<compile_context>
chip_gen: v7x
topology: tpu7x:2x2x1
jax: 0.10.0
libtpu: 0.0.40
codegen_flags: <defaults>
</compile_context>

<pallas_src>
import jax
import jax.numpy as jnp
from jax import lax
from jax.experimental import pallas as pl
from jax.experimental.pallas import tpu as pltpu

BN_EPS = 1e-5


# ---------------------------------------------------------------------------
# Fused  BN->ReLU->conv  ->  (folded BN)->ReLU->conv  Pallas kernel
# ---------------------------------------------------------------------------
def _zero_border(ref, pad, H, W):
    """Zero only the halo border of a (C, H+2p, W+2p) scratch ref."""
    if pad == 0:
        return
    C, Hp, Wp = ref.shape
    ref[:, 0:pad, :] = jnp.zeros((C, pad, Wp), ref.dtype)
    ref[:, pad + H:, :] = jnp.zeros((C, Hp - (pad + H), Wp), ref.dtype)
    ref[:, :, 0:pad] = jnp.zeros((C, Hp, pad), ref.dtype)
    ref[:, :, pad + W:] = jnp.zeros((C, Hp, Wp - (pad + W)), ref.dtype)


def _im2col_t(pad_ref, K, H, W, C):
    """(C, H+2p, W+2p) bf16 scratch -> transposed patch matrix (K*K*C, H*W) bf16."""
    rows = []
    for ky in range(K):
        for kx in range(K):
            rows.append(pad_ref[:, ky:ky + H, kx:kx + W].reshape(C, H * W))
    return jnp.concatenate(rows, axis=0)


def _make_convdown_kernel(K, H, W, Cin, Cout):
    pad = K // 2

    def kernel(x_ref, s0_ref, sh0_ref, w0_ref, sh1_ref, w1_ref, b1_ref,
               o_ref, pad0_scr, pad1_scr):
        # Only the halo border needs (re)initialisation; the interior is fully
        # overwritten every step.  Done per-iteration so the kernel is correct
        # regardless of how the "parallel" batch axis is sharded across cores.
        _zero_border(pad0_scr, pad, H, W)
        _zero_border(pad1_scr, pad, H, W)

        # ---- stage 0: BN0(eval, folded) -> ReLU, channel-major (NCHW) ----
        x = x_ref[0].astype(jnp.float32)                        # (Cin, H, W)
        s0 = s0_ref[...].reshape(Cin, 1, 1)
        sh0 = sh0_ref[...].reshape(Cin, 1, 1)
        t0 = jnp.maximum(x * s0 + sh0, 0.0)
        pad0_scr[:, pad:pad + H, pad:pad + W] = t0.astype(pad0_scr.dtype)

        # ---- conv0 (BN1 scale pre-folded into weights): one MXU matmul ----
        col0 = _im2col_t(pad0_scr, K, H, W, Cin)                 # (K*K*Cin, H*W) bf16
        y = jnp.dot(w0_ref[...], col0,                           # (Cout, H*W) f32
                    preferred_element_type=jnp.float32)

        # ---- stage 1: fused (b0*scale1 + shift1) add -> ReLU (lane-dense) ----
        t1 = jnp.maximum(y + sh1_ref[...], 0.0)                  # (Cout, H*W)
        pad1_scr[:, pad:pad + H, pad:pad + W] = (
            t1.reshape(Cout, H, W).astype(pad1_scr.dtype))

        # ---- conv1: one MXU matmul; lane-dense (Cout, H*W) output store ----
        col1 = _im2col_t(pad1_scr, K, H, W, Cout)                # (K*K*Cout, H*W) bf16
        out = jnp.dot(w1_ref[...], col1,
                      preferred_element_type=jnp.float32) + b1_ref[...]
        o_ref[0] = out.astype(o_ref.dtype)                        # minor dim H*W (256)

    return kernel


def convdown_pallas(x_nchw, p):
    """x_nchw: (N, Cin, H, W) float32 -> (N, Cout, H, W) float32."""
    N, Cin, H, W = x_nchw.shape
    K = p['w0'].shape[0]
    Cout = p['w0'].shape[-1]
    pad = K // 2

    # ---- host-side parameter prep ----
    # Fold BN1 scale and the conv0 bias into conv0:
    #   bn1(conv0(t) + b0) = conv0_{w0*s1}(t) + (b0*s1 + shift1)
    s1 = p['scale1'].astype(jnp.float32)
    w0f = p['w0'].astype(jnp.float32) * s1[None, None, None, :]
    sh1p = p['b0'].astype(jnp.float32) * s1 + p['shift1'].astype(jnp.float32)

    # bf16 at the HBM / MXU boundary; transposed-im2col weight layout (Cout, K*K*C).
    w0t = jnp.transpose(w0f.astype(jnp.bfloat16), (3, 0, 1, 2)).reshape(Cout, K * K * Cin)
    w1t = jnp.transpose(p['w1'].astype(jnp.bfloat16), (3, 0, 1, 2)).reshape(Cout, K * K * Cout)

    x_bf16 = x_nchw.astype(jnp.bfloat16)
    s0 = p['scale0'].reshape(Cin, 1).astype(jnp.float32)
    sh0 = p['shift0'].reshape(Cin, 1).astype(jnp.float32)
    sh1 = sh1p.reshape(Cout, 1)
    b1 = p['b1'].reshape(Cout, 1).astype(jnp.float32)

    # NOTE: the output store is unmasked/lane-dense when (H*W) % 128 == 0 (true for the
    # demo 16*16=256); other shapes still run correctly via masked partial stores.
    flops = 2 * N * H * W * K * K * (Cin * Cout + Cout * Cout)
    bytes_accessed = (x_bf16.size * 2 + N * Cout * H * W * 4
                      + (w0t.size + w1t.size) * 2 + (2 * Cin + 3 * Cout) * 4)

    kernel = _make_convdown_kernel(K, H, W, Cin, Cout)
    out = pl.pallas_call(
        kernel,
        out_shape=jax.ShapeDtypeStruct((N, Cout, H * W), jnp.float32),
        grid_spec=pltpu.PrefetchScalarGridSpec(
            num_scalar_prefetch=0,
            grid=(N,),
            in_specs=[
                pl.BlockSpec((1, Cin, H, W), lambda n: (n, 0, 0, 0)),    # x (NCHW)
                pl.BlockSpec((Cin, 1), lambda n: (0, 0)),                # scale0
                pl.BlockSpec((Cin, 1), lambda n: (0, 0)),                # shift0
                pl.BlockSpec((Cout, K * K * Cin), lambda n: (0, 0)),     # w0^T (BN1-folded)
                pl.BlockSpec((Cout, 1), lambda n: (0, 0)),               # b0*s1 + shift1
                pl.BlockSpec((Cout, K * K * Cout), lambda n: (0, 0)),    # w1^T
                pl.BlockSpec((Cout, 1), lambda n: (0, 0)),               # b1
            ],
            out_specs=pl.BlockSpec((1, Cout, H * W), lambda n: (n, 0, 0)),
            scratch_shapes=[
                pltpu.VMEM((Cin, H + 2 * pad, W + 2 * pad), jnp.bfloat16),
                pltpu.VMEM((Cout, H + 2 * pad, W + 2 * pad), jnp.bfloat16),
            ],
        ),
        compiler_params=pltpu.CompilerParams(
            dimension_semantics=("parallel",),
            vmem_limit_bytes=32 * 1024 * 1024),
        cost_estimate=pl.CostEstimate(
            flops=flops, transcendentals=0, bytes_accessed=bytes_accessed),
    )(x_bf16, s0, sh0, w0t, sh1, w1t, b1)
    return out.reshape(N, Cout, H, W)


# ---------------------------------------------------------------------------
# Pure-JAX reference (same math, same folding + bf16 MXU operand quantization)
# ---------------------------------------------------------------------------
def convdown_ref(x_nchw, p):
    K = p['w0'].shape[0]
    pad = K // 2
    s1 = p['scale1'].astype(jnp.float32)
    w0f = (p['w0'].astype(jnp.float32) * s1[None, None, None, :]).astype(jnp.bfloat16)
    sh1p = p['b0'].astype(jnp.float32) * s1 + p['shift1'].astype(jnp.float32)

    x = x_nchw.astype(jnp.bfloat16).astype(jnp.float32)
    t0 = jnp.maximum(x * p['scale0'][None, :, None, None]
                     + p['shift0'][None, :, None, None], 0.0)
    y = lax.conv_general_dilated(
        t0.astype(jnp.bfloat16), w0f, window_strides=(1, 1),
        padding=[(pad, pad)] * 2,
        dimension_numbers=('NCHW', 'HWIO', 'NCHW'),
        preferred_element_type=jnp.float32)
    t1 = jnp.maximum(y + sh1p[None, :, None, None], 0.0)
    out = lax.conv_general_dilated(
        t1.astype(jnp.bfloat16), p['w1'].astype(jnp.bfloat16),
        window_strides=(1, 1), padding=[(pad, pad)] * 2,
        dimension_numbers=('NCHW', 'HWIO', 'NCHW'),
        preferred_element_type=jnp.float32) + p['b1'][None, :, None, None]
    return out


# ---------------------------------------------------------------------------
# Deterministic parameter initialization (shapes from the module __init__)
# ---------------------------------------------------------------------------
def _init_bn(key, C):
    k1, k2, k3, k4 = jax.random.split(key, 4)
    gamma = 1.0 + 0.1 * jax.random.normal(k1, (C,), jnp.float32)
    beta = 0.1 * jax.random.normal(k2, (C,), jnp.float32)
    running_mean = 0.1 * jax.random.normal(k3, (C,), jnp.float32)
    running_var = 1.0 + 0.1 * jax.random.uniform(k4, (C,), jnp.float32)
    scale = gamma / jnp.sqrt(running_var + BN_EPS)
    shift = beta - running_mean * scale
    return scale, shift


def _init_conv(key, K, Cin, Cout):
    k1, k2 = jax.random.split(key)
    bound = 1.0 / (Cin * K * K) ** 0.5
    w = jax.random.uniform(k1, (K, K, Cin, Cout), jnp.float32, -bound, bound)
    b = jax.random.uniform(k2, (Cout,), jnp.float32, -bound, bound)
    return w, b


def init_convdown(key, Cin, Cout, K):
    k0, k1, k2, k3 = jax.random.split(key, 4)
    s0, t0 = _init_bn(k0, Cin)
    w0, b0 = _init_conv(k1, K, Cin, Cout)
    s1, t1 = _init_bn(k2, Cout)
    w1, b1 = _init_conv(k3, K, Cout, Cout)
    return dict(scale0=s0, shift0=t0, w0=w0, b0=b0,
                scale1=s1, shift1=t1, w1=w1, b1=b1)


if __name__ == "__main__":
    # convdown(in_channels=4, out_channels=16, sz=3, dim=2)
    N, Cin, H, W = 2, 4, 16, 16
    Cout, K = 16, 3

    root = jax.random.PRNGKey(0)
    kp, kx = jax.random.split(root)
    params = init_convdown(kp, Cin, Cout, K)

    # input / output stay in the PyTorch NCHW convention (kernel is channel-major)
    x_nchw = jax.random.normal(kx, (N, Cin, H, W), jnp.float32)

    out = convdown_pallas(x_nchw, params)
    jax.block_until_ready(out)

    # correctness check against pure-JAX reference
    ref = convdown_ref(x_nchw, params)
    assert out.shape == (N, Cout, H, W), out.shape
    max_err = float(jnp.max(jnp.abs(out - ref)))
    assert max_err < 1e-2, f"mismatch vs reference: {max_err}"

    print("KERNEL_OK")
</pallas_src>

<mosaic_0001>
module attributes {stable_mosaic.version = 11 : i64} {
  func.func @kernel(%arg0: i32, %arg1: memref<1x4x16x16xbf16, #tpu.memory_space<vmem>>, %arg2: memref<4x1xf32, #tpu.memory_space<vmem>>, %arg3: memref<4x1xf32, #tpu.memory_space<vmem>>, %arg4: memref<16x36xbf16, #tpu.memory_space<vmem>>, %arg5: memref<16x1xf32, #tpu.memory_space<vmem>>, %arg6: memref<16x144xbf16, #tpu.memory_space<vmem>>, %arg7: memref<16x1xf32, #tpu.memory_space<vmem>>, %arg8: memref<1x16x256xf32, #tpu.memory_space<vmem>>, %arg9: memref<4x18x18xbf16, #tpu.memory_space<vmem>>, %arg10: memref<16x18x18xbf16, #tpu.memory_space<vmem>>) attributes {dimension_semantics = [#tpu.dimension_semantics<parallel>], iteration_bounds = array<i64: 2>, scalar_prefetch = 0 : i64, scratch_operands = 2 : i64, tpu.core_type = #tpu.core_type<tc>, window_params = [{transform_indices = @transform_0, window_bounds = array<i64: 1, 4, 16, 16>}, {pipeline_mode = #tpu.pipeline_mode<synchronous>, transform_indices = @transform_1, window_bounds = array<i64: 4, 1>}, {pipeline_mode = #tpu.pipeline_mode<synchronous>, transform_indices = @transform_2, window_bounds = array<i64: 4, 1>}, {pipeline_mode = #tpu.pipeline_mode<synchronous>, transform_indices = @transform_3, window_bounds = array<i64: 16, 36>}, {pipeline_mode = #tpu.pipeline_mode<synchronous>, transform_indices = @transform_4, window_bounds = array<i64: 16, 1>}, {pipeline_mode = #tpu.pipeline_mode<synchronous>, transform_indices = @transform_5, window_bounds = array<i64: 16, 144>}, {pipeline_mode = #tpu.pipeline_mode<synchronous>, transform_indices = @transform_6, window_bounds = array<i64: 16, 1>}, {transform_indices = @transform_7, window_bounds = array<i64: 1, 16, 256>}]} {
    %cst = arith.constant 0.000000e+00 : bf16
    %0 = vector.broadcast %cst : bf16 to vector<4x1x18xbf16>
    %c0 = arith.constant 0 : index
    %c0_0 = arith.constant 0 : index
    %c0_1 = arith.constant 0 : index
    %1 = vector.load %arg9[%c0, %c0_0, %c0_1] : memref<4x18x18xbf16, #tpu.memory_space<vmem>>, vector<4x1x18xbf16>
    tpu.vector_store %arg9[%c0, %c0_0, %c0_1], %0 {strides = array<i32>} : memref<4x18x18xbf16, #tpu.memory_space<vmem>>, vector<4x1x18xbf16>,
    %cst_2 = arith.constant 0.000000e+00 : bf16
    %2 = vector.broadcast %cst_2 : bf16 to vector<4x1x18xbf16>
    %c0_3 = arith.constant 0 : index
    %c17 = arith.constant 17 : index
    %c0_4 = arith.constant 0 : index
    %3 = vector.load %arg9[%c0_3, %c17, %c0_4] : memref<4x18x18xbf16, #tpu.memory_space<vmem>>, vector<4x1x18xbf16>
    tpu.vector_store %arg9[%c0_3, %c17, %c0_4], %2 {strides = array<i32>} : memref<4x18x18xbf16, #tpu.memory_space<vmem>>, vector<4x1x18xbf16>,
    %cst_5 = arith.constant 0.000000e+00 : bf16
    %4 = vector.broadcast %cst_5 : bf16 to vector<4x18x1xbf16>
    %c0_6 = arith.constant 0 : index
    %c0_7 = arith.constant 0 : index
    %c0_8 = arith.constant 0 : index
    %5 = vector.load %arg9[%c0_6, %c0_7, %c0_8] : memref<4x18x18xbf16, #tpu.memory_space<vmem>>, vector<4x18x1xbf16>
    tpu.vector_store %arg9[%c0_6, %c0_7, %c0_8], %4 {strides = array<i32>} : memref<4x18x18xbf16, #tpu.memory_space<vmem>>, vector<4x18x1xbf16>,
    %cst_9 = arith.constant 0.000000e+00 : bf16
    %6 = vector.broadcast %cst_9 : bf16 to vector<4x18x1xbf16>
    %c0_10 = arith.constant 0 : index
    %c0_11 = arith.constant 0 : index
    %c17_12 = arith.constant 17 : index
    %7 = vector.load %arg9[%c0_10, %c0_11, %c17_12] : memref<4x18x18xbf16, #tpu.memory_space<vmem>>, vector<4x18x1xbf16>
    tpu.vector_store %arg9[%c0_10, %c0_11, %c17_12], %6 {strides = array<i32>} : memref<4x18x18xbf16, #tpu.memory_space<vmem>>, vector<4x18x1xbf16>,
    %cst_13 = arith.constant 0.000000e+00 : bf16
    %8 = vector.broadcast %cst_13 : bf16 to vector<16x1x18xbf16>
    %c0_14 = arith.constant 0 : index
    %c0_15 = arith.constant 0 : index
    %c0_16 = arith.constant 0 : index
    %9 = vector.load %arg10[%c0_14, %c0_15, %c0_16] : memref<16x18x18xbf16, #tpu.memory_space<vmem>>, vector<16x1x18xbf16>
    tpu.vector_store %arg10[%c0_14, %c0_15, %c0_16], %8 {strides = array<i32>} : memref<16x18x18xbf16, #tpu.memory_space<vmem>>, vector<16x1x18xbf16>,
    %cst_17 = arith.constant 0.000000e+00 : bf16
    %10 = vector.broadcast %cst_17 : bf16 to vector<16x1x18xbf16>
    %c0_18 = arith.constant 0 : index
    %c17_19 = arith.constant 17 : index
    %c0_20 = arith.constant 0 : index
    %11 = vector.load %arg10[%c0_18, %c17_19, %c0_20] : memref<16x18x18xbf16, #tpu.memory_space<vmem>>, vector<16x1x18xbf16>
    tpu.vector_store %arg10[%c0_18, %c17_19, %c0_20], %10 {strides = array<i32>} : memref<16x18x18xbf16, #tpu.memory_space<vmem>>, vector<16x1x18xbf16>,
    %cst_21 = arith.constant 0.000000e+00 : bf16
    %12 = vector.broadcast %cst_21 : bf16 to vector<16x18x1xbf16>
    %c0_22 = arith.constant 0 : index
    %c0_23 = arith.constant 0 : index
    %c0_24 = arith.constant 0 : index
    %13 = vector.load %arg10[%c0_22, %c0_23, %c0_24] : memref<16x18x18xbf16, #tpu.memory_space<vmem>>, vector<16x18x1xbf16>
    tpu.vector_store %arg10[%c0_22, %c0_23, %c0_24], %12 {strides = array<i32>} : memref<16x18x18xbf16, #tpu.memory_space<vmem>>, vector<16x18x1xbf16>,
    %cst_25 = arith.constant 0.000000e+00 : bf16
    %14 = vector.broadcast %cst_25 : bf16 to vector<16x18x1xbf16>
    %c0_26 = arith.constant 0 : index
    %c0_27 = arith.constant 0 : index
    %c17_28 = arith.constant 17 : index
    %15 = vector.load %arg10[%c0_26, %c0_27, %c17_28] : memref<16x18x18xbf16, #tpu.memory_space<vmem>>, vector<16x18x1xbf16>
    tpu.vector_store %arg10[%c0_26, %c0_27, %c17_28], %14 {strides = array<i32>} : memref<16x18x18xbf16, #tpu.memory_space<vmem>>, vector<16x18x1xbf16>,
    %c0_29 = arith.constant 0 : index
    %c0_30 = arith.constant 0 : index
    %c0_31 = arith.constant 0 : index
    %c0_32 = arith.constant 0 : index
    %16 = vector.load %arg1[%c0_29, %c0_30, %c0_31, %c0_32] : memref<1x4x16x16xbf16, #tpu.memory_space<vmem>>, vector<1x4x16x16xbf16>
    %17 = vector.shape_cast %16 : vector<1x4x16x16xbf16> to vector<4x16x16xbf16>
    %18 = arith.extf %17 : vector<4x16x16xbf16> to vector<4x16x16xf32>
    %c0_33 = arith.constant 0 : index
    %c0_34 = arith.constant 0 : index
    %19 = vector.load %arg2[%c0_33, %c0_34] : memref<4x1xf32, #tpu.memory_space<vmem>>, vector<4x1xf32>
    %20 = vector.shape_cast %19 : vector<4x1xf32> to vector<4x1x1xf32>
    %c0_35 = arith.constant 0 : index
    %c0_36 = arith.constant 0 : index
    %21 = vector.load %arg3[%c0_35, %c0_36] : memref<4x1xf32, #tpu.memory_space<vmem>>, vector<4x1xf32>
    %22 = vector.shape_cast %21 : vector<4x1xf32> to vector<4x1x1xf32>
    %23 = vector.broadcast %20 : vector<4x1x1xf32> to vector<4x16x16xf32>
    %24 = arith.mulf %18, %23 : vector<4x16x16xf32>
    %25 = vector.broadcast %22 : vector<4x1x1xf32> to vector<4x16x16xf32>
    %26 = arith.addf %24, %25 : vector<4x16x16xf32>
    %cst_37 = arith.constant 0.000000e+00 : f32
    %27 = vector.broadcast %cst_37 : f32 to vector<4x16x16xf32>
    %28 = arith.maximumf %26, %27 : vector<4x16x16xf32>
    %29 = arith.truncf %28 : vector<4x16x16xf32> to vector<4x16x16xbf16>
    %c0_38 = arith.constant 0 : index
    %c1 = arith.constant 1 : index
    %c1_39 = arith.constant 1 : index
    %30 = vector.load %arg9[%c0_38, %c1, %c1_39] : memref<4x18x18xbf16, #tpu.memory_space<vmem>>, vector<4x16x16xbf16>
    tpu.vector_store %arg9[%c0_38, %c1, %c1_39], %29 {strides = array<i32>} : memref<4x18x18xbf16, #tpu.memory_space<vmem>>, vector<4x16x16xbf16>,
    %c0_40 = arith.constant 0 : index
    %c0_41 = arith.constant 0 : index
    %c0_42 = arith.constant 0 : index
    %31 = vector.load %arg9[%c0_40, %c0_41, %c0_42] : memref<4x18x18xbf16, #tpu.memory_space<vmem>>, vector<4x16x16xbf16>
    %32 = vector.shape_cast %31 : vector<4x16x16xbf16> to vector<4x256xbf16>
    %c0_43 = arith.constant 0 : index
    %c0_44 = arith.constant 0 : index
    %c1_45 = arith.constant 1 : index
    %33 = vector.load %arg9[%c0_43, %c0_44, %c1_45] : memref<4x18x18xbf16, #tpu.memory_space<vmem>>, vector<4x16x16xbf16>
    %34 = vector.shape_cast %33 : vector<4x16x16xbf16> to vector<4x256xbf16>
    %c0_46 = arith.constant 0 : index
    %c0_47 = arith.constant 0 : index
    %c2 = arith.constant 2 : index
    %35 = vector.load %arg9[%c0_46, %c0_47, %c2] : memref<4x18x18xbf16, #tpu.memory_space<vmem>>, vector<4x16x16xbf16>
    %36 = vector.shape_cast %35 : vector<4x16x16xbf16> to vector<4x256xbf16>
    %c0_48 = arith.constant 0 : index
    %c1_49 = arith.constant 1 : index
    %c0_50 = arith.constant 0 : index
    %37 = vector.load %arg9[%c0_48, %c1_49, %c0_50] : memref<4x18x18xbf16, #tpu.memory_space<vmem>>, vector<4x16x16xbf16>
    %38 = vector.shape_cast %37 : vector<4x16x16xbf16> to vector<4x256xbf16>
    %c0_51 = arith.constant 0 : index
    %c1_52 = arith.constant 1 : index
    %c1_53 = arith.constant 1 : index
    %39 = vector.load %arg9[%c0_51, %c1_52, %c1_53] : memref<4x18x18xbf16, #tpu.memory_space<vmem>>, vector<4x16x16xbf16>
    %40 = vector.shape_cast %39 : vector<4x16x16xbf16> to vector<4x256xbf16>
    %c0_54 = arith.constant 0 : index
    %c1_55 = arith.constant 1 : index
    %c2_56 = arith.constant 2 : index
    %41 = vector.load %arg9[%c0_54, %c1_55, %c2_56] : memref<4x18x18xbf16, #tpu.memory_space<vmem>>, vector<4x16x16xbf16>
    %42 = vector.shape_cast %41 : vector<4x16x16xbf16> to vector<4x256xbf16>
    %c0_57 = arith.constant 0 : index
    %c2_58 = arith.constant 2 : index
    %c0_59 = arith.constant 0 : index
    %43 = vector.load %arg9[%c0_57, %c2_58, %c0_59] : memref<4x18x18xbf16, #tpu.memory_space<vmem>>, vector<4x16x16xbf16>
    %44 = vector.shape_cast %43 : vector<4x16x16xbf16> to vector<4x256xbf16>
    %c0_60 = arith.constant 0 : index
    %c2_61 = arith.constant 2 : index
    %c1_62 = arith.constant 1 : index
    %45 = vector.load %arg9[%c0_60, %c2_61, %c1_62] : memref<4x18x18xbf16, #tpu.memory_space<vmem>>, vector<4x16x16xbf16>
    %46 = vector.shape_cast %45 : vector<4x16x16xbf16> to vector<4x256xbf16>
    %c0_63 = arith.constant 0 : index
    %c2_64 = arith.constant 2 : index
    %c2_65 = arith.constant 2 : index
    %47 = vector.load %arg9[%c0_63, %c2_64, %c2_65] : memref<4x18x18xbf16, #tpu.memory_space<vmem>>, vector<4x16x16xbf16>
    %48 = vector.shape_cast %47 : vector<4x16x16xbf16> to vector<4x256xbf16>
    %49 = tpu.concatenate %32, %34, %36, %38, %40, %42, %44, %46, %48 in 0 : vector<4x256xbf16>, vector<4x256xbf16>, vector<4x256xbf16>, vector<4x256xbf16>, vector<4x256xbf16>, vector<4x256xbf16>, vector<4x256xbf16>, vector<4x256xbf16>, vector<4x256xbf16> -> vector<36x256xbf16>
    %c0_66 = arith.constant 0 : index
    %c0_67 = arith.constant 0 : index
    %50 = vector.load %arg4[%c0_66, %c0_67] : memref<16x36xbf16, #tpu.memory_space<vmem>>, vector<16x36xbf16>
    %cst_68 = arith.constant dense<0.000000e+00> : vector<16x256xf32>
    %51 = tpu.matmul %50, %49, %cst_68 {dimension_numbers = #tpu.dot_dimension_numbers<[1], [0], [0], [1], [0, 0, 1, 1], [], []>} : vector<16x36xbf16>, vector<36x256xbf16>, vector<16x256xf32> -> vector<16x256xf32>
    %c0_69 = arith.constant 0 : index
    %c0_70 = arith.constant 0 : index
    %52 = vector.load %arg5[%c0_69, %c0_70] : memref<16x1xf32, #tpu.memory_space<vmem>>, vector<16x1xf32>
    %53 = vector.broadcast %52 : vector<16x1xf32> to vector<16x256xf32>
    %54 = arith.addf %51, %53 : vector<16x256xf32>
    %cst_71 = arith.constant 0.000000e+00 : f32
    %55 = vector.broadcast %cst_71 : f32 to vector<16x256xf32>
    %56 = arith.maximumf %54, %55 : vector<16x256xf32>
    %57 = vector.shape_cast %56 : vector<16x256xf32> to vector<16x16x16xf32>
    %58 = arith.truncf %57 : vector<16x16x16xf32> to vector<16x16x16xbf16>
    %c0_72 = arith.constant 0 : index
    %c1_73 = arith.constant 1 : index
    %c1_74 = arith.constant 1 : index
    %59 = vector.load %arg10[%c0_72, %c1_73, %c1_74] : memref<16x18x18xbf16, #tpu.memory_space<vmem>>, vector<16x16x16xbf16>
    tpu.vector_store %arg10[%c0_72, %c1_73, %c1_74], %58 {strides = array<i32>} : memref<16x18x18xbf16, #tpu.memory_space<vmem>>, vector<16x16x16xbf16>,
    %c0_75 = arith.constant 0 : index
    %c0_76 = arith.constant 0 : index
    %c0_77 = arith.constant 0 : index
    %60 = vector.load %arg10[%c0_75, %c0_76, %c0_77] : memref<16x18x18xbf16, #tpu.memory_space<vmem>>, vector<16x16x16xbf16>
    %61 = vector.shape_cast %60 : vector<16x16x16xbf16> to vector<16x256xbf16>
    %c0_78 = arith.constant 0 : index
    %c0_79 = arith.constant 0 : index
    %c1_80 = arith.constant 1 : index
    %62 = vector.load %arg10[%c0_78, %c0_79, %c1_80] : memref<16x18x18xbf16, #tpu.memory_space<vmem>>, vector<16x16x16xbf16>
    %63 = vector.shape_cast %62 : vector<16x16x16xbf16> to vector<16x256xbf16>
    %c0_81 = arith.constant 0 : index
    %c0_82 = arith.constant 0 : index
    %c2_83 = arith.constant 2 : index
    %64 = vector.load %arg10[%c0_81, %c0_82, %c2_83] : memref<16x18x18xbf16, #tpu.memory_space<vmem>>, vector<16x16x16xbf16>
    %65 = vector.shape_cast %64 : vector<16x16x16xbf16> to vector<16x256xbf16>
    %c0_84 = arith.constant 0 : index
    %c1_85 = arith.constant 1 : index
    %c0_86 = arith.constant 0 : index
    %66 = vector.load %arg10[%c0_84, %c1_85, %c0_86] : memref<16x18x18xbf16, #tpu.memory_space<vmem>>, vector<16x16x16xbf16>
    %67 = vector.shape_cast %66 : vector<16x16x16xbf16> to vector<16x256xbf16>
    %c0_87 = arith.constant 0 : index
    %c1_88 = arith.constant 1 : index
    %c1_89 = arith.constant 1 : index
    %68 = vector.load %arg10[%c0_87, %c1_88, %c1_89] : memref<16x18x18xbf16, #tpu.memory_space<vmem>>, vector<16x16x16xbf16>
    %69 = vector.shape_cast %68 : vector<16x16x16xbf16> to vector<16x256xbf16>
    %c0_90 = arith.constant 0 : index
    %c1_91 = arith.constant 1 : index
    %c2_92 = arith.constant 2 : index
    %70 = vector.load %arg10[%c0_90, %c1_91, %c2_92] : memref<16x18x18xbf16, #tpu.memory_space<vmem>>, vector<16x16x16xbf16>
    %71 = vector.shape_cast %70 : vector<16x16x16xbf16> to vector<16x256xbf16>
    %c0_93 = arith.constant 0 : index
    %c2_94 = arith.constant 2 : index
    %c0_95 = arith.constant 0 : index
    %72 = vector.load %arg10[%c0_93, %c2_94, %c0_95] : memref<16x18x18xbf16, #tpu.memory_space<vmem>>, vector<16x16x16xbf16>
    %73 = vector.shape_cast %72 : vector<16x16x16xbf16> to vector<16x256xbf16>
    %c0_96 = arith.constant 0 : index
    %c2_97 = arith.constant 2 : index
    %c1_98 = arith.constant 1 : index
    %74 = vector.load %arg10[%c0_96, %c2_97, %c1_98] : memref<16x18x18xbf16, #tpu.memory_space<vmem>>, vector<16x16x16xbf16>
    %75 = vector.shape_cast %74 : vector<16x16x16xbf16> to vector<16x256xbf16>
    %c0_99 = arith.constant 0 : index
    %c2_100 = arith.constant 2 : index
    %c2_101 = arith.constant 2 : index
    %76 = vector.load %arg10[%c0_99, %c2_100, %c2_101] : memref<16x18x18xbf16, #tpu.memory_space<vmem>>, vector<16x16x16xbf16>
    %77 = vector.shape_cast %76 : vector<16x16x16xbf16> to vector<16x256xbf16>
    %78 = tpu.concatenate %61, %63, %65, %67, %69, %71, %73, %75, %77 in 0 : vector<16x256xbf16>, vector<16x256xbf16>, vector<16x256xbf16>, vector<16x256xbf16>, vector<16x256xbf16>, vector<16x256xbf16>, vector<16x256xbf16>, vector<16x256xbf16>, vector<16x256xbf16> -> vector<144x256xbf16>
    %c0_102 = arith.constant 0 : index
    %c0_103 = arith.constant 0 : index
    %79 = vector.load %arg6[%c0_102, %c0_103] : memref<16x144xbf16, #tpu.memory_space<vmem>>, vector<16x144xbf16>
    %cst_104 = arith.constant dense<0.000000e+00> : vector<16x256xf32>
    %80 = tpu.matmul %79, %78, %cst_104 {dimension_numbers = #tpu.dot_dimension_numbers<[1], [0], [0], [1], [0, 0, 1, 1], [], []>} : vector<16x144xbf16>, vector<144x256xbf16>, vector<16x256xf32> -> vector<16x256xf32>
    %c0_105 = arith.constant 0 : index
    %c0_106 = arith.constant 0 : index
    %81 = vector.load %arg7[%c0_105, %c0_106] : memref<16x1xf32, #tpu.memory_space<vmem>>, vector<16x1xf32>
    %82 = vector.broadcast %81 : vector<16x1xf32> to vector<16x256xf32>
    %83 = arith.addf %80, %82 : vector<16x256xf32>
    %c0_107 = arith.constant 0 : index
    %c0_108 = arith.constant 0 : index
    %c0_109 = arith.constant 0 : index
    %84 = vector.load %arg8[%c0_107, %c0_108, %c0_109] : memref<1x16x256xf32, #tpu.memory_space<vmem>>, vector<1x16x256xf32>
    %85 = vector.shape_cast %84 : vector<1x16x256xf32> to vector<16x256xf32>
    %86 = vector.shape_cast %83 : vector<16x256xf32> to vector<1x16x256xf32>
    tpu.vector_store %arg8[%c0_107, %c0_108, %c0_109], %86 {strides = array<i32>} : memref<1x16x256xf32, #tpu.memory_space<vmem>>, vector<1x16x256xf32>,
    return
  }
  func.func @transform_0(%arg0: i32) -> (i32, i32, i32, i32) {
    %c0_i32 = arith.constant 0 : i32
    %c0_i32_0 = arith.constant 0 : i32
    %c0_i32_1 = arith.constant 0 : i32
    %c0_i32_2 = arith.constant 0 : i32
    return %arg0, %c0_i32, %c0_i32_0, %c0_i32_1 : i32, i32, i32, i32
  }
  func.func @transform_1(%arg0: i32) -> (i32, i32) {
    %c0_i32 = arith.constant 0 : i32
    %c0_i32_0 = arith.constant 0 : i32
    %c0_i32_1 = arith.constant 0 : i32
    return %c0_i32, %c0_i32_0 : i32, i32
  }
  func.func @transform_2(%arg0: i32) -> (i32, i32) {
    %c0_i32 = arith.constant 0 : i32
    %c0_i32_0 = arith.constant 0 : i32
    %c0_i32_1 = arith.constant 0 : i32
    return %c0_i32, %c0_i32_0 : i32, i32
  }
  func.func @transform_3(%arg0: i32) -> (i32, i32) {
    %c0_i32 = arith.constant 0 : i32
    %c0_i32_0 = arith.constant 0 : i32
    %c0_i32_1 = arith.constant 0 : i32
    return %c0_i32, %c0_i32_0 : i32, i32
  }
  func.func @transform_4(%arg0: i32) -> (i32, i32) {
    %c0_i32 = arith.constant 0 : i32
    %c0_i32_0 = arith.constant 0 : i32
    %c0_i32_1 = arith.constant 0 : i32
    return %c0_i32, %c0_i32_0 : i32, i32
  }
  func.func @transform_5(%arg0: i32) -> (i32, i32) {
    %c0_i32 = arith.constant 0 : i32
    %c0_i32_0 = arith.constant 0 : i32
    %c0_i32_1 = arith.constant 0 : i32
    return %c0_i32, %c0_i32_0 : i32, i32
  }
  func.func @transform_6(%arg0: i32) -> (i32, i32) {
    %c0_i32 = arith.constant 0 : i32
    %c0_i32_0 = arith.constant 0 : i32
    %c0_i32_1 = arith.constant 0 : i32
    return %c0_i32, %c0_i32_0 : i32, i32
  }
  func.func @transform_7(%arg0: i32) -> (i32, i32, i32) {
    %c0_i32 = arith.constant 0 : i32
    %c0_i32_0 = arith.constant 0 : i32
    %c0_i32_1 = arith.constant 0 : i32
    return %arg0, %c0_i32, %c0_i32_0 : i32, i32, i32
  }
}

</mosaic_0001>

<llo_original>
// kernel: tpu_custom_call.1
$region0: #{tpu_custom_call.1}
  #allocation0 [shape = 'u32[]', space=smem, size = 0x4, offset = 0x4, fixed_abs, tag = 'smem constant byte address 0x4 - core index']
  #allocation1 [shape = 'u32[144,128]{1,0:T(1,128)}', space=vmem, size = 0x12000, scoped, tag = 'internal scratch']
  #allocation2 [shape = 'bf16[4,18,18]{2,1,0:T(8,128)(2,1)}', space=vmem, size = 0x6000, scoped, tag = 'scratch operand']
  #allocation3 [shape = 'bf16[16,18,18]{2,1,0:T(8,128)(2,1)}', space=vmem, size = 0x18000, scoped, tag = 'scratch operand']
  %s0 = inlined_call_operand.hbm [shape: bf16[2,4,16,16], index: 0, kind: input, shape index: {}]
  %s1 = inlined_call_operand.vmem [shape: f32[4,1], index: 1, kind: input, shape index: {}]
  %s2 = inlined_call_operand.vmem [shape: f32[4,1], index: 2, kind: input, shape index: {}]
  %s3 = inlined_call_operand.vmem [shape: bf16[16,36], index: 3, kind: input, shape index: {}]
  %s4 = inlined_call_operand.vmem [shape: f32[16,1], index: 4, kind: input, shape index: {}]
  %s5 = inlined_call_operand.vmem [shape: bf16[16,144], index: 5, kind: input, shape index: {}]
  %s6 = inlined_call_operand.vmem [shape: f32[16,1], index: 6, kind: input, shape index: {}]
  %s7 = inlined_call_operand.hbm [shape: f32[2,16,256], index: 7, kind: output, shape index: {}]
  %s8 = sld [smem:[#allocation0]]
  $region65: #{tpu_custom_call.1} parent=0
    _
  %s10 = ssub.s32 1, %s8
  %s11 = scalar_select 0, %s10, %s8
  $region1: #{tpu_custom_call.1} parent=0
    #allocation4 [shape = 'u8[32768]{0}', space=vmem, size = 0x8000, scoped, tag = 'input window, operand 0']
    #allocation5 [shape = 's32[2]{0}', space=sflag, size = 0x8, scoped, tag = 'scoped memory for tpu_custom_call.1']
    #allocation6 [shape = 's32[2]{0}', space=sflag, size = 0x8, scoped, tag = 'scoped memory for tpu_custom_call.1']
    #allocation7 [shape = 'u8[32768]{0}', space=vmem, size = 0x8000, scoped, tag = 'output window, operand 0']
    %12 = vsyncpa [#allocation5], 0
    %s13 = scalar_lea.sflag [#allocation5], 1
    %14 = vsyncpa %s13, 0
    %15 = vsyncpa [#allocation6], 0
    %s16 = scalar_lea.sflag [#allocation6], 1
    %17 = vsyncpa %s16, 0
    loop: start=0, step=1, limit=4
    $region2: #{tpu_custom_call.1} parent=1 // loop_pre_header
      _
    $region3: #{tpu_custom_call.1} parent=1 // loop_header
      %s19 = sphi 0, %s23
      %p20 = scmp.ge.s32.totalorder %s19, 4
      %s29 = sphi 0, %s31
      %s32 = sphi 0, %s29
      %s33 = sphi 0, %s32
      %s49 = sphi 0, %s33
      %s53 = sphi 0, %s53
      %s55 = sphi 0, %s53
      %s56 = sphi 0, %s55
      %s70 = sphi 0, %s56
      %s74 = sphi 0, %s74
      %s76 = sphi 0, %s74
      %s77 = sphi 0, %s76
      %s91 = sphi 0, %s77
      %s95 = sphi 0, %s95
      %s97 = sphi 0, %s95
      %s98 = sphi 0, %s97
      %s112 = sphi 0, %s98
      %s116 = sphi 0, %s116
      %s118 = sphi 0, %s116
      %s119 = sphi 0, %s118
      %s133 = sphi 0, %s119
      %s137 = sphi 0, %s137
      %s139 = sphi 0, %s137
      %s140 = sphi 0, %s139
      %s154 = sphi 0, %s140
      %s158 = sphi 0, %s158
      %s160 = sphi 0, %s158
      %s161 = sphi 0, %s160
      %s175 = sphi 0, %s161
      %s181 = sphi 0, %s183
      %s184 = sphi 0, %s181
      %s185 = sphi 0, %s184
      %s201 = sphi 0, %s185
    $region4: #{tpu_custom_call.1} parent=1 // loop_header_branch
      %22 = sbr.rel (%p20) target = $region8
    $region5: #{tpu_custom_call.1} parent=1 // loop_body
      %s24 = ssub.s32 %s19, 1
      %s25 = ssub.s32 %s19, 2
      %s26 = sadd.s32 %s19, 1
      %s27 = ssub.s32 %s19, %s26
      %p28 = scmp.eq.s32.totalorder %s27, 0
      %s30 = sadd.s32 %s29, 1
      %s31 = scalar_select %p28, %s29, %s30
      %p34 = pneg %p28
      %p35 = scmp.eq.s32.totalorder %s19, 1
      %p36 = por %p34, %p35
      %p37 = scmp.ne.s32.totalorder %s29, %s32
      %p38 = scmp.eq.s32.totalorder %s19, 0
      %p39 = por %p37, %p38
      %p40 = scmp.ne.s32.totalorder %s29, %s32
      %p41 = scmp.eq.s32.totalorder %s24, 1
      %p42 = por %p40, %p41
      %p43 = scmp.ne.s32.totalorder %s32, %s33
      %p44 = scmp.eq.s32.totalorder %s24, 0
      %p45 = por %p43, %p44
      %p46 = scmp.ne.s32.totalorder %s32, %s33
      %p47 = scmp.eq.s32.totalorder %s25, 1
      %p48 = por %p46, %p47
      %p50 = scmp.ne.s32.totalorder %s33, %s49
      %p51 = scmp.eq.s32.totalorder %s25, 0
      %p52 = por %p50, %p51
      %s54 = sadd.s32 %s53, 1
      %p57 = scmp.eq.s32.totalorder %s19, 1
      %p58 = scmp.ne.s32.totalorder %s53, %s55
      %p59 = scmp.eq.s32.totalorder %s19, 0
      %p60 = por %p58, %p59
      %p61 = scmp.ne.s32.totalorder %s53, %s55
      %p62 = scmp.eq.s32.totalorder %s24, 1
      %p63 = por %p61, %p62
      %p64 = scmp.ne.s32.totalorder %s55, %s56
      %p65 = scmp.eq.s32.totalorder %s24, 0
      %p66 = por %p64, %p65
      %p67 = scmp.ne.s32.totalorder %s55, %s56
      %p68 = scmp.eq.s32.totalorder %s25, 1
      %p69 = por %p67, %p68
      %p71 = scmp.ne.s32.totalorder %s56, %s70
      %p72 = scmp.eq.s32.totalorder %s25, 0
      %p73 = por %p71, %p72
      %s75 = sadd.s32 %s74, 1
      %p78 = scmp.eq.s32.totalorder %s19, 1
      %p79 = scmp.ne.s32.totalorder %s74, %s76
      %p80 = scmp.eq.s32.totalorder %s19, 0
      %p81 = por %p79, %p80
      %p82 = scmp.ne.s32.totalorder %s74, %s76
      %p83 = scmp.eq.s32.totalorder %s24, 1
      %p84 = por %p82, %p83
      %p85 = scmp.ne.s32.totalorder %s76, %s77
      %p86 = scmp.eq.s32.totalorder %s24, 0
      %p87 = por %p85, %p86
      %p88 = scmp.ne.s32.totalorder %s76, %s77
      %p89 = scmp.eq.s32.totalorder %s25, 1
      %p90 = por %p88, %p89
      %p92 = scmp.ne.s32.totalorder %s77, %s91
      %p93 = scmp.eq.s32.totalorder %s25, 0
      %p94 = por %p92, %p93
      %s96 = sadd.s32 %s95, 1
      %p99 = scmp.eq.s32.totalorder %s19, 1
      %p100 = scmp.ne.s32.totalorder %s95, %s97
      %p101 = scmp.eq.s32.totalorder %s19, 0
      %p102 = por %p100, %p101
      %p103 = scmp.ne.s32.totalorder %s95, %s97
      %p104 = scmp.eq.s32.totalorder %s24, 1
      %p105 = por %p103, %p104
      %p106 = scmp.ne.s32.totalorder %s97, %s98
      %p107 = scmp.eq.s32.totalorder %s24, 0
      %p108 = por %p106, %p107
      %p109 = scmp.ne.s32.totalorder %s97, %s98
      %p110 = scmp.eq.s32.totalorder %s25, 1
      %p111 = por %p109, %p110
      %p113 = scmp.ne.s32.totalorder %s98, %s112
      %p114 = scmp.eq.s32.totalorder %s25, 0
      %p115 = por %p113, %p114
      %s117 = sadd.s32 %s116, 1
      %p120 = scmp.eq.s32.totalorder %s19, 1
      %p121 = scmp.ne.s32.totalorder %s116, %s118
      %p122 = scmp.eq.s32.totalorder %s19, 0
      %p123 = por %p121, %p122
      %p124 = scmp.ne.s32.totalorder %s116, %s118
      %p125 = scmp.eq.s32.totalorder %s24, 1
      %p126 = por %p124, %p125
      %p127 = scmp.ne.s32.totalorder %s118, %s119
      %p128 = scmp.eq.s32.totalorder %s24, 0
      %p129 = por %p127, %p128
      %p130 = scmp.ne.s32.totalorder %s118, %s119
      %p131 = scmp.eq.s32.totalorder %s25, 1
      %p132 = por %p130, %p131
      %p134 = scmp.ne.s32.totalorder %s119, %s133
      %p135 = scmp.eq.s32.totalorder %s25, 0
      %p136 = por %p134, %p135
      %s138 = sadd.s32 %s137, 1
      %p141 = scmp.eq.s32.totalorder %s19, 1
      %p142 = scmp.ne.s32.totalorder %s137, %s139
      %p143 = scmp.eq.s32.totalorder %s19, 0
      %p144 = por %p142, %p143
      %p145 = scmp.ne.s32.totalorder %s137, %s139
      %p146 = scmp.eq.s32.totalorder %s24, 1
      %p147 = por %p145, %p146
      %p148 = scmp.ne.s32.totalorder %s139, %s140
      %p149 = scmp.eq.s32.totalorder %s24, 0
      %p150 = por %p148, %p149
      %p151 = scmp.ne.s32.totalorder %s139, %s140
      %p152 = scmp.eq.s32.totalorder %s25, 1
      %p153 = por %p151, %p152
      %p155 = scmp.ne.s32.totalorder %s140, %s154
      %p156 = scmp.eq.s32.totalorder %s25, 0
      %p157 = por %p155, %p156
      %s159 = sadd.s32 %s158, 1
      %p162 = scmp.eq.s32.totalorder %s19, 1
      %p163 = scmp.ne.s32.totalorder %s158, %s160
      %p164 = scmp.eq.s32.totalorder %s19, 0
      %p165 = por %p163, %p164
      %p166 = scmp.ne.s32.totalorder %s158, %s160
      %p167 = scmp.eq.s32.totalorder %s24, 1
      %p168 = por %p166, %p167
      %p169 = scmp.ne.s32.totalorder %s160, %s161
      %p170 = scmp.eq.s32.totalorder %s24, 0
      %p171 = por %p169, %p170
      %p172 = scmp.ne.s32.totalorder %s160, %s161
      %p173 = scmp.eq.s32.totalorder %s25, 1
      %p174 = por %p172, %p173
      %p176 = scmp.ne.s32.totalorder %s161, %s175
      %p177 = scmp.eq.s32.totalorder %s25, 0
      %p178 = por %p176, %p177
      %s179 = ssub.s32 %s19, %s26
      %p180 = scmp.eq.s32.totalorder %s179, 0
      %s182 = sadd.s32 %s181, 1
      %s183 = scalar_select %p180, %s181, %s182
      %p186 = pneg %p180
      %p187 = scmp.eq.s32.totalorder %s19, 1
      %p188 = por %p186, %p187
      %p189 = scmp.ne.s32.totalorder %s181, %s184
      %p190 = scmp.eq.s32.totalorder %s19, 0
      %p191 = por %p189, %p190
      %p192 = scmp.ne.s32.totalorder %s181, %s184
      %p193 = scmp.eq.s32.totalorder %s24, 1
      %p194 = por %p192, %p193
      %p195 = scmp.ne.s32.totalorder %s184, %s185
      %p196 = scmp.eq.s32.totalorder %s24, 0
      %p197 = por %p195, %p196
      %p198 = scmp.ne.s32.totalorder %s184, %s185
      %p199 = scmp.eq.s32.totalorder %s25, 1
      %p200 = por %p198, %p199
      %p202 = scmp.ne.s32.totalorder %s185, %s201
      %p203 = scmp.eq.s32.totalorder %s25, 0
      %p204 = por %p202, %p203
      %p205 = scmp.le.s32.totalorder 1, %s19
      %p206 = scmp.lt.s32.totalorder %s19, 3
      %p207 = pnand %p205, %p206
      %p208 = pneg %p207
      // Predicated region
      $region9: #{tpu_custom_call.1} parent=5 // pred_check
        _
      $region10: #{tpu_custom_call.1} parent=5 // pred_check_branch
        %210 = sbr.rel (%p207) target = $region12
      $region11: #{tpu_custom_call.1} parent=5 // pred_region
        %s211 = ssub.s32 %s19, 1
        // Predicated region
        $region13: #{tpu_custom_call.1} parent=11 // pred_check
          %p212 = pneg %p66
        $region14: #{tpu_custom_call.1} parent=11 // pred_check_branch
          %214 = sbr.rel (%p212) target = $region16
        $region15: #{tpu_custom_call.1} parent=11 // pred_region
          _
        $region16: #{tpu_custom_call.1} parent=11 // pred_fallthru
          _
        // Predicated region
        $region17: #{tpu_custom_call.1} parent=11 // pred_check
          %p215 = pneg %p87
        $region18: #{tpu_custom_call.1} parent=11 // pred_check_branch
          %217 = sbr.rel (%p215) target = $region20
        $region19: #{tpu_custom_call.1} parent=11 // pred_region
          _
        $region20: #{tpu_custom_call.1} parent=11 // pred_fallthru
          _
        // Predicated region
        $region21: #{tpu_custom_call.1} parent=11 // pred_check
          %p218 = pneg %p108
        $region22: #{tpu_custom_call.1} parent=11 // pred_check_branch
          %220 = sbr.rel (%p218) target = $region24
        $region23: #{tpu_custom_call.1} parent=11 // pred_region
          _
        $region24: #{tpu_custom_call.1} parent=11 // pred_fallthru
          _
        // Predicated region
        $region25: #{tpu_custom_call.1} parent=11 // pred_check
          %p221 = pneg %p129
        $region26: #{tpu_custom_call.1} parent=11 // pred_check_branch
          %223 = sbr.rel (%p221) target = $region28
        $region27: #{tpu_custom_call.1} parent=11 // pred_region
          _
        $region28: #{tpu_custom_call.1} parent=11 // pred_fallthru
          _
        // Predicated region
        $region29: #{tpu_custom_call.1} parent=11 // pred_check
          %p224 = pneg %p150
        $region30: #{tpu_custom_call.1} parent=11 // pred_check_branch
          %226 = sbr.rel (%p224) target = $region32
        $region31: #{tpu_custom_call.1} parent=11 // pred_region
          _
        $region32: #{tpu_custom_call.1} parent=11 // pred_fallthru
          _
        // Predicated region
        $region33: #{tpu_custom_call.1} parent=11 // pred_check
          %p227 = pneg %p171
        $region34: #{tpu_custom_call.1} parent=11 // pred_check_branch
          %229 = sbr.rel (%p227) target = $region36
        $region35: #{tpu_custom_call.1} parent=11 // pred_region
          _
        $region36: #{tpu_custom_call.1} parent=11 // pred_fallthru
          _
      $region12: #{tpu_custom_call.1} parent=5 // pred_fallthru
        _
      %p230 = scmp.lt.s32.totalorder %s19, 2
      // Predicated region
      $region37: #{tpu_custom_call.1} parent=5 // pred_check
        %p231 = pneg %p230
      $region38: #{tpu_custom_call.1} parent=5 // pred_check_branch
        %233 = sbr.rel (%p231) target = $region40
      $region39: #{tpu_custom_call.1} parent=5 // pred_region
        // Predicated region
        $region41: #{tpu_custom_call.1} parent=39 // pred_check
          %p234 = pneg %p39
        $region42: #{tpu_custom_call.1} parent=39 // pred_check_branch
          %236 = sbr.rel (%p234) target = $region44
        $region43: #{tpu_custom_call.1} parent=39 // pred_region
          %s237 = sand.u32 %s29, 1
          %s238 = scalar_lea.sflag [#allocation5], %s237
          %s239 = sand.u32 %s29, 1
          %s240 = smul.addr %s239, 32
          %s241 = scalar_lea.vmem [#allocation4], %s240
          %s243 = ssub.s32 512, 512
          %244 = vsyncadd %s238, %s243
          %s245 = smul.addr %s19, 8
          %s246 = smul.addr %s245, 64
          %s247 = scalar_lea.hbm %s0, %s246
          %s248 = sshll.u32 %s241, 4
          %s249 = int_to_ptr.vmem [resolvable:$true] %s248
          %254 = dma.hbm_to_vmem [thread:$0]  %s247, 512, %s249, %s238, 64, 64, 4
        $region44: #{tpu_custom_call.1} parent=39 // pred_fallthru
          _
      $region40: #{tpu_custom_call.1} parent=5 // pred_fallthru
        _
      %p255 = scmp.le.s32.totalorder 1, %s19
      %p256 = scmp.lt.s32.totalorder %s19, 3
      %p257 = pnand %p255, %p256
      %p258 = pneg %p257
      // Predicated region
      $region45: #{tpu_custom_call.1} parent=5 // pred_check
        _
      $region46: #{tpu_custom_call.1} parent=5 // pred_check_branch
        %260 = sbr.rel (%p257) target = $region48
      $region47: #{tpu_custom_call.1} parent=5 // pred_region
        %s261 = ssub.s32 %s19, 1
        %s262 = sand.u32 %s32, 1
        %s263 = scalar_lea.sflag [#allocation5], %s262
        %s264 = sand.u32 %s32, 1
        %s265 = smul.addr %s264, 32
        %s266 = scalar_lea.vmem [#allocation4], %s265
        // Predicated region
        $region49: #{tpu_custom_call.1} parent=47 // pred_check
          %p267 = pneg %p45
        $region50: #{tpu_custom_call.1} parent=47 // pred_check_branch
          %269 = sbr.rel (%p267) target = $region52
        $region51: #{tpu_custom_call.1} parent=47 // pred_region
          %270 = dma.done %s263, 512
        $region52: #{tpu_custom_call.1} parent=47 // pred_fallthru
          _
        %s271 = sand.u32 %s32, 1
        %s272 = scalar_lea.sflag [#allocation5], %s271
        %s273 = sand.u32 %s32, 1
        %s274 = smul.addr %s273, 32
        %s275 = scalar_lea.vmem [#allocation4], %s274
        %p276 = pneg %p45
        %p277 = pneg %p42
        %p278 = pneg %p66
        %p279 = pneg %p63
        %p280 = pneg %p87
        %p281 = pneg %p84
        %p282 = pneg %p108
        %p283 = pneg %p105
        %p284 = pneg %p129
        %p285 = pneg %p126
        %p286 = pneg %p150
        %p287 = pneg %p147
        %p288 = pneg %p171
        %p289 = pneg %p168
        %p290 = pneg %p197
        %p291 = pneg %p194
        %s292 = sand.u32 %s184, 1
        %s293 = scalar_lea.sflag [#allocation6], %s292
        %s294 = sand.u32 %s184, 1
        %s295 = smul.addr %s294, 32
        %s296 = scalar_lea.vmem [#allocation7], %s295
        %vm298 = vcmask 139264
        %vm299 = vsmask.f32 256
        %vm300 = vmand %vm298, %vm299
        %v301 = vld [vmem:[#allocation2] sm:$0x1]
        %v302 = vsel %vm300, 0, %v301
        %303 = vst [vmem:[#allocation2] sm:$0x1] %v302
        %v304 = vld [vmem:[#allocation2 + $0xc] sm:$0x1]
        %v305 = vsel %vm300, 0, %v304
        %306 = vst [vmem:[#allocation2 + $0xc] sm:$0x1] %v305
        %v307 = vld [vmem:[#allocation2 + $0x18] sm:$0x1]
        %v308 = vsel %vm300, 0, %v307
        %309 = vst [vmem:[#allocation2 + $0x18] sm:$0x1] %v308
        %v310 = vld [vmem:[#allocation2 + $0x24] sm:$0x1]
        %v311 = vsel %vm300, 0, %v310
        %312 = vst [vmem:[#allocation2 + $0x24] sm:$0x1] %v311
        %vm313 = vsmask.f32 7938
        %vm314 = vmand %vm298, %vm313
        %v315 = vld [vmem:[#allocation2 + $0x8] sm:$0x1]
        %v316 = vsel %vm314, 0, %v315
        %317 = vst [vmem:[#allocation2 + $0x8] sm:$0x1] %v316
        %v318 = vld [vmem:[#allocation2 + $0x14] sm:$0x1]
        %v319 = vsel %vm314, 0, %v318
        %320 = vst [vmem:[#allocation2 + $0x14] sm:$0x1] %v319
        %v321 = vld [vmem:[#allocation2 + $0x20] sm:$0x1]
        %v322 = vsel %vm314, 0, %v321
        %323 = vst [vmem:[#allocation2 + $0x20] sm:$0x1] %v322
        %v324 = vld [vmem:[#allocation2 + $0x2c] sm:$0x1]
        %v325 = vsel %vm314, 0, %v324
        %326 = vst [vmem:[#allocation2 + $0x2c] sm:$0x1] %v325
        %vm327 = vcmask 3072
        %328 = vst.msk [vmem:[#allocation2] sm:$0xf] %vm327, 0
        %329 = vst.msk [vmem:[#allocation2 + $0x4] sm:$0xf] %vm327, 0
        %vm330 = vcmask 0
        %331 = vst.msk [vmem:[#allocation2 + $0x8] sm:$0x1] %vm330, 0
        %332 = vst.msk [vmem:[#allocation2 + $0xc] sm:$0xf] %vm327, 0
        %333 = vst.msk [vmem:[#allocation2 + $0x10] sm:$0xf] %vm327, 0
        %334 = vst.msk [vmem:[#allocation2 + $0x14] sm:$0x1] %vm330, 0
        %335 = vst.msk [vmem:[#allocation2 + $0x18] sm:$0xf] %vm327, 0
        %336 = vst.msk [vmem:[#allocation2 + $0x1c] sm:$0xf] %vm327, 0
        %337 = vst.msk [vmem:[#allocation2 + $0x20] sm:$0x1] %vm330, 0
        %338 = vst.msk [vmem:[#allocation2 + $0x24] sm:$0xf] %vm327, 0
        %339 = vst.msk [vmem:[#allocation2 + $0x28] sm:$0xf] %vm327, 0
        %340 = vst.msk [vmem:[#allocation2 + $0x2c] sm:$0x1] %vm330, 0
        %vm341 = vcmask 142472
        %342 = vst.msk [vmem:[#allocation2] sm:$0xf] %vm341, 0
        %343 = vst.msk [vmem:[#allocation2 + $0x4] sm:$0xf] %vm341, 0
        %vm344 = vcmask 139400
        %345 = vst.msk [vmem:[#allocation2 + $0x8] sm:$0x1] %vm344, 0
        %346 = vst.msk [vmem:[#allocation2 + $0xc] sm:$0xf] %vm341, 0
        %347 = vst.msk [vmem:[#allocation2 + $0x10] sm:$0xf] %vm341, 0
        %348 = vst.msk [vmem:[#allocation2 + $0x14] sm:$0x1] %vm344, 0
        %349 = vst.msk [vmem:[#allocation2 + $0x18] sm:$0xf] %vm341, 0
        %350 = vst.msk [vmem:[#allocation2 + $0x1c] sm:$0xf] %vm341, 0
        %351 = vst.msk [vmem:[#allocation2 + $0x20] sm:$0x1] %vm344, 0
        %352 = vst.msk [vmem:[#allocation2 + $0x24] sm:$0xf] %vm341, 0
        %353 = vst.msk [vmem:[#allocation2 + $0x28] sm:$0xf] %vm341, 0
        %354 = vst.msk [vmem:[#allocation2 + $0x2c] sm:$0x1] %vm344, 0
        %v355 = vld [vmem:[#allocation3] sm:$0x1]
        %v356 = vsel %vm300, 0, %v355
        %357 = vst [vmem:[#allocation3] sm:$0x1] %v356
        %v358 = vld [vmem:[#allocation3 + $0xc] sm:$0x1]
        %v359 = vsel %vm300, 0, %v358
        %360 = vst [vmem:[#allocation3 + $0xc] sm:$0x1] %v359
        %v361 = vld [vmem:[#allocation3 + $0x18] sm:$0x1]
        %v362 = vsel %vm300, 0, %v361
        %363 = vst [vmem:[#allocation3 + $0x18] sm:$0x1] %v362
        %v364 = vld [vmem:[#allocation3 + $0x24] sm:$0x1]
        %v365 = vsel %vm300, 0, %v364
        %366 = vst [vmem:[#allocation3 + $0x24] sm:$0x1] %v365
        %v367 = vld [vmem:[#allocation3 + $0x30] sm:$0x1]
        %v368 = vsel %vm300, 0, %v367
        %369 = vst [vmem:[#allocation3 + $0x30] sm:$0x1] %v368
        %v370 = vld [vmem:[#allocation3 + $0x3c] sm:$0x1]
        %v371 = vsel %vm300, 0, %v370
        %372 = vst [vmem:[#allocation3 + $0x3c] sm:$0x1] %v371
        %v373 = vld [vmem:[#allocation3 + $0x48] sm:$0x1]
        %v374 = vsel %vm300, 0, %v373
        %375 = vst [vmem:[#allocation3 + $0x48] sm:$0x1] %v374
        %v376 = vld [vmem:[#allocation3 + $0x54] sm:$0x1]
        %v377 = vsel %vm300, 0, %v376
        %378 = vst [vmem:[#allocation3 + $0x54] sm:$0x1] %v377
        %v379 = vld [vmem:[#allocation3 + $0x60] sm:$0x1]
        %v380 = vsel %vm300, 0, %v379
        %381 = vst [vmem:[#allocation3 + $0x60] sm:$0x1] %v380
        %v382 = vld [vmem:[#allocation3 + $0x6c] sm:$0x1]
        %v383 = vsel %vm300, 0, %v382
        %384 = vst [vmem:[#allocation3 + $0x6c] sm:$0x1] %v383
        %v385 = vld [vmem:[#allocation3 + $0x78] sm:$0x1]
        %v386 = vsel %vm300, 0, %v385
        %387 = vst [vmem:[#allocation3 + $0x78] sm:$0x1] %v386
        %v388 = vld [vmem:[#allocation3 + $0x84] sm:$0x1]
        %v389 = vsel %vm300, 0, %v388
        %390 = vst [vmem:[#allocation3 + $0x84] sm:$0x1] %v389
        %v391 = vld [vmem:[#allocation3 + $0x90] sm:$0x1]
        %v392 = vsel %vm300, 0, %v391
        %393 = vst [vmem:[#allocation3 + $0x90] sm:$0x1] %v392
        %v394 = vld [vmem:[#allocation3 + $0x9c] sm:$0x1]
        %v395 = vsel %vm300, 0, %v394
        %396 = vst [vmem:[#allocation3 + $0x9c] sm:$0x1] %v395
        %v397 = vld [vmem:[#allocation3 + $0xa8] sm:$0x1]
        %v398 = vsel %vm300, 0, %v397
        %399 = vst [vmem:[#allocation3 + $0xa8] sm:$0x1] %v398
        %v400 = vld [vmem:[#allocation3 + $0xb4] sm:$0x1]
        %v401 = vsel %vm300, 0, %v400
        %402 = vst [vmem:[#allocation3 + $0xb4] sm:$0x1] %v401
        %v403 = vld [vmem:[#allocation3 + $0x8] sm:$0x1]
        %v404 = vsel %vm314, 0, %v403
        %405 = vst [vmem:[#allocation3 + $0x8] sm:$0x1] %v404
        %v406 = vld [vmem:[#allocation3 + $0x14] sm:$0x1]
        %v407 = vsel %vm314, 0, %v406
        %408 = vst [vmem:[#allocation3 + $0x14] sm:$0x1] %v407
        %v409 = vld [vmem:[#allocation3 + $0x20] sm:$0x1]
        %v410 = vsel %vm314, 0, %v409
        %411 = vst [vmem:[#allocation3 + $0x20] sm:$0x1] %v410
        %v412 = vld [vmem:[#allocation3 + $0x2c] sm:$0x1]
        %v413 = vsel %vm314, 0, %v412
        %414 = vst [vmem:[#allocation3 + $0x2c] sm:$0x1] %v413
        %v415 = vld [vmem:[#allocation3 + $0x38] sm:$0x1]
        %v416 = vsel %vm314, 0, %v415
        %417 = vst [vmem:[#allocation3 + $0x38] sm:$0x1] %v416
        %v418 = vld [vmem:[#allocation3 + $0x44] sm:$0x1]
        %v419 = vsel %vm314, 0, %v418
        %420 = vst [vmem:[#allocation3 + $0x44] sm:$0x1] %v419
        %v421 = vld [vmem:[#allocation3 + $0x50] sm:$0x1]
        %v422 = vsel %vm314, 0, %v421
        %423 = vst [vmem:[#allocation3 + $0x50] sm:$0x1] %v422
        %v424 = vld [vmem:[#allocation3 + $0x5c] sm:$0x1]
        %v425 = vsel %vm314, 0, %v424
        %426 = vst [vmem:[#allocation3 + $0x5c] sm:$0x1] %v425
        %v427 = vld [vmem:[#allocation3 + $0x68] sm:$0x1]
        %v428 = vsel %vm314, 0, %v427
        %429 = vst [vmem:[#allocation3 + $0x68] sm:$0x1] %v428
        %v430 = vld [vmem:[#allocation3 + $0x74] sm:$0x1]
        %v431 = vsel %vm314, 0, %v430
        %432 = vst [vmem:[#allocation3 + $0x74] sm:$0x1] %v431
        %v433 = vld [vmem:[#allocation3 + $0x80] sm:$0x1]
        %v434 = vsel %vm314, 0, %v433
        %435 = vst [vmem:[#allocation3 + $0x80] sm:$0x1] %v434
        %v436 = vld [vmem:[#allocation3 + $0x8c] sm:$0x1]
        %v437 = vsel %vm314, 0, %v436
        %438 = vst [vmem:[#allocation3 + $0x8c] sm:$0x1] %v437
        %v439 = vld [vmem:[#allocation3 + $0x98] sm:$0x1]
        %v440 = vsel %vm314, 0, %v439
        %441 = vst [vmem:[#allocation3 + $0x98] sm:$0x1] %v440
        %v442 = vld [vmem:[#allocation3 + $0xa4] sm:$0x1]
        %v443 = vsel %vm314, 0, %v442
        %444 = vst [vmem:[#allocation3 + $0xa4] sm:$0x1] %v443
        %v445 = vld [vmem:[#allocation3 + $0xb0] sm:$0x1]
        %v446 = vsel %vm314, 0, %v445
        %447 = vst [vmem:[#allocation3 + $0xb0] sm:$0x1] %v446
        %v448 = vld [vmem:[#allocation3 + $0xbc] sm:$0x1]
        %v449 = vsel %vm314, 0, %v448
        %450 = vst [vmem:[#allocation3 + $0xbc] sm:$0x1] %v449
        %451 = vst.msk [vmem:[#allocation3] sm:$0xf] %vm327, 0
        %452 = vst.msk [vmem:[#allocation3 + $0x4] sm:$0xf] %vm327, 0
        %453 = vst.msk [vmem:[#allocation3 + $0x8] sm:$0x1] %vm330, 0
        %454 = vst.msk [vmem:[#allocation3 + $0xc] sm:$0xf] %vm327, 0
        %455 = vst.msk [vmem:[#allocation3 + $0x10] sm:$0xf] %vm327, 0
        %456 = vst.msk [vmem:[#allocation3 + $0x14] sm:$0x1] %vm330, 0
        %457 = vst.msk [vmem:[#allocation3 + $0x18] sm:$0xf] %vm327, 0
        %458 = vst.msk [vmem:[#allocation3 + $0x1c] sm:$0xf] %vm327, 0
        %459 = vst.msk [vmem:[#allocation3 + $0x20] sm:$0x1] %vm330, 0
        %460 = vst.msk [vmem:[#allocation3 + $0x24] sm:$0xf] %vm327, 0
        %461 = vst.msk [vmem:[#allocation3 + $0x28] sm:$0xf] %vm327, 0
        %462 = vst.msk [vmem:[#allocation3 + $0x2c] sm:$0x1] %vm330, 0
        %463 = vst.msk [vmem:[#allocation3 + $0x30] sm:$0xf] %vm327, 0
        %464 = vst.msk [vmem:[#allocation3 + $0x34] sm:$0xf] %vm327, 0
        %465 = vst.msk [vmem:[#allocation3 + $0x38] sm:$0x1] %vm330, 0
        %466 = vst.msk [vmem:[#allocation3 + $0x3c] sm:$0xf] %vm327, 0
        %467 = vst.msk [vmem:[#allocation3 + $0x40] sm:$0xf] %vm327, 0
        %468 = vst.msk [vmem:[#allocation3 + $0x44] sm:$0x1] %vm330, 0
        %469 = vst.msk [vmem:[#allocation3 + $0x48] sm:$0xf] %vm327, 0
        %470 = vst.msk [vmem:[#allocation3 + $0x4c] sm:$0xf] %vm327, 0
        %471 = vst.msk [vmem:[#allocation3 + $0x50] sm:$0x1] %vm330, 0
        %472 = vst.msk [vmem:[#allocation3 + $0x54] sm:$0xf] %vm327, 0
        %473 = vst.msk [vmem:[#allocation3 + $0x58] sm:$0xf] %vm327, 0
        %474 = vst.msk [vmem:[#allocation3 + $0x5c] sm:$0x1] %vm330, 0
        %475 = vst.msk [vmem:[#allocation3 + $0x60] sm:$0xf] %vm327, 0
        %476 = vst.msk [vmem:[#allocation3 + $0x64] sm:$0xf] %vm327, 0
        %477 = vst.msk [vmem:[#allocation3 + $0x68] sm:$0x1] %vm330, 0
        %478 = vst.msk [vmem:[#allocation3 + $0x6c] sm:$0xf] %vm327, 0
        %479 = vst.msk [vmem:[#allocation3 + $0x70] sm:$0xf] %vm327, 0
        %480 = vst.msk [vmem:[#allocation3 + $0x74] sm:$0x1] %vm330, 0
        %481 = vst.msk [vmem:[#allocation3 + $0x78] sm:$0xf] %vm327, 0
        %482 = vst.msk [vmem:[#allocation3 + $0x7c] sm:$0xf] %vm327, 0
        %483 = vst.msk [vmem:[#allocation3 + $0x80] sm:$0x1] %vm330, 0
        %484 = vst.msk [vmem:[#allocation3 + $0x84] sm:$0xf] %vm327, 0
        %485 = vst.msk [vmem:[#allocation3 + $0x88] sm:$0xf] %vm327, 0
        %486 = vst.msk [vmem:[#allocation3 + $0x8c] sm:$0x1] %vm330, 0
        %487 = vst.msk [vmem:[#allocation3 + $0x90] sm:$0xf] %vm327, 0
        %488 = vst.msk [vmem:[#allocation3 + $0x94] sm:$0xf] %vm327, 0
        %489 = vst.msk [vmem:[#allocation3 + $0x98] sm:$0x1] %vm330, 0
        %490 = vst.msk [vmem:[#allocation3 + $0x9c] sm:$0xf] %vm327, 0
        %491 = vst.msk [vmem:[#allocation3 + $0xa0] sm:$0xf] %vm327, 0
        %492 = vst.msk [vmem:[#allocation3 + $0xa4] sm:$0x1] %vm330, 0
        %493 = vst.msk [vmem:[#allocation3 + $0xa8] sm:$0xf] %vm327, 0
        %494 = vst.msk [vmem:[#allocation3 + $0xac] sm:$0xf] %vm327, 0
        %495 = vst.msk [vmem:[#allocation3 + $0xb0] sm:$0x1] %vm330, 0
        %496 = vst.msk [vmem:[#allocation3 + $0xb4] sm:$0xf] %vm327, 0
        %497 = vst.msk [vmem:[#allocation3 + $0xb8] sm:$0xf] %vm327, 0
        %498 = vst.msk [vmem:[#allocation3 + $0xbc] sm:$0x1] %vm330, 0
        %499 = vst.msk [vmem:[#allocation3] sm:$0xf] %vm341, 0
        %500 = vst.msk [vmem:[#allocation3 + $0x4] sm:$0xf] %vm341, 0
        %501 = vst.msk [vmem:[#allocation3 + $0x8] sm:$0x1] %vm344, 0
        %502 = vst.msk [vmem:[#allocation3 + $0xc] sm:$0xf] %vm341, 0
        %503 = vst.msk [vmem:[#allocation3 + $0x10] sm:$0xf] %vm341, 0
        %504 = vst.msk [vmem:[#allocation3 + $0x14] sm:$0x1] %vm344, 0
        %505 = vst.msk [vmem:[#allocation3 + $0x18] sm:$0xf] %vm341, 0
        %506 = vst.msk [vmem:[#allocation3 + $0x1c] sm:$0xf] %vm341, 0
        %507 = vst.msk [vmem:[#allocation3 + $0x20] sm:$0x1] %vm344, 0
        %508 = vst.msk [vmem:[#allocation3 + $0x24] sm:$0xf] %vm341, 0
        %509 = vst.msk [vmem:[#allocation3 + $0x28] sm:$0xf] %vm341, 0
        %510 = vst.msk [vmem:[#allocation3 + $0x2c] sm:$0x1] %vm344, 0
        %511 = vst.msk [vmem:[#allocation3 + $0x30] sm:$0xf] %vm341, 0
        %512 = vst.msk [vmem:[#allocation3 + $0x34] sm:$0xf] %vm341, 0
        %513 = vst.msk [vmem:[#allocation3 + $0x38] sm:$0x1] %vm344, 0
        %514 = vst.msk [vmem:[#allocation3 + $0x3c] sm:$0xf] %vm341, 0
        %515 = vst.msk [vmem:[#allocation3 + $0x40] sm:$0xf] %vm341, 0
        %516 = vst.msk [vmem:[#allocation3 + $0x44] sm:$0x1] %vm344, 0
        %517 = vst.msk [vmem:[#allocation3 + $0x48] sm:$0xf] %vm341, 0
        %518 = vst.msk [vmem:[#allocation3 + $0x4c] sm:$0xf] %vm341, 0
        %519 = vst.msk [vmem:[#allocation3 + $0x50] sm:$0x1] %vm344, 0
        %520 = vst.msk [vmem:[#allocation3 + $0x54] sm:$0xf] %vm341, 0
        %521 = vst.msk [vmem:[#allocation3 + $0x58] sm:$0xf] %vm341, 0
        %522 = vst.msk [vmem:[#allocation3 + $0x5c] sm:$0x1] %vm344, 0
        %523 = vst.msk [vmem:[#allocation3 + $0x60] sm:$0xf] %vm341, 0
        %524 = vst.msk [vmem:[#allocation3 + $0x64] sm:$0xf] %vm341, 0
        %525 = vst.msk [vmem:[#allocation3 + $0x68] sm:$0x1] %vm344, 0
        %526 = vst.msk [vmem:[#allocation3 + $0x6c] sm:$0xf] %vm341, 0
        %527 = vst.msk [vmem:[#allocation3 + $0x70] sm:$0xf] %vm341, 0
        %528 = vst.msk [vmem:[#allocation3 + $0x74] sm:$0x1] %vm344, 0
        %529 = vst.msk [vmem:[#allocation3 + $0x78] sm:$0xf] %vm341, 0
        %530 = vst.msk [vmem:[#allocation3 + $0x7c] sm:$0xf] %vm341, 0
        %531 = vst.msk [vmem:[#allocation3 + $0x80] sm:$0x1] %vm344, 0
        %532 = vst.msk [vmem:[#allocation3 + $0x84] sm:$0xf] %vm341, 0
        %533 = vst.msk [vmem:[#allocation3 + $0x88] sm:$0xf] %vm341, 0
        %534 = vst.msk [vmem:[#allocation3 + $0x8c] sm:$0x1] %vm344, 0
        %535 = vst.msk [vmem:[#allocation3 + $0x90] sm:$0xf] %vm341, 0
        %536 = vst.msk [vmem:[#allocation3 + $0x94] sm:$0xf] %vm341, 0
        %537 = vst.msk [vmem:[#allocation3 + $0x98] sm:$0x1] %vm344, 0
        %538 = vst.msk [vmem:[#allocation3 + $0x9c] sm:$0xf] %vm341, 0
        %539 = vst.msk [vmem:[#allocation3 + $0xa0] sm:$0xf] %vm341, 0
        %540 = vst.msk [vmem:[#allocation3 + $0xa4] sm:$0x1] %vm344, 0
        %541 = vst.msk [vmem:[#allocation3 + $0xa8] sm:$0xf] %vm341, 0
        %542 = vst.msk [vmem:[#allocation3 + $0xac] sm:$0xf] %vm341, 0
        %543 = vst.msk [vmem:[#allocation3 + $0xb0] sm:$0x1] %vm344, 0
        %544 = vst.msk [vmem:[#allocation3 + $0xb4] sm:$0xf] %vm341, 0
        %545 = vst.msk [vmem:[#allocation3 + $0xb8] sm:$0xf] %vm341, 0
        %546 = vst.msk [vmem:[#allocation3 + $0xbc] sm:$0x1] %vm344, 0
        %v547 = vld [vmem:[%s266] sm:$0xf]
        %v548 = vld [vmem:[%s266 + $0x4] sm:$0xf]
        %v549 = vld [vmem:[%s266 + $0x8] sm:$0xf]
        %v550 = vld [vmem:[%s266 + $0xc] sm:$0xf]
        %v551 = vld [vmem:[%s266 + $0x10] sm:$0xf]
        %v552 = vld [vmem:[%s266 + $0x14] sm:$0xf]
        %v553 = vld [vmem:[%s266 + $0x18] sm:$0xf]
        %v554 = vld [vmem:[%s266 + $0x1c] sm:$0xf]
        %v555 = vunpack.c.l.bf16 %v547
        %v556 = vunpack.c.l.bf16 %v548
        %v557 = vunpack.c.l.bf16 %v549
        %v558 = vunpack.c.l.bf16 %v550
        %v559 = vunpack.c.l.bf16 %v551
        %v560 = vunpack.c.l.bf16 %v552
        %v561 = vunpack.c.l.bf16 %v553
        %v562 = vunpack.c.l.bf16 %v554
        %v563 = vld [vmem:[%s1] sm:$0xf]
        %v566 = vunpack.c.l.s4 1966171168
        %v567 = vunpack.c.0.s8 %v566
        %v568 = vlaneseq
        %v569 = vshrl.u32 %v568, 7
        %v570 = vsub.s32 %v567, %v569
        %v571 = vrot.slane %v563, %v570
        %v572 = vcombine.high %v571, %v571
        %v574 = vunpack.c.l.s4 1966171168
        %v575 = vunpack.c.0.s8 %v574
        %v576 = vlaneseq
        %v577 = vshrl.u32 %v576, 7
        %v578 = vsub.s32 %v575, %v577
        %v579 = vrot.slane %v571, %v578
        %v581 = vunpack.c.l.s4 1966171168
        %v582 = vunpack.c.0.s8 %v581
        %v583 = vlaneseq
        %v584 = vshrl.u32 %v583, 7
        %v585 = vsub.s32 %v582, %v584
        %v586 = vrot.slane %v572, %v585
        %v587 = vcombine.high %v579, %v579
        %v588 = vcombine.high %v586, %v586
        %v589 = vld [vmem:[%s2] sm:$0xf]
        %v592 = vunpack.c.l.s4 1966171168
        %v593 = vunpack.c.0.s8 %v592
        %v594 = vlaneseq
        %v595 = vshrl.u32 %v594, 7
        %v596 = vsub.s32 %v593, %v595
        %v597 = vrot.slane %v589, %v596
        %v598 = vcombine.high %v597, %v597
        %v600 = vunpack.c.l.s4 1966171168
        %v601 = vunpack.c.0.s8 %v600
        %v602 = vlaneseq
        %v603 = vshrl.u32 %v602, 7
        %v604 = vsub.s32 %v601, %v603
        %v605 = vrot.slane %v597, %v604
        %v607 = vunpack.c.l.s4 1966171168
        %v608 = vunpack.c.0.s8 %v607
        %v609 = vlaneseq
        %v610 = vshrl.u32 %v609, 7
        %v611 = vsub.s32 %v608, %v610
        %v612 = vrot.slane %v598, %v611
        %v613 = vcombine.high %v605, %v605
        %v614 = vcombine.high %v612, %v612
        %v615 = vlaneseq
        %v616 = vshrl.u32 %v615, 7
        %v617 = vsub.s32 0, %v616
        %v618 = vrot.slane %v579, %v617
        %v619 = vlaneseq
        %v620 = vshrl.u32 %v619, 7
        %v621 = vsub.s32 0, %v620
        %v622 = vrot.slane %v586, %v621
        %v623 = vlaneseq
        %v624 = vshrl.u32 %v623, 7
        %v625 = vsub.s32 0, %v624
        %v626 = vrot.slane %v587, %v625
        %v627 = vlaneseq
        %v628 = vshrl.u32 %v627, 7
        %v629 = vsub.s32 0, %v628
        %v630 = vrot.slane %v588, %v629
        %631 = vset.pattern.permute.xlu0 0
        %632 = vperm.xlu0 %631, %v618
        %v633 = vpop.permute.xlu0 %632
        %635 = vset.pattern.permute.xlu0 0
        %636 = vperm.xlu0 %635, %v622
        %v637 = vpop.permute.xlu0 %636
        %639 = vset.pattern.permute.xlu0 0
        %640 = vperm.xlu0 %639, %v626
        %v641 = vpop.permute.xlu0 %640
        %643 = vset.pattern.permute.xlu0 0
        %644 = vperm.xlu0 %643, %v630
        %v645 = vpop.permute.xlu0 %644
        %v647 = vmul.f32 %v555, %v633
        %v648 = vmul.f32 %v556, %v633
        %v649 = vmul.f32 %v557, %v637
        %v650 = vmul.f32 %v558, %v637
        %v651 = vmul.f32 %v559, %v641
        %v652 = vmul.f32 %v560, %v641
        %v653 = vmul.f32 %v561, %v645
        %v654 = vmul.f32 %v562, %v645
        %v655 = vlaneseq
        %v656 = vshrl.u32 %v655, 7
        %v657 = vsub.s32 0, %v656
        %v658 = vrot.slane %v605, %v657
        %v659 = vlaneseq
        %v660 = vshrl.u32 %v659, 7
        %v661 = vsub.s32 0, %v660
        %v662 = vrot.slane %v612, %v661
        %v663 = vlaneseq
        %v664 = vshrl.u32 %v663, 7
        %v665 = vsub.s32 0, %v664
        %v666 = vrot.slane %v613, %v665
        %v667 = vlaneseq
        %v668 = vshrl.u32 %v667, 7
        %v669 = vsub.s32 0, %v668
        %v670 = vrot.slane %v614, %v669
        %671 = vset.pattern.permute.xlu0 0
        %672 = vperm.xlu0 %671, %v658
        %v673 = vpop.permute.xlu0 %672
        %675 = vset.pattern.permute.xlu0 0
        %676 = vperm.xlu0 %675, %v662
        %v677 = vpop.permute.xlu0 %676
        %679 = vset.pattern.permute.xlu0 0
        %680 = vperm.xlu0 %679, %v666
        %v681 = vpop.permute.xlu0 %680
        %683 = vset.pattern.permute.xlu0 0
        %684 = vperm.xlu0 %683, %v670
        %v685 = vpop.permute.xlu0 %684
        %v687 = vadd.f32 %v647, %v673
        %v688 = vadd.f32 %v648, %v673
        %v689 = vadd.f32 %v649, %v677
        %v690 = vadd.f32 %v650, %v677
        %v691 = vadd.f32 %v651, %v681
        %v692 = vadd.f32 %v652, %v681
        %v693 = vadd.f32 %v653, %v685
        %v694 = vadd.f32 %v654, %v685
        %v695 = vmax.f32 %v687, 0.0
        %v696 = vmax.f32 %v688, 0.0
        %v697 = vmax.f32 %v689, 0.0
        %v698 = vmax.f32 %v690, 0.0
        %v699 = vmax.f32 %v691, 0.0
        %v700 = vmax.f32 %v692, 0.0
        %v701 = vmax.f32 %v693, 0.0
        %v702 = vmax.f32 %v694, 0.0
        %v703 = vpack.c.bf16 %v696, %v695
        %v704 = vpack.c.bf16 %v698, %v697
        %v705 = vpack.c.bf16 %v700, %v699
        %v706 = vpack.c.bf16 %v702, %v701
        %v711 = vunpack.c.l.b16 %v703
        %v712 = vunpack.c.h.b16 %v703
        %v713 = vunpack.c.l.b16 %v704
        %v714 = vunpack.c.h.b16 %v704
        %v715 = vunpack.c.l.b16 %v705
        %v716 = vunpack.c.h.b16 %v705
        %v717 = vunpack.c.l.b16 %v706
        %v718 = vunpack.c.h.b16 %v706
        %v719 = vpack.c.b16 %v711, %v711
        %v720 = vpack.c.b16 %v712, %v712
        %v721 = vpack.c.b16 %v713, %v713
        %v722 = vpack.c.b16 %v714, %v714
        %v723 = vpack.c.b16 %v715, %v715
        %v724 = vpack.c.b16 %v716, %v716
        %v725 = vpack.c.b16 %v717, %v717
        %v726 = vpack.c.b16 %v718, %v718
        %vm727 = vsmask.f32 4368
        %vm728 = vmor %vm299, %vm727
        %v730 = vshrl.u32 %v719, 16
        %v732 = vrot.slane %v730, 7
        %v733 = vshll.u32 %v719, 16
        %v735 = vor.u32 %v732, %v733
        %v736 = vrot.slane %v732, 4
        %v738 = vshrl.u32 %v720, 16
        %v740 = vrot.slane %v738, 7
        %v741 = vshll.u32 %v720, 16
        %v743 = vor.u32 %v740, %v741
        %v744 = vsel %vm728, %v736, %v743
        %v745 = vrot.slane %v740, 4
        %v747 = vshrl.u32 %v721, 16
        %v749 = vrot.slane %v747, 7
        %v750 = vshll.u32 %v721, 16
        %v752 = vor.u32 %v749, %v750
        %v753 = vrot.slane %v749, 4
        %v755 = vshrl.u32 %v722, 16
        %v757 = vrot.slane %v755, 7
        %v758 = vshll.u32 %v722, 16
        %v760 = vor.u32 %v757, %v758
        %v761 = vsel %vm728, %v753, %v760
        %v762 = vrot.slane %v757, 4
        %v764 = vshrl.u32 %v723, 16
        %v766 = vrot.slane %v764, 7
        %v767 = vshll.u32 %v723, 16
        %v769 = vor.u32 %v766, %v767
        %v770 = vrot.slane %v766, 4
        %v772 = vshrl.u32 %v724, 16
        %v774 = vrot.slane %v772, 7
        %v775 = vshll.u32 %v724, 16
        %v777 = vor.u32 %v774, %v775
        %v778 = vsel %vm728, %v770, %v777
        %v779 = vrot.slane %v774, 4
        %v781 = vshrl.u32 %v725, 16
        %v783 = vrot.slane %v781, 7
        %v784 = vshll.u32 %v725, 16
        %v786 = vor.u32 %v783, %v784
        %v787 = vrot.slane %v783, 4
        %v789 = vshrl.u32 %v726, 16
        %v791 = vrot.slane %v789, 7
        %v792 = vshll.u32 %v726, 16
        %v794 = vor.u32 %v791, %v792
        %v795 = vsel %vm728, %v787, %v794
        %v796 = vrot.slane %v791, 4
        %797 = vrot.lane.b32.xlu0 %v735, 1
        %v798 = vpop.permute.xlu0 %797
        %799 = vrot.lane.b32.xlu0 %v744, 1
        %v800 = vpop.permute.xlu0 %799
        %801 = vrot.lane.b32.xlu0 %v745, 1
        %v802 = vpop.permute.xlu0 %801
        %803 = vrot.lane.b32.xlu0 %v752, 1
        %v804 = vpop.permute.xlu0 %803
        %805 = vrot.lane.b32.xlu0 %v761, 1
        %v806 = vpop.permute.xlu0 %805
        %807 = vrot.lane.b32.xlu0 %v762, 1
        %v808 = vpop.permute.xlu0 %807
        %809 = vrot.lane.b32.xlu0 %v769, 1
        %v810 = vpop.permute.xlu0 %809
        %811 = vrot.lane.b32.xlu0 %v778, 1
        %v812 = vpop.permute.xlu0 %811
        %813 = vrot.lane.b32.xlu0 %v779, 1
        %v814 = vpop.permute.xlu0 %813
        %815 = vrot.lane.b32.xlu0 %v786, 1
        %v816 = vpop.permute.xlu0 %815
        %817 = vrot.lane.b32.xlu0 %v795, 1
        %v818 = vpop.permute.xlu0 %817
        %819 = vrot.lane.b32.xlu0 %v796, 1
        %v820 = vpop.permute.xlu0 %819
        %vm833 = vcmask 134152
        %vm834 = vmand %vm833, %vm313
        %v835 = vld [vmem:[#allocation2] sm:$0xf]
        %v836 = vsel %vm834, %v798, %v835
        %837 = vst [vmem:[#allocation2] sm:$0xf] %v836
        %vm838 = vcmask 134152
        %839 = vst.msk [vmem:[#allocation2 + $0x4] sm:$0xf] %vm838, %v800
        %vm840 = vcmask 131080
        %vm841 = vmand %vm840, %vm299
        %v842 = vld [vmem:[#allocation2 + $0x8] sm:$0x1]
        %v843 = vsel %vm841, %v802, %v842
        %844 = vst [vmem:[#allocation2 + $0x8] sm:$0x1] %v843
        %v845 = vld [vmem:[#allocation2 + $0xc] sm:$0xf]
        %v846 = vsel %vm834, %v804, %v845
        %847 = vst [vmem:[#allocation2 + $0xc] sm:$0xf] %v846
        %848 = vst.msk [vmem:[#allocation2 + $0x10] sm:$0xf] %vm838, %v806
        %v849 = vld [vmem:[#allocation2 + $0x14] sm:$0x1]
        %v850 = vsel %vm841, %v808, %v849
        %851 = vst [vmem:[#allocation2 + $0x14] sm:$0x1] %v850
        %v852 = vld [vmem:[#allocation2 + $0x18] sm:$0xf]
        %v853 = vsel %vm834, %v810, %v852
        %854 = vst [vmem:[#allocation2 + $0x18] sm:$0xf] %v853
        %855 = vst.msk [vmem:[#allocation2 + $0x1c] sm:$0xf] %vm838, %v812
        %v856 = vld [vmem:[#allocation2 + $0x20] sm:$0x1]
        %v857 = vsel %vm841, %v814, %v856
        %858 = vst [vmem:[#allocation2 + $0x20] sm:$0x1] %v857
        %v859 = vld [vmem:[#allocation2 + $0x24] sm:$0xf]
        %v860 = vsel %vm834, %v816, %v859
        %861 = vst [vmem:[#allocation2 + $0x24] sm:$0xf] %v860
        %862 = vst.msk [vmem:[#allocation2 + $0x28] sm:$0xf] %vm838, %v818
        %v863 = vld [vmem:[#allocation2 + $0x2c] sm:$0x1]
        %v864 = vsel %vm841, %v820, %v863
        %865 = vst [vmem:[#allocation2 + $0x2c] sm:$0x1] %v864
        %v866 = vld [vmem:[#allocation2] sm:$0xf]
        %v867 = vld [vmem:[#allocation2 + $0x4] sm:$0xf]
        %v868 = vld [vmem:[#allocation2 + $0xc] sm:$0xf]
        %v869 = vld [vmem:[#allocation2 + $0x10] sm:$0xf]
        %v870 = vld [vmem:[#allocation2 + $0x18] sm:$0xf]
        %v871 = vld [vmem:[#allocation2 + $0x1c] sm:$0xf]
        %v872 = vld [vmem:[#allocation2 + $0x24] sm:$0xf]
        %v873 = vld [vmem:[#allocation2 + $0x28] sm:$0xf]
        %v876 = vpack.i.b16 %v868, %v866
        %v877 = vshrl.u32 %v866, 16
        %v878 = vshrl.u32 %v868, 16
        %v879 = vpack.i.b16 %v878, %v877
        %v882 = vpack.i.b16 %v872, %v870
        %v883 = vshrl.u32 %v870, 16
        %v884 = vshrl.u32 %v872, 16
        %v885 = vpack.i.b16 %v884, %v883
        %v888 = vpack.i.b16 %v869, %v867
        %v889 = vshrl.u32 %v867, 16
        %v890 = vshrl.u32 %v869, 16
        %v891 = vpack.i.b16 %v890, %v889
        %v894 = vpack.i.b16 %v873, %v871
        %v895 = vshrl.u32 %v871, 16
        %v896 = vshrl.u32 %v873, 16
        %v897 = vpack.i.b16 %v896, %v895
        %v900 = vunpack.c.l.s4 1983009808
        %v901 = vunpack.c.0.s8 %v900
        %v902 = vlaneseq
        %v903 = vshrl.u32 %v902, 7
        %v904 = vsub.s32 %v901, %v903
        %v905 = vrot.slane %v876, %v904
        %v908 = vunpack.c.l.s4 1983009808
        %v909 = vunpack.c.0.s8 %v908
        %v910 = vlaneseq
        %v911 = vshrl.u32 %v910, 7
        %v912 = vsub.s32 %v909, %v911
        %v913 = vrot.slane %v882, %v912
        %v914 = vcombine.low %v905, %v913
        %v915 = vcombine.high %v905, %v913
        %v917 = vunpack.c.l.s4 1934713408
        %v918 = vunpack.c.0.s8 %v917
        %v919 = vlaneseq
        %v920 = vshrl.u32 %v919, 7
        %v921 = vsub.s32 %v918, %v920
        %v922 = vrot.slane %v914, %v921
        %v924 = vunpack.c.l.s4 1934713408
        %v925 = vunpack.c.0.s8 %v924
        %v926 = vlaneseq
        %v927 = vshrl.u32 %v926, 7
        %v928 = vsub.s32 %v925, %v927
        %v929 = vrot.slane %v915, %v928
        %v930 = vcombine.high %v922, 0
        %v931 = vcombine.high %v929, 0
        %v934 = vunpack.c.l.s4 1983009808
        %v935 = vunpack.c.0.s8 %v934
        %v936 = vlaneseq
        %v937 = vshrl.u32 %v936, 7
        %v938 = vsub.s32 %v935, %v937
        %v939 = vrot.slane %v879, %v938
        %v942 = vunpack.c.l.s4 1983009808
        %v943 = vunpack.c.0.s8 %v942
        %v944 = vlaneseq
        %v945 = vshrl.u32 %v944, 7
        %v946 = vsub.s32 %v943, %v945
        %v947 = vrot.slane %v885, %v946
        %v948 = vcombine.low %v939, %v947
        %v949 = vcombine.high %v939, %v947
        %v951 = vunpack.c.l.s4 1934713408
        %v952 = vunpack.c.0.s8 %v951
        %v953 = vlaneseq
        %v954 = vshrl.u32 %v953, 7
        %v955 = vsub.s32 %v952, %v954
        %v956 = vrot.slane %v948, %v955
        %v958 = vunpack.c.l.s4 1934713408
        %v959 = vunpack.c.0.s8 %v958
        %v960 = vlaneseq
        %v961 = vshrl.u32 %v960, 7
        %v962 = vsub.s32 %v959, %v961
        %v963 = vrot.slane %v949, %v962
        %v964 = vcombine.high %v956, 0
        %v965 = vcombine.high %v963, 0
        %v968 = vunpack.c.l.s4 1983009808
        %v969 = vunpack.c.0.s8 %v968
        %v970 = vlaneseq
        %v971 = vshrl.u32 %v970, 7
        %v972 = vsub.s32 %v969, %v971
        %v973 = vrot.slane %v888, %v972
        %v976 = vunpack.c.l.s4 1983009808
        %v977 = vunpack.c.0.s8 %v976
        %v978 = vlaneseq
        %v979 = vshrl.u32 %v978, 7
        %v980 = vsub.s32 %v977, %v979
        %v981 = vrot.slane %v894, %v980
        %v982 = vcombine.low %v973, %v981
        %v983 = vcombine.high %v973, %v981
        %v985 = vunpack.c.l.s4 1934713408
        %v986 = vunpack.c.0.s8 %v985
        %v987 = vlaneseq
        %v988 = vshrl.u32 %v987, 7
        %v989 = vsub.s32 %v986, %v988
        %v990 = vrot.slane %v982, %v989
        %v992 = vunpack.c.l.s4 1934713408
        %v993 = vunpack.c.0.s8 %v992
        %v994 = vlaneseq
        %v995 = vshrl.u32 %v994, 7
        %v996 = vsub.s32 %v993, %v995
        %v997 = vrot.slane %v983, %v996
        %v998 = vcombine.high %v990, 0
        %v999 = vcombine.high %v997, 0
        %v1002 = vunpack.c.l.s4 1983009808
        %v1003 = vunpack.c.0.s8 %v1002
        %v1004 = vlaneseq
        %v1005 = vshrl.u32 %v1004, 7
        %v1006 = vsub.s32 %v1003, %v1005
        %v1007 = vrot.slane %v891, %v1006
        %v1010 = vunpack.c.l.s4 1983009808
        %v1011 = vunpack.c.0.s8 %v1010
        %v1012 = vlaneseq
        %v1013 = vshrl.u32 %v1012, 7
        %v1014 = vsub.s32 %v1011, %v1013
        %v1015 = vrot.slane %v897, %v1014
        %v1016 = vcombine.low %v1007, %v1015
        %v1017 = vcombine.high %v1007, %v1015
        %v1019 = vunpack.c.l.s4 1934713408
        %v1020 = vunpack.c.0.s8 %v1019
        %v1021 = vlaneseq
        %v1022 = vshrl.u32 %v1021, 7
        %v1023 = vsub.s32 %v1020, %v1022
        %v1024 = vrot.slane %v1016, %v1023
        %v1026 = vunpack.c.l.s4 1934713408
        %v1027 = vunpack.c.0.s8 %v1026
        %v1028 = vlaneseq
        %v1029 = vshrl.u32 %v1028, 7
        %v1030 = vsub.s32 %v1027, %v1029
        %v1031 = vrot.slane %v1017, %v1030
        %v1032 = vcombine.high %v1024, 0
        %v1033 = vcombine.high %v1031, 0
        %v1035 = vunpack.c.l.b16 %v956
        %v1036 = vpack.c.b16 %v1035, %v1035
        %1037 = vrot.lane.b32.xlu0 %v1036, 16
        %v1038 = vpop.permute.xlu0 %1037
        %v1040 = vunpack.c.l.b16 %v930
        %v1041 = vpack.c.b16 %v1040, %v1040
        %1042 = vrot.lane.b32.xlu0 %v1041, 32
        %v1043 = vpop.permute.xlu0 %1042
        %v1045 = vunpack.c.l.b16 %v964
        %v1046 = vpack.c.b16 %v1045, %v1045
        %1047 = vrot.lane.b32.xlu0 %v1046, 48
        %v1048 = vpop.permute.xlu0 %1047
        %v1050 = vunpack.c.l.b16 %v929
        %v1051 = vpack.c.b16 %v1050, %v1050
        %1052 = vrot.lane.b32.xlu0 %v1051, 64
        %v1053 = vpop.permute.xlu0 %1052
        %v1055 = vunpack.c.l.b16 %v963
        %v1056 = vpack.c.b16 %v1055, %v1055
        %1057 = vrot.lane.b32.xlu0 %v1056, 80
        %v1058 = vpop.permute.xlu0 %1057
        %v1060 = vunpack.c.l.b16 %v931
        %v1061 = vpack.c.b16 %v1060, %v1060
        %1062 = vrot.lane.b32.xlu0 %v1061, 96
        %v1063 = vpop.permute.xlu0 %1062
        %v1065 = vunpack.c.l.b16 %v965
        %v1066 = vpack.c.b16 %v1065, %v1065
        %1067 = vrot.lane.b32.xlu0 %v1066, 112
        %v1068 = vpop.permute.xlu0 %1067
        %v1070 = vunpack.c.l.b16 %v1024
        %v1071 = vpack.c.b16 %v1070, %v1070
        %1072 = vrot.lane.b32.xlu0 %v1071, 16
        %v1073 = vpop.permute.xlu0 %1072
        %v1075 = vunpack.c.l.b16 %v998
        %v1076 = vpack.c.b16 %v1075, %v1075
        %1077 = vrot.lane.b32.xlu0 %v1076, 32
        %v1078 = vpop.permute.xlu0 %1077
        %v1080 = vunpack.c.l.b16 %v1032
        %v1081 = vpack.c.b16 %v1080, %v1080
        %1082 = vrot.lane.b32.xlu0 %v1081, 48
        %v1083 = vpop.permute.xlu0 %1082
        %v1085 = vunpack.c.l.b16 %v997
        %v1086 = vpack.c.b16 %v1085, %v1085
        %1087 = vrot.lane.b32.xlu0 %v1086, 64
        %v1088 = vpop.permute.xlu0 %1087
        %v1090 = vunpack.c.l.b16 %v1031
        %v1091 = vpack.c.b16 %v1090, %v1090
        %1092 = vrot.lane.b32.xlu0 %v1091, 80
        %v1093 = vpop.permute.xlu0 %1092
        %v1095 = vunpack.c.l.b16 %v999
        %v1096 = vpack.c.b16 %v1095, %v1095
        %1097 = vrot.lane.b32.xlu0 %v1096, 96
        %v1098 = vpop.permute.xlu0 %1097
        %v1100 = vunpack.c.l.b16 %v1033
        %v1101 = vpack.c.b16 %v1100, %v1100
        %1102 = vrot.lane.b32.xlu0 %v1101, 112
        %v1103 = vpop.permute.xlu0 %1102
        %vm1104 = vcmask 130048
        %v1107 = vsel %vm1104, %v922, %v1038
        %vm1108 = vcmask 261120
        %v1110 = vsel %vm1108, %v1107, %v1043
        %vm1111 = vcmask 392192
        %v1113 = vsel %vm1111, %v1110, %v1048
        %vm1114 = vcmask 523264
        %v1116 = vsel %vm1114, %v1113, %v1053
        %vm1117 = vcmask 654336
        %v1119 = vsel %vm1117, %v1116, %v1058
        %vm1120 = vcmask 785408
        %v1122 = vsel %vm1120, %v1119, %v1063
        %vm1123 = vcmask 916480
        %v1125 = vsel %vm1123, %v1122, %v1068
        %v1128 = vsel %vm1104, %v990, %v1073
        %v1130 = vsel %vm1108, %v1128, %v1078
        %v1132 = vsel %vm1111, %v1130, %v1083
        %v1134 = vsel %vm1114, %v1132, %v1088
        %v1136 = vsel %vm1117, %v1134, %v1093
        %v1138 = vsel %vm1120, %v1136, %v1098
        %v1140 = vsel %vm1123, %v1138, %v1103
        %1149 = vrot.lane.b32.xlu0 %v866, 127
        %v1150 = vpop.permute.xlu0 %1149
        %1151 = vrot.lane.b32.xlu0 %v867, 127
        %v1152 = vpop.permute.xlu0 %1151
        %1153 = vrot.lane.b32.xlu0 %v868, 127
        %v1154 = vpop.permute.xlu0 %1153
        %1155 = vrot.lane.b32.xlu0 %v869, 127
        %v1156 = vpop.permute.xlu0 %1155
        %1157 = vrot.lane.b32.xlu0 %v870, 127
        %v1158 = vpop.permute.xlu0 %1157
        %1159 = vrot.lane.b32.xlu0 %v871, 127
        %v1160 = vpop.permute.xlu0 %1159
        %1161 = vrot.lane.b32.xlu0 %v872, 127
        %v1162 = vpop.permute.xlu0 %1161
        %1163 = vrot.lane.b32.xlu0 %v873, 127
        %v1164 = vpop.permute.xlu0 %1163
        %v1167 = vpack.i.b16 %v1154, %v1150
        %v1168 = vshrl.u32 %v1150, 16
        %v1169 = vshrl.u32 %v1154, 16
        %v1170 = vpack.i.b16 %v1169, %v1168
        %v1173 = vpack.i.b16 %v1162, %v1158
        %v1174 = vshrl.u32 %v1158, 16
        %v1175 = vshrl.u32 %v1162, 16
        %v1176 = vpack.i.b16 %v1175, %v1174
        %v1179 = vpack.i.b16 %v1156, %v1152
        %v1180 = vshrl.u32 %v1152, 16
        %v1181 = vshrl.u32 %v1156, 16
        %v1182 = vpack.i.b16 %v1181, %v1180
        %v1185 = vpack.i.b16 %v1164, %v1160
        %v1186 = vshrl.u32 %v1160, 16
        %v1187 = vshrl.u32 %v1164, 16
        %v1188 = vpack.i.b16 %v1187, %v1186
        %v1191 = vunpack.c.l.s4 1983009808
        %v1192 = vunpack.c.0.s8 %v1191
        %v1193 = vlaneseq
        %v1194 = vshrl.u32 %v1193, 7
        %v1195 = vsub.s32 %v1192, %v1194
        %v1196 = vrot.slane %v1167, %v1195
        %v1199 = vunpack.c.l.s4 1983009808
        %v1200 = vunpack.c.0.s8 %v1199
        %v1201 = vlaneseq
        %v1202 = vshrl.u32 %v1201, 7
        %v1203 = vsub.s32 %v1200, %v1202
        %v1204 = vrot.slane %v1173, %v1203
        %v1205 = vcombine.low %v1196, %v1204
        %v1206 = vcombine.high %v1196, %v1204
        %v1208 = vunpack.c.l.s4 1934713408
        %v1209 = vunpack.c.0.s8 %v1208
        %v1210 = vlaneseq
        %v1211 = vshrl.u32 %v1210, 7
        %v1212 = vsub.s32 %v1209, %v1211
        %v1213 = vrot.slane %v1205, %v1212
        %v1215 = vunpack.c.l.s4 1934713408
        %v1216 = vunpack.c.0.s8 %v1215
        %v1217 = vlaneseq
        %v1218 = vshrl.u32 %v1217, 7
        %v1219 = vsub.s32 %v1216, %v1218
        %v1220 = vrot.slane %v1206, %v1219
        %v1221 = vcombine.high %v1213, 0
        %v1222 = vcombine.high %v1220, 0
        %v1225 = vunpack.c.l.s4 1983009808
        %v1226 = vunpack.c.0.s8 %v1225
        %v1227 = vlaneseq
        %v1228 = vshrl.u32 %v1227, 7
        %v1229 = vsub.s32 %v1226, %v1228
        %v1230 = vrot.slane %v1170, %v1229
        %v1233 = vunpack.c.l.s4 1983009808
        %v1234 = vunpack.c.0.s8 %v1233
        %v1235 = vlaneseq
        %v1236 = vshrl.u32 %v1235, 7
        %v1237 = vsub.s32 %v1234, %v1236
        %v1238 = vrot.slane %v1176, %v1237
        %v1239 = vcombine.low %v1230, %v1238
        %v1240 = vcombine.high %v1230, %v1238
        %v1242 = vunpack.c.l.s4 1934713408
        %v1243 = vunpack.c.0.s8 %v1242
        %v1244 = vlaneseq
        %v1245 = vshrl.u32 %v1244, 7
        %v1246 = vsub.s32 %v1243, %v1245
        %v1247 = vrot.slane %v1239, %v1246
        %v1249 = vunpack.c.l.s4 1934713408
        %v1250 = vunpack.c.0.s8 %v1249
        %v1251 = vlaneseq
        %v1252 = vshrl.u32 %v1251, 7
        %v1253 = vsub.s32 %v1250, %v1252
        %v1254 = vrot.slane %v1240, %v1253
        %v1255 = vcombine.high %v1247, 0
        %v1256 = vcombine.high %v1254, 0
        %v1259 = vunpack.c.l.s4 1983009808
        %v1260 = vunpack.c.0.s8 %v1259
        %v1261 = vlaneseq
        %v1262 = vshrl.u32 %v1261, 7
        %v1263 = vsub.s32 %v1260, %v1262
        %v1264 = vrot.slane %v1179, %v1263
        %v1267 = vunpack.c.l.s4 1983009808
        %v1268 = vunpack.c.0.s8 %v1267
        %v1269 = vlaneseq
        %v1270 = vshrl.u32 %v1269, 7
        %v1271 = vsub.s32 %v1268, %v1270
        %v1272 = vrot.slane %v1185, %v1271
        %v1273 = vcombine.low %v1264, %v1272
        %v1274 = vcombine.high %v1264, %v1272
        %v1276 = vunpack.c.l.s4 1934713408
        %v1277 = vunpack.c.0.s8 %v1276
        %v1278 = vlaneseq
        %v1279 = vshrl.u32 %v1278, 7
        %v1280 = vsub.s32 %v1277, %v1279
        %v1281 = vrot.slane %v1273, %v1280
        %v1283 = vunpack.c.l.s4 1934713408
        %v1284 = vunpack.c.0.s8 %v1283
        %v1285 = vlaneseq
        %v1286 = vshrl.u32 %v1285, 7
        %v1287 = vsub.s32 %v1284, %v1286
        %v1288 = vrot.slane %v1274, %v1287
        %v1289 = vcombine.high %v1281, 0
        %v1290 = vcombine.high %v1288, 0
        %v1293 = vunpack.c.l.s4 1983009808
        %v1294 = vunpack.c.0.s8 %v1293
        %v1295 = vlaneseq
        %v1296 = vshrl.u32 %v1295, 7
        %v1297 = vsub.s32 %v1294, %v1296
        %v1298 = vrot.slane %v1182, %v1297
        %v1301 = vunpack.c.l.s4 1983009808
        %v1302 = vunpack.c.0.s8 %v1301
        %v1303 = vlaneseq
        %v1304 = vshrl.u32 %v1303, 7
        %v1305 = vsub.s32 %v1302, %v1304
        %v1306 = vrot.slane %v1188, %v1305
        %v1307 = vcombine.low %v1298, %v1306
        %v1308 = vcombine.high %v1298, %v1306
        %v1310 = vunpack.c.l.s4 1934713408
        %v1311 = vunpack.c.0.s8 %v1310
        %v1312 = vlaneseq
        %v1313 = vshrl.u32 %v1312, 7
        %v1314 = vsub.s32 %v1311, %v1313
        %v1315 = vrot.slane %v1307, %v1314
        %v1317 = vunpack.c.l.s4 1934713408
        %v1318 = vunpack.c.0.s8 %v1317
        %v1319 = vlaneseq
        %v1320 = vshrl.u32 %v1319, 7
        %v1321 = vsub.s32 %v1318, %v1320
        %v1322 = vrot.slane %v1308, %v1321
        %v1323 = vcombine.high %v1315, 0
        %v1324 = vcombine.high %v1322, 0
        %v1326 = vunpack.c.l.b16 %v1247
        %v1327 = vpack.c.b16 %v1326, %v1326
        %1328 = vrot.lane.b32.xlu0 %v1327, 16
        %v1329 = vpop.permute.xlu0 %1328
        %v1331 = vunpack.c.l.b16 %v1221
        %v1332 = vpack.c.b16 %v1331, %v1331
        %1333 = vrot.lane.b32.xlu0 %v1332, 32
        %v1334 = vpop.permute.xlu0 %1333
        %v1336 = vunpack.c.l.b16 %v1255
        %v1337 = vpack.c.b16 %v1336, %v1336
        %1338 = vrot.lane.b32.xlu0 %v1337, 48
        %v1339 = vpop.permute.xlu0 %1338
        %v1341 = vunpack.c.l.b16 %v1220
        %v1342 = vpack.c.b16 %v1341, %v1341
        %1343 = vrot.lane.b32.xlu0 %v1342, 64
        %v1344 = vpop.permute.xlu0 %1343
        %v1346 = vunpack.c.l.b16 %v1254
        %v1347 = vpack.c.b16 %v1346, %v1346
        %1348 = vrot.lane.b32.xlu0 %v1347, 80
        %v1349 = vpop.permute.xlu0 %1348
        %v1351 = vunpack.c.l.b16 %v1222
        %v1352 = vpack.c.b16 %v1351, %v1351
        %1353 = vrot.lane.b32.xlu0 %v1352, 96
        %v1354 = vpop.permute.xlu0 %1353
        %v1356 = vunpack.c.l.b16 %v1256
        %v1357 = vpack.c.b16 %v1356, %v1356
        %1358 = vrot.lane.b32.xlu0 %v1357, 112
        %v1359 = vpop.permute.xlu0 %1358
        %v1361 = vunpack.c.l.b16 %v1315
        %v1362 = vpack.c.b16 %v1361, %v1361
        %1363 = vrot.lane.b32.xlu0 %v1362, 16
        %v1364 = vpop.permute.xlu0 %1363
        %v1366 = vunpack.c.l.b16 %v1289
        %v1367 = vpack.c.b16 %v1366, %v1366
        %1368 = vrot.lane.b32.xlu0 %v1367, 32
        %v1369 = vpop.permute.xlu0 %1368
        %v1371 = vunpack.c.l.b16 %v1323
        %v1372 = vpack.c.b16 %v1371, %v1371
        %1373 = vrot.lane.b32.xlu0 %v1372, 48
        %v1374 = vpop.permute.xlu0 %1373
        %v1376 = vunpack.c.l.b16 %v1288
        %v1377 = vpack.c.b16 %v1376, %v1376
        %1378 = vrot.lane.b32.xlu0 %v1377, 64
        %v1379 = vpop.permute.xlu0 %1378
        %v1381 = vunpack.c.l.b16 %v1322
        %v1382 = vpack.c.b16 %v1381, %v1381
        %1383 = vrot.lane.b32.xlu0 %v1382, 80
        %v1384 = vpop.permute.xlu0 %1383
        %v1386 = vunpack.c.l.b16 %v1290
        %v1387 = vpack.c.b16 %v1386, %v1386
        %1388 = vrot.lane.b32.xlu0 %v1387, 96
        %v1389 = vpop.permute.xlu0 %1388
        %v1391 = vunpack.c.l.b16 %v1324
        %v1392 = vpack.c.b16 %v1391, %v1391
        %1393 = vrot.lane.b32.xlu0 %v1392, 112
        %v1394 = vpop.permute.xlu0 %1393
        %v1397 = vsel %vm1104, %v1213, %v1329
        %v1399 = vsel %vm1108, %v1397, %v1334
        %v1401 = vsel %vm1111, %v1399, %v1339
        %v1403 = vsel %vm1114, %v1401, %v1344
        %v1405 = vsel %vm1117, %v1403, %v1349
        %v1407 = vsel %vm1120, %v1405, %v1354
        %v1409 = vsel %vm1123, %v1407, %v1359
        %v1412 = vsel %vm1104, %v1281, %v1364
        %v1414 = vsel %vm1108, %v1412, %v1369
        %v1416 = vsel %vm1111, %v1414, %v1374
        %v1418 = vsel %vm1114, %v1416, %v1379
        %v1420 = vsel %vm1117, %v1418, %v1384
        %v1422 = vsel %vm1120, %v1420, %v1389
        %v1424 = vsel %vm1123, %v1422, %v1394
        %1425 = vrot.lane.b32.xlu0 %v866, 126
        %v1426 = vpop.permute.xlu0 %1425
        %1427 = vrot.lane.b32.xlu0 %v867, 126
        %v1428 = vpop.permute.xlu0 %1427
        %1429 = vrot.lane.b32.xlu0 %v868, 126
        %v1430 = vpop.permute.xlu0 %1429
        %1431 = vrot.lane.b32.xlu0 %v869, 126
        %v1432 = vpop.permute.xlu0 %1431
        %1433 = vrot.lane.b32.xlu0 %v870, 126
        %v1434 = vpop.permute.xlu0 %1433
        %1435 = vrot.lane.b32.xlu0 %v871, 126
        %v1436 = vpop.permute.xlu0 %1435
        %1437 = vrot.lane.b32.xlu0 %v872, 126
        %v1438 = vpop.permute.xlu0 %1437
        %1439 = vrot.lane.b32.xlu0 %v873, 126
        %v1440 = vpop.permute.xlu0 %1439
        %v1443 = vpack.i.b16 %v1430, %v1426
        %v1444 = vshrl.u32 %v1426, 16
        %v1445 = vshrl.u32 %v1430, 16
        %v1446 = vpack.i.b16 %v1445, %v1444
        %v1449 = vpack.i.b16 %v1438, %v1434
        %v1450 = vshrl.u32 %v1434, 16
        %v1451 = vshrl.u32 %v1438, 16
        %v1452 = vpack.i.b16 %v1451, %v1450
        %v1455 = vpack.i.b16 %v1432, %v1428
        %v1456 = vshrl.u32 %v1428, 16
        %v1457 = vshrl.u32 %v1432, 16
        %v1458 = vpack.i.b16 %v1457, %v1456
        %v1461 = vpack.i.b16 %v1440, %v1436
        %v1462 = vshrl.u32 %v1436, 16
        %v1463 = vshrl.u32 %v1440, 16
        %v1464 = vpack.i.b16 %v1463, %v1462
        %v1467 = vunpack.c.l.s4 1983009808
        %v1468 = vunpack.c.0.s8 %v1467
        %v1469 = vlaneseq
        %v1470 = vshrl.u32 %v1469, 7
        %v1471 = vsub.s32 %v1468, %v1470
        %v1472 = vrot.slane %v1443, %v1471
        %v1475 = vunpack.c.l.s4 1983009808
        %v1476 = vunpack.c.0.s8 %v1475
        %v1477 = vlaneseq
        %v1478 = vshrl.u32 %v1477, 7
        %v1479 = vsub.s32 %v1476, %v1478
        %v1480 = vrot.slane %v1449, %v1479
        %v1481 = vcombine.low %v1472, %v1480
        %v1482 = vcombine.high %v1472, %v1480
        %v1484 = vunpack.c.l.s4 1934713408
        %v1485 = vunpack.c.0.s8 %v1484
        %v1486 = vlaneseq
        %v1487 = vshrl.u32 %v1486, 7
        %v1488 = vsub.s32 %v1485, %v1487
        %v1489 = vrot.slane %v1481, %v1488
        %v1491 = vunpack.c.l.s4 1934713408
        %v1492 = vunpack.c.0.s8 %v1491
        %v1493 = vlaneseq
        %v1494 = vshrl.u32 %v1493, 7
        %v1495 = vsub.s32 %v1492, %v1494
        %v1496 = vrot.slane %v1482, %v1495
        %v1497 = vcombine.high %v1489, 0
        %v1498 = vcombine.high %v1496, 0
        %v1501 = vunpack.c.l.s4 1983009808
        %v1502 = vunpack.c.0.s8 %v1501
        %v1503 = vlaneseq
        %v1504 = vshrl.u32 %v1503, 7
        %v1505 = vsub.s32 %v1502, %v1504
        %v1506 = vrot.slane %v1446, %v1505
        %v1509 = vunpack.c.l.s4 1983009808
        %v1510 = vunpack.c.0.s8 %v1509
        %v1511 = vlaneseq
        %v1512 = vshrl.u32 %v1511, 7
        %v1513 = vsub.s32 %v1510, %v1512
        %v1514 = vrot.slane %v1452, %v1513
        %v1515 = vcombine.low %v1506, %v1514
        %v1516 = vcombine.high %v1506, %v1514
        %v1518 = vunpack.c.l.s4 1934713408
        %v1519 = vunpack.c.0.s8 %v1518
        %v1520 = vlaneseq
        %v1521 = vshrl.u32 %v1520, 7
        %v1522 = vsub.s32 %v1519, %v1521
        %v1523 = vrot.slane %v1515, %v1522
        %v1525 = vunpack.c.l.s4 1934713408
        %v1526 = vunpack.c.0.s8 %v1525
        %v1527 = vlaneseq
        %v1528 = vshrl.u32 %v1527, 7
        %v1529 = vsub.s32 %v1526, %v1528
        %v1530 = vrot.slane %v1516, %v1529
        %v1531 = vcombine.high %v1523, 0
        %v1532 = vcombine.high %v1530, 0
        %v1535 = vunpack.c.l.s4 1983009808
        %v1536 = vunpack.c.0.s8 %v1535
        %v1537 = vlaneseq
        %v1538 = vshrl.u32 %v1537, 7
        %v1539 = vsub.s32 %v1536, %v1538
        %v1540 = vrot.slane %v1455, %v1539
        %v1543 = vunpack.c.l.s4 1983009808
        %v1544 = vunpack.c.0.s8 %v1543
        %v1545 = vlaneseq
        %v1546 = vshrl.u32 %v1545, 7
        %v1547 = vsub.s32 %v1544, %v1546
        %v1548 = vrot.slane %v1461, %v1547
        %v1549 = vcombine.low %v1540, %v1548
        %v1550 = vcombine.high %v1540, %v1548
        %v1552 = vunpack.c.l.s4 1934713408
        %v1553 = vunpack.c.0.s8 %v1552
        %v1554 = vlaneseq
        %v1555 = vshrl.u32 %v1554, 7
        %v1556 = vsub.s32 %v1553, %v1555
        %v1557 = vrot.slane %v1549, %v1556
        %v1559 = vunpack.c.l.s4 1934713408
        %v1560 = vunpack.c.0.s8 %v1559
        %v1561 = vlaneseq
        %v1562 = vshrl.u32 %v1561, 7
        %v1563 = vsub.s32 %v1560, %v1562
        %v1564 = vrot.slane %v1550, %v1563
        %v1565 = vcombine.high %v1557, 0
        %v1566 = vcombine.high %v1564, 0
        %v1569 = vunpack.c.l.s4 1983009808
        %v1570 = vunpack.c.0.s8 %v1569
        %v1571 = vlaneseq
        %v1572 = vshrl.u32 %v1571, 7
        %v1573 = vsub.s32 %v1570, %v1572
        %v1574 = vrot.slane %v1458, %v1573
        %v1577 = vunpack.c.l.s4 1983009808
        %v1578 = vunpack.c.0.s8 %v1577
        %v1579 = vlaneseq
        %v1580 = vshrl.u32 %v1579, 7
        %v1581 = vsub.s32 %v1578, %v1580
        %v1582 = vrot.slane %v1464, %v1581
        %v1583 = vcombine.low %v1574, %v1582
        %v1584 = vcombine.high %v1574, %v1582
        %v1586 = vunpack.c.l.s4 1934713408
        %v1587 = vunpack.c.0.s8 %v1586
        %v1588 = vlaneseq
        %v1589 = vshrl.u32 %v1588, 7
        %v1590 = vsub.s32 %v1587, %v1589
        %v1591 = vrot.slane %v1583, %v1590
        %v1593 = vunpack.c.l.s4 1934713408
        %v1594 = vunpack.c.0.s8 %v1593
        %v1595 = vlaneseq
        %v1596 = vshrl.u32 %v1595, 7
        %v1597 = vsub.s32 %v1594, %v1596
        %v1598 = vrot.slane %v1584, %v1597
        %v1599 = vcombine.high %v1591, 0
        %v1600 = vcombine.high %v1598, 0
        %v1602 = vunpack.c.l.b16 %v1523
        %v1603 = vpack.c.b16 %v1602, %v1602
        %1604 = vrot.lane.b32.xlu0 %v1603, 16
        %v1605 = vpop.permute.xlu0 %1604
        %v1607 = vunpack.c.l.b16 %v1497
        %v1608 = vpack.c.b16 %v1607, %v1607
        %1609 = vrot.lane.b32.xlu0 %v1608, 32
        %v1610 = vpop.permute.xlu0 %1609
        %v1612 = vunpack.c.l.b16 %v1531
        %v1613 = vpack.c.b16 %v1612, %v1612
        %1614 = vrot.lane.b32.xlu0 %v1613, 48
        %v1615 = vpop.permute.xlu0 %1614
        %v1617 = vunpack.c.l.b16 %v1496
        %v1618 = vpack.c.b16 %v1617, %v1617
        %1619 = vrot.lane.b32.xlu0 %v1618, 64
        %v1620 = vpop.permute.xlu0 %1619
        %v1622 = vunpack.c.l.b16 %v1530
        %v1623 = vpack.c.b16 %v1622, %v1622
        %1624 = vrot.lane.b32.xlu0 %v1623, 80
        %v1625 = vpop.permute.xlu0 %1624
        %v1627 = vunpack.c.l.b16 %v1498
        %v1628 = vpack.c.b16 %v1627, %v1627
        %1629 = vrot.lane.b32.xlu0 %v1628, 96
        %v1630 = vpop.permute.xlu0 %1629
        %v1632 = vunpack.c.l.b16 %v1532
        %v1633 = vpack.c.b16 %v1632, %v1632
        %1634 = vrot.lane.b32.xlu0 %v1633, 112
        %v1635 = vpop.permute.xlu0 %1634
        %v1637 = vunpack.c.l.b16 %v1591
        %v1638 = vpack.c.b16 %v1637, %v1637
        %1639 = vrot.lane.b32.xlu0 %v1638, 16
        %v1640 = vpop.permute.xlu0 %1639
        %v1642 = vunpack.c.l.b16 %v1565
        %v1643 = vpack.c.b16 %v1642, %v1642
        %1644 = vrot.lane.b32.xlu0 %v1643, 32
        %v1645 = vpop.permute.xlu0 %1644
        %v1647 = vunpack.c.l.b16 %v1599
        %v1648 = vpack.c.b16 %v1647, %v1647
        %1649 = vrot.lane.b32.xlu0 %v1648, 48
        %v1650 = vpop.permute.xlu0 %1649
        %v1652 = vunpack.c.l.b16 %v1564
        %v1653 = vpack.c.b16 %v1652, %v1652
        %1654 = vrot.lane.b32.xlu0 %v1653, 64
        %v1655 = vpop.permute.xlu0 %1654
        %v1657 = vunpack.c.l.b16 %v1598
        %v1658 = vpack.c.b16 %v1657, %v1657
        %1659 = vrot.lane.b32.xlu0 %v1658, 80
        %v1660 = vpop.permute.xlu0 %1659
        %v1662 = vunpack.c.l.b16 %v1566
        %v1663 = vpack.c.b16 %v1662, %v1662
        %1664 = vrot.lane.b32.xlu0 %v1663, 96
        %v1665 = vpop.permute.xlu0 %1664
        %v1667 = vunpack.c.l.b16 %v1600
        %v1668 = vpack.c.b16 %v1667, %v1667
        %1669 = vrot.lane.b32.xlu0 %v1668, 112
        %v1670 = vpop.permute.xlu0 %1669
        %v1673 = vsel %vm1104, %v1489, %v1605
        %v1675 = vsel %vm1108, %v1673, %v1610
        %v1677 = vsel %vm1111, %v1675, %v1615
        %v1679 = vsel %vm1114, %v1677, %v1620
        %v1681 = vsel %vm1117, %v1679, %v1625
        %v1683 = vsel %vm1120, %v1681, %v1630
        %v1685 = vsel %vm1123, %v1683, %v1635
        %v1688 = vsel %vm1104, %v1557, %v1640
        %v1690 = vsel %vm1108, %v1688, %v1645
        %v1692 = vsel %vm1111, %v1690, %v1650
        %v1694 = vsel %vm1114, %v1692, %v1655
        %v1696 = vsel %vm1117, %v1694, %v1660
        %v1698 = vsel %vm1120, %v1696, %v1665
        %v1700 = vsel %vm1123, %v1698, %v1670
        %v1701 = vld [vmem:[#allocation2 + $0x8] sm:$0x1]
        %v1702 = vld [vmem:[#allocation2 + $0x14] sm:$0x1]
        %v1703 = vld [vmem:[#allocation2 + $0x20] sm:$0x1]
        %v1704 = vld [vmem:[#allocation2 + $0x2c] sm:$0x1]
        %vm1705 = vsmask.f32 3328
        %vm1706 = vsmask.f32 7440
        %vm1707 = vmor %vm1705, %vm1706
        %v1709 = vrot.slane %v877, 4
        %v1710 = vshll.u32 %v866, 16
        %v1712 = vrot.slane %v1710, 5
        %v1713 = vor.u32 %v1709, %v1712
        %v1714 = vrot.slane %v1713, 4
        %v1715 = vshll.u32 %v867, 16
        %v1717 = vrot.slane %v1715, 5
        %v1718 = vsel %vm1707, %v1714, %v1717
        %v1720 = vrot.slane %v889, 4
        %v1721 = vor.u32 %v1720, %v1717
        %v1722 = vrot.slane %v1721, 4
        %v1724 = vshll.u32 %v1701, 16
        %v1726 = vrot.slane %v1724, 5
        %v1727 = vsel %vm1707, %v1722, %v1726
        %v1729 = vrot.slane %v878, 4
        %v1730 = vshll.u32 %v868, 16
        %v1732 = vrot.slane %v1730, 5
        %v1733 = vor.u32 %v1729, %v1732
        %v1734 = vrot.slane %v1733, 4
        %v1735 = vshll.u32 %v869, 16
        %v1737 = vrot.slane %v1735, 5
        %v1738 = vsel %vm1707, %v1734, %v1737
        %v1740 = vrot.slane %v890, 4
        %v1741 = vor.u32 %v1740, %v1737
        %v1742 = vrot.slane %v1741, 4
        %v1744 = vshll.u32 %v1702, 16
        %v1746 = vrot.slane %v1744, 5
        %v1747 = vsel %vm1707, %v1742, %v1746
        %v1749 = vrot.slane %v883, 4
        %v1750 = vshll.u32 %v870, 16
        %v1752 = vrot.slane %v1750, 5
        %v1753 = vor.u32 %v1749, %v1752
        %v1754 = vrot.slane %v1753, 4
        %v1755 = vshll.u32 %v871, 16
        %v1757 = vrot.slane %v1755, 5
        %v1758 = vsel %vm1707, %v1754, %v1757
        %v1760 = vrot.slane %v895, 4
        %v1761 = vor.u32 %v1760, %v1757
        %v1762 = vrot.slane %v1761, 4
        %v1764 = vshll.u32 %v1703, 16
        %v1766 = vrot.slane %v1764, 5
        %v1767 = vsel %vm1707, %v1762, %v1766
        %v1769 = vrot.slane %v884, 4
        %v1770 = vshll.u32 %v872, 16
        %v1772 = vrot.slane %v1770, 5
        %v1773 = vor.u32 %v1769, %v1772
        %v1774 = vrot.slane %v1773, 4
        %v1775 = vshll.u32 %v873, 16
        %v1777 = vrot.slane %v1775, 5
        %v1778 = vsel %vm1707, %v1774, %v1777
        %v1780 = vrot.slane %v896, 4
        %v1781 = vor.u32 %v1780, %v1777
        %v1782 = vrot.slane %v1781, 4
        %v1784 = vshll.u32 %v1704, 16
        %v1786 = vrot.slane %v1784, 5
        %v1787 = vsel %vm1707, %v1782, %v1786
        %v1790 = vpack.i.b16 %v1738, %v1718
        %v1791 = vshrl.u32 %v1718, 16
        %v1792 = vshrl.u32 %v1738, 16
        %v1793 = vpack.i.b16 %v1792, %v1791
        %v1796 = vpack.i.b16 %v1778, %v1758
        %v1797 = vshrl.u32 %v1758, 16
        %v1798 = vshrl.u32 %v1778, 16
        %v1799 = vpack.i.b16 %v1798, %v1797
        %v1802 = vpack.i.b16 %v1747, %v1727
        %v1803 = vshrl.u32 %v1727, 16
        %v1804 = vshrl.u32 %v1747, 16
        %v1805 = vpack.i.b16 %v1804, %v1803
        %v1808 = vpack.i.b16 %v1787, %v1767
        %v1809 = vshrl.u32 %v1767, 16
        %v1810 = vshrl.u32 %v1787, 16
        %v1811 = vpack.i.b16 %v1810, %v1809
        %v1814 = vunpack.c.l.s4 1983009808
        %v1815 = vunpack.c.0.s8 %v1814
        %v1816 = vlaneseq
        %v1817 = vshrl.u32 %v1816, 7
        %v1818 = vsub.s32 %v1815, %v1817
        %v1819 = vrot.slane %v1790, %v1818
        %v1822 = vunpack.c.l.s4 1983009808
        %v1823 = vunpack.c.0.s8 %v1822
        %v1824 = vlaneseq
        %v1825 = vshrl.u32 %v1824, 7
        %v1826 = vsub.s32 %v1823, %v1825
        %v1827 = vrot.slane %v1796, %v1826
        %v1828 = vcombine.low %v1819, %v1827
        %v1829 = vcombine.high %v1819, %v1827
        %v1831 = vunpack.c.l.s4 1934713408
        %v1832 = vunpack.c.0.s8 %v1831
        %v1833 = vlaneseq
        %v1834 = vshrl.u32 %v1833, 7
        %v1835 = vsub.s32 %v1832, %v1834
        %v1836 = vrot.slane %v1828, %v1835
        %v1838 = vunpack.c.l.s4 1934713408
        %v1839 = vunpack.c.0.s8 %v1838
        %v1840 = vlaneseq
        %v1841 = vshrl.u32 %v1840, 7
        %v1842 = vsub.s32 %v1839, %v1841
        %v1843 = vrot.slane %v1829, %v1842
        %v1844 = vcombine.high %v1836, 0
        %v1845 = vcombine.high %v1843, 0
        %v1848 = vunpack.c.l.s4 1983009808
        %v1849 = vunpack.c.0.s8 %v1848
        %v1850 = vlaneseq
        %v1851 = vshrl.u32 %v1850, 7
        %v1852 = vsub.s32 %v1849, %v1851
        %v1853 = vrot.slane %v1793, %v1852
        %v1856 = vunpack.c.l.s4 1983009808
        %v1857 = vunpack.c.0.s8 %v1856
        %v1858 = vlaneseq
        %v1859 = vshrl.u32 %v1858, 7
        %v1860 = vsub.s32 %v1857, %v1859
        %v1861 = vrot.slane %v1799, %v1860
        %v1862 = vcombine.low %v1853, %v1861
        %v1863 = vcombine.high %v1853, %v1861
        %v1865 = vunpack.c.l.s4 1934713408
        %v1866 = vunpack.c.0.s8 %v1865
        %v1867 = vlaneseq
        %v1868 = vshrl.u32 %v1867, 7
        %v1869 = vsub.s32 %v1866, %v1868
        %v1870 = vrot.slane %v1862, %v1869
        %v1872 = vunpack.c.l.s4 1934713408
        %v1873 = vunpack.c.0.s8 %v1872
        %v1874 = vlaneseq
        %v1875 = vshrl.u32 %v1874, 7
        %v1876 = vsub.s32 %v1873, %v1875
        %v1877 = vrot.slane %v1863, %v1876
        %v1878 = vcombine.high %v1870, 0
        %v1879 = vcombine.high %v1877, 0
        %v1882 = vunpack.c.l.s4 1983009808
        %v1883 = vunpack.c.0.s8 %v1882
        %v1884 = vlaneseq
        %v1885 = vshrl.u32 %v1884, 7
        %v1886 = vsub.s32 %v1883, %v1885
        %v1887 = vrot.slane %v1802, %v1886
        %v1890 = vunpack.c.l.s4 1983009808
        %v1891 = vunpack.c.0.s8 %v1890
        %v1892 = vlaneseq
        %v1893 = vshrl.u32 %v1892, 7
        %v1894 = vsub.s32 %v1891, %v1893
        %v1895 = vrot.slane %v1808, %v1894
        %v1896 = vcombine.low %v1887, %v1895
        %v1897 = vcombine.high %v1887, %v1895
        %v1899 = vunpack.c.l.s4 1934713408
        %v1900 = vunpack.c.0.s8 %v1899
        %v1901 = vlaneseq
        %v1902 = vshrl.u32 %v1901, 7
        %v1903 = vsub.s32 %v1900, %v1902
        %v1904 = vrot.slane %v1896, %v1903
        %v1906 = vunpack.c.l.s4 1934713408
        %v1907 = vunpack.c.0.s8 %v1906
        %v1908 = vlaneseq
        %v1909 = vshrl.u32 %v1908, 7
        %v1910 = vsub.s32 %v1907, %v1909
        %v1911 = vrot.slane %v1897, %v1910
        %v1912 = vcombine.high %v1904, 0
        %v1913 = vcombine.high %v1911, 0
        %v1916 = vunpack.c.l.s4 1983009808
        %v1917 = vunpack.c.0.s8 %v1916
        %v1918 = vlaneseq
        %v1919 = vshrl.u32 %v1918, 7
        %v1920 = vsub.s32 %v1917, %v1919
        %v1921 = vrot.slane %v1805, %v1920
        %v1924 = vunpack.c.l.s4 1983009808
        %v1925 = vunpack.c.0.s8 %v1924
        %v1926 = vlaneseq
        %v1927 = vshrl.u32 %v1926, 7
        %v1928 = vsub.s32 %v1925, %v1927
        %v1929 = vrot.slane %v1811, %v1928
        %v1930 = vcombine.low %v1921, %v1929
        %v1931 = vcombine.high %v1921, %v1929
        %v1933 = vunpack.c.l.s4 1934713408
        %v1934 = vunpack.c.0.s8 %v1933
        %v1935 = vlaneseq
        %v1936 = vshrl.u32 %v1935, 7
        %v1937 = vsub.s32 %v1934, %v1936
        %v1938 = vrot.slane %v1930, %v1937
        %v1940 = vunpack.c.l.s4 1934713408
        %v1941 = vunpack.c.0.s8 %v1940
        %v1942 = vlaneseq
        %v1943 = vshrl.u32 %v1942, 7
        %v1944 = vsub.s32 %v1941, %v1943
        %v1945 = vrot.slane %v1931, %v1944
        %v1946 = vcombine.high %v1938, 0
        %v1947 = vcombine.high %v1945, 0
        %v1949 = vunpack.c.l.b16 %v1870
        %v1950 = vpack.c.b16 %v1949, %v1949
        %1951 = vrot.lane.b32.xlu0 %v1950, 16
        %v1952 = vpop.permute.xlu0 %1951
        %v1954 = vunpack.c.l.b16 %v1844
        %v1955 = vpack.c.b16 %v1954, %v1954
        %1956 = vrot.lane.b32.xlu0 %v1955, 32
        %v1957 = vpop.permute.xlu0 %1956
        %v1959 = vunpack.c.l.b16 %v1878
        %v1960 = vpack.c.b16 %v1959, %v1959
        %1961 = vrot.lane.b32.xlu0 %v1960, 48
        %v1962 = vpop.permute.xlu0 %1961
        %v1964 = vunpack.c.l.b16 %v1843
        %v1965 = vpack.c.b16 %v1964, %v1964
        %1966 = vrot.lane.b32.xlu0 %v1965, 64
        %v1967 = vpop.permute.xlu0 %1966
        %v1969 = vunpack.c.l.b16 %v1877
        %v1970 = vpack.c.b16 %v1969, %v1969
        %1971 = vrot.lane.b32.xlu0 %v1970, 80
        %v1972 = vpop.permute.xlu0 %1971
        %v1974 = vunpack.c.l.b16 %v1845
        %v1975 = vpack.c.b16 %v1974, %v1974
        %1976 = vrot.lane.b32.xlu0 %v1975, 96
        %v1977 = vpop.permute.xlu0 %1976
        %v1979 = vunpack.c.l.b16 %v1879
        %v1980 = vpack.c.b16 %v1979, %v1979
        %1981 = vrot.lane.b32.xlu0 %v1980, 112
        %v1982 = vpop.permute.xlu0 %1981
        %v1984 = vunpack.c.l.b16 %v1938
        %v1985 = vpack.c.b16 %v1984, %v1984
        %1986 = vrot.lane.b32.xlu0 %v1985, 16
        %v1987 = vpop.permute.xlu0 %1986
        %v1989 = vunpack.c.l.b16 %v1912
        %v1990 = vpack.c.b16 %v1989, %v1989
        %1991 = vrot.lane.b32.xlu0 %v1990, 32
        %v1992 = vpop.permute.xlu0 %1991
        %v1994 = vunpack.c.l.b16 %v1946
        %v1995 = vpack.c.b16 %v1994, %v1994
        %1996 = vrot.lane.b32.xlu0 %v1995, 48
        %v1997 = vpop.permute.xlu0 %1996
        %v1999 = vunpack.c.l.b16 %v1911
        %v2000 = vpack.c.b16 %v1999, %v1999
        %2001 = vrot.lane.b32.xlu0 %v2000, 64
        %v2002 = vpop.permute.xlu0 %2001
        %v2004 = vunpack.c.l.b16 %v1945
        %v2005 = vpack.c.b16 %v2004, %v2004
        %2006 = vrot.lane.b32.xlu0 %v2005, 80
        %v2007 = vpop.permute.xlu0 %2006
        %v2009 = vunpack.c.l.b16 %v1913
        %v2010 = vpack.c.b16 %v2009, %v2009
        %2011 = vrot.lane.b32.xlu0 %v2010, 96
        %v2012 = vpop.permute.xlu0 %2011
        %v2014 = vunpack.c.l.b16 %v1947
        %v2015 = vpack.c.b16 %v2014, %v2014
        %2016 = vrot.lane.b32.xlu0 %v2015, 112
        %v2017 = vpop.permute.xlu0 %2016
        %v2020 = vsel %vm1104, %v1836, %v1952
        %v2022 = vsel %vm1108, %v2020, %v1957
        %v2024 = vsel %vm1111, %v2022, %v1962
        %v2026 = vsel %vm1114, %v2024, %v1967
        %v2028 = vsel %vm1117, %v2026, %v1972
        %v2030 = vsel %vm1120, %v2028, %v1977
        %v2032 = vsel %vm1123, %v2030, %v1982
        %v2035 = vsel %vm1104, %v1904, %v1987
        %v2037 = vsel %vm1108, %v2035, %v1992
        %v2039 = vsel %vm1111, %v2037, %v1997
        %v2041 = vsel %vm1114, %v2039, %v2002
        %v2043 = vsel %vm1117, %v2041, %v2007
        %v2045 = vsel %vm1120, %v2043, %v2012
        %v2047 = vsel %vm1123, %v2045, %v2017
        %2048 = vrot.lane.b32.xlu0 %v1718, 127
        %v2049 = vpop.permute.xlu0 %2048
        %2050 = vrot.lane.b32.xlu0 %v1727, 127
        %v2051 = vpop.permute.xlu0 %2050
        %2052 = vrot.lane.b32.xlu0 %v1738, 127
        %v2053 = vpop.permute.xlu0 %2052
        %2054 = vrot.lane.b32.xlu0 %v1747, 127
        %v2055 = vpop.permute.xlu0 %2054
        %2056 = vrot.lane.b32.xlu0 %v1758, 127
        %v2057 = vpop.permute.xlu0 %2056
        %2058 = vrot.lane.b32.xlu0 %v1767, 127
        %v2059 = vpop.permute.xlu0 %2058
        %2060 = vrot.lane.b32.xlu0 %v1778, 127
        %v2061 = vpop.permute.xlu0 %2060
        %2062 = vrot.lane.b32.xlu0 %v1787, 127
        %v2063 = vpop.permute.xlu0 %2062
        %v2066 = vpack.i.b16 %v2053, %v2049
        %v2067 = vshrl.u32 %v2049, 16
        %v2068 = vshrl.u32 %v2053, 16
        %v2069 = vpack.i.b16 %v2068, %v2067
        %v2072 = vpack.i.b16 %v2061, %v2057
        %v2073 = vshrl.u32 %v2057, 16
        %v2074 = vshrl.u32 %v2061, 16
        %v2075 = vpack.i.b16 %v2074, %v2073
        %v2078 = vpack.i.b16 %v2055, %v2051
        %v2079 = vshrl.u32 %v2051, 16
        %v2080 = vshrl.u32 %v2055, 16
        %v2081 = vpack.i.b16 %v2080, %v2079
        %v2084 = vpack.i.b16 %v2063, %v2059
        %v2085 = vshrl.u32 %v2059, 16
        %v2086 = vshrl.u32 %v2063, 16
        %v2087 = vpack.i.b16 %v2086, %v2085
        %v2090 = vunpack.c.l.s4 1983009808
        %v2091 = vunpack.c.0.s8 %v2090
        %v2092 = vlaneseq
        %v2093 = vshrl.u32 %v2092, 7
        %v2094 = vsub.s32 %v2091, %v2093
        %v2095 = vrot.slane %v2066, %v2094
        %v2098 = vunpack.c.l.s4 1983009808
        %v2099 = vunpack.c.0.s8 %v2098
        %v2100 = vlaneseq
        %v2101 = vshrl.u32 %v2100, 7
        %v2102 = vsub.s32 %v2099, %v2101
        %v2103 = vrot.slane %v2072, %v2102
        %v2104 = vcombine.low %v2095, %v2103
        %v2105 = vcombine.high %v2095, %v2103
        %v2107 = vunpack.c.l.s4 1934713408
        %v2108 = vunpack.c.0.s8 %v2107
        %v2109 = vlaneseq
        %v2110 = vshrl.u32 %v2109, 7
        %v2111 = vsub.s32 %v2108, %v2110
        %v2112 = vrot.slane %v2104, %v2111
        %v2114 = vunpack.c.l.s4 1934713408
        %v2115 = vunpack.c.0.s8 %v2114
        %v2116 = vlaneseq
        %v2117 = vshrl.u32 %v2116, 7
        %v2118 = vsub.s32 %v2115, %v2117
        %v2119 = vrot.slane %v2105, %v2118
        %v2120 = vcombine.high %v2112, 0
        %v2121 = vcombine.high %v2119, 0
        %v2124 = vunpack.c.l.s4 1983009808
        %v2125 = vunpack.c.0.s8 %v2124
        %v2126 = vlaneseq
        %v2127 = vshrl.u32 %v2126, 7
        %v2128 = vsub.s32 %v2125, %v2127
        %v2129 = vrot.slane %v2069, %v2128
        %v2132 = vunpack.c.l.s4 1983009808
        %v2133 = vunpack.c.0.s8 %v2132
        %v2134 = vlaneseq
        %v2135 = vshrl.u32 %v2134, 7
        %v2136 = vsub.s32 %v2133, %v2135
        %v2137 = vrot.slane %v2075, %v2136
        %v2138 = vcombine.low %v2129, %v2137
        %v2139 = vcombine.high %v2129, %v2137
        %v2141 = vunpack.c.l.s4 1934713408
        %v2142 = vunpack.c.0.s8 %v2141
        %v2143 = vlaneseq
        %v2144 = vshrl.u32 %v2143, 7
        %v2145 = vsub.s32 %v2142, %v2144
        %v2146 = vrot.slane %v2138, %v2145
        %v2148 = vunpack.c.l.s4 1934713408
        %v2149 = vunpack.c.0.s8 %v2148
        %v2150 = vlaneseq
        %v2151 = vshrl.u32 %v2150, 7
        %v2152 = vsub.s32 %v2149, %v2151
        %v2153 = vrot.slane %v2139, %v2152
        %v2154 = vcombine.high %v2146, 0
        %v2155 = vcombine.high %v2153, 0
        %v2158 = vunpack.c.l.s4 1983009808
        %v2159 = vunpack.c.0.s8 %v2158
        %v2160 = vlaneseq
        %v2161 = vshrl.u32 %v2160, 7
        %v2162 = vsub.s32 %v2159, %v2161
        %v2163 = vrot.slane %v2078, %v2162
        %v2166 = vunpack.c.l.s4 1983009808
        %v2167 = vunpack.c.0.s8 %v2166
        %v2168 = vlaneseq
        %v2169 = vshrl.u32 %v2168, 7
        %v2170 = vsub.s32 %v2167, %v2169
        %v2171 = vrot.slane %v2084, %v2170
        %v2172 = vcombine.low %v2163, %v2171
        %v2173 = vcombine.high %v2163, %v2171
        %v2175 = vunpack.c.l.s4 1934713408
        %v2176 = vunpack.c.0.s8 %v2175
        %v2177 = vlaneseq
        %v2178 = vshrl.u32 %v2177, 7
        %v2179 = vsub.s32 %v2176, %v2178
        %v2180 = vrot.slane %v2172, %v2179
        %v2182 = vunpack.c.l.s4 1934713408
        %v2183 = vunpack.c.0.s8 %v2182
        %v2184 = vlaneseq
        %v2185 = vshrl.u32 %v2184, 7
        %v2186 = vsub.s32 %v2183, %v2185
        %v2187 = vrot.slane %v2173, %v2186
        %v2188 = vcombine.high %v2180, 0
        %v2189 = vcombine.high %v2187, 0
        %v2192 = vunpack.c.l.s4 1983009808
        %v2193 = vunpack.c.0.s8 %v2192
        %v2194 = vlaneseq
        %v2195 = vshrl.u32 %v2194, 7
        %v2196 = vsub.s32 %v2193, %v2195
        %v2197 = vrot.slane %v2081, %v2196
        %v2200 = vunpack.c.l.s4 1983009808
        %v2201 = vunpack.c.0.s8 %v2200
        %v2202 = vlaneseq
        %v2203 = vshrl.u32 %v2202, 7
        %v2204 = vsub.s32 %v2201, %v2203
        %v2205 = vrot.slane %v2087, %v2204
        %v2206 = vcombine.low %v2197, %v2205
        %v2207 = vcombine.high %v2197, %v2205
        %v2209 = vunpack.c.l.s4 1934713408
        %v2210 = vunpack.c.0.s8 %v2209
        %v2211 = vlaneseq
        %v2212 = vshrl.u32 %v2211, 7
        %v2213 = vsub.s32 %v2210, %v2212
        %v2214 = vrot.slane %v2206, %v2213
        %v2216 = vunpack.c.l.s4 1934713408
        %v2217 = vunpack.c.0.s8 %v2216
        %v2218 = vlaneseq
        %v2219 = vshrl.u32 %v2218, 7
        %v2220 = vsub.s32 %v2217, %v2219
        %v2221 = vrot.slane %v2207, %v2220
        %v2222 = vcombine.high %v2214, 0
        %v2223 = vcombine.high %v2221, 0
        %v2225 = vunpack.c.l.b16 %v2146
        %v2226 = vpack.c.b16 %v2225, %v2225
        %2227 = vrot.lane.b32.xlu0 %v2226, 16
        %v2228 = vpop.permute.xlu0 %2227
        %v2230 = vunpack.c.l.b16 %v2120
        %v2231 = vpack.c.b16 %v2230, %v2230
        %2232 = vrot.lane.b32.xlu0 %v2231, 32
        %v2233 = vpop.permute.xlu0 %2232
        %v2235 = vunpack.c.l.b16 %v2154
        %v2236 = vpack.c.b16 %v2235, %v2235
        %2237 = vrot.lane.b32.xlu0 %v2236, 48
        %v2238 = vpop.permute.xlu0 %2237
        %v2240 = vunpack.c.l.b16 %v2119
        %v2241 = vpack.c.b16 %v2240, %v2240
        %2242 = vrot.lane.b32.xlu0 %v2241, 64
        %v2243 = vpop.permute.xlu0 %2242
        %v2245 = vunpack.c.l.b16 %v2153
        %v2246 = vpack.c.b16 %v2245, %v2245
        %2247 = vrot.lane.b32.xlu0 %v2246, 80
        %v2248 = vpop.permute.xlu0 %2247
        %v2250 = vunpack.c.l.b16 %v2121
        %v2251 = vpack.c.b16 %v2250, %v2250
        %2252 = vrot.lane.b32.xlu0 %v2251, 96
        %v2253 = vpop.permute.xlu0 %2252
        %v2255 = vunpack.c.l.b16 %v2155
        %v2256 = vpack.c.b16 %v2255, %v2255
        %2257 = vrot.lane.b32.xlu0 %v2256, 112
        %v2258 = vpop.permute.xlu0 %2257
        %v2260 = vunpack.c.l.b16 %v2214
        %v2261 = vpack.c.b16 %v2260, %v2260
        %2262 = vrot.lane.b32.xlu0 %v2261, 16
        %v2263 = vpop.permute.xlu0 %2262
        %v2265 = vunpack.c.l.b16 %v2188
        %v2266 = vpack.c.b16 %v2265, %v2265
        %2267 = vrot.lane.b32.xlu0 %v2266, 32
        %v2268 = vpop.permute.xlu0 %2267
        %v2270 = vunpack.c.l.b16 %v2222
        %v2271 = vpack.c.b16 %v2270, %v2270
        %2272 = vrot.lane.b32.xlu0 %v2271, 48
        %v2273 = vpop.permute.xlu0 %2272
        %v2275 = vunpack.c.l.b16 %v2187
        %v2276 = vpack.c.b16 %v2275, %v2275
        %2277 = vrot.lane.b32.xlu0 %v2276, 64
        %v2278 = vpop.permute.xlu0 %2277
        %v2280 = vunpack.c.l.b16 %v2221
        %v2281 = vpack.c.b16 %v2280, %v2280
        %2282 = vrot.lane.b32.xlu0 %v2281, 80
        %v2283 = vpop.permute.xlu0 %2282
        %v2285 = vunpack.c.l.b16 %v2189
        %v2286 = vpack.c.b16 %v2285, %v2285
        %2287 = vrot.lane.b32.xlu0 %v2286, 96
        %v2288 = vpop.permute.xlu0 %2287
        %v2290 = vunpack.c.l.b16 %v2223
        %v2291 = vpack.c.b16 %v2290, %v2290
        %2292 = vrot.lane.b32.xlu0 %v2291, 112
        %v2293 = vpop.permute.xlu0 %2292
        %v2296 = vsel %vm1104, %v2112, %v2228
        %v2298 = vsel %vm1108, %v2296, %v2233
        %v2300 = vsel %vm1111, %v2298, %v2238
        %v2302 = vsel %vm1114, %v2300, %v2243
        %v2304 = vsel %vm1117, %v2302, %v2248
        %v2306 = vsel %vm1120, %v2304, %v2253
        %v2308 = vsel %vm1123, %v2306, %v2258
        %v2311 = vsel %vm1104, %v2180, %v2263
        %v2313 = vsel %vm1108, %v2311, %v2268
        %v2315 = vsel %vm1111, %v2313, %v2273
        %v2317 = vsel %vm1114, %v2315, %v2278
        %v2319 = vsel %vm1117, %v2317, %v2283
        %v2321 = vsel %vm1120, %v2319, %v2288
        %v2323 = vsel %vm1123, %v2321, %v2293
        %2324 = vrot.lane.b32.xlu0 %v1718, 126
        %v2325 = vpop.permute.xlu0 %2324
        %2326 = vrot.lane.b32.xlu0 %v1727, 126
        %v2327 = vpop.permute.xlu0 %2326
        %2328 = vrot.lane.b32.xlu0 %v1738, 126
        %v2329 = vpop.permute.xlu0 %2328
        %2330 = vrot.lane.b32.xlu0 %v1747, 126
        %v2331 = vpop.permute.xlu0 %2330
        %2332 = vrot.lane.b32.xlu0 %v1758, 126
        %v2333 = vpop.permute.xlu0 %2332
        %2334 = vrot.lane.b32.xlu0 %v1767, 126
        %v2335 = vpop.permute.xlu0 %2334
        %2336 = vrot.lane.b32.xlu0 %v1778, 126
        %v2337 = vpop.permute.xlu0 %2336
        %2338 = vrot.lane.b32.xlu0 %v1787, 126
        %v2339 = vpop.permute.xlu0 %2338
        %v2342 = vpack.i.b16 %v2329, %v2325
        %v2343 = vshrl.u32 %v2325, 16
        %v2344 = vshrl.u32 %v2329, 16
        %v2345 = vpack.i.b16 %v2344, %v2343
        %v2348 = vpack.i.b16 %v2337, %v2333
        %v2349 = vshrl.u32 %v2333, 16
        %v2350 = vshrl.u32 %v2337, 16
        %v2351 = vpack.i.b16 %v2350, %v2349
        %v2354 = vpack.i.b16 %v2331, %v2327
        %v2355 = vshrl.u32 %v2327, 16
        %v2356 = vshrl.u32 %v2331, 16
        %v2357 = vpack.i.b16 %v2356, %v2355
        %v2360 = vpack.i.b16 %v2339, %v2335
        %v2361 = vshrl.u32 %v2335, 16
        %v2362 = vshrl.u32 %v2339, 16
        %v2363 = vpack.i.b16 %v2362, %v2361
        %v2366 = vunpack.c.l.s4 1983009808
        %v2367 = vunpack.c.0.s8 %v2366
        %v2368 = vlaneseq
        %v2369 = vshrl.u32 %v2368, 7
        %v2370 = vsub.s32 %v2367, %v2369
        %v2371 = vrot.slane %v2342, %v2370
        %v2374 = vunpack.c.l.s4 1983009808
        %v2375 = vunpack.c.0.s8 %v2374
        %v2376 = vlaneseq
        %v2377 = vshrl.u32 %v2376, 7
        %v2378 = vsub.s32 %v2375, %v2377
        %v2379 = vrot.slane %v2348, %v2378
        %v2380 = vcombine.low %v2371, %v2379
        %v2381 = vcombine.high %v2371, %v2379
        %v2383 = vunpack.c.l.s4 1934713408
        %v2384 = vunpack.c.0.s8 %v2383
        %v2385 = vlaneseq
        %v2386 = vshrl.u32 %v2385, 7
        %v2387 = vsub.s32 %v2384, %v2386
        %v2388 = vrot.slane %v2380, %v2387
        %v2390 = vunpack.c.l.s4 1934713408
        %v2391 = vunpack.c.0.s8 %v2390
        %v2392 = vlaneseq
        %v2393 = vshrl.u32 %v2392, 7
        %v2394 = vsub.s32 %v2391, %v2393
        %v2395 = vrot.slane %v2381, %v2394
        %v2396 = vcombine.high %v2388, 0
        %v2397 = vcombine.high %v2395, 0
        %v2400 = vunpack.c.l.s4 1983009808
        %v2401 = vunpack.c.0.s8 %v2400
        %v2402 = vlaneseq
        %v2403 = vshrl.u32 %v2402, 7
        %v2404 = vsub.s32 %v2401, %v2403
        %v2405 = vrot.slane %v2345, %v2404
        %v2408 = vunpack.c.l.s4 1983009808
        %v2409 = vunpack.c.0.s8 %v2408
        %v2410 = vlaneseq
        %v2411 = vshrl.u32 %v2410, 7
        %v2412 = vsub.s32 %v2409, %v2411
        %v2413 = vrot.slane %v2351, %v2412
        %v2414 = vcombine.low %v2405, %v2413
        %v2415 = vcombine.high %v2405, %v2413
        %v2417 = vunpack.c.l.s4 1934713408
        %v2418 = vunpack.c.0.s8 %v2417
        %v2419 = vlaneseq
        %v2420 = vshrl.u32 %v2419, 7
        %v2421 = vsub.s32 %v2418, %v2420
        %v2422 = vrot.slane %v2414, %v2421
        %v2424 = vunpack.c.l.s4 1934713408
        %v2425 = vunpack.c.0.s8 %v2424
        %v2426 = vlaneseq
        %v2427 = vshrl.u32 %v2426, 7
        %v2428 = vsub.s32 %v2425, %v2427
        %v2429 = vrot.slane %v2415, %v2428
        %v2430 = vcombine.high %v2422, 0
        %v2431 = vcombine.high %v2429, 0
        %v2434 = vunpack.c.l.s4 1983009808
        %v2435 = vunpack.c.0.s8 %v2434
        %v2436 = vlaneseq
        %v2437 = vshrl.u32 %v2436, 7
        %v2438 = vsub.s32 %v2435, %v2437
        %v2439 = vrot.slane %v2354, %v2438
        %v2442 = vunpack.c.l.s4 1983009808
        %v2443 = vunpack.c.0.s8 %v2442
        %v2444 = vlaneseq
        %v2445 = vshrl.u32 %v2444, 7
        %v2446 = vsub.s32 %v2443, %v2445
        %v2447 = vrot.slane %v2360, %v2446
        %v2448 = vcombine.low %v2439, %v2447
        %v2449 = vcombine.high %v2439, %v2447
        %v2451 = vunpack.c.l.s4 1934713408
        %v2452 = vunpack.c.0.s8 %v2451
        %v2453 = vlaneseq
        %v2454 = vshrl.u32 %v2453, 7
        %v2455 = vsub.s32 %v2452, %v2454
        %v2456 = vrot.slane %v2448, %v2455
        %v2458 = vunpack.c.l.s4 1934713408
        %v2459 = vunpack.c.0.s8 %v2458
        %v2460 = vlaneseq
        %v2461 = vshrl.u32 %v2460, 7
        %v2462 = vsub.s32 %v2459, %v2461
        %v2463 = vrot.slane %v2449, %v2462
        %v2464 = vcombine.high %v2456, 0
        %v2465 = vcombine.high %v2463, 0
        %v2468 = vunpack.c.l.s4 1983009808
        %v2469 = vunpack.c.0.s8 %v2468
        %v2470 = vlaneseq
        %v2471 = vshrl.u32 %v2470, 7
        %v2472 = vsub.s32 %v2469, %v2471
        %v2473 = vrot.slane %v2357, %v2472
        %v2476 = vunpack.c.l.s4 1983009808
        %v2477 = vunpack.c.0.s8 %v2476
        %v2478 = vlaneseq
        %v2479 = vshrl.u32 %v2478, 7
        %v2480 = vsub.s32 %v2477, %v2479
        %v2481 = vrot.slane %v2363, %v2480
        %v2482 = vcombine.low %v2473, %v2481
        %v2483 = vcombine.high %v2473, %v2481
        %v2485 = vunpack.c.l.s4 1934713408
        %v2486 = vunpack.c.0.s8 %v2485
        %v2487 = vlaneseq
        %v2488 = vshrl.u32 %v2487, 7
        %v2489 = vsub.s32 %v2486, %v2488
        %v2490 = vrot.slane %v2482, %v2489
        %v2492 = vunpack.c.l.s4 1934713408
        %v2493 = vunpack.c.0.s8 %v2492
        %v2494 = vlaneseq
        %v2495 = vshrl.u32 %v2494, 7
        %v2496 = vsub.s32 %v2493, %v2495
        %v2497 = vrot.slane %v2483, %v2496
        %v2498 = vcombine.high %v2490, 0
        %v2499 = vcombine.high %v2497, 0
        %v2501 = vunpack.c.l.b16 %v2422
        %v2502 = vpack.c.b16 %v2501, %v2501
        %2503 = vrot.lane.b32.xlu0 %v2502, 16
        %v2504 = vpop.permute.xlu0 %2503
        %v2506 = vunpack.c.l.b16 %v2396
        %v2507 = vpack.c.b16 %v2506, %v2506
        %2508 = vrot.lane.b32.xlu0 %v2507, 32
        %v2509 = vpop.permute.xlu0 %2508
        %v2511 = vunpack.c.l.b16 %v2430
        %v2512 = vpack.c.b16 %v2511, %v2511
        %2513 = vrot.lane.b32.xlu0 %v2512, 48
        %v2514 = vpop.permute.xlu0 %2513
        %v2516 = vunpack.c.l.b16 %v2395
        %v2517 = vpack.c.b16 %v2516, %v2516
        %2518 = vrot.lane.b32.xlu0 %v2517, 64
        %v2519 = vpop.permute.xlu0 %2518
        %v2521 = vunpack.c.l.b16 %v2429
        %v2522 = vpack.c.b16 %v2521, %v2521
        %2523 = vrot.lane.b32.xlu0 %v2522, 80
        %v2524 = vpop.permute.xlu0 %2523
        %v2526 = vunpack.c.l.b16 %v2397
        %v2527 = vpack.c.b16 %v2526, %v2526
        %2528 = vrot.lane.b32.xlu0 %v2527, 96
        %v2529 = vpop.permute.xlu0 %2528
        %v2531 = vunpack.c.l.b16 %v2431
        %v2532 = vpack.c.b16 %v2531, %v2531
        %2533 = vrot.lane.b32.xlu0 %v2532, 112
        %v2534 = vpop.permute.xlu0 %2533
        %v2536 = vunpack.c.l.b16 %v2490
        %v2537 = vpack.c.b16 %v2536, %v2536
        %2538 = vrot.lane.b32.xlu0 %v2537, 16
        %v2539 = vpop.permute.xlu0 %2538
        %v2541 = vunpack.c.l.b16 %v2464
        %v2542 = vpack.c.b16 %v2541, %v2541
        %2543 = vrot.lane.b32.xlu0 %v2542, 32
        %v2544 = vpop.permute.xlu0 %2543
        %v2546 = vunpack.c.l.b16 %v2498
        %v2547 = vpack.c.b16 %v2546, %v2546
        %2548 = vrot.lane.b32.xlu0 %v2547, 48
        %v2549 = vpop.permute.xlu0 %2548
        %v2551 = vunpack.c.l.b16 %v2463
        %v2552 = vpack.c.b16 %v2551, %v2551
        %2553 = vrot.lane.b32.xlu0 %v2552, 64
        %v2554 = vpop.permute.xlu0 %2553
        %v2556 = vunpack.c.l.b16 %v2497
        %v2557 = vpack.c.b16 %v2556, %v2556
        %2558 = vrot.lane.b32.xlu0 %v2557, 80
        %v2559 = vpop.permute.xlu0 %2558
        %v2561 = vunpack.c.l.b16 %v2465
        %v2562 = vpack.c.b16 %v2561, %v2561
        %2563 = vrot.lane.b32.xlu0 %v2562, 96
        %v2564 = vpop.permute.xlu0 %2563
        %v2566 = vunpack.c.l.b16 %v2499
        %v2567 = vpack.c.b16 %v2566, %v2566
        %2568 = vrot.lane.b32.xlu0 %v2567, 112
        %v2569 = vpop.permute.xlu0 %2568
        %v2572 = vsel %vm1104, %v2388, %v2504
        %v2574 = vsel %vm1108, %v2572, %v2509
        %v2576 = vsel %vm1111, %v2574, %v2514
        %v2578 = vsel %vm1114, %v2576, %v2519
        %v2580 = vsel %vm1117, %v2578, %v2524
        %v2582 = vsel %vm1120, %v2580, %v2529
        %v2584 = vsel %vm1123, %v2582, %v2534
        %v2587 = vsel %vm1104, %v2456, %v2539
        %v2589 = vsel %vm1108, %v2587, %v2544
        %v2591 = vsel %vm1111, %v2589, %v2549
        %v2593 = vsel %vm1114, %v2591, %v2554
        %v2595 = vsel %vm1117, %v2593, %v2559
        %v2597 = vsel %vm1120, %v2595, %v2564
        %v2599 = vsel %vm1123, %v2597, %v2569
        %v2600 = vld [vmem:[#allocation2] sm:$0xe]
        %v2601 = vld [vmem:[#allocation2 + $0xc] sm:$0xe]
        %v2602 = vld [vmem:[#allocation2 + $0x18] sm:$0xe]
        %v2603 = vld [vmem:[#allocation2 + $0x24] sm:$0xe]
        %vm2612 = vcmask 1042432
        %vm2613 = vcmask 1046532
        %vm2614 = vmor %vm2612, %vm2613
        %v2615 = vrot.slane %v2600, 5
        %v2616 = vrot.slane %v2615, 4
        %v2617 = vrot.slane %v867, 5
        %v2618 = vsel %vm2614, %v2616, %v2617
        %v2619 = vrot.slane %v2617, 4
        %v2620 = vrot.slane %v1701, 5
        %v2621 = vsel %vm2614, %v2619, %v2620
        %v2622 = vrot.slane %v2601, 5
        %v2623 = vrot.slane %v2622, 4
        %v2624 = vrot.slane %v869, 5
        %v2625 = vsel %vm2614, %v2623, %v2624
        %v2626 = vrot.slane %v2624, 4
        %v2627 = vrot.slane %v1702, 5
        %v2628 = vsel %vm2614, %v2626, %v2627
        %v2629 = vrot.slane %v2602, 5
        %v2630 = vrot.slane %v2629, 4
        %v2631 = vrot.slane %v871, 5
        %v2632 = vsel %vm2614, %v2630, %v2631
        %v2633 = vrot.slane %v2631, 4
        %v2634 = vrot.slane %v1703, 5
        %v2635 = vsel %vm2614, %v2633, %v2634
        %v2636 = vrot.slane %v2603, 5
        %v2637 = vrot.slane %v2636, 4
        %v2638 = vrot.slane %v873, 5
        %v2639 = vsel %vm2614, %v2637, %v2638
        %v2640 = vrot.slane %v2638, 4
        %v2641 = vrot.slane %v1704, 5
        %v2642 = vsel %vm2614, %v2640, %v2641
        %v2645 = vpack.i.b16 %v2625, %v2618
        %v2646 = vshrl.u32 %v2618, 16
        %v2647 = vshrl.u32 %v2625, 16
        %v2648 = vpack.i.b16 %v2647, %v2646
        %v2651 = vpack.i.b16 %v2639, %v2632
        %v2652 = vshrl.u32 %v2632, 16
        %v2653 = vshrl.u32 %v2639, 16
        %v2654 = vpack.i.b16 %v2653, %v2652
        %v2657 = vpack.i.b16 %v2628, %v2621
        %v2658 = vshrl.u32 %v2621, 16
        %v2659 = vshrl.u32 %v2628, 16
        %v2660 = vpack.i.b16 %v2659, %v2658
        %v2663 = vpack.i.b16 %v2642, %v2635
        %v2664 = vshrl.u32 %v2635, 16
        %v2665 = vshrl.u32 %v2642, 16
        %v2666 = vpack.i.b16 %v2665, %v2664
        %v2669 = vunpack.c.l.s4 1983009808
        %v2670 = vunpack.c.0.s8 %v2669
        %v2671 = vlaneseq
        %v2672 = vshrl.u32 %v2671, 7
        %v2673 = vsub.s32 %v2670, %v2672
        %v2674 = vrot.slane %v2645, %v2673
        %v2677 = vunpack.c.l.s4 1983009808
        %v2678 = vunpack.c.0.s8 %v2677
        %v2679 = vlaneseq
        %v2680 = vshrl.u32 %v2679, 7
        %v2681 = vsub.s32 %v2678, %v2680
        %v2682 = vrot.slane %v2651, %v2681
        %v2683 = vcombine.low %v2674, %v2682
        %v2684 = vcombine.high %v2674, %v2682
        %v2686 = vunpack.c.l.s4 1934713408
        %v2687 = vunpack.c.0.s8 %v2686
        %v2688 = vlaneseq
        %v2689 = vshrl.u32 %v2688, 7
        %v2690 = vsub.s32 %v2687, %v2689
        %v2691 = vrot.slane %v2683, %v2690
        %v2693 = vunpack.c.l.s4 1934713408
        %v2694 = vunpack.c.0.s8 %v2693
        %v2695 = vlaneseq
        %v2696 = vshrl.u32 %v2695, 7
        %v2697 = vsub.s32 %v2694, %v2696
        %v2698 = vrot.slane %v2684, %v2697
        %v2699 = vcombine.high %v2691, 0
        %v2700 = vcombine.high %v2698, 0
        %v2703 = vunpack.c.l.s4 1983009808
        %v2704 = vunpack.c.0.s8 %v2703
        %v2705 = vlaneseq
        %v2706 = vshrl.u32 %v2705, 7
        %v2707 = vsub.s32 %v2704, %v2706
        %v2708 = vrot.slane %v2648, %v2707
        %v2711 = vunpack.c.l.s4 1983009808
        %v2712 = vunpack.c.0.s8 %v2711
        %v2713 = vlaneseq
        %v2714 = vshrl.u32 %v2713, 7
        %v2715 = vsub.s32 %v2712, %v2714
        %v2716 = vrot.slane %v2654, %v2715
        %v2717 = vcombine.low %v2708, %v2716
        %v2718 = vcombine.high %v2708, %v2716
        %v2720 = vunpack.c.l.s4 1934713408
        %v2721 = vunpack.c.0.s8 %v2720
        %v2722 = vlaneseq
        %v2723 = vshrl.u32 %v2722, 7
        %v2724 = vsub.s32 %v2721, %v2723
        %v2725 = vrot.slane %v2717, %v2724
        %v2727 = vunpack.c.l.s4 1934713408
        %v2728 = vunpack.c.0.s8 %v2727
        %v2729 = vlaneseq
        %v2730 = vshrl.u32 %v2729, 7
        %v2731 = vsub.s32 %v2728, %v2730
        %v2732 = vrot.slane %v2718, %v2731
        %v2733 = vcombine.high %v2725, 0
        %v2734 = vcombine.high %v2732, 0
        %v2737 = vunpack.c.l.s4 1983009808
        %v2738 = vunpack.c.0.s8 %v2737
        %v2739 = vlaneseq
        %v2740 = vshrl.u32 %v2739, 7
        %v2741 = vsub.s32 %v2738, %v2740
        %v2742 = vrot.slane %v2657, %v2741
        %v2745 = vunpack.c.l.s4 1983009808
        %v2746 = vunpack.c.0.s8 %v2745
        %v2747 = vlaneseq
        %v2748 = vshrl.u32 %v2747, 7
        %v2749 = vsub.s32 %v2746, %v2748
        %v2750 = vrot.slane %v2663, %v2749
        %v2751 = vcombine.low %v2742, %v2750
        %v2752 = vcombine.high %v2742, %v2750
        %v2754 = vunpack.c.l.s4 1934713408
        %v2755 = vunpack.c.0.s8 %v2754
        %v2756 = vlaneseq
        %v2757 = vshrl.u32 %v2756, 7
        %v2758 = vsub.s32 %v2755, %v2757
        %v2759 = vrot.slane %v2751, %v2758
        %v2761 = vunpack.c.l.s4 1934713408
        %v2762 = vunpack.c.0.s8 %v2761
        %v2763 = vlaneseq
        %v2764 = vshrl.u32 %v2763, 7
        %v2765 = vsub.s32 %v2762, %v2764
        %v2766 = vrot.slane %v2752, %v2765
        %v2767 = vcombine.high %v2759, 0
        %v2768 = vcombine.high %v2766, 0
        %v2771 = vunpack.c.l.s4 1983009808
        %v2772 = vunpack.c.0.s8 %v2771
        %v2773 = vlaneseq
        %v2774 = vshrl.u32 %v2773, 7
        %v2775 = vsub.s32 %v2772, %v2774
        %v2776 = vrot.slane %v2660, %v2775
        %v2779 = vunpack.c.l.s4 1983009808
        %v2780 = vunpack.c.0.s8 %v2779
        %v2781 = vlaneseq
        %v2782 = vshrl.u32 %v2781, 7
        %v2783 = vsub.s32 %v2780, %v2782
        %v2784 = vrot.slane %v2666, %v2783
        %v2785 = vcombine.low %v2776, %v2784
        %v2786 = vcombine.high %v2776, %v2784
        %v2788 = vunpack.c.l.s4 1934713408
        %v2789 = vunpack.c.0.s8 %v2788
        %v2790 = vlaneseq
        %v2791 = vshrl.u32 %v2790, 7
        %v2792 = vsub.s32 %v2789, %v2791
        %v2793 = vrot.slane %v2785, %v2792
        %v2795 = vunpack.c.l.s4 1934713408
        %v2796 = vunpack.c.0.s8 %v2795
        %v2797 = vlaneseq
        %v2798 = vshrl.u32 %v2797, 7
        %v2799 = vsub.s32 %v2796, %v2798
        %v2800 = vrot.slane %v2786, %v2799
        %v2801 = vcombine.high %v2793, 0
        %v2802 = vcombine.high %v2800, 0
        %v2804 = vunpack.c.l.b16 %v2725
        %v2805 = vpack.c.b16 %v2804, %v2804
        %2806 = vrot.lane.b32.xlu0 %v2805, 16
        %v2807 = vpop.permute.xlu0 %2806
        %v2809 = vunpack.c.l.b16 %v2699
        %v2810 = vpack.c.b16 %v2809, %v2809
        %2811 = vrot.lane.b32.xlu0 %v2810, 32
        %v2812 = vpop.permute.xlu0 %2811
        %v2814 = vunpack.c.l.b16 %v2733
        %v2815 = vpack.c.b16 %v2814, %v2814
        %2816 = vrot.lane.b32.xlu0 %v2815, 48
        %v2817 = vpop.permute.xlu0 %2816
        %v2819 = vunpack.c.l.b16 %v2698
        %v2820 = vpack.c.b16 %v2819, %v2819
        %2821 = vrot.lane.b32.xlu0 %v2820, 64
        %v2822 = vpop.permute.xlu0 %2821
        %v2824 = vunpack.c.l.b16 %v2732
        %v2825 = vpack.c.b16 %v2824, %v2824
        %2826 = vrot.lane.b32.xlu0 %v2825, 80
        %v2827 = vpop.permute.xlu0 %2826
        %v2829 = vunpack.c.l.b16 %v2700
        %v2830 = vpack.c.b16 %v2829, %v2829
        %2831 = vrot.lane.b32.xlu0 %v2830, 96
        %v2832 = vpop.permute.xlu0 %2831
        %v2834 = vunpack.c.l.b16 %v2734
        %v2835 = vpack.c.b16 %v2834, %v2834
        %2836 = vrot.lane.b32.xlu0 %v2835, 112
        %v2837 = vpop.permute.xlu0 %2836
        %v2839 = vunpack.c.l.b16 %v2793
        %v2840 = vpack.c.b16 %v2839, %v2839
        %2841 = vrot.lane.b32.xlu0 %v2840, 16
        %v2842 = vpop.permute.xlu0 %2841
        %v2844 = vunpack.c.l.b16 %v2767
        %v2845 = vpack.c.b16 %v2844, %v2844
        %2846 = vrot.lane.b32.xlu0 %v2845, 32
        %v2847 = vpop.permute.xlu0 %2846
        %v2849 = vunpack.c.l.b16 %v2801
        %v2850 = vpack.c.b16 %v2849, %v2849
        %2851 = vrot.lane.b32.xlu0 %v2850, 48
        %v2852 = vpop.permute.xlu0 %2851
        %v2854 = vunpack.c.l.b16 %v2766
        %v2855 = vpack.c.b16 %v2854, %v2854
        %2856 = vrot.lane.b32.xlu0 %v2855, 64
        %v2857 = vpop.permute.xlu0 %2856
        %v2859 = vunpack.c.l.b16 %v2800
        %v2860 = vpack.c.b16 %v2859, %v2859
        %2861 = vrot.lane.b32.xlu0 %v2860, 80
        %v2862 = vpop.permute.xlu0 %2861
        %v2864 = vunpack.c.l.b16 %v2768
        %v2865 = vpack.c.b16 %v2864, %v2864
        %2866 = vrot.lane.b32.xlu0 %v2865, 96
        %v2867 = vpop.permute.xlu0 %2866
        %v2869 = vunpack.c.l.b16 %v2802
        %v2870 = vpack.c.b16 %v2869, %v2869
        %2871 = vrot.lane.b32.xlu0 %v2870, 112
        %v2872 = vpop.permute.xlu0 %2871
        %v2875 = vsel %vm1104, %v2691, %v2807
        %v2877 = vsel %vm1108, %v2875, %v2812
        %v2879 = vsel %vm1111, %v2877, %v2817
        %v2881 = vsel %vm1114, %v2879, %v2822
        %v2883 = vsel %vm1117, %v2881, %v2827
        %v2885 = vsel %vm1120, %v2883, %v2832
        %v2887 = vsel %vm1123, %v2885, %v2837
        %v2890 = vsel %vm1104, %v2759, %v2842
        %v2892 = vsel %vm1108, %v2890, %v2847
        %v2894 = vsel %vm1111, %v2892, %v2852
        %v2896 = vsel %vm1114, %v2894, %v2857
        %v2898 = vsel %vm1117, %v2896, %v2862
        %v2900 = vsel %vm1120, %v2898, %v2867
        %v2902 = vsel %vm1123, %v2900, %v2872
        %2903 = vrot.lane.b32.xlu0 %v2618, 127
        %v2904 = vpop.permute.xlu0 %2903
        %2905 = vrot.lane.b32.xlu0 %v2621, 127
        %v2906 = vpop.permute.xlu0 %2905
        %2907 = vrot.lane.b32.xlu0 %v2625, 127
        %v2908 = vpop.permute.xlu0 %2907
        %2909 = vrot.lane.b32.xlu0 %v2628, 127
        %v2910 = vpop.permute.xlu0 %2909
        %2911 = vrot.lane.b32.xlu0 %v2632, 127
        %v2912 = vpop.permute.xlu0 %2911
        %2913 = vrot.lane.b32.xlu0 %v2635, 127
        %v2914 = vpop.permute.xlu0 %2913
        %2915 = vrot.lane.b32.xlu0 %v2639, 127
        %v2916 = vpop.permute.xlu0 %2915
        %2917 = vrot.lane.b32.xlu0 %v2642, 127
        %v2918 = vpop.permute.xlu0 %2917
        %v2921 = vpack.i.b16 %v2908, %v2904
        %v2922 = vshrl.u32 %v2904, 16
        %v2923 = vshrl.u32 %v2908, 16
        %v2924 = vpack.i.b16 %v2923, %v2922
        %v2927 = vpack.i.b16 %v2916, %v2912
        %v2928 = vshrl.u32 %v2912, 16
        %v2929 = vshrl.u32 %v2916, 16
        %v2930 = vpack.i.b16 %v2929, %v2928
        %v2933 = vpack.i.b16 %v2910, %v2906
        %v2934 = vshrl.u32 %v2906, 16
        %v2935 = vshrl.u32 %v2910, 16
        %v2936 = vpack.i.b16 %v2935, %v2934
        %v2939 = vpack.i.b16 %v2918, %v2914
        %v2940 = vshrl.u32 %v2914, 16
        %v2941 = vshrl.u32 %v2918, 16
        %v2942 = vpack.i.b16 %v2941, %v2940
        %v2945 = vunpack.c.l.s4 1983009808
        %v2946 = vunpack.c.0.s8 %v2945
        %v2947 = vlaneseq
        %v2948 = vshrl.u32 %v2947, 7
        %v2949 = vsub.s32 %v2946, %v2948
        %v2950 = vrot.slane %v2921, %v2949
        %v2953 = vunpack.c.l.s4 1983009808
        %v2954 = vunpack.c.0.s8 %v2953
        %v2955 = vlaneseq
        %v2956 = vshrl.u32 %v2955, 7
        %v2957 = vsub.s32 %v2954, %v2956
        %v2958 = vrot.slane %v2927, %v2957
        %v2959 = vcombine.low %v2950, %v2958
        %v2960 = vcombine.high %v2950, %v2958
        %v2962 = vunpack.c.l.s4 1934713408
        %v2963 = vunpack.c.0.s8 %v2962
        %v2964 = vlaneseq
        %v2965 = vshrl.u32 %v2964, 7
        %v2966 = vsub.s32 %v2963, %v2965
        %v2967 = vrot.slane %v2959, %v2966
        %v2969 = vunpack.c.l.s4 1934713408
        %v2970 = vunpack.c.0.s8 %v2969
        %v2971 = vlaneseq
        %v2972 = vshrl.u32 %v2971, 7
        %v2973 = vsub.s32 %v2970, %v2972
        %v2974 = vrot.slane %v2960, %v2973
        %v2975 = vcombine.high %v2967, 0
        %v2976 = vcombine.high %v2974, 0
        %v2979 = vunpack.c.l.s4 1983009808
        %v2980 = vunpack.c.0.s8 %v2979
        %v2981 = vlaneseq
        %v2982 = vshrl.u32 %v2981, 7
        %v2983 = vsub.s32 %v2980, %v2982
        %v2984 = vrot.slane %v2924, %v2983
        %v2987 = vunpack.c.l.s4 1983009808
        %v2988 = vunpack.c.0.s8 %v2987
        %v2989 = vlaneseq
        %v2990 = vshrl.u32 %v2989, 7
        %v2991 = vsub.s32 %v2988, %v2990
        %v2992 = vrot.slane %v2930, %v2991
        %v2993 = vcombine.low %v2984, %v2992
        %v2994 = vcombine.high %v2984, %v2992
        %v2996 = vunpack.c.l.s4 1934713408
        %v2997 = vunpack.c.0.s8 %v2996
        %v2998 = vlaneseq
        %v2999 = vshrl.u32 %v2998, 7
        %v3000 = vsub.s32 %v2997, %v2999
        %v3001 = vrot.slane %v2993, %v3000
        %v3003 = vunpack.c.l.s4 1934713408
        %v3004 = vunpack.c.0.s8 %v3003
        %v3005 = vlaneseq
        %v3006 = vshrl.u32 %v3005, 7
        %v3007 = vsub.s32 %v3004, %v3006
        %v3008 = vrot.slane %v2994, %v3007
        %v3009 = vcombine.high %v3001, 0
        %v3010 = vcombine.high %v3008, 0
        %v3013 = vunpack.c.l.s4 1983009808
        %v3014 = vunpack.c.0.s8 %v3013
        %v3015 = vlaneseq
        %v3016 = vshrl.u32 %v3015, 7
        %v3017 = vsub.s32 %v3014, %v3016
        %v3018 = vrot.slane %v2933, %v3017
        %v3021 = vunpack.c.l.s4 1983009808
        %v3022 = vunpack.c.0.s8 %v3021
        %v3023 = vlaneseq
        %v3024 = vshrl.u32 %v3023, 7
        %v3025 = vsub.s32 %v3022, %v3024
        %v3026 = vrot.slane %v2939, %v3025
        %v3027 = vcombine.low %v3018, %v3026
        %v3028 = vcombine.high %v3018, %v3026
        %v3030 = vunpack.c.l.s4 1934713408
        %v3031 = vunpack.c.0.s8 %v3030
        %v3032 = vlaneseq
        %v3033 = vshrl.u32 %v3032, 7
        %v3034 = vsub.s32 %v3031, %v3033
        %v3035 = vrot.slane %v3027, %v3034
        %v3037 = vunpack.c.l.s4 1934713408
        %v3038 = vunpack.c.0.s8 %v3037
        %v3039 = vlaneseq
        %v3040 = vshrl.u32 %v3039, 7
        %v3041 = vsub.s32 %v3038, %v3040
        %v3042 = vrot.slane %v3028, %v3041
        %v3043 = vcombine.high %v3035, 0
        %v3044 = vcombine.high %v3042, 0
        %v3047 = vunpack.c.l.s4 1983009808
        %v3048 = vunpack.c.0.s8 %v3047
        %v3049 = vlaneseq
        %v3050 = vshrl.u32 %v3049, 7
        %v3051 = vsub.s32 %v3048, %v3050
        %v3052 = vrot.slane %v2936, %v3051
        %v3055 = vunpack.c.l.s4 1983009808
        %v3056 = vunpack.c.0.s8 %v3055
        %v3057 = vlaneseq
        %v3058 = vshrl.u32 %v3057, 7
        %v3059 = vsub.s32 %v3056, %v3058
        %v3060 = vrot.slane %v2942, %v3059
        %v3061 = vcombine.low %v3052, %v3060
        %v3062 = vcombine.high %v3052, %v3060
        %v3064 = vunpack.c.l.s4 1934713408
        %v3065 = vunpack.c.0.s8 %v3064
        %v3066 = vlaneseq
        %v3067 = vshrl.u32 %v3066, 7
        %v3068 = vsub.s32 %v3065, %v3067
        %v3069 = vrot.slane %v3061, %v3068
        %v3071 = vunpack.c.l.s4 1934713408
        %v3072 = vunpack.c.0.s8 %v3071
        %v3073 = vlaneseq
        %v3074 = vshrl.u32 %v3073, 7
        %v3075 = vsub.s32 %v3072, %v3074
        %v3076 = vrot.slane %v3062, %v3075
        %v3077 = vcombine.high %v3069, 0
        %v3078 = vcombine.high %v3076, 0
        %v3080 = vunpack.c.l.b16 %v3001
        %v3081 = vpack.c.b16 %v3080, %v3080
        %3082 = vrot.lane.b32.xlu0 %v3081, 16
        %v3083 = vpop.permute.xlu0 %3082
        %v3085 = vunpack.c.l.b16 %v2975
        %v3086 = vpack.c.b16 %v3085, %v3085
        %3087 = vrot.lane.b32.xlu0 %v3086, 32
        %v3088 = vpop.permute.xlu0 %3087
        %v3090 = vunpack.c.l.b16 %v3009
        %v3091 = vpack.c.b16 %v3090, %v3090
        %3092 = vrot.lane.b32.xlu0 %v3091, 48
        %v3093 = vpop.permute.xlu0 %3092
        %v3095 = vunpack.c.l.b16 %v2974
        %v3096 = vpack.c.b16 %v3095, %v3095
        %3097 = vrot.lane.b32.xlu0 %v3096, 64
        %v3098 = vpop.permute.xlu0 %3097
        %v3100 = vunpack.c.l.b16 %v3008
        %v3101 = vpack.c.b16 %v3100, %v3100
        %3102 = vrot.lane.b32.xlu0 %v3101, 80
        %v3103 = vpop.permute.xlu0 %3102
        %v3105 = vunpack.c.l.b16 %v2976
        %v3106 = vpack.c.b16 %v3105, %v3105
        %3107 = vrot.lane.b32.xlu0 %v3106, 96
        %v3108 = vpop.permute.xlu0 %3107
        %v3110 = vunpack.c.l.b16 %v3010
        %v3111 = vpack.c.b16 %v3110, %v3110
        %3112 = vrot.lane.b32.xlu0 %v3111, 112
        %v3113 = vpop.permute.xlu0 %3112
        %v3115 = vunpack.c.l.b16 %v3069
        %v3116 = vpack.c.b16 %v3115, %v3115
        %3117 = vrot.lane.b32.xlu0 %v3116, 16
        %v3118 = vpop.permute.xlu0 %3117
        %v3120 = vunpack.c.l.b16 %v3043
        %v3121 = vpack.c.b16 %v3120, %v3120
        %3122 = vrot.lane.b32.xlu0 %v3121, 32
        %v3123 = vpop.permute.xlu0 %3122
        %v3125 = vunpack.c.l.b16 %v3077
        %v3126 = vpack.c.b16 %v3125, %v3125
        %3127 = vrot.lane.b32.xlu0 %v3126, 48
        %v3128 = vpop.permute.xlu0 %3127
        %v3130 = vunpack.c.l.b16 %v3042
        %v3131 = vpack.c.b16 %v3130, %v3130
        %3132 = vrot.lane.b32.xlu0 %v3131, 64
        %v3133 = vpop.permute.xlu0 %3132
        %v3135 = vunpack.c.l.b16 %v3076
        %v3136 = vpack.c.b16 %v3135, %v3135
        %3137 = vrot.lane.b32.xlu0 %v3136, 80
        %v3138 = vpop.permute.xlu0 %3137
        %v3140 = vunpack.c.l.b16 %v3044
        %v3141 = vpack.c.b16 %v3140, %v3140
        %3142 = vrot.lane.b32.xlu0 %v3141, 96
        %v3143 = vpop.permute.xlu0 %3142
        %v3145 = vunpack.c.l.b16 %v3078
        %v3146 = vpack.c.b16 %v3145, %v3145
        %3147 = vrot.lane.b32.xlu0 %v3146, 112
        %v3148 = vpop.permute.xlu0 %3147
        %v3151 = vsel %vm1104, %v2967, %v3083
        %v3153 = vsel %vm1108, %v3151, %v3088
        %v3155 = vsel %vm1111, %v3153, %v3093
        %v3157 = vsel %vm1114, %v3155, %v3098
        %v3159 = vsel %vm1117, %v3157, %v3103
        %v3161 = vsel %vm1120, %v3159, %v3108
        %v3163 = vsel %vm1123, %v3161, %v3113
        %v3166 = vsel %vm1104, %v3035, %v3118
        %v3168 = vsel %vm1108, %v3166, %v3123
        %v3170 = vsel %vm1111, %v3168, %v3128
        %v3172 = vsel %vm1114, %v3170, %v3133
        %v3174 = vsel %vm1117, %v3172, %v3138
        %v3176 = vsel %vm1120, %v3174, %v3143
        %v3178 = vsel %vm1123, %v3176, %v3148
        %3179 = vrot.lane.b32.xlu0 %v2618, 126
        %v3180 = vpop.permute.xlu0 %3179
        %3181 = vrot.lane.b32.xlu0 %v2621, 126
        %v3182 = vpop.permute.xlu0 %3181
        %3183 = vrot.lane.b32.xlu0 %v2625, 126
        %v3184 = vpop.permute.xlu0 %3183
        %3185 = vrot.lane.b32.xlu0 %v2628, 126
        %v3186 = vpop.permute.xlu0 %3185
        %3187 = vrot.lane.b32.xlu0 %v2632, 126
        %v3188 = vpop.permute.xlu0 %3187
        %3189 = vrot.lane.b32.xlu0 %v2635, 126
        %v3190 = vpop.permute.xlu0 %3189
        %3191 = vrot.lane.b32.xlu0 %v2639, 126
        %v3192 = vpop.permute.xlu0 %3191
        %3193 = vrot.lane.b32.xlu0 %v2642, 126
        %v3194 = vpop.permute.xlu0 %3193
        %v3197 = vpack.i.b16 %v3184, %v3180
        %v3198 = vshrl.u32 %v3180, 16
        %v3199 = vshrl.u32 %v3184, 16
        %v3200 = vpack.i.b16 %v3199, %v3198
        %v3203 = vpack.i.b16 %v3192, %v3188
        %v3204 = vshrl.u32 %v3188, 16
        %v3205 = vshrl.u32 %v3192, 16
        %v3206 = vpack.i.b16 %v3205, %v3204
        %v3209 = vpack.i.b16 %v3186, %v3182
        %v3210 = vshrl.u32 %v3182, 16
        %v3211 = vshrl.u32 %v3186, 16
        %v3212 = vpack.i.b16 %v3211, %v3210
        %v3215 = vpack.i.b16 %v3194, %v3190
        %v3216 = vshrl.u32 %v3190, 16
        %v3217 = vshrl.u32 %v3194, 16
        %v3218 = vpack.i.b16 %v3217, %v3216
        %v3221 = vunpack.c.l.s4 1983009808
        %v3222 = vunpack.c.0.s8 %v3221
        %v3223 = vlaneseq
        %v3224 = vshrl.u32 %v3223, 7
        %v3225 = vsub.s32 %v3222, %v3224
        %v3226 = vrot.slane %v3197, %v3225
        %v3229 = vunpack.c.l.s4 1983009808
        %v3230 = vunpack.c.0.s8 %v3229
        %v3231 = vlaneseq
        %v3232 = vshrl.u32 %v3231, 7
        %v3233 = vsub.s32 %v3230, %v3232
        %v3234 = vrot.slane %v3203, %v3233
        %v3235 = vcombine.low %v3226, %v3234
        %v3236 = vcombine.high %v3226, %v3234
        %v3238 = vunpack.c.l.s4 1934713408
        %v3239 = vunpack.c.0.s8 %v3238
        %v3240 = vlaneseq
        %v3241 = vshrl.u32 %v3240, 7
        %v3242 = vsub.s32 %v3239, %v3241
        %v3243 = vrot.slane %v3235, %v3242
        %v3245 = vunpack.c.l.s4 1934713408
        %v3246 = vunpack.c.0.s8 %v3245
        %v3247 = vlaneseq
        %v3248 = vshrl.u32 %v3247, 7
        %v3249 = vsub.s32 %v3246, %v3248
        %v3250 = vrot.slane %v3236, %v3249
        %v3251 = vcombine.high %v3243, 0
        %v3252 = vcombine.high %v3250, 0
        %v3255 = vunpack.c.l.s4 1983009808
        %v3256 = vunpack.c.0.s8 %v3255
        %v3257 = vlaneseq
        %v3258 = vshrl.u32 %v3257, 7
        %v3259 = vsub.s32 %v3256, %v3258
        %v3260 = vrot.slane %v3200, %v3259
        %v3263 = vunpack.c.l.s4 1983009808
        %v3264 = vunpack.c.0.s8 %v3263
        %v3265 = vlaneseq
        %v3266 = vshrl.u32 %v3265, 7
        %v3267 = vsub.s32 %v3264, %v3266
        %v3268 = vrot.slane %v3206, %v3267
        %v3269 = vcombine.low %v3260, %v3268
        %v3270 = vcombine.high %v3260, %v3268
        %v3272 = vunpack.c.l.s4 1934713408
        %v3273 = vunpack.c.0.s8 %v3272
        %v3274 = vlaneseq
        %v3275 = vshrl.u32 %v3274, 7
        %v3276 = vsub.s32 %v3273, %v3275
        %v3277 = vrot.slane %v3269, %v3276
        %v3279 = vunpack.c.l.s4 1934713408
        %v3280 = vunpack.c.0.s8 %v3279
        %v3281 = vlaneseq
        %v3282 = vshrl.u32 %v3281, 7
        %v3283 = vsub.s32 %v3280, %v3282
        %v3284 = vrot.slane %v3270, %v3283
        %v3285 = vcombine.high %v3277, 0
        %v3286 = vcombine.high %v3284, 0
        %v3289 = vunpack.c.l.s4 1983009808
        %v3290 = vunpack.c.0.s8 %v3289
        %v3291 = vlaneseq
        %v3292 = vshrl.u32 %v3291, 7
        %v3293 = vsub.s32 %v3290, %v3292
        %v3294 = vrot.slane %v3209, %v3293
        %v3297 = vunpack.c.l.s4 1983009808
        %v3298 = vunpack.c.0.s8 %v3297
        %v3299 = vlaneseq
        %v3300 = vshrl.u32 %v3299, 7
        %v3301 = vsub.s32 %v3298, %v3300
        %v3302 = vrot.slane %v3215, %v3301
        %v3303 = vcombine.low %v3294, %v3302
        %v3304 = vcombine.high %v3294, %v3302
        %v3306 = vunpack.c.l.s4 1934713408
        %v3307 = vunpack.c.0.s8 %v3306
        %v3308 = vlaneseq
        %v3309 = vshrl.u32 %v3308, 7
        %v3310 = vsub.s32 %v3307, %v3309
        %v3311 = vrot.slane %v3303, %v3310
        %v3313 = vunpack.c.l.s4 1934713408
        %v3314 = vunpack.c.0.s8 %v3313
        %v3315 = vlaneseq
        %v3316 = vshrl.u32 %v3315, 7
        %v3317 = vsub.s32 %v3314, %v3316
        %v3318 = vrot.slane %v3304, %v3317
        %v3319 = vcombine.high %v3311, 0
        %v3320 = vcombine.high %v3318, 0
        %v3323 = vunpack.c.l.s4 1983009808
        %v3324 = vunpack.c.0.s8 %v3323
        %v3325 = vlaneseq
        %v3326 = vshrl.u32 %v3325, 7
        %v3327 = vsub.s32 %v3324, %v3326
        %v3328 = vrot.slane %v3212, %v3327
        %v3331 = vunpack.c.l.s4 1983009808
        %v3332 = vunpack.c.0.s8 %v3331
        %v3333 = vlaneseq
        %v3334 = vshrl.u32 %v3333, 7
        %v3335 = vsub.s32 %v3332, %v3334
        %v3336 = vrot.slane %v3218, %v3335
        %v3337 = vcombine.low %v3328, %v3336
        %v3338 = vcombine.high %v3328, %v3336
        %v3340 = vunpack.c.l.s4 1934713408
        %v3341 = vunpack.c.0.s8 %v3340
        %v3342 = vlaneseq
        %v3343 = vshrl.u32 %v3342, 7
        %v3344 = vsub.s32 %v3341, %v3343
        %v3345 = vrot.slane %v3337, %v3344
        %v3347 = vunpack.c.l.s4 1934713408
        %v3348 = vunpack.c.0.s8 %v3347
        %v3349 = vlaneseq
        %v3350 = vshrl.u32 %v3349, 7
        %v3351 = vsub.s32 %v3348, %v3350
        %v3352 = vrot.slane %v3338, %v3351
        %v3353 = vcombine.high %v3345, 0
        %v3354 = vcombine.high %v3352, 0
        %v3356 = vunpack.c.l.b16 %v3277
        %v3357 = vpack.c.b16 %v3356, %v3356
        %3358 = vrot.lane.b32.xlu0 %v3357, 16
        %v3359 = vpop.permute.xlu0 %3358
        %v3361 = vunpack.c.l.b16 %v3251
        %v3362 = vpack.c.b16 %v3361, %v3361
        %3363 = vrot.lane.b32.xlu0 %v3362, 32
        %v3364 = vpop.permute.xlu0 %3363
        %v3366 = vunpack.c.l.b16 %v3285
        %v3367 = vpack.c.b16 %v3366, %v3366
        %3368 = vrot.lane.b32.xlu0 %v3367, 48
        %v3369 = vpop.permute.xlu0 %3368
        %v3371 = vunpack.c.l.b16 %v3250
        %v3372 = vpack.c.b16 %v3371, %v3371
        %3373 = vrot.lane.b32.xlu0 %v3372, 64
        %v3374 = vpop.permute.xlu0 %3373
        %v3376 = vunpack.c.l.b16 %v3284
        %v3377 = vpack.c.b16 %v3376, %v3376
        %3378 = vrot.lane.b32.xlu0 %v3377, 80
        %v3379 = vpop.permute.xlu0 %3378
        %v3381 = vunpack.c.l.b16 %v3252
        %v3382 = vpack.c.b16 %v3381, %v3381
        %3383 = vrot.lane.b32.xlu0 %v3382, 96
        %v3384 = vpop.permute.xlu0 %3383
        %v3386 = vunpack.c.l.b16 %v3286
        %v3387 = vpack.c.b16 %v3386, %v3386
        %3388 = vrot.lane.b32.xlu0 %v3387, 112
        %v3389 = vpop.permute.xlu0 %3388
        %v3391 = vunpack.c.l.b16 %v3345
        %v3392 = vpack.c.b16 %v3391, %v3391
        %3393 = vrot.lane.b32.xlu0 %v3392, 16
        %v3394 = vpop.permute.xlu0 %3393
        %v3396 = vunpack.c.l.b16 %v3319
        %v3397 = vpack.c.b16 %v3396, %v3396
        %3398 = vrot.lane.b32.xlu0 %v3397, 32
        %v3399 = vpop.permute.xlu0 %3398
        %v3401 = vunpack.c.l.b16 %v3353
        %v3402 = vpack.c.b16 %v3401, %v3401
        %3403 = vrot.lane.b32.xlu0 %v3402, 48
        %v3404 = vpop.permute.xlu0 %3403
        %v3406 = vunpack.c.l.b16 %v3318
        %v3407 = vpack.c.b16 %v3406, %v3406
        %3408 = vrot.lane.b32.xlu0 %v3407, 64
        %v3409 = vpop.permute.xlu0 %3408
        %v3411 = vunpack.c.l.b16 %v3352
        %v3412 = vpack.c.b16 %v3411, %v3411
        %3413 = vrot.lane.b32.xlu0 %v3412, 80
        %v3414 = vpop.permute.xlu0 %3413
        %v3416 = vunpack.c.l.b16 %v3320
        %v3417 = vpack.c.b16 %v3416, %v3416
        %3418 = vrot.lane.b32.xlu0 %v3417, 96
        %v3419 = vpop.permute.xlu0 %3418
        %v3421 = vunpack.c.l.b16 %v3354
        %v3422 = vpack.c.b16 %v3421, %v3421
        %3423 = vrot.lane.b32.xlu0 %v3422, 112
        %v3424 = vpop.permute.xlu0 %3423
        %v3427 = vsel %vm1104, %v3243, %v3359
        %v3429 = vsel %vm1108, %v3427, %v3364
        %v3431 = vsel %vm1111, %v3429, %v3369
        %v3433 = vsel %vm1114, %v3431, %v3374
        %v3435 = vsel %vm1117, %v3433, %v3379
        %v3437 = vsel %vm1120, %v3435, %v3384
        %v3439 = vsel %vm1123, %v3437, %v3389
        %v3442 = vsel %vm1104, %v3311, %v3394
        %v3444 = vsel %vm1108, %v3442, %v3399
        %v3446 = vsel %vm1111, %v3444, %v3404
        %v3448 = vsel %vm1114, %v3446, %v3409
        %v3450 = vsel %vm1117, %v3448, %v3414
        %v3452 = vsel %vm1120, %v3450, %v3419
        %v3454 = vsel %vm1123, %v3452, %v3424
        %v3457 = vrot.slane %v1409, 6
        %v3458 = vrot.slane %v1424, 6
        %v3461 = vrot.slane %v1685, 4
        %v3462 = vrot.slane %v1700, 4
        %v3465 = vrot.slane %v2032, 2
        %v3466 = vrot.slane %v2047, 2
        %v3469 = vrot.slane %v2584, 6
        %v3470 = vrot.slane %v2599, 6
        %v3473 = vrot.slane %v2887, 4
        %v3474 = vrot.slane %v2902, 4
        %v3477 = vrot.slane %v3163, 2
        %v3478 = vrot.slane %v3178, 2
        %vm3479 = vcmask 1041408
        %v3481 = vsel %vm3479, %v1125, %v3457
        %v3483 = vsel %vm3479, %v1140, %v3458
        %vm3484 = vcmask 1043456
        %v3486 = vsel %vm3484, %v3481, %v3461
        %v3488 = vsel %vm3484, %v3483, %v3462
        %vm3489 = vcmask 1045504
        %v3491 = vsel %vm3489, %v3486, %v3465
        %v3494 = vsel %vm3489, %v3488, %v3466
        %v3497 = vsel %vm3479, %v2308, %v3469
        %v3499 = vsel %vm3479, %v2323, %v3470
        %v3501 = vsel %vm3484, %v3497, %v3473
        %v3503 = vsel %vm3484, %v3499, %v3474
        %v3505 = vsel %vm3489, %v3501, %v3477
        %v3508 = vsel %vm3489, %v3503, %v3478
        %v3510 = vld [vmem:[%s3] sm:$0xf]
        %v3511 = vld [vmem:[%s3 + $0x4] sm:$0xf]
        %v3512 = vld [vmem:[%s4] sm:$0xff]
        %v3513 = vld [vmem:[%s4 + $0x8] sm:$0xff]
        %3515 = vset.pattern.permute.xlu0 0
        %3516 = vperm.xlu0 %3515, %v3512
        %v3517 = vpop.permute.xlu0 %3516
        %3520 = vset.pattern.permute.xlu0 0
        %3521 = vperm.xlu0 %3520, %v3513
        %v3522 = vpop.permute.xlu0 %3521
        %v3526 = vunpack.c.l.b16 %v3510
        %v3527 = vunpack.c.l.b16 %v3511
        %v3528 = vpack.c.b16 %v3527, %v3526
        %vm3529 = vcmask 293888
        %v3531 = vsel %vm3529, %v3528, 0
        %v3533 = vsel %vm3479, %v3439, 0
        %v3535 = vsel %vm3479, %v3454, 0
        %3537 = vmatprep.subr.bf16.mxu0 %v3494
        %3538 = vmatpush1.bf16.msra.mxu0 %v3491
        %3539 = vmatprep.subr.bf16.mxu0 %v3508
        %3540 = vmatpush1.bf16.msra.mxu0 %v3505
        %3541 = vmatprep.subr.bf16.mxu0 %v3535
        %3542 = vmatpush1.bf16.msra.mxu0 %v3533
        %3543 = vmatprep.subr.bf16.mxu0 0
        %3544 = vmatpush1.bf16.msra.mxu0 0
        %3545 = vmatprep.subr.bf16.mxu0 0
        %3546 = vmatpush1.bf16.msra.mxu0 0
        %3547 = vmatprep.subr.bf16.mxu0 0
        %3548 = vmatpush1.bf16.msra.mxu0 0
        %3549 = vmatprep.subr.bf16.mxu0 0
        %3550 = vmatpush1.bf16.msra.mxu0 0
        %3551 = vmatprep.subr.bf16.mxu0 0
        %3552 = vmatpush1.bf16.msra.mxu0 0
        %3553 = vmatprep.subr.bf16.mxu0 0
        %3554 = vmatpush1.bf16.msra.mxu0 0
        %3555 = vmatprep.subr.bf16.mxu0 0
        %3556 = vmatpush1.bf16.msra.mxu0 0
        %3557 = vmatprep.subr.bf16.mxu0 0
        %3558 = vmatpush1.bf16.msra.mxu0 0
        %3559 = vmatprep.subr.bf16.mxu0 0
        %3560 = vmatpush1.bf16.msra.mxu0 0
        %3561 = vmatprep.subr.bf16.mxu0 0
        %3562 = vmatpush1.bf16.msra.mxu0 0
        %3563 = vmatprep.subr.bf16.mxu0 0
        %3564 = vmatpush1.bf16.msra.mxu0 0
        %3565 = vmatprep.subr.bf16.mxu0 0
        %3566 = vmatpush1.bf16.msra.mxu0 0
        %3567 = vmatprep.subr.bf16.mxu0 0
        %3568 = vmatpush1.bf16.msra.mxu0 0
        %3569 = vmatprep.mubr.bf16.mxu0 0
        %3570 = vmatmul.mubr.bf16.gmra.mrb[0].mxu0 %v3531
        %v3571 = vpop.f32.mrb[0].mxu0
        %v3572 = vadd.f32 %v3517, %v3571
        %v3573 = vpop.f32.mrb[0].mxu0
        %v3574 = vadd.f32 %v3517, %v3573
        %v3575 = vpop.f32.mrb[0].mxu0
        %v3576 = vadd.f32 %v3522, %v3575
        %v3577 = vpop.f32.mrb[0].mxu0
        %v3578 = vadd.f32 %v3522, %v3577
        %3579 = vdwg.mxu0
        %v3580 = vmax.f32 %v3572, 0.0
        %v3581 = vmax.f32 %v3574, 0.0
        %v3582 = vmax.f32 %v3576, 0.0
        %v3583 = vmax.f32 %v3578, 0.0
        %3586 = vrot.lane.b32.xlu0 %v3580, 112
        %v3587 = vpop.permute.xlu0 %3586
        %3588 = vrot.lane.b32.xlu0 %v3582, 112
        %v3589 = vpop.permute.xlu0 %3588
        %3592 = vrot.lane.b32.xlu0 %v3580, 96
        %v3593 = vpop.permute.xlu0 %3592
        %3594 = vrot.lane.b32.xlu0 %v3582, 96
        %v3595 = vpop.permute.xlu0 %3594
        %3598 = vrot.lane.b32.xlu0 %v3580, 80
        %v3599 = vpop.permute.xlu0 %3598
        %3600 = vrot.lane.b32.xlu0 %v3582, 80
        %v3601 = vpop.permute.xlu0 %3600
        %3604 = vrot.lane.b32.xlu0 %v3580, 64
        %v3605 = vpop.permute.xlu0 %3604
        %3606 = vrot.lane.b32.xlu0 %v3582, 64
        %v3607 = vpop.permute.xlu0 %3606
        %3610 = vrot.lane.b32.xlu0 %v3580, 48
        %v3611 = vpop.permute.xlu0 %3610
        %3612 = vrot.lane.b32.xlu0 %v3582, 48
        %v3613 = vpop.permute.xlu0 %3612
        %3616 = vrot.lane.b32.xlu0 %v3580, 32
        %v3617 = vpop.permute.xlu0 %3616
        %3618 = vrot.lane.b32.xlu0 %v3582, 32
        %v3619 = vpop.permute.xlu0 %3618
        %3622 = vrot.lane.b32.xlu0 %v3580, 16
        %v3623 = vpop.permute.xlu0 %3622
        %3624 = vrot.lane.b32.xlu0 %v3582, 16
        %v3625 = vpop.permute.xlu0 %3624
        %3630 = vrot.lane.b32.xlu0 %v3581, 112
        %v3631 = vpop.permute.xlu0 %3630
        %3632 = vrot.lane.b32.xlu0 %v3583, 112
        %v3633 = vpop.permute.xlu0 %3632
        %3636 = vrot.lane.b32.xlu0 %v3581, 96
        %v3637 = vpop.permute.xlu0 %3636
        %3638 = vrot.lane.b32.xlu0 %v3583, 96
        %v3639 = vpop.permute.xlu0 %3638
        %3642 = vrot.lane.b32.xlu0 %v3581, 80
        %v3643 = vpop.permute.xlu0 %3642
        %3644 = vrot.lane.b32.xlu0 %v3583, 80
        %v3645 = vpop.permute.xlu0 %3644
        %3648 = vrot.lane.b32.xlu0 %v3581, 64
        %v3649 = vpop.permute.xlu0 %3648
        %3650 = vrot.lane.b32.xlu0 %v3583, 64
        %v3651 = vpop.permute.xlu0 %3650
        %3654 = vrot.lane.b32.xlu0 %v3581, 48
        %v3655 = vpop.permute.xlu0 %3654
        %3656 = vrot.lane.b32.xlu0 %v3583, 48
        %v3657 = vpop.permute.xlu0 %3656
        %3660 = vrot.lane.b32.xlu0 %v3581, 32
        %v3661 = vpop.permute.xlu0 %3660
        %3662 = vrot.lane.b32.xlu0 %v3583, 32
        %v3663 = vpop.permute.xlu0 %3662
        %3666 = vrot.lane.b32.xlu0 %v3581, 16
        %v3667 = vpop.permute.xlu0 %3666
        %3668 = vrot.lane.b32.xlu0 %v3583, 16
        %v3669 = vpop.permute.xlu0 %3668
        %v3672 = vcombine.low %v3580, %v3593
        %v3673 = vcombine.high %v3580, %v3593
        %v3675 = vunpack.c.l.s4 1983009808
        %v3676 = vunpack.c.0.s8 %v3675
        %v3677 = vlaneseq
        %v3678 = vshrl.u32 %v3677, 7
        %v3679 = vsub.s32 %v3676, %v3678
        %v3680 = vrot.slane %v3672, %v3679
        %v3682 = vunpack.c.l.s4 1983009808
        %v3683 = vunpack.c.0.s8 %v3682
        %v3684 = vlaneseq
        %v3685 = vshrl.u32 %v3684, 7
        %v3686 = vsub.s32 %v3683, %v3685
        %v3687 = vrot.slane %v3673, %v3686
        %v3688 = vcombine.low %v3587, %v3599
        %v3689 = vcombine.high %v3587, %v3599
        %v3691 = vunpack.c.l.s4 1983009808
        %v3692 = vunpack.c.0.s8 %v3691
        %v3693 = vlaneseq
        %v3694 = vshrl.u32 %v3693, 7
        %v3695 = vsub.s32 %v3692, %v3694
        %v3696 = vrot.slane %v3688, %v3695
        %v3698 = vunpack.c.l.s4 1983009808
        %v3699 = vunpack.c.0.s8 %v3698
        %v3700 = vlaneseq
        %v3701 = vshrl.u32 %v3700, 7
        %v3702 = vsub.s32 %v3699, %v3701
        %v3703 = vrot.slane %v3689, %v3702
        %v3704 = vcombine.low %v3605, %v3617
        %v3705 = vcombine.high %v3605, %v3617
        %v3707 = vunpack.c.l.s4 1983009808
        %v3708 = vunpack.c.0.s8 %v3707
        %v3709 = vlaneseq
        %v3710 = vshrl.u32 %v3709, 7
        %v3711 = vsub.s32 %v3708, %v3710
        %v3712 = vrot.slane %v3704, %v3711
        %v3714 = vunpack.c.l.s4 1983009808
        %v3715 = vunpack.c.0.s8 %v3714
        %v3716 = vlaneseq
        %v3717 = vshrl.u32 %v3716, 7
        %v3718 = vsub.s32 %v3715, %v3717
        %v3719 = vrot.slane %v3705, %v3718
        %v3720 = vcombine.low %v3611, %v3623
        %v3721 = vcombine.high %v3611, %v3623
        %v3723 = vunpack.c.l.s4 1983009808
        %v3724 = vunpack.c.0.s8 %v3723
        %v3725 = vlaneseq
        %v3726 = vshrl.u32 %v3725, 7
        %v3727 = vsub.s32 %v3724, %v3726
        %v3728 = vrot.slane %v3720, %v3727
        %v3730 = vunpack.c.l.s4 1983009808
        %v3731 = vunpack.c.0.s8 %v3730
        %v3732 = vlaneseq
        %v3733 = vshrl.u32 %v3732, 7
        %v3734 = vsub.s32 %v3731, %v3733
        %v3735 = vrot.slane %v3721, %v3734
        %v3736 = vcombine.low %v3680, %v3696
        %v3737 = vcombine.high %v3680, %v3696
        %v3739 = vunpack.c.l.s4 1934713408
        %v3740 = vunpack.c.0.s8 %v3739
        %v3741 = vlaneseq
        %v3742 = vshrl.u32 %v3741, 7
        %v3743 = vsub.s32 %v3740, %v3742
        %v3744 = vrot.slane %v3736, %v3743
        %v3746 = vunpack.c.l.s4 1934713408
        %v3747 = vunpack.c.0.s8 %v3746
        %v3748 = vlaneseq
        %v3749 = vshrl.u32 %v3748, 7
        %v3750 = vsub.s32 %v3747, %v3749
        %v3751 = vrot.slane %v3737, %v3750
        %v3752 = vcombine.low %v3687, %v3703
        %v3753 = vcombine.high %v3687, %v3703
        %v3755 = vunpack.c.l.s4 1934713408
        %v3756 = vunpack.c.0.s8 %v3755
        %v3757 = vlaneseq
        %v3758 = vshrl.u32 %v3757, 7
        %v3759 = vsub.s32 %v3756, %v3758
        %v3760 = vrot.slane %v3752, %v3759
        %v3762 = vunpack.c.l.s4 1934713408
        %v3763 = vunpack.c.0.s8 %v3762
        %v3764 = vlaneseq
        %v3765 = vshrl.u32 %v3764, 7
        %v3766 = vsub.s32 %v3763, %v3765
        %v3767 = vrot.slane %v3753, %v3766
        %v3768 = vcombine.low %v3712, %v3728
        %v3769 = vcombine.high %v3712, %v3728
        %v3771 = vunpack.c.l.s4 1934713408
        %v3772 = vunpack.c.0.s8 %v3771
        %v3773 = vlaneseq
        %v3774 = vshrl.u32 %v3773, 7
        %v3775 = vsub.s32 %v3772, %v3774
        %v3776 = vrot.slane %v3768, %v3775
        %v3778 = vunpack.c.l.s4 1934713408
        %v3779 = vunpack.c.0.s8 %v3778
        %v3780 = vlaneseq
        %v3781 = vshrl.u32 %v3780, 7
        %v3782 = vsub.s32 %v3779, %v3781
        %v3783 = vrot.slane %v3769, %v3782
        %v3784 = vcombine.low %v3719, %v3735
        %v3785 = vcombine.high %v3719, %v3735
        %v3787 = vunpack.c.l.s4 1934713408
        %v3788 = vunpack.c.0.s8 %v3787
        %v3789 = vlaneseq
        %v3790 = vshrl.u32 %v3789, 7
        %v3791 = vsub.s32 %v3788, %v3790
        %v3792 = vrot.slane %v3784, %v3791
        %v3794 = vunpack.c.l.s4 1934713408
        %v3795 = vunpack.c.0.s8 %v3794
        %v3796 = vlaneseq
        %v3797 = vshrl.u32 %v3796, 7
        %v3798 = vsub.s32 %v3795, %v3797
        %v3799 = vrot.slane %v3785, %v3798
        %v3800 = vcombine.low %v3744, %v3776
        %v3801 = vcombine.high %v3744, %v3776
        %v3802 = vcombine.low %v3751, %v3783
        %v3803 = vcombine.high %v3751, %v3783
        %v3804 = vcombine.low %v3760, %v3792
        %v3805 = vcombine.high %v3760, %v3792
        %v3806 = vcombine.low %v3767, %v3799
        %v3807 = vcombine.high %v3767, %v3799
        %v3808 = vcombine.low %v3581, %v3637
        %v3809 = vcombine.high %v3581, %v3637
        %v3811 = vunpack.c.l.s4 1983009808
        %v3812 = vunpack.c.0.s8 %v3811
        %v3813 = vlaneseq
        %v3814 = vshrl.u32 %v3813, 7
        %v3815 = vsub.s32 %v3812, %v3814
        %v3816 = vrot.slane %v3808, %v3815
        %v3818 = vunpack.c.l.s4 1983009808
        %v3819 = vunpack.c.0.s8 %v3818
        %v3820 = vlaneseq
        %v3821 = vshrl.u32 %v3820, 7
        %v3822 = vsub.s32 %v3819, %v3821
        %v3823 = vrot.slane %v3809, %v3822
        %v3824 = vcombine.low %v3631, %v3643
        %v3825 = vcombine.high %v3631, %v3643
        %v3827 = vunpack.c.l.s4 1983009808
        %v3828 = vunpack.c.0.s8 %v3827
        %v3829 = vlaneseq
        %v3830 = vshrl.u32 %v3829, 7
        %v3831 = vsub.s32 %v3828, %v3830
        %v3832 = vrot.slane %v3824, %v3831
        %v3834 = vunpack.c.l.s4 1983009808
        %v3835 = vunpack.c.0.s8 %v3834
        %v3836 = vlaneseq
        %v3837 = vshrl.u32 %v3836, 7
        %v3838 = vsub.s32 %v3835, %v3837
        %v3839 = vrot.slane %v3825, %v3838
        %v3840 = vcombine.low %v3649, %v3661
        %v3841 = vcombine.high %v3649, %v3661
        %v3843 = vunpack.c.l.s4 1983009808
        %v3844 = vunpack.c.0.s8 %v3843
        %v3845 = vlaneseq
        %v3846 = vshrl.u32 %v3845, 7
        %v3847 = vsub.s32 %v3844, %v3846
        %v3848 = vrot.slane %v3840, %v3847
        %v3850 = vunpack.c.l.s4 1983009808
        %v3851 = vunpack.c.0.s8 %v3850
        %v3852 = vlaneseq
        %v3853 = vshrl.u32 %v3852, 7
        %v3854 = vsub.s32 %v3851, %v3853
        %v3855 = vrot.slane %v3841, %v3854
        %v3856 = vcombine.low %v3655, %v3667
        %v3857 = vcombine.high %v3655, %v3667
        %v3859 = vunpack.c.l.s4 1983009808
        %v3860 = vunpack.c.0.s8 %v3859
        %v3861 = vlaneseq
        %v3862 = vshrl.u32 %v3861, 7
        %v3863 = vsub.s32 %v3860, %v3862
        %v3864 = vrot.slane %v3856, %v3863
        %v3866 = vunpack.c.l.s4 1983009808
        %v3867 = vunpack.c.0.s8 %v3866
        %v3868 = vlaneseq
        %v3869 = vshrl.u32 %v3868, 7
        %v3870 = vsub.s32 %v3867, %v3869
        %v3871 = vrot.slane %v3857, %v3870
        %v3872 = vcombine.low %v3816, %v3832
        %v3873 = vcombine.high %v3816, %v3832
        %v3875 = vunpack.c.l.s4 1934713408
        %v3876 = vunpack.c.0.s8 %v3875
        %v3877 = vlaneseq
        %v3878 = vshrl.u32 %v3877, 7
        %v3879 = vsub.s32 %v3876, %v3878
        %v3880 = vrot.slane %v3872, %v3879
        %v3882 = vunpack.c.l.s4 1934713408
        %v3883 = vunpack.c.0.s8 %v3882
        %v3884 = vlaneseq
        %v3885 = vshrl.u32 %v3884, 7
        %v3886 = vsub.s32 %v3883, %v3885
        %v3887 = vrot.slane %v3873, %v3886
        %v3888 = vcombine.low %v3823, %v3839
        %v3889 = vcombine.high %v3823, %v3839
        %v3891 = vunpack.c.l.s4 1934713408
        %v3892 = vunpack.c.0.s8 %v3891
        %v3893 = vlaneseq
        %v3894 = vshrl.u32 %v3893, 7
        %v3895 = vsub.s32 %v3892, %v3894
        %v3896 = vrot.slane %v3888, %v3895
        %v3898 = vunpack.c.l.s4 1934713408
        %v3899 = vunpack.c.0.s8 %v3898
        %v3900 = vlaneseq
        %v3901 = vshrl.u32 %v3900, 7
        %v3902 = vsub.s32 %v3899, %v3901
        %v3903 = vrot.slane %v3889, %v3902
        %v3904 = vcombine.low %v3848, %v3864
        %v3905 = vcombine.high %v3848, %v3864
        %v3907 = vunpack.c.l.s4 1934713408
        %v3908 = vunpack.c.0.s8 %v3907
        %v3909 = vlaneseq
        %v3910 = vshrl.u32 %v3909, 7
        %v3911 = vsub.s32 %v3908, %v3910
        %v3912 = vrot.slane %v3904, %v3911
        %v3914 = vunpack.c.l.s4 1934713408
        %v3915 = vunpack.c.0.s8 %v3914
        %v3916 = vlaneseq
        %v3917 = vshrl.u32 %v3916, 7
        %v3918 = vsub.s32 %v3915, %v3917
        %v3919 = vrot.slane %v3905, %v3918
        %v3920 = vcombine.low %v3855, %v3871
        %v3921 = vcombine.high %v3855, %v3871
        %v3923 = vunpack.c.l.s4 1934713408
        %v3924 = vunpack.c.0.s8 %v3923
        %v3925 = vlaneseq
        %v3926 = vshrl.u32 %v3925, 7
        %v3927 = vsub.s32 %v3924, %v3926
        %v3928 = vrot.slane %v3920, %v3927
        %v3930 = vunpack.c.l.s4 1934713408
        %v3931 = vunpack.c.0.s8 %v3930
        %v3932 = vlaneseq
        %v3933 = vshrl.u32 %v3932, 7
        %v3934 = vsub.s32 %v3931, %v3933
        %v3935 = vrot.slane %v3921, %v3934
        %v3936 = vcombine.low %v3880, %v3912
        %v3937 = vcombine.high %v3880, %v3912
        %v3938 = vcombine.low %v3887, %v3919
        %v3939 = vcombine.high %v3887, %v3919
        %v3940 = vcombine.low %v3896, %v3928
        %v3941 = vcombine.high %v3896, %v3928
        %v3942 = vcombine.low %v3903, %v3935
        %v3943 = vcombine.high %v3903, %v3935
        %v3944 = vcombine.low %v3582, %v3595
        %v3945 = vcombine.high %v3582, %v3595
        %v3947 = vunpack.c.l.s4 1983009808
        %v3948 = vunpack.c.0.s8 %v3947
        %v3949 = vlaneseq
        %v3950 = vshrl.u32 %v3949, 7
        %v3951 = vsub.s32 %v3948, %v3950
        %v3952 = vrot.slane %v3944, %v3951
        %v3954 = vunpack.c.l.s4 1983009808
        %v3955 = vunpack.c.0.s8 %v3954
        %v3956 = vlaneseq
        %v3957 = vshrl.u32 %v3956, 7
        %v3958 = vsub.s32 %v3955, %v3957
        %v3959 = vrot.slane %v3945, %v3958
        %v3960 = vcombine.low %v3589, %v3601
        %v3961 = vcombine.high %v3589, %v3601
        %v3963 = vunpack.c.l.s4 1983009808
        %v3964 = vunpack.c.0.s8 %v3963
        %v3965 = vlaneseq
        %v3966 = vshrl.u32 %v3965, 7
        %v3967 = vsub.s32 %v3964, %v3966
        %v3968 = vrot.slane %v3960, %v3967
        %v3970 = vunpack.c.l.s4 1983009808
        %v3971 = vunpack.c.0.s8 %v3970
        %v3972 = vlaneseq
        %v3973 = vshrl.u32 %v3972, 7
        %v3974 = vsub.s32 %v3971, %v3973
        %v3975 = vrot.slane %v3961, %v3974
        %v3976 = vcombine.low %v3607, %v3619
        %v3977 = vcombine.high %v3607, %v3619
        %v3979 = vunpack.c.l.s4 1983009808
        %v3980 = vunpack.c.0.s8 %v3979
        %v3981 = vlaneseq
        %v3982 = vshrl.u32 %v3981, 7
        %v3983 = vsub.s32 %v3980, %v3982
        %v3984 = vrot.slane %v3976, %v3983
        %v3986 = vunpack.c.l.s4 1983009808
        %v3987 = vunpack.c.0.s8 %v3986
        %v3988 = vlaneseq
        %v3989 = vshrl.u32 %v3988, 7
        %v3990 = vsub.s32 %v3987, %v3989
        %v3991 = vrot.slane %v3977, %v3990
        %v3992 = vcombine.low %v3613, %v3625
        %v3993 = vcombine.high %v3613, %v3625
        %v3995 = vunpack.c.l.s4 1983009808
        %v3996 = vunpack.c.0.s8 %v3995
        %v3997 = vlaneseq
        %v3998 = vshrl.u32 %v3997, 7
        %v3999 = vsub.s32 %v3996, %v3998
        %v4000 = vrot.slane %v3992, %v3999
        %v4002 = vunpack.c.l.s4 1983009808
        %v4003 = vunpack.c.0.s8 %v4002
        %v4004 = vlaneseq
        %v4005 = vshrl.u32 %v4004, 7
        %v4006 = vsub.s32 %v4003, %v4005
        %v4007 = vrot.slane %v3993, %v4006
        %v4008 = vcombine.low %v3952, %v3968
        %v4009 = vcombine.high %v3952, %v3968
        %v4011 = vunpack.c.l.s4 1934713408
        %v4012 = vunpack.c.0.s8 %v4011
        %v4013 = vlaneseq
        %v4014 = vshrl.u32 %v4013, 7
        %v4015 = vsub.s32 %v4012, %v4014
        %v4016 = vrot.slane %v4008, %v4015
        %v4018 = vunpack.c.l.s4 1934713408
        %v4019 = vunpack.c.0.s8 %v4018
        %v4020 = vlaneseq
        %v4021 = vshrl.u32 %v4020, 7
        %v4022 = vsub.s32 %v4019, %v4021
        %v4023 = vrot.slane %v4009, %v4022
        %v4024 = vcombine.low %v3959, %v3975
        %v4025 = vcombine.high %v3959, %v3975
        %v4027 = vunpack.c.l.s4 1934713408
        %v4028 = vunpack.c.0.s8 %v4027
        %v4029 = vlaneseq
        %v4030 = vshrl.u32 %v4029, 7
        %v4031 = vsub.s32 %v4028, %v4030
        %v4032 = vrot.slane %v4024, %v4031
        %v4034 = vunpack.c.l.s4 1934713408
        %v4035 = vunpack.c.0.s8 %v4034
        %v4036 = vlaneseq
        %v4037 = vshrl.u32 %v4036, 7
        %v4038 = vsub.s32 %v4035, %v4037
        %v4039 = vrot.slane %v4025, %v4038
        %v4040 = vcombine.low %v3984, %v4000
        %v4041 = vcombine.high %v3984, %v4000
        %v4043 = vunpack.c.l.s4 1934713408
        %v4044 = vunpack.c.0.s8 %v4043
        %v4045 = vlaneseq
        %v4046 = vshrl.u32 %v4045, 7
        %v4047 = vsub.s32 %v4044, %v4046
        %v4048 = vrot.slane %v4040, %v4047
        %v4050 = vunpack.c.l.s4 1934713408
        %v4051 = vunpack.c.0.s8 %v4050
        %v4052 = vlaneseq
        %v4053 = vshrl.u32 %v4052, 7
        %v4054 = vsub.s32 %v4051, %v4053
        %v4055 = vrot.slane %v4041, %v4054
        %v4056 = vcombine.low %v3991, %v4007
        %v4057 = vcombine.high %v3991, %v4007
        %v4059 = vunpack.c.l.s4 1934713408
        %v4060 = vunpack.c.0.s8 %v4059
        %v4061 = vlaneseq
        %v4062 = vshrl.u32 %v4061, 7
        %v4063 = vsub.s32 %v4060, %v4062
        %v4064 = vrot.slane %v4056, %v4063
        %v4066 = vunpack.c.l.s4 1934713408
        %v4067 = vunpack.c.0.s8 %v4066
        %v4068 = vlaneseq
        %v4069 = vshrl.u32 %v4068, 7
        %v4070 = vsub.s32 %v4067, %v4069
        %v4071 = vrot.slane %v4057, %v4070
        %v4072 = vcombine.low %v4016, %v4048
        %v4073 = vcombine.high %v4016, %v4048
        %v4074 = vcombine.low %v4023, %v4055
        %v4075 = vcombine.high %v4023, %v4055
        %v4076 = vcombine.low %v4032, %v4064
        %v4077 = vcombine.high %v4032, %v4064
        %v4078 = vcombine.low %v4039, %v4071
        %v4079 = vcombine.high %v4039, %v4071
        %v4080 = vcombine.low %v3583, %v3639
        %v4081 = vcombine.high %v3583, %v3639
        %v4083 = vunpack.c.l.s4 1983009808
        %v4084 = vunpack.c.0.s8 %v4083
        %v4085 = vlaneseq
        %v4086 = vshrl.u32 %v4085, 7
        %v4087 = vsub.s32 %v4084, %v4086
        %v4088 = vrot.slane %v4080, %v4087
        %v4090 = vunpack.c.l.s4 1983009808
        %v4091 = vunpack.c.0.s8 %v4090
        %v4092 = vlaneseq
        %v4093 = vshrl.u32 %v4092, 7
        %v4094 = vsub.s32 %v4091, %v4093
        %v4095 = vrot.slane %v4081, %v4094
        %v4096 = vcombine.low %v3633, %v3645
        %v4097 = vcombine.high %v3633, %v3645
        %v4099 = vunpack.c.l.s4 1983009808
        %v4100 = vunpack.c.0.s8 %v4099
        %v4101 = vlaneseq
        %v4102 = vshrl.u32 %v4101, 7
        %v4103 = vsub.s32 %v4100, %v4102
        %v4104 = vrot.slane %v4096, %v4103
        %v4106 = vunpack.c.l.s4 1983009808
        %v4107 = vunpack.c.0.s8 %v4106
        %v4108 = vlaneseq
        %v4109 = vshrl.u32 %v4108, 7
        %v4110 = vsub.s32 %v4107, %v4109
        %v4111 = vrot.slane %v4097, %v4110
        %v4112 = vcombine.low %v3651, %v3663
        %v4113 = vcombine.high %v3651, %v3663
        %v4115 = vunpack.c.l.s4 1983009808
        %v4116 = vunpack.c.0.s8 %v4115
        %v4117 = vlaneseq
        %v4118 = vshrl.u32 %v4117, 7
        %v4119 = vsub.s32 %v4116, %v4118
        %v4120 = vrot.slane %v4112, %v4119
        %v4122 = vunpack.c.l.s4 1983009808
        %v4123 = vunpack.c.0.s8 %v4122
        %v4124 = vlaneseq
        %v4125 = vshrl.u32 %v4124, 7
        %v4126 = vsub.s32 %v4123, %v4125
        %v4127 = vrot.slane %v4113, %v4126
        %v4128 = vcombine.low %v3657, %v3669
        %v4129 = vcombine.high %v3657, %v3669
        %v4131 = vunpack.c.l.s4 1983009808
        %v4132 = vunpack.c.0.s8 %v4131
        %v4133 = vlaneseq
        %v4134 = vshrl.u32 %v4133, 7
        %v4135 = vsub.s32 %v4132, %v4134
        %v4136 = vrot.slane %v4128, %v4135
        %v4138 = vunpack.c.l.s4 1983009808
        %v4139 = vunpack.c.0.s8 %v4138
        %v4140 = vlaneseq
        %v4141 = vshrl.u32 %v4140, 7
        %v4142 = vsub.s32 %v4139, %v4141
        %v4143 = vrot.slane %v4129, %v4142
        %v4144 = vcombine.low %v4088, %v4104
        %v4145 = vcombine.high %v4088, %v4104
        %v4147 = vunpack.c.l.s4 1934713408
        %v4148 = vunpack.c.0.s8 %v4147
        %v4149 = vlaneseq
        %v4150 = vshrl.u32 %v4149, 7
        %v4151 = vsub.s32 %v4148, %v4150
        %v4152 = vrot.slane %v4144, %v4151
        %v4154 = vunpack.c.l.s4 1934713408
        %v4155 = vunpack.c.0.s8 %v4154
        %v4156 = vlaneseq
        %v4157 = vshrl.u32 %v4156, 7
        %v4158 = vsub.s32 %v4155, %v4157
        %v4159 = vrot.slane %v4145, %v4158
        %v4160 = vcombine.low %v4095, %v4111
        %v4161 = vcombine.high %v4095, %v4111
        %v4163 = vunpack.c.l.s4 1934713408
        %v4164 = vunpack.c.0.s8 %v4163
        %v4165 = vlaneseq
        %v4166 = vshrl.u32 %v4165, 7
        %v4167 = vsub.s32 %v4164, %v4166
        %v4168 = vrot.slane %v4160, %v4167
        %v4170 = vunpack.c.l.s4 1934713408
        %v4171 = vunpack.c.0.s8 %v4170
        %v4172 = vlaneseq
        %v4173 = vshrl.u32 %v4172, 7
        %v4174 = vsub.s32 %v4171, %v4173
        %v4175 = vrot.slane %v4161, %v4174
        %v4176 = vcombine.low %v4120, %v4136
        %v4177 = vcombine.high %v4120, %v4136
        %v4179 = vunpack.c.l.s4 1934713408
        %v4180 = vunpack.c.0.s8 %v4179
        %v4181 = vlaneseq
        %v4182 = vshrl.u32 %v4181, 7
        %v4183 = vsub.s32 %v4180, %v4182
        %v4184 = vrot.slane %v4176, %v4183
        %v4186 = vunpack.c.l.s4 1934713408
        %v4187 = vunpack.c.0.s8 %v4186
        %v4188 = vlaneseq
        %v4189 = vshrl.u32 %v4188, 7
        %v4190 = vsub.s32 %v4187, %v4189
        %v4191 = vrot.slane %v4177, %v4190
        %v4192 = vcombine.low %v4127, %v4143
        %v4193 = vcombine.high %v4127, %v4143
        %v4195 = vunpack.c.l.s4 1934713408
        %v4196 = vunpack.c.0.s8 %v4195
        %v4197 = vlaneseq
        %v4198 = vshrl.u32 %v4197, 7
        %v4199 = vsub.s32 %v4196, %v4198
        %v4200 = vrot.slane %v4192, %v4199
        %v4202 = vunpack.c.l.s4 1934713408
        %v4203 = vunpack.c.0.s8 %v4202
        %v4204 = vlaneseq
        %v4205 = vshrl.u32 %v4204, 7
        %v4206 = vsub.s32 %v4203, %v4205
        %v4207 = vrot.slane %v4193, %v4206
        %v4208 = vcombine.low %v4152, %v4184
        %v4209 = vcombine.high %v4152, %v4184
        %v4210 = vcombine.low %v4159, %v4191
        %v4211 = vcombine.high %v4159, %v4191
        %v4212 = vcombine.low %v4168, %v4200
        %v4213 = vcombine.high %v4168, %v4200
        %v4214 = vcombine.low %v4175, %v4207
        %v4215 = vcombine.high %v4175, %v4207
        %v4216 = vpack.c.bf16 %v3936, %v3800
        %v4217 = vpack.c.bf16 %v3937, %v3801
        %v4218 = vpack.c.bf16 %v3938, %v3802
        %v4219 = vpack.c.bf16 %v3939, %v3803
        %v4220 = vpack.c.bf16 %v3940, %v3804
        %v4221 = vpack.c.bf16 %v3941, %v3805
        %v4222 = vpack.c.bf16 %v3942, %v3806
        %v4223 = vpack.c.bf16 %v3943, %v3807
        %v4224 = vpack.c.bf16 %v4208, %v4072
        %v4225 = vpack.c.bf16 %v4209, %v4073
        %v4226 = vpack.c.bf16 %v4210, %v4074
        %v4227 = vpack.c.bf16 %v4211, %v4075
        %v4228 = vpack.c.bf16 %v4212, %v4076
        %v4229 = vpack.c.bf16 %v4213, %v4077
        %v4230 = vpack.c.bf16 %v4214, %v4078
        %v4231 = vpack.c.bf16 %v4215, %v4079
        %v4248 = vunpack.c.l.b16 %v4216
        %v4249 = vunpack.c.h.b16 %v4216
        %v4250 = vunpack.c.l.b16 %v4217
        %v4251 = vunpack.c.h.b16 %v4217
        %v4252 = vunpack.c.l.b16 %v4218
        %v4253 = vunpack.c.h.b16 %v4218
        %v4254 = vunpack.c.l.b16 %v4219
        %v4255 = vunpack.c.h.b16 %v4219
        %v4256 = vunpack.c.l.b16 %v4220
        %v4257 = vunpack.c.h.b16 %v4220
        %v4258 = vunpack.c.l.b16 %v4221
        %v4259 = vunpack.c.h.b16 %v4221
        %v4260 = vunpack.c.l.b16 %v4222
        %v4261 = vunpack.c.h.b16 %v4222
        %v4262 = vunpack.c.l.b16 %v4223
        %v4263 = vunpack.c.h.b16 %v4223
        %v4264 = vunpack.c.l.b16 %v4224
        %v4265 = vunpack.c.h.b16 %v4224
        %v4266 = vunpack.c.l.b16 %v4225
        %v4267 = vunpack.c.h.b16 %v4225
        %v4268 = vunpack.c.l.b16 %v4226
        %v4269 = vunpack.c.h.b16 %v4226
        %v4270 = vunpack.c.l.b16 %v4227
        %v4271 = vunpack.c.h.b16 %v4227
        %v4272 = vunpack.c.l.b16 %v4228
        %v4273 = vunpack.c.h.b16 %v4228
        %v4274 = vunpack.c.l.b16 %v4229
        %v4275 = vunpack.c.h.b16 %v4229
        %v4276 = vunpack.c.l.b16 %v4230
        %v4277 = vunpack.c.h.b16 %v4230
        %v4278 = vunpack.c.l.b16 %v4231
        %v4279 = vunpack.c.h.b16 %v4231
        %v4280 = vpack.c.b16 %v4248, %v4248
        %v4281 = vpack.c.b16 %v4249, %v4249
        %v4282 = vpack.c.b16 %v4250, %v4250
        %v4283 = vpack.c.b16 %v4251, %v4251
        %v4284 = vpack.c.b16 %v4252, %v4252
        %v4285 = vpack.c.b16 %v4253, %v4253
        %v4286 = vpack.c.b16 %v4254, %v4254
        %v4287 = vpack.c.b16 %v4255, %v4255
        %v4288 = vpack.c.b16 %v4256, %v4256
        %v4289 = vpack.c.b16 %v4257, %v4257
        %v4290 = vpack.c.b16 %v4258, %v4258
        %v4291 = vpack.c.b16 %v4259, %v4259
        %v4292 = vpack.c.b16 %v4260, %v4260
        %v4293 = vpack.c.b16 %v4261, %v4261
        %v4294 = vpack.c.b16 %v4262, %v4262
        %v4295 = vpack.c.b16 %v4263, %v4263
        %v4296 = vpack.c.b16 %v4264, %v4264
        %v4297 = vpack.c.b16 %v4265, %v4265
        %v4298 = vpack.c.b16 %v4266, %v4266
        %v4299 = vpack.c.b16 %v4267, %v4267
        %v4300 = vpack.c.b16 %v4268, %v4268
        %v4301 = vpack.c.b16 %v4269, %v4269
        %v4302 = vpack.c.b16 %v4270, %v4270
        %v4303 = vpack.c.b16 %v4271, %v4271
        %v4304 = vpack.c.b16 %v4272, %v4272
        %v4305 = vpack.c.b16 %v4273, %v4273
        %v4306 = vpack.c.b16 %v4274, %v4274
        %v4307 = vpack.c.b16 %v4275, %v4275
        %v4308 = vpack.c.b16 %v4276, %v4276
        %v4309 = vpack.c.b16 %v4277, %v4277
        %v4310 = vpack.c.b16 %v4278, %v4278
        %v4311 = vpack.c.b16 %v4279, %v4279
        %v4313 = vshrl.u32 %v4280, 16
        %v4315 = vrot.slane %v4313, 7
        %v4316 = vshll.u32 %v4280, 16
        %v4318 = vor.u32 %v4315, %v4316
        %v4319 = vrot.slane %v4315, 4
        %v4321 = vshrl.u32 %v4281, 16
        %v4323 = vrot.slane %v4321, 7
        %v4324 = vshll.u32 %v4281, 16
        %v4326 = vor.u32 %v4323, %v4324
        %v4327 = vsel %vm728, %v4319, %v4326
        %v4328 = vrot.slane %v4323, 4
        %v4330 = vshrl.u32 %v4282, 16
        %v4332 = vrot.slane %v4330, 7
        %v4333 = vshll.u32 %v4282, 16
        %v4335 = vor.u32 %v4332, %v4333
        %v4336 = vrot.slane %v4332, 4
        %v4338 = vshrl.u32 %v4283, 16
        %v4340 = vrot.slane %v4338, 7
        %v4341 = vshll.u32 %v4283, 16
        %v4343 = vor.u32 %v4340, %v4341
        %v4344 = vsel %vm728, %v4336, %v4343
        %v4345 = vrot.slane %v4340, 4
        %v4347 = vshrl.u32 %v4284, 16
        %v4349 = vrot.slane %v4347, 7
        %v4350 = vshll.u32 %v4284, 16
        %v4352 = vor.u32 %v4349, %v4350
        %v4353 = vrot.slane %v4349, 4
        %v4355 = vshrl.u32 %v4285, 16
        %v4357 = vrot.slane %v4355, 7
        %v4358 = vshll.u32 %v4285, 16
        %v4360 = vor.u32 %v4357, %v4358
        %v4361 = vsel %vm728, %v4353, %v4360
        %v4362 = vrot.slane %v4357, 4
        %v4364 = vshrl.u32 %v4286, 16
        %v4366 = vrot.slane %v4364, 7
        %v4367 = vshll.u32 %v4286, 16
        %v4369 = vor.u32 %v4366, %v4367
        %v4370 = vrot.slane %v4366, 4
        %v4372 = vshrl.u32 %v4287, 16
        %v4374 = vrot.slane %v4372, 7
        %v4375 = vshll.u32 %v4287, 16
        %v4377 = vor.u32 %v4374, %v4375
        %v4378 = vsel %vm728, %v4370, %v4377
        %v4379 = vrot.slane %v4374, 4
        %v4381 = vshrl.u32 %v4288, 16
        %v4383 = vrot.slane %v4381, 7
        %v4384 = vshll.u32 %v4288, 16
        %v4386 = vor.u32 %v4383, %v4384
        %v4387 = vrot.slane %v4383, 4
        %v4389 = vshrl.u32 %v4289, 16
        %v4391 = vrot.slane %v4389, 7
        %v4392 = vshll.u32 %v4289, 16
        %v4394 = vor.u32 %v4391, %v4392
        %v4395 = vsel %vm728, %v4387, %v4394
        %v4396 = vrot.slane %v4391, 4
        %v4398 = vshrl.u32 %v4290, 16
        %v4400 = vrot.slane %v4398, 7
        %v4401 = vshll.u32 %v4290, 16
        %v4403 = vor.u32 %v4400, %v4401
        %v4404 = vrot.slane %v4400, 4
        %v4406 = vshrl.u32 %v4291, 16
        %v4408 = vrot.slane %v4406, 7
        %v4409 = vshll.u32 %v4291, 16
        %v4411 = vor.u32 %v4408, %v4409
        %v4412 = vsel %vm728, %v4404, %v4411
        %v4413 = vrot.slane %v4408, 4
        %v4415 = vshrl.u32 %v4292, 16
        %v4417 = vrot.slane %v4415, 7
        %v4418 = vshll.u32 %v4292, 16
        %v4420 = vor.u32 %v4417, %v4418
        %v4421 = vrot.slane %v4417, 4
        %v4423 = vshrl.u32 %v4293, 16
        %v4425 = vrot.slane %v4423, 7
        %v4426 = vshll.u32 %v4293, 16
        %v4428 = vor.u32 %v4425, %v4426
        %v4429 = vsel %vm728, %v4421, %v4428
        %v4430 = vrot.slane %v4425, 4
        %v4432 = vshrl.u32 %v4294, 16
        %v4434 = vrot.slane %v4432, 7
        %v4435 = vshll.u32 %v4294, 16
        %v4437 = vor.u32 %v4434, %v4435
        %v4438 = vrot.slane %v4434, 4
        %v4440 = vshrl.u32 %v4295, 16
        %v4442 = vrot.slane %v4440, 7
        %v4443 = vshll.u32 %v4295, 16
        %v4445 = vor.u32 %v4442, %v4443
        %v4446 = vsel %vm728, %v4438, %v4445
        %v4447 = vrot.slane %v4442, 4
        %v4449 = vshrl.u32 %v4296, 16
        %v4451 = vrot.slane %v4449, 7
        %v4452 = vshll.u32 %v4296, 16
        %v4454 = vor.u32 %v4451, %v4452
        %v4455 = vrot.slane %v4451, 4
        %v4457 = vshrl.u32 %v4297, 16
        %v4459 = vrot.slane %v4457, 7
        %v4460 = vshll.u32 %v4297, 16
        %v4462 = vor.u32 %v4459, %v4460
        %v4463 = vsel %vm728, %v4455, %v4462
        %v4464 = vrot.slane %v4459, 4
        %v4466 = vshrl.u32 %v4298, 16
        %v4468 = vrot.slane %v4466, 7
        %v4469 = vshll.u32 %v4298, 16
        %v4471 = vor.u32 %v4468, %v4469
        %v4472 = vrot.slane %v4468, 4
        %v4474 = vshrl.u32 %v4299, 16
        %v4476 = vrot.slane %v4474, 7
        %v4477 = vshll.u32 %v4299, 16
        %v4479 = vor.u32 %v4476, %v4477
        %v4480 = vsel %vm728, %v4472, %v4479
        %v4481 = vrot.slane %v4476, 4
        %v4483 = vshrl.u32 %v4300, 16
        %v4485 = vrot.slane %v4483, 7
        %v4486 = vshll.u32 %v4300, 16
        %v4488 = vor.u32 %v4485, %v4486
        %v4489 = vrot.slane %v4485, 4
        %v4491 = vshrl.u32 %v4301, 16
        %v4493 = vrot.slane %v4491, 7
        %v4494 = vshll.u32 %v4301, 16
        %v4496 = vor.u32 %v4493, %v4494
        %v4497 = vsel %vm728, %v4489, %v4496
        %v4498 = vrot.slane %v4493, 4
        %v4500 = vshrl.u32 %v4302, 16
        %v4502 = vrot.slane %v4500, 7
        %v4503 = vshll.u32 %v4302, 16
        %v4505 = vor.u32 %v4502, %v4503
        %v4506 = vrot.slane %v4502, 4
        %v4508 = vshrl.u32 %v4303, 16
        %v4510 = vrot.slane %v4508, 7
        %v4511 = vshll.u32 %v4303, 16
        %v4513 = vor.u32 %v4510, %v4511
        %v4514 = vsel %vm728, %v4506, %v4513
        %v4515 = vrot.slane %v4510, 4
        %v4517 = vshrl.u32 %v4304, 16
        %v4519 = vrot.slane %v4517, 7
        %v4520 = vshll.u32 %v4304, 16
        %v4522 = vor.u32 %v4519, %v4520
        %v4523 = vrot.slane %v4519, 4
        %v4525 = vshrl.u32 %v4305, 16
        %v4527 = vrot.slane %v4525, 7
        %v4528 = vshll.u32 %v4305, 16
        %v4530 = vor.u32 %v4527, %v4528
        %v4531 = vsel %vm728, %v4523, %v4530
        %v4532 = vrot.slane %v4527, 4
        %v4534 = vshrl.u32 %v4306, 16
        %v4536 = vrot.slane %v4534, 7
        %v4537 = vshll.u32 %v4306, 16
        %v4539 = vor.u32 %v4536, %v4537
        %v4540 = vrot.slane %v4536, 4
        %v4542 = vshrl.u32 %v4307, 16
        %v4544 = vrot.slane %v4542, 7
        %v4545 = vshll.u32 %v4307, 16
        %v4547 = vor.u32 %v4544, %v4545
        %v4548 = vsel %vm728, %v4540, %v4547
        %v4549 = vrot.slane %v4544, 4
        %v4551 = vshrl.u32 %v4308, 16
        %v4553 = vrot.slane %v4551, 7
        %v4554 = vshll.u32 %v4308, 16
        %v4556 = vor.u32 %v4553, %v4554
        %v4557 = vrot.slane %v4553, 4
        %v4559 = vshrl.u32 %v4309, 16
        %v4561 = vrot.slane %v4559, 7
        %v4562 = vshll.u32 %v4309, 16
        %v4564 = vor.u32 %v4561, %v4562
        %v4565 = vsel %vm728, %v4557, %v4564
        %v4566 = vrot.slane %v4561, 4
        %v4568 = vshrl.u32 %v4310, 16
        %v4570 = vrot.slane %v4568, 7
        %v4571 = vshll.u32 %v4310, 16
        %v4573 = vor.u32 %v4570, %v4571
        %v4574 = vrot.slane %v4570, 4
        %v4576 = vshrl.u32 %v4311, 16
        %v4578 = vrot.slane %v4576, 7
        %v4579 = vshll.u32 %v4311, 16
        %v4581 = vor.u32 %v4578, %v4579
        %v4582 = vsel %vm728, %v4574, %v4581
        %v4583 = vrot.slane %v4578, 4
        %4584 = vrot.lane.b32.xlu0 %v4318, 1
        %v4585 = vpop.permute.xlu0 %4584
        %4586 = vrot.lane.b32.xlu0 %v4327, 1
        %v4587 = vpop.permute.xlu0 %4586
        %4588 = vrot.lane.b32.xlu0 %v4328, 1
        %v4589 = vpop.permute.xlu0 %4588
        %4590 = vrot.lane.b32.xlu0 %v4335, 1
        %v4591 = vpop.permute.xlu0 %4590
        %4592 = vrot.lane.b32.xlu0 %v4344, 1
        %v4593 = vpop.permute.xlu0 %4592
        %4594 = vrot.lane.b32.xlu0 %v4345, 1
        %v4595 = vpop.permute.xlu0 %4594
        %4596 = vrot.lane.b32.xlu0 %v4352, 1
        %v4597 = vpop.permute.xlu0 %4596
        %4598 = vrot.lane.b32.xlu0 %v4361, 1
        %v4599 = vpop.permute.xlu0 %4598
        %4600 = vrot.lane.b32.xlu0 %v4362, 1
        %v4601 = vpop.permute.xlu0 %4600
        %4602 = vrot.lane.b32.xlu0 %v4369, 1
        %v4603 = vpop.permute.xlu0 %4602
        %4604 = vrot.lane.b32.xlu0 %v4378, 1
        %v4605 = vpop.permute.xlu0 %4604
        %4606 = vrot.lane.b32.xlu0 %v4379, 1
        %v4607 = vpop.permute.xlu0 %4606
        %4608 = vrot.lane.b32.xlu0 %v4386, 1
        %v4609 = vpop.permute.xlu0 %4608
        %4610 = vrot.lane.b32.xlu0 %v4395, 1
        %v4611 = vpop.permute.xlu0 %4610
        %4612 = vrot.lane.b32.xlu0 %v4396, 1
        %v4613 = vpop.permute.xlu0 %4612
        %4614 = vrot.lane.b32.xlu0 %v4403, 1
        %v4615 = vpop.permute.xlu0 %4614
        %4616 = vrot.lane.b32.xlu0 %v4412, 1
        %v4617 = vpop.permute.xlu0 %4616
        %4618 = vrot.lane.b32.xlu0 %v4413, 1
        %v4619 = vpop.permute.xlu0 %4618
        %4620 = vrot.lane.b32.xlu0 %v4420, 1
        %v4621 = vpop.permute.xlu0 %4620
        %4622 = vrot.lane.b32.xlu0 %v4429, 1
        %v4623 = vpop.permute.xlu0 %4622
        %4624 = vrot.lane.b32.xlu0 %v4430, 1
        %v4625 = vpop.permute.xlu0 %4624
        %4626 = vrot.lane.b32.xlu0 %v4437, 1
        %v4627 = vpop.permute.xlu0 %4626
        %4628 = vrot.lane.b32.xlu0 %v4446, 1
        %v4629 = vpop.permute.xlu0 %4628
        %4630 = vrot.lane.b32.xlu0 %v4447, 1
        %v4631 = vpop.permute.xlu0 %4630
        %4632 = vrot.lane.b32.xlu0 %v4454, 1
        %v4633 = vpop.permute.xlu0 %4632
        %4634 = vrot.lane.b32.xlu0 %v4463, 1
        %v4635 = vpop.permute.xlu0 %4634
        %4636 = vrot.lane.b32.xlu0 %v4464, 1
        %v4637 = vpop.permute.xlu0 %4636
        %4638 = vrot.lane.b32.xlu0 %v4471, 1
        %v4639 = vpop.permute.xlu0 %4638
        %4640 = vrot.lane.b32.xlu0 %v4480, 1
        %v4641 = vpop.permute.xlu0 %4640
        %4642 = vrot.lane.b32.xlu0 %v4481, 1
        %v4643 = vpop.permute.xlu0 %4642
        %4644 = vrot.lane.b32.xlu0 %v4488, 1
        %v4645 = vpop.permute.xlu0 %4644
        %4646 = vrot.lane.b32.xlu0 %v4497, 1
        %v4647 = vpop.permute.xlu0 %4646
        %4648 = vrot.lane.b32.xlu0 %v4498, 1
        %v4649 = vpop.permute.xlu0 %4648
        %4650 = vrot.lane.b32.xlu0 %v4505, 1
        %v4651 = vpop.permute.xlu0 %4650
        %4652 = vrot.lane.b32.xlu0 %v4514, 1
        %v4653 = vpop.permute.xlu0 %4652
        %4654 = vrot.lane.b32.xlu0 %v4515, 1
        %v4655 = vpop.permute.xlu0 %4654
        %4656 = vrot.lane.b32.xlu0 %v4522, 1
        %v4657 = vpop.permute.xlu0 %4656
        %4658 = vrot.lane.b32.xlu0 %v4531, 1
        %v4659 = vpop.permute.xlu0 %4658
        %4660 = vrot.lane.b32.xlu0 %v4532, 1
        %v4661 = vpop.permute.xlu0 %4660
        %4662 = vrot.lane.b32.xlu0 %v4539, 1
        %v4663 = vpop.permute.xlu0 %4662
        %4664 = vrot.lane.b32.xlu0 %v4548, 1
        %v4665 = vpop.permute.xlu0 %4664
        %4666 = vrot.lane.b32.xlu0 %v4549, 1
        %v4667 = vpop.permute.xlu0 %4666
        %4668 = vrot.lane.b32.xlu0 %v4556, 1
        %v4669 = vpop.permute.xlu0 %4668
        %4670 = vrot.lane.b32.xlu0 %v4565, 1
        %v4671 = vpop.permute.xlu0 %4670
        %4672 = vrot.lane.b32.xlu0 %v4566, 1
        %v4673 = vpop.permute.xlu0 %4672
        %4674 = vrot.lane.b32.xlu0 %v4573, 1
        %v4675 = vpop.permute.xlu0 %4674
        %4676 = vrot.lane.b32.xlu0 %v4582, 1
        %v4677 = vpop.permute.xlu0 %4676
        %4678 = vrot.lane.b32.xlu0 %v4583, 1
        %v4679 = vpop.permute.xlu0 %4678
        %v4728 = vld [vmem:[#allocation3] sm:$0xf]
        %v4729 = vsel %vm834, %v4585, %v4728
        %4730 = vst [vmem:[#allocation3] sm:$0xf] %v4729
        %4731 = vst.msk [vmem:[#allocation3 + $0x4] sm:$0xf] %vm838, %v4587
        %v4732 = vld [vmem:[#allocation3 + $0x8] sm:$0x1]
        %v4733 = vsel %vm841, %v4589, %v4732
        %4734 = vst [vmem:[#allocation3 + $0x8] sm:$0x1] %v4733
        %v4735 = vld [vmem:[#allocation3 + $0xc] sm:$0xf]
        %v4736 = vsel %vm834, %v4591, %v4735
        %4737 = vst [vmem:[#allocation3 + $0xc] sm:$0xf] %v4736
        %4738 = vst.msk [vmem:[#allocation3 + $0x10] sm:$0xf] %vm838, %v4593
        %v4739 = vld [vmem:[#allocation3 + $0x14] sm:$0x1]
        %v4740 = vsel %vm841, %v4595, %v4739
        %4741 = vst [vmem:[#allocation3 + $0x14] sm:$0x1] %v4740
        %v4742 = vld [vmem:[#allocation3 + $0x18] sm:$0xf]
        %v4743 = vsel %vm834, %v4597, %v4742
        %4744 = vst [vmem:[#allocation3 + $0x18] sm:$0xf] %v4743
        %4745 = vst.msk [vmem:[#allocation3 + $0x1c] sm:$0xf] %vm838, %v4599
        %v4746 = vld [vmem:[#allocation3 + $0x20] sm:$0x1]
        %v4747 = vsel %vm841, %v4601, %v4746
        %4748 = vst [vmem:[#allocation3 + $0x20] sm:$0x1] %v4747
        %v4749 = vld [vmem:[#allocation3 + $0x24] sm:$0xf]
        %v4750 = vsel %vm834, %v4603, %v4749
        %4751 = vst [vmem:[#allocation3 + $0x24] sm:$0xf] %v4750
        %4752 = vst.msk [vmem:[#allocation3 + $0x28] sm:$0xf] %vm838, %v4605
        %v4753 = vld [vmem:[#allocation3 + $0x2c] sm:$0x1]
        %v4754 = vsel %vm841, %v4607, %v4753
        %4755 = vst [vmem:[#allocation3 + $0x2c] sm:$0x1] %v4754
        %v4756 = vld [vmem:[#allocation3 + $0x30] sm:$0xf]
        %v4757 = vsel %vm834, %v4609, %v4756
        %4758 = vst [vmem:[#allocation3 + $0x30] sm:$0xf] %v4757
        %4759 = vst.msk [vmem:[#allocation3 + $0x34] sm:$0xf] %vm838, %v4611
        %v4760 = vld [vmem:[#allocation3 + $0x38] sm:$0x1]
        %v4761 = vsel %vm841, %v4613, %v4760
        %4762 = vst [vmem:[#allocation3 + $0x38] sm:$0x1] %v4761
        %v4763 = vld [vmem:[#allocation3 + $0x3c] sm:$0xf]
        %v4764 = vsel %vm834, %v4615, %v4763
        %4765 = vst [vmem:[#allocation3 + $0x3c] sm:$0xf] %v4764
        %4766 = vst.msk [vmem:[#allocation3 + $0x40] sm:$0xf] %vm838, %v4617
        %v4767 = vld [vmem:[#allocation3 + $0x44] sm:$0x1]
        %v4768 = vsel %vm841, %v4619, %v4767
        %4769 = vst [vmem:[#allocation3 + $0x44] sm:$0x1] %v4768
        %v4770 = vld [vmem:[#allocation3 + $0x48] sm:$0xf]
        %v4771 = vsel %vm834, %v4621, %v4770
        %4772 = vst [vmem:[#allocation3 + $0x48] sm:$0xf] %v4771
        %4773 = vst.msk [vmem:[#allocation3 + $0x4c] sm:$0xf] %vm838, %v4623
        %v4774 = vld [vmem:[#allocation3 + $0x50] sm:$0x1]
        %v4775 = vsel %vm841, %v4625, %v4774
        %4776 = vst [vmem:[#allocation3 + $0x50] sm:$0x1] %v4775
        %v4777 = vld [vmem:[#allocation3 + $0x54] sm:$0xf]
        %v4778 = vsel %vm834, %v4627, %v4777
        %4779 = vst [vmem:[#allocation3 + $0x54] sm:$0xf] %v4778
        %4780 = vst.msk [vmem:[#allocation3 + $0x58] sm:$0xf] %vm838, %v4629
        %v4781 = vld [vmem:[#allocation3 + $0x5c] sm:$0x1]
        %v4782 = vsel %vm841, %v4631, %v4781
        %4783 = vst [vmem:[#allocation3 + $0x5c] sm:$0x1] %v4782
        %v4784 = vld [vmem:[#allocation3 + $0x60] sm:$0xf]
        %v4785 = vsel %vm834, %v4633, %v4784
        %4786 = vst [vmem:[#allocation3 + $0x60] sm:$0xf] %v4785
        %4787 = vst.msk [vmem:[#allocation3 + $0x64] sm:$0xf] %vm838, %v4635
        %v4788 = vld [vmem:[#allocation3 + $0x68] sm:$0x1]
        %v4789 = vsel %vm841, %v4637, %v4788
        %4790 = vst [vmem:[#allocation3 + $0x68] sm:$0x1] %v4789
        %v4791 = vld [vmem:[#allocation3 + $0x6c] sm:$0xf]
        %v4792 = vsel %vm834, %v4639, %v4791
        %4793 = vst [vmem:[#allocation3 + $0x6c] sm:$0xf] %v4792
        %4794 = vst.msk [vmem:[#allocation3 + $0x70] sm:$0xf] %vm838, %v4641
        %v4795 = vld [vmem:[#allocation3 + $0x74] sm:$0x1]
        %v4796 = vsel %vm841, %v4643, %v4795
        %4797 = vst [vmem:[#allocation3 + $0x74] sm:$0x1] %v4796
        %v4798 = vld [vmem:[#allocation3 + $0x78] sm:$0xf]
        %v4799 = vsel %vm834, %v4645, %v4798
        %4800 = vst [vmem:[#allocation3 + $0x78] sm:$0xf] %v4799
        %4801 = vst.msk [vmem:[#allocation3 + $0x7c] sm:$0xf] %vm838, %v4647
        %v4802 = vld [vmem:[#allocation3 + $0x80] sm:$0x1]
        %v4803 = vsel %vm841, %v4649, %v4802
        %4804 = vst [vmem:[#allocation3 + $0x80] sm:$0x1] %v4803
        %v4805 = vld [vmem:[#allocation3 + $0x84] sm:$0xf]
        %v4806 = vsel %vm834, %v4651, %v4805
        %4807 = vst [vmem:[#allocation3 + $0x84] sm:$0xf] %v4806
        %4808 = vst.msk [vmem:[#allocation3 + $0x88] sm:$0xf] %vm838, %v4653
        %v4809 = vld [vmem:[#allocation3 + $0x8c] sm:$0x1]
        %v4810 = vsel %vm841, %v4655, %v4809
        %4811 = vst [vmem:[#allocation3 + $0x8c] sm:$0x1] %v4810
        %v4812 = vld [vmem:[#allocation3 + $0x90] sm:$0xf]
        %v4813 = vsel %vm834, %v4657, %v4812
        %4814 = vst [vmem:[#allocation3 + $0x90] sm:$0xf] %v4813
        %4815 = vst.msk [vmem:[#allocation3 + $0x94] sm:$0xf] %vm838, %v4659
        %v4816 = vld [vmem:[#allocation3 + $0x98] sm:$0x1]
        %v4817 = vsel %vm841, %v4661, %v4816
        %4818 = vst [vmem:[#allocation3 + $0x98] sm:$0x1] %v4817
        %v4819 = vld [vmem:[#allocation3 + $0x9c] sm:$0xf]
        %v4820 = vsel %vm834, %v4663, %v4819
        %4821 = vst [vmem:[#allocation3 + $0x9c] sm:$0xf] %v4820
        %4822 = vst.msk [vmem:[#allocation3 + $0xa0] sm:$0xf] %vm838, %v4665
        %v4823 = vld [vmem:[#allocation3 + $0xa4] sm:$0x1]
        %v4824 = vsel %vm841, %v4667, %v4823
        %4825 = vst [vmem:[#allocation3 + $0xa4] sm:$0x1] %v4824
        %v4826 = vld [vmem:[#allocation3 + $0xa8] sm:$0xf]
        %v4827 = vsel %vm834, %v4669, %v4826
        %4828 = vst [vmem:[#allocation3 + $0xa8] sm:$0xf] %v4827
        %4829 = vst.msk [vmem:[#allocation3 + $0xac] sm:$0xf] %vm838, %v4671
        %v4830 = vld [vmem:[#allocation3 + $0xb0] sm:$0x1]
        %v4831 = vsel %vm841, %v4673, %v4830
        %4832 = vst [vmem:[#allocation3 + $0xb0] sm:$0x1] %v4831
        %v4833 = vld [vmem:[#allocation3 + $0xb4] sm:$0xf]
        %v4834 = vsel %vm834, %v4675, %v4833
        %4835 = vst [vmem:[#allocation3 + $0xb4] sm:$0xf] %v4834
        %4836 = vst.msk [vmem:[#allocation3 + $0xb8] sm:$0xf] %vm838, %v4677
        %v4837 = vld [vmem:[#allocation3 + $0xbc] sm:$0x1]
        %v4838 = vsel %vm841, %v4679, %v4837
        %4839 = vst [vmem:[#allocation3 + $0xbc] sm:$0x1] %v4838
        %v4840 = vld [vmem:[#allocation3] sm:$0xf]
        %v4841 = vld [vmem:[#allocation3 + $0x4] sm:$0xf]
        %v4842 = vld [vmem:[#allocation3 + $0xc] sm:$0xf]
        %v4843 = vld [vmem:[#allocation3 + $0x10] sm:$0xf]
        %v4844 = vld [vmem:[#allocation3 + $0x18] sm:$0xf]
        %v4845 = vld [vmem:[#allocation3 + $0x1c] sm:$0xf]
        %v4846 = vld [vmem:[#allocation3 + $0x24] sm:$0xf]
        %v4847 = vld [vmem:[#allocation3 + $0x28] sm:$0xf]
        %v4848 = vld [vmem:[#allocation3 + $0x30] sm:$0xf]
        %v4849 = vld [vmem:[#allocation3 + $0x34] sm:$0xf]
        %v4850 = vld [vmem:[#allocation3 + $0x3c] sm:$0xf]
        %v4851 = vld [vmem:[#allocation3 + $0x40] sm:$0xf]
        %v4852 = vld [vmem:[#allocation3 + $0x48] sm:$0xf]
        %v4853 = vld [vmem:[#allocation3 + $0x4c] sm:$0xf]
        %v4854 = vld [vmem:[#allocation3 + $0x54] sm:$0xf]
        %v4855 = vld [vmem:[#allocation3 + $0x58] sm:$0xf]
        %v4856 = vld [vmem:[#allocation3 + $0x60] sm:$0xf]
        %v4857 = vld [vmem:[#allocation3 + $0x64] sm:$0xf]
        %v4858 = vld [vmem:[#allocation3 + $0x6c] sm:$0xf]
        %v4859 = vld [vmem:[#allocation3 + $0x70] sm:$0xf]
        %v4860 = vld [vmem:[#allocation3 + $0x78] sm:$0xf]
        %v4861 = vld [vmem:[#allocation3 + $0x7c] sm:$0xf]
        %v4862 = vld [vmem:[#allocation3 + $0x84] sm:$0xf]
        %v4863 = vld [vmem:[#allocation3 + $0x88] sm:$0xf]
        %v4864 = vld [vmem:[#allocation3 + $0x90] sm:$0xf]
        %v4865 = vld [vmem:[#allocation3 + $0x94] sm:$0xf]
        %v4866 = vld [vmem:[#allocation3 + $0x9c] sm:$0xf]
        %v4867 = vld [vmem:[#allocation3 + $0xa0] sm:$0xf]
        %v4868 = vld [vmem:[#allocation3 + $0xa8] sm:$0xf]
        %v4869 = vld [vmem:[#allocation3 + $0xac] sm:$0xf]
        %v4870 = vld [vmem:[#allocation3 + $0xb4] sm:$0xf]
        %v4871 = vld [vmem:[#allocation3 + $0xb8] sm:$0xf]
        %v4872 = vcombine.low %v4840, %v4848
        %v4874 = vunpack.c.l.s4 1983009808
        %v4875 = vunpack.c.0.s8 %v4874
        %v4876 = vlaneseq
        %v4877 = vshrl.u32 %v4876, 7
        %v4878 = vsub.s32 %v4875, %v4877
        %v4879 = vrot.slane %v4872, %v4878
        %v4880 = vcombine.low %v4844, %v4852
        %v4882 = vunpack.c.l.s4 1983009808
        %v4883 = vunpack.c.0.s8 %v4882
        %v4884 = vlaneseq
        %v4885 = vshrl.u32 %v4884, 7
        %v4886 = vsub.s32 %v4883, %v4885
        %v4887 = vrot.slane %v4880, %v4886
        %v4888 = vcombine.low %v4879, %v4887
        %v4889 = vcombine.high %v4879, %v4887
        %v4891 = vunpack.c.l.s4 1934713408
        %v4892 = vunpack.c.0.s8 %v4891
        %v4893 = vlaneseq
        %v4894 = vshrl.u32 %v4893, 7
        %v4895 = vsub.s32 %v4892, %v4894
        %v4896 = vrot.slane %v4888, %v4895
        %v4898 = vunpack.c.l.s4 1934713408
        %v4899 = vunpack.c.0.s8 %v4898
        %v4900 = vlaneseq
        %v4901 = vshrl.u32 %v4900, 7
        %v4902 = vsub.s32 %v4899, %v4901
        %v4903 = vrot.slane %v4889, %v4902
        %v4904 = vcombine.high %v4896, 0
        %v4905 = vcombine.high %v4903, 0
        %v4906 = vcombine.low %v4842, %v4850
        %v4908 = vunpack.c.l.s4 1983009808
        %v4909 = vunpack.c.0.s8 %v4908
        %v4910 = vlaneseq
        %v4911 = vshrl.u32 %v4910, 7
        %v4912 = vsub.s32 %v4909, %v4911
        %v4913 = vrot.slane %v4906, %v4912
        %v4914 = vcombine.low %v4846, %v4854
        %v4916 = vunpack.c.l.s4 1983009808
        %v4917 = vunpack.c.0.s8 %v4916
        %v4918 = vlaneseq
        %v4919 = vshrl.u32 %v4918, 7
        %v4920 = vsub.s32 %v4917, %v4919
        %v4921 = vrot.slane %v4914, %v4920
        %v4922 = vcombine.low %v4913, %v4921
        %v4923 = vcombine.high %v4913, %v4921
        %v4925 = vunpack.c.l.s4 1934713408
        %v4926 = vunpack.c.0.s8 %v4925
        %v4927 = vlaneseq
        %v4928 = vshrl.u32 %v4927, 7
        %v4929 = vsub.s32 %v4926, %v4928
        %v4930 = vrot.slane %v4922, %v4929
        %v4932 = vunpack.c.l.s4 1934713408
        %v4933 = vunpack.c.0.s8 %v4932
        %v4934 = vlaneseq
        %v4935 = vshrl.u32 %v4934, 7
        %v4936 = vsub.s32 %v4933, %v4935
        %v4937 = vrot.slane %v4923, %v4936
        %v4938 = vcombine.high %v4930, 0
        %v4939 = vcombine.high %v4937, 0
        %v4940 = vcombine.low %v4856, %v4864
        %v4942 = vunpack.c.l.s4 1983009808
        %v4943 = vunpack.c.0.s8 %v4942
        %v4944 = vlaneseq
        %v4945 = vshrl.u32 %v4944, 7
        %v4946 = vsub.s32 %v4943, %v4945
        %v4947 = vrot.slane %v4940, %v4946
        %v4948 = vcombine.low %v4860, %v4868
        %v4950 = vunpack.c.l.s4 1983009808
        %v4951 = vunpack.c.0.s8 %v4950
        %v4952 = vlaneseq
        %v4953 = vshrl.u32 %v4952, 7
        %v4954 = vsub.s32 %v4951, %v4953
        %v4955 = vrot.slane %v4948, %v4954
        %v4956 = vcombine.low %v4947, %v4955
        %v4957 = vcombine.high %v4947, %v4955
        %v4959 = vunpack.c.l.s4 1934713408
        %v4960 = vunpack.c.0.s8 %v4959
        %v4961 = vlaneseq
        %v4962 = vshrl.u32 %v4961, 7
        %v4963 = vsub.s32 %v4960, %v4962
        %v4964 = vrot.slane %v4956, %v4963
        %v4966 = vunpack.c.l.s4 1934713408
        %v4967 = vunpack.c.0.s8 %v4966
        %v4968 = vlaneseq
        %v4969 = vshrl.u32 %v4968, 7
        %v4970 = vsub.s32 %v4967, %v4969
        %v4971 = vrot.slane %v4957, %v4970
        %v4972 = vcombine.high %v4964, 0
        %v4973 = vcombine.high %v4971, 0
        %v4974 = vcombine.low %v4858, %v4866
        %v4976 = vunpack.c.l.s4 1983009808
        %v4977 = vunpack.c.0.s8 %v4976
        %v4978 = vlaneseq
        %v4979 = vshrl.u32 %v4978, 7
        %v4980 = vsub.s32 %v4977, %v4979
        %v4981 = vrot.slane %v4974, %v4980
        %v4982 = vcombine.low %v4862, %v4870
        %v4984 = vunpack.c.l.s4 1983009808
        %v4985 = vunpack.c.0.s8 %v4984
        %v4986 = vlaneseq
        %v4987 = vshrl.u32 %v4986, 7
        %v4988 = vsub.s32 %v4985, %v4987
        %v4989 = vrot.slane %v4982, %v4988
        %v4990 = vcombine.low %v4981, %v4989
        %v4991 = vcombine.high %v4981, %v4989
        %v4993 = vunpack.c.l.s4 1934713408
        %v4994 = vunpack.c.0.s8 %v4993
        %v4995 = vlaneseq
        %v4996 = vshrl.u32 %v4995, 7
        %v4997 = vsub.s32 %v4994, %v4996
        %v4998 = vrot.slane %v4990, %v4997
        %v5000 = vunpack.c.l.s4 1934713408
        %v5001 = vunpack.c.0.s8 %v5000
        %v5002 = vlaneseq
        %v5003 = vshrl.u32 %v5002, 7
        %v5004 = vsub.s32 %v5001, %v5003
        %v5005 = vrot.slane %v4991, %v5004
        %v5006 = vcombine.high %v4998, 0
        %v5007 = vcombine.high %v5005, 0
        %v5008 = vcombine.low %v4841, %v4849
        %v5010 = vunpack.c.l.s4 1983009808
        %v5011 = vunpack.c.0.s8 %v5010
        %v5012 = vlaneseq
        %v5013 = vshrl.u32 %v5012, 7
        %v5014 = vsub.s32 %v5011, %v5013
        %v5015 = vrot.slane %v5008, %v5014
        %v5016 = vcombine.low %v4845, %v4853
        %v5018 = vunpack.c.l.s4 1983009808
        %v5019 = vunpack.c.0.s8 %v5018
        %v5020 = vlaneseq
        %v5021 = vshrl.u32 %v5020, 7
        %v5022 = vsub.s32 %v5019, %v5021
        %v5023 = vrot.slane %v5016, %v5022
        %v5024 = vcombine.low %v5015, %v5023
        %v5025 = vcombine.high %v5015, %v5023
        %v5027 = vunpack.c.l.s4 1934713408
        %v5028 = vunpack.c.0.s8 %v5027
        %v5029 = vlaneseq
        %v5030 = vshrl.u32 %v5029, 7
        %v5031 = vsub.s32 %v5028, %v5030
        %v5032 = vrot.slane %v5024, %v5031
        %v5034 = vunpack.c.l.s4 1934713408
        %v5035 = vunpack.c.0.s8 %v5034
        %v5036 = vlaneseq
        %v5037 = vshrl.u32 %v5036, 7
        %v5038 = vsub.s32 %v5035, %v5037
        %v5039 = vrot.slane %v5025, %v5038
        %v5040 = vcombine.high %v5032, 0
        %v5041 = vcombine.high %v5039, 0
        %v5042 = vcombine.low %v4843, %v4851
        %v5044 = vunpack.c.l.s4 1983009808
        %v5045 = vunpack.c.0.s8 %v5044
        %v5046 = vlaneseq
        %v5047 = vshrl.u32 %v5046, 7
        %v5048 = vsub.s32 %v5045, %v5047
        %v5049 = vrot.slane %v5042, %v5048
        %v5050 = vcombine.low %v4847, %v4855
        %v5052 = vunpack.c.l.s4 1983009808
        %v5053 = vunpack.c.0.s8 %v5052
        %v5054 = vlaneseq
        %v5055 = vshrl.u32 %v5054, 7
        %v5056 = vsub.s32 %v5053, %v5055
        %v5057 = vrot.slane %v5050, %v5056
        %v5058 = vcombine.low %v5049, %v5057
        %v5059 = vcombine.high %v5049, %v5057
        %v5061 = vunpack.c.l.s4 1934713408
        %v5062 = vunpack.c.0.s8 %v5061
        %v5063 = vlaneseq
        %v5064 = vshrl.u32 %v5063, 7
        %v5065 = vsub.s32 %v5062, %v5064
        %v5066 = vrot.slane %v5058, %v5065
        %v5068 = vunpack.c.l.s4 1934713408
        %v5069 = vunpack.c.0.s8 %v5068
        %v5070 = vlaneseq
        %v5071 = vshrl.u32 %v5070, 7
        %v5072 = vsub.s32 %v5069, %v5071
        %v5073 = vrot.slane %v5059, %v5072
        %v5074 = vcombine.high %v5066, 0
        %v5075 = vcombine.high %v5073, 0
        %v5076 = vcombine.low %v4857, %v4865
        %v5078 = vunpack.c.l.s4 1983009808
        %v5079 = vunpack.c.0.s8 %v5078
        %v5080 = vlaneseq
        %v5081 = vshrl.u32 %v5080, 7
        %v5082 = vsub.s32 %v5079, %v5081
        %v5083 = vrot.slane %v5076, %v5082
        %v5084 = vcombine.low %v4861, %v4869
        %v5086 = vunpack.c.l.s4 1983009808
        %v5087 = vunpack.c.0.s8 %v5086
        %v5088 = vlaneseq
        %v5089 = vshrl.u32 %v5088, 7
        %v5090 = vsub.s32 %v5087, %v5089
        %v5091 = vrot.slane %v5084, %v5090
        %v5092 = vcombine.low %v5083, %v5091
        %v5093 = vcombine.high %v5083, %v5091
        %v5095 = vunpack.c.l.s4 1934713408
        %v5096 = vunpack.c.0.s8 %v5095
        %v5097 = vlaneseq
        %v5098 = vshrl.u32 %v5097, 7
        %v5099 = vsub.s32 %v5096, %v5098
        %v5100 = vrot.slane %v5092, %v5099
        %v5102 = vunpack.c.l.s4 1934713408
        %v5103 = vunpack.c.0.s8 %v5102
        %v5104 = vlaneseq
        %v5105 = vshrl.u32 %v5104, 7
        %v5106 = vsub.s32 %v5103, %v5105
        %v5107 = vrot.slane %v5093, %v5106
        %v5108 = vcombine.high %v5100, 0
        %v5109 = vcombine.high %v5107, 0
        %v5110 = vcombine.low %v4859, %v4867
        %v5112 = vunpack.c.l.s4 1983009808
        %v5113 = vunpack.c.0.s8 %v5112
        %v5114 = vlaneseq
        %v5115 = vshrl.u32 %v5114, 7
        %v5116 = vsub.s32 %v5113, %v5115
        %v5117 = vrot.slane %v5110, %v5116
        %v5118 = vcombine.low %v4863, %v4871
        %v5120 = vunpack.c.l.s4 1983009808
        %v5121 = vunpack.c.0.s8 %v5120
        %v5122 = vlaneseq
        %v5123 = vshrl.u32 %v5122, 7
        %v5124 = vsub.s32 %v5121, %v5123
        %v5125 = vrot.slane %v5118, %v5124
        %v5126 = vcombine.low %v5117, %v5125
        %v5127 = vcombine.high %v5117, %v5125
        %v5129 = vunpack.c.l.s4 1934713408
        %v5130 = vunpack.c.0.s8 %v5129
        %v5131 = vlaneseq
        %v5132 = vshrl.u32 %v5131, 7
        %v5133 = vsub.s32 %v5130, %v5132
        %v5134 = vrot.slane %v5126, %v5133
        %v5136 = vunpack.c.l.s4 1934713408
        %v5137 = vunpack.c.0.s8 %v5136
        %v5138 = vlaneseq
        %v5139 = vshrl.u32 %v5138, 7
        %v5140 = vsub.s32 %v5137, %v5139
        %v5141 = vrot.slane %v5127, %v5140
        %v5142 = vcombine.high %v5134, 0
        %v5143 = vcombine.high %v5141, 0
        %v5146 = vpack.i.b16 %v4930, %v4896
        %v5147 = vshrl.u32 %v4896, 16
        %v5148 = vshrl.u32 %v4930, 16
        %v5149 = vpack.i.b16 %v5148, %v5147
        %v5152 = vpack.i.b16 %v4938, %v4904
        %v5153 = vshrl.u32 %v4904, 16
        %v5154 = vshrl.u32 %v4938, 16
        %v5155 = vpack.i.b16 %v5154, %v5153
        %v5158 = vpack.i.b16 %v4937, %v4903
        %v5159 = vshrl.u32 %v4903, 16
        %v5160 = vshrl.u32 %v4937, 16
        %v5161 = vpack.i.b16 %v5160, %v5159
        %v5164 = vpack.i.b16 %v4939, %v4905
        %v5165 = vshrl.u32 %v4905, 16
        %v5166 = vshrl.u32 %v4939, 16
        %v5167 = vpack.i.b16 %v5166, %v5165
        %v5170 = vpack.i.b16 %v5066, %v5032
        %v5171 = vshrl.u32 %v5032, 16
        %v5172 = vshrl.u32 %v5066, 16
        %v5173 = vpack.i.b16 %v5172, %v5171
        %v5176 = vpack.i.b16 %v5074, %v5040
        %v5177 = vshrl.u32 %v5040, 16
        %v5178 = vshrl.u32 %v5074, 16
        %v5179 = vpack.i.b16 %v5178, %v5177
        %v5182 = vpack.i.b16 %v5073, %v5039
        %v5183 = vshrl.u32 %v5039, 16
        %v5184 = vshrl.u32 %v5073, 16
        %v5185 = vpack.i.b16 %v5184, %v5183
        %v5188 = vpack.i.b16 %v5075, %v5041
        %v5189 = vshrl.u32 %v5041, 16
        %v5190 = vshrl.u32 %v5075, 16
        %v5191 = vpack.i.b16 %v5190, %v5189
        %v5194 = vpack.i.b16 %v4998, %v4964
        %v5195 = vshrl.u32 %v4964, 16
        %v5196 = vshrl.u32 %v4998, 16
        %v5197 = vpack.i.b16 %v5196, %v5195
        %v5200 = vpack.i.b16 %v5006, %v4972
        %v5201 = vshrl.u32 %v4972, 16
        %v5202 = vshrl.u32 %v5006, 16
        %v5203 = vpack.i.b16 %v5202, %v5201
        %v5206 = vpack.i.b16 %v5005, %v4971
        %v5207 = vshrl.u32 %v4971, 16
        %v5208 = vshrl.u32 %v5005, 16
        %v5209 = vpack.i.b16 %v5208, %v5207
        %v5212 = vpack.i.b16 %v5007, %v4973
        %v5213 = vshrl.u32 %v4973, 16
        %v5214 = vshrl.u32 %v5007, 16
        %v5215 = vpack.i.b16 %v5214, %v5213
        %v5218 = vpack.i.b16 %v5134, %v5100
        %v5219 = vshrl.u32 %v5100, 16
        %v5220 = vshrl.u32 %v5134, 16
        %v5221 = vpack.i.b16 %v5220, %v5219
        %v5224 = vpack.i.b16 %v5142, %v5108
        %v5225 = vshrl.u32 %v5108, 16
        %v5226 = vshrl.u32 %v5142, 16
        %v5227 = vpack.i.b16 %v5226, %v5225
        %v5230 = vpack.i.b16 %v5141, %v5107
        %v5231 = vshrl.u32 %v5107, 16
        %v5232 = vshrl.u32 %v5141, 16
        %v5233 = vpack.i.b16 %v5232, %v5231
        %v5236 = vpack.i.b16 %v5143, %v5109
        %v5237 = vshrl.u32 %v5109, 16
        %v5238 = vshrl.u32 %v5143, 16
        %v5239 = vpack.i.b16 %v5238, %v5237
        %v5240 = vunpack.c.l.b16 %v5146
        %v5241 = vunpack.c.l.b16 %v5194
        %v5242 = vpack.c.b16 %v5241, %v5240
        %v5243 = vunpack.c.l.b16 %v5149
        %v5244 = vunpack.c.l.b16 %v5197
        %v5245 = vpack.c.b16 %v5244, %v5243
        %5246 = vrot.lane.b32.xlu0 %v5245, 16
        %v5247 = vpop.permute.xlu0 %5246
        %v5248 = vunpack.c.l.b16 %v5152
        %v5249 = vunpack.c.l.b16 %v5200
        %v5250 = vpack.c.b16 %v5249, %v5248
        %5251 = vrot.lane.b32.xlu0 %v5250, 32
        %v5252 = vpop.permute.xlu0 %5251
        %v5253 = vunpack.c.l.b16 %v5155
        %v5254 = vunpack.c.l.b16 %v5203
        %v5255 = vpack.c.b16 %v5254, %v5253
        %5256 = vrot.lane.b32.xlu0 %v5255, 48
        %v5257 = vpop.permute.xlu0 %5256
        %v5258 = vunpack.c.l.b16 %v5158
        %v5259 = vunpack.c.l.b16 %v5206
        %v5260 = vpack.c.b16 %v5259, %v5258
        %5261 = vrot.lane.b32.xlu0 %v5260, 64
        %v5262 = vpop.permute.xlu0 %5261
        %v5263 = vunpack.c.l.b16 %v5161
        %v5264 = vunpack.c.l.b16 %v5209
        %v5265 = vpack.c.b16 %v5264, %v5263
        %5266 = vrot.lane.b32.xlu0 %v5265, 80
        %v5267 = vpop.permute.xlu0 %5266
        %v5268 = vunpack.c.l.b16 %v5164
        %v5269 = vunpack.c.l.b16 %v5212
        %v5270 = vpack.c.b16 %v5269, %v5268
        %5271 = vrot.lane.b32.xlu0 %v5270, 96
        %v5272 = vpop.permute.xlu0 %5271
        %v5273 = vunpack.c.l.b16 %v5167
        %v5274 = vunpack.c.l.b16 %v5215
        %v5275 = vpack.c.b16 %v5274, %v5273
        %5276 = vrot.lane.b32.xlu0 %v5275, 112
        %v5277 = vpop.permute.xlu0 %5276
        %v5278 = vunpack.c.l.b16 %v5170
        %v5279 = vunpack.c.l.b16 %v5218
        %v5280 = vpack.c.b16 %v5279, %v5278
        %v5281 = vunpack.c.l.b16 %v5173
        %v5282 = vunpack.c.l.b16 %v5221
        %v5283 = vpack.c.b16 %v5282, %v5281
        %5284 = vrot.lane.b32.xlu0 %v5283, 16
        %v5285 = vpop.permute.xlu0 %5284
        %v5286 = vunpack.c.l.b16 %v5176
        %v5287 = vunpack.c.l.b16 %v5224
        %v5288 = vpack.c.b16 %v5287, %v5286
        %5289 = vrot.lane.b32.xlu0 %v5288, 32
        %v5290 = vpop.permute.xlu0 %5289
        %v5291 = vunpack.c.l.b16 %v5179
        %v5292 = vunpack.c.l.b16 %v5227
        %v5293 = vpack.c.b16 %v5292, %v5291
        %5294 = vrot.lane.b32.xlu0 %v5293, 48
        %v5295 = vpop.permute.xlu0 %5294
        %v5296 = vunpack.c.l.b16 %v5182
        %v5297 = vunpack.c.l.b16 %v5230
        %v5298 = vpack.c.b16 %v5297, %v5296
        %5299 = vrot.lane.b32.xlu0 %v5298, 64
        %v5300 = vpop.permute.xlu0 %5299
        %v5301 = vunpack.c.l.b16 %v5185
        %v5302 = vunpack.c.l.b16 %v5233
        %v5303 = vpack.c.b16 %v5302, %v5301
        %5304 = vrot.lane.b32.xlu0 %v5303, 80
        %v5305 = vpop.permute.xlu0 %5304
        %v5306 = vunpack.c.l.b16 %v5188
        %v5307 = vunpack.c.l.b16 %v5236
        %v5308 = vpack.c.b16 %v5307, %v5306
        %5309 = vrot.lane.b32.xlu0 %v5308, 96
        %v5310 = vpop.permute.xlu0 %5309
        %v5311 = vunpack.c.l.b16 %v5191
        %v5312 = vunpack.c.l.b16 %v5239
        %v5313 = vpack.c.b16 %v5312, %v5311
        %5314 = vrot.lane.b32.xlu0 %v5313, 112
        %v5315 = vpop.permute.xlu0 %5314
        %v5318 = vsel %vm1104, %v5242, %v5247
        %v5320 = vsel %vm1108, %v5318, %v5252
        %v5322 = vsel %vm1111, %v5320, %v5257
        %v5324 = vsel %vm1114, %v5322, %v5262
        %v5326 = vsel %vm1117, %v5324, %v5267
        %v5328 = vsel %vm1120, %v5326, %v5272
        %v5330 = vsel %vm1123, %v5328, %v5277
        %v5334 = vsel %vm1104, %v5280, %v5285
        %v5336 = vsel %vm1108, %v5334, %v5290
        %v5338 = vsel %vm1111, %v5336, %v5295
        %v5340 = vsel %vm1114, %v5338, %v5300
        %v5342 = vsel %vm1117, %v5340, %v5305
        %v5344 = vsel %vm1120, %v5342, %v5310
        %v5346 = vsel %vm1123, %v5344, %v5315
        %5380 = vrot.lane.b32.xlu0 %v4840, 127
        %v5381 = vpop.permute.xlu0 %5380
        %5382 = vrot.lane.b32.xlu0 %v4841, 127
        %v5383 = vpop.permute.xlu0 %5382
        %5384 = vrot.lane.b32.xlu0 %v4842, 127
        %v5385 = vpop.permute.xlu0 %5384
        %5386 = vrot.lane.b32.xlu0 %v4843, 127
        %v5387 = vpop.permute.xlu0 %5386
        %5388 = vrot.lane.b32.xlu0 %v4844, 127
        %v5389 = vpop.permute.xlu0 %5388
        %5390 = vrot.lane.b32.xlu0 %v4845, 127
        %v5391 = vpop.permute.xlu0 %5390
        %5392 = vrot.lane.b32.xlu0 %v4846, 127
        %v5393 = vpop.permute.xlu0 %5392
        %5394 = vrot.lane.b32.xlu0 %v4847, 127
        %v5395 = vpop.permute.xlu0 %5394
        %5396 = vrot.lane.b32.xlu0 %v4848, 127
        %v5397 = vpop.permute.xlu0 %5396
        %5398 = vrot.lane.b32.xlu0 %v4849, 127
        %v5399 = vpop.permute.xlu0 %5398
        %5400 = vrot.lane.b32.xlu0 %v4850, 127
        %v5401 = vpop.permute.xlu0 %5400
        %5402 = vrot.lane.b32.xlu0 %v4851, 127
        %v5403 = vpop.permute.xlu0 %5402
        %5404 = vrot.lane.b32.xlu0 %v4852, 127
        %v5405 = vpop.permute.xlu0 %5404
        %5406 = vrot.lane.b32.xlu0 %v4853, 127
        %v5407 = vpop.permute.xlu0 %5406
        %5408 = vrot.lane.b32.xlu0 %v4854, 127
        %v5409 = vpop.permute.xlu0 %5408
        %5410 = vrot.lane.b32.xlu0 %v4855, 127
        %v5411 = vpop.permute.xlu0 %5410
        %5412 = vrot.lane.b32.xlu0 %v4856, 127
        %v5413 = vpop.permute.xlu0 %5412
        %5414 = vrot.lane.b32.xlu0 %v4857, 127
        %v5415 = vpop.permute.xlu0 %5414
        %5416 = vrot.lane.b32.xlu0 %v4858, 127
        %v5417 = vpop.permute.xlu0 %5416
        %5418 = vrot.lane.b32.xlu0 %v4859, 127
        %v5419 = vpop.permute.xlu0 %5418
        %5420 = vrot.lane.b32.xlu0 %v4860, 127
        %v5421 = vpop.permute.xlu0 %5420
        %5422 = vrot.lane.b32.xlu0 %v4861, 127
        %v5423 = vpop.permute.xlu0 %5422
        %5424 = vrot.lane.b32.xlu0 %v4862, 127
        %v5425 = vpop.permute.xlu0 %5424
        %5426 = vrot.lane.b32.xlu0 %v4863, 127
        %v5427 = vpop.permute.xlu0 %5426
        %5428 = vrot.lane.b32.xlu0 %v4864, 127
        %v5429 = vpop.permute.xlu0 %5428
        %5430 = vrot.lane.b32.xlu0 %v4865, 127
        %v5431 = vpop.permute.xlu0 %5430
        %5432 = vrot.lane.b32.xlu0 %v4866, 127
        %v5433 = vpop.permute.xlu0 %5432
        %5434 = vrot.lane.b32.xlu0 %v4867, 127
        %v5435 = vpop.permute.xlu0 %5434
        %5436 = vrot.lane.b32.xlu0 %v4868, 127
        %v5437 = vpop.permute.xlu0 %5436
        %5438 = vrot.lane.b32.xlu0 %v4869, 127
        %v5439 = vpop.permute.xlu0 %5438
        %5440 = vrot.lane.b32.xlu0 %v4870, 127
        %v5441 = vpop.permute.xlu0 %5440
        %5442 = vrot.lane.b32.xlu0 %v4871, 127
        %v5443 = vpop.permute.xlu0 %5442
        %v5476 = vcombine.low %v5381, %v5397
        %v5478 = vunpack.c.l.s4 1983009808
        %v5479 = vunpack.c.0.s8 %v5478
        %v5480 = vlaneseq
        %v5481 = vshrl.u32 %v5480, 7
        %v5482 = vsub.s32 %v5479, %v5481
        %v5483 = vrot.slane %v5476, %v5482
        %v5484 = vcombine.low %v5389, %v5405
        %v5486 = vunpack.c.l.s4 1983009808
        %v5487 = vunpack.c.0.s8 %v5486
        %v5488 = vlaneseq
        %v5489 = vshrl.u32 %v5488, 7
        %v5490 = vsub.s32 %v5487, %v5489
        %v5491 = vrot.slane %v5484, %v5490
        %v5492 = vcombine.low %v5483, %v5491
        %v5493 = vcombine.high %v5483, %v5491
        %v5495 = vunpack.c.l.s4 1934713408
        %v5496 = vunpack.c.0.s8 %v5495
        %v5497 = vlaneseq
        %v5498 = vshrl.u32 %v5497, 7
        %v5499 = vsub.s32 %v5496, %v5498
        %v5500 = vrot.slane %v5492, %v5499
        %v5502 = vunpack.c.l.s4 1934713408
        %v5503 = vunpack.c.0.s8 %v5502
        %v5504 = vlaneseq
        %v5505 = vshrl.u32 %v5504, 7
        %v5506 = vsub.s32 %v5503, %v5505
        %v5507 = vrot.slane %v5493, %v5506
        %v5508 = vcombine.high %v5500, 0
        %v5509 = vcombine.high %v5507, 0
        %v5510 = vcombine.low %v5385, %v5401
        %v5512 = vunpack.c.l.s4 1983009808
        %v5513 = vunpack.c.0.s8 %v5512
        %v5514 = vlaneseq
        %v5515 = vshrl.u32 %v5514, 7
        %v5516 = vsub.s32 %v5513, %v5515
        %v5517 = vrot.slane %v5510, %v5516
        %v5518 = vcombine.low %v5393, %v5409
        %v5520 = vunpack.c.l.s4 1983009808
        %v5521 = vunpack.c.0.s8 %v5520
        %v5522 = vlaneseq
        %v5523 = vshrl.u32 %v5522, 7
        %v5524 = vsub.s32 %v5521, %v5523
        %v5525 = vrot.slane %v5518, %v5524
        %v5526 = vcombine.low %v5517, %v5525
        %v5527 = vcombine.high %v5517, %v5525
        %v5529 = vunpack.c.l.s4 1934713408
        %v5530 = vunpack.c.0.s8 %v5529
        %v5531 = vlaneseq
        %v5532 = vshrl.u32 %v5531, 7
        %v5533 = vsub.s32 %v5530, %v5532
        %v5534 = vrot.slane %v5526, %v5533
        %v5536 = vunpack.c.l.s4 1934713408
        %v5537 = vunpack.c.0.s8 %v5536
        %v5538 = vlaneseq
        %v5539 = vshrl.u32 %v5538, 7
        %v5540 = vsub.s32 %v5537, %v5539
        %v5541 = vrot.slane %v5527, %v5540
        %v5542 = vcombine.high %v5534, 0
        %v5543 = vcombine.high %v5541, 0
        %v5544 = vcombine.low %v5413, %v5429
        %v5546 = vunpack.c.l.s4 1983009808
        %v5547 = vunpack.c.0.s8 %v5546
        %v5548 = vlaneseq
        %v5549 = vshrl.u32 %v5548, 7
        %v5550 = vsub.s32 %v5547, %v5549
        %v5551 = vrot.slane %v5544, %v5550
        %v5552 = vcombine.low %v5421, %v5437
        %v5554 = vunpack.c.l.s4 1983009808
        %v5555 = vunpack.c.0.s8 %v5554
        %v5556 = vlaneseq
        %v5557 = vshrl.u32 %v5556, 7
        %v5558 = vsub.s32 %v5555, %v5557
        %v5559 = vrot.slane %v5552, %v5558
        %v5560 = vcombine.low %v5551, %v5559
        %v5561 = vcombine.high %v5551, %v5559
        %v5563 = vunpack.c.l.s4 1934713408
        %v5564 = vunpack.c.0.s8 %v5563
        %v5565 = vlaneseq
        %v5566 = vshrl.u32 %v5565, 7
        %v5567 = vsub.s32 %v5564, %v5566
        %v5568 = vrot.slane %v5560, %v5567
        %v5570 = vunpack.c.l.s4 1934713408
        %v5571 = vunpack.c.0.s8 %v5570
        %v5572 = vlaneseq
        %v5573 = vshrl.u32 %v5572, 7
        %v5574 = vsub.s32 %v5571, %v5573
        %v5575 = vrot.slane %v5561, %v5574
        %v5576 = vcombine.high %v5568, 0
        %v5577 = vcombine.high %v5575, 0
        %v5578 = vcombine.low %v5417, %v5433
        %v5580 = vunpack.c.l.s4 1983009808
        %v5581 = vunpack.c.0.s8 %v5580
        %v5582 = vlaneseq
        %v5583 = vshrl.u32 %v5582, 7
        %v5584 = vsub.s32 %v5581, %v5583
        %v5585 = vrot.slane %v5578, %v5584
        %v5586 = vcombine.low %v5425, %v5441
        %v5588 = vunpack.c.l.s4 1983009808
        %v5589 = vunpack.c.0.s8 %v5588
        %v5590 = vlaneseq
        %v5591 = vshrl.u32 %v5590, 7
        %v5592 = vsub.s32 %v5589, %v5591
        %v5593 = vrot.slane %v5586, %v5592
        %v5594 = vcombine.low %v5585, %v5593
        %v5595 = vcombine.high %v5585, %v5593
        %v5597 = vunpack.c.l.s4 1934713408
        %v5598 = vunpack.c.0.s8 %v5597
        %v5599 = vlaneseq
        %v5600 = vshrl.u32 %v5599, 7
        %v5601 = vsub.s32 %v5598, %v5600
        %v5602 = vrot.slane %v5594, %v5601
        %v5604 = vunpack.c.l.s4 1934713408
        %v5605 = vunpack.c.0.s8 %v5604
        %v5606 = vlaneseq
        %v5607 = vshrl.u32 %v5606, 7
        %v5608 = vsub.s32 %v5605, %v5607
        %v5609 = vrot.slane %v5595, %v5608
        %v5610 = vcombine.high %v5602, 0
        %v5611 = vcombine.high %v5609, 0
        %v5612 = vcombine.low %v5383, %v5399
        %v5614 = vunpack.c.l.s4 1983009808
        %v5615 = vunpack.c.0.s8 %v5614
        %v5616 = vlaneseq
        %v5617 = vshrl.u32 %v5616, 7
        %v5618 = vsub.s32 %v5615, %v5617
        %v5619 = vrot.slane %v5612, %v5618
        %v5620 = vcombine.low %v5391, %v5407
        %v5622 = vunpack.c.l.s4 1983009808
        %v5623 = vunpack.c.0.s8 %v5622
        %v5624 = vlaneseq
        %v5625 = vshrl.u32 %v5624, 7
        %v5626 = vsub.s32 %v5623, %v5625
        %v5627 = vrot.slane %v5620, %v5626
        %v5628 = vcombine.low %v5619, %v5627
        %v5629 = vcombine.high %v5619, %v5627
        %v5631 = vunpack.c.l.s4 1934713408
        %v5632 = vunpack.c.0.s8 %v5631
        %v5633 = vlaneseq
        %v5634 = vshrl.u32 %v5633, 7
        %v5635 = vsub.s32 %v5632, %v5634
        %v5636 = vrot.slane %v5628, %v5635
        %v5638 = vunpack.c.l.s4 1934713408
        %v5639 = vunpack.c.0.s8 %v5638
        %v5640 = vlaneseq
        %v5641 = vshrl.u32 %v5640, 7
        %v5642 = vsub.s32 %v5639, %v5641
        %v5643 = vrot.slane %v5629, %v5642
        %v5644 = vcombine.high %v5636, 0
        %v5645 = vcombine.high %v5643, 0
        %v5646 = vcombine.low %v5387, %v5403
        %v5648 = vunpack.c.l.s4 1983009808
        %v5649 = vunpack.c.0.s8 %v5648
        %v5650 = vlaneseq
        %v5651 = vshrl.u32 %v5650, 7
        %v5652 = vsub.s32 %v5649, %v5651
        %v5653 = vrot.slane %v5646, %v5652
        %v5654 = vcombine.low %v5395, %v5411
        %v5656 = vunpack.c.l.s4 1983009808
        %v5657 = vunpack.c.0.s8 %v5656
        %v5658 = vlaneseq
        %v5659 = vshrl.u32 %v5658, 7
        %v5660 = vsub.s32 %v5657, %v5659
        %v5661 = vrot.slane %v5654, %v5660
        %v5662 = vcombine.low %v5653, %v5661
        %v5663 = vcombine.high %v5653, %v5661
        %v5665 = vunpack.c.l.s4 1934713408
        %v5666 = vunpack.c.0.s8 %v5665
        %v5667 = vlaneseq
        %v5668 = vshrl.u32 %v5667, 7
        %v5669 = vsub.s32 %v5666, %v5668
        %v5670 = vrot.slane %v5662, %v5669
        %v5672 = vunpack.c.l.s4 1934713408
        %v5673 = vunpack.c.0.s8 %v5672
        %v5674 = vlaneseq
        %v5675 = vshrl.u32 %v5674, 7
        %v5676 = vsub.s32 %v5673, %v5675
        %v5677 = vrot.slane %v5663, %v5676
        %v5678 = vcombine.high %v5670, 0
        %v5679 = vcombine.high %v5677, 0
        %v5680 = vcombine.low %v5415, %v5431
        %v5682 = vunpack.c.l.s4 1983009808
        %v5683 = vunpack.c.0.s8 %v5682
        %v5684 = vlaneseq
        %v5685 = vshrl.u32 %v5684, 7
        %v5686 = vsub.s32 %v5683, %v5685
        %v5687 = vrot.slane %v5680, %v5686
        %v5688 = vcombine.low %v5423, %v5439
        %v5690 = vunpack.c.l.s4 1983009808
        %v5691 = vunpack.c.0.s8 %v5690
        %v5692 = vlaneseq
        %v5693 = vshrl.u32 %v5692, 7
        %v5694 = vsub.s32 %v5691, %v5693
        %v5695 = vrot.slane %v5688, %v5694
        %v5696 = vcombine.low %v5687, %v5695
        %v5697 = vcombine.high %v5687, %v5695
        %v5699 = vunpack.c.l.s4 1934713408
        %v5700 = vunpack.c.0.s8 %v5699
        %v5701 = vlaneseq
        %v5702 = vshrl.u32 %v5701, 7
        %v5703 = vsub.s32 %v5700, %v5702
        %v5704 = vrot.slane %v5696, %v5703
        %v5706 = vunpack.c.l.s4 1934713408
        %v5707 = vunpack.c.0.s8 %v5706
        %v5708 = vlaneseq
        %v5709 = vshrl.u32 %v5708, 7
        %v5710 = vsub.s32 %v5707, %v5709
        %v5711 = vrot.slane %v5697, %v5710
        %v5712 = vcombine.high %v5704, 0
        %v5713 = vcombine.high %v5711, 0
        %v5714 = vcombine.low %v5419, %v5435
        %v5716 = vunpack.c.l.s4 1983009808
        %v5717 = vunpack.c.0.s8 %v5716
        %v5718 = vlaneseq
        %v5719 = vshrl.u32 %v5718, 7
        %v5720 = vsub.s32 %v5717, %v5719
        %v5721 = vrot.slane %v5714, %v5720
        %v5722 = vcombine.low %v5427, %v5443
        %v5724 = vunpack.c.l.s4 1983009808
        %v5725 = vunpack.c.0.s8 %v5724
        %v5726 = vlaneseq
        %v5727 = vshrl.u32 %v5726, 7
        %v5728 = vsub.s32 %v5725, %v5727
        %v5729 = vrot.slane %v5722, %v5728
        %v5730 = vcombine.low %v5721, %v5729
        %v5731 = vcombine.high %v5721, %v5729
        %v5733 = vunpack.c.l.s4 1934713408
        %v5734 = vunpack.c.0.s8 %v5733
        %v5735 = vlaneseq
        %v5736 = vshrl.u32 %v5735, 7
        %v5737 = vsub.s32 %v5734, %v5736
        %v5738 = vrot.slane %v5730, %v5737
        %v5740 = vunpack.c.l.s4 1934713408
        %v5741 = vunpack.c.0.s8 %v5740
        %v5742 = vlaneseq
        %v5743 = vshrl.u32 %v5742, 7
        %v5744 = vsub.s32 %v5741, %v5743
        %v5745 = vrot.slane %v5731, %v5744
        %v5746 = vcombine.high %v5738, 0
        %v5747 = vcombine.high %v5745, 0
        %v5750 = vpack.i.b16 %v5534, %v5500
        %v5751 = vshrl.u32 %v5500, 16
        %v5752 = vshrl.u32 %v5534, 16
        %v5753 = vpack.i.b16 %v5752, %v5751
        %v5756 = vpack.i.b16 %v5542, %v5508
        %v5757 = vshrl.u32 %v5508, 16
        %v5758 = vshrl.u32 %v5542, 16
        %v5759 = vpack.i.b16 %v5758, %v5757
        %v5762 = vpack.i.b16 %v5541, %v5507
        %v5763 = vshrl.u32 %v5507, 16
        %v5764 = vshrl.u32 %v5541, 16
        %v5765 = vpack.i.b16 %v5764, %v5763
        %v5768 = vpack.i.b16 %v5543, %v5509
        %v5769 = vshrl.u32 %v5509, 16
        %v5770 = vshrl.u32 %v5543, 16
        %v5771 = vpack.i.b16 %v5770, %v5769
        %v5774 = vpack.i.b16 %v5670, %v5636
        %v5775 = vshrl.u32 %v5636, 16
        %v5776 = vshrl.u32 %v5670, 16
        %v5777 = vpack.i.b16 %v5776, %v5775
        %v5780 = vpack.i.b16 %v5678, %v5644
        %v5781 = vshrl.u32 %v5644, 16
        %v5782 = vshrl.u32 %v5678, 16
        %v5783 = vpack.i.b16 %v5782, %v5781
        %v5786 = vpack.i.b16 %v5677, %v5643
        %v5787 = vshrl.u32 %v5643, 16
        %v5788 = vshrl.u32 %v5677, 16
        %v5789 = vpack.i.b16 %v5788, %v5787
        %v5792 = vpack.i.b16 %v5679, %v5645
        %v5793 = vshrl.u32 %v5645, 16
        %v5794 = vshrl.u32 %v5679, 16
        %v5795 = vpack.i.b16 %v5794, %v5793
        %v5798 = vpack.i.b16 %v5602, %v5568
        %v5799 = vshrl.u32 %v5568, 16
        %v5800 = vshrl.u32 %v5602, 16
        %v5801 = vpack.i.b16 %v5800, %v5799
        %v5804 = vpack.i.b16 %v5610, %v5576
        %v5805 = vshrl.u32 %v5576, 16
        %v5806 = vshrl.u32 %v5610, 16
        %v5807 = vpack.i.b16 %v5806, %v5805
        %v5810 = vpack.i.b16 %v5609, %v5575
        %v5811 = vshrl.u32 %v5575, 16
        %v5812 = vshrl.u32 %v5609, 16
        %v5813 = vpack.i.b16 %v5812, %v5811
        %v5816 = vpack.i.b16 %v5611, %v5577
        %v5817 = vshrl.u32 %v5577, 16
        %v5818 = vshrl.u32 %v5611, 16
        %v5819 = vpack.i.b16 %v5818, %v5817
        %v5822 = vpack.i.b16 %v5738, %v5704
        %v5823 = vshrl.u32 %v5704, 16
        %v5824 = vshrl.u32 %v5738, 16
        %v5825 = vpack.i.b16 %v5824, %v5823
        %v5828 = vpack.i.b16 %v5746, %v5712
        %v5829 = vshrl.u32 %v5712, 16
        %v5830 = vshrl.u32 %v5746, 16
        %v5831 = vpack.i.b16 %v5830, %v5829
        %v5834 = vpack.i.b16 %v5745, %v5711
        %v5835 = vshrl.u32 %v5711, 16
        %v5836 = vshrl.u32 %v5745, 16
        %v5837 = vpack.i.b16 %v5836, %v5835
        %v5840 = vpack.i.b16 %v5747, %v5713
        %v5841 = vshrl.u32 %v5713, 16
        %v5842 = vshrl.u32 %v5747, 16
        %v5843 = vpack.i.b16 %v5842, %v5841
        %v5844 = vunpack.c.l.b16 %v5750
        %v5845 = vunpack.c.l.b16 %v5798
        %v5846 = vpack.c.b16 %v5845, %v5844
        %v5847 = vunpack.c.l.b16 %v5753
        %v5848 = vunpack.c.l.b16 %v5801
        %v5849 = vpack.c.b16 %v5848, %v5847
        %5850 = vrot.lane.b32.xlu0 %v5849, 16
        %v5851 = vpop.permute.xlu0 %5850
        %v5852 = vunpack.c.l.b16 %v5756
        %v5853 = vunpack.c.l.b16 %v5804
        %v5854 = vpack.c.b16 %v5853, %v5852
        %5855 = vrot.lane.b32.xlu0 %v5854, 32
        %v5856 = vpop.permute.xlu0 %5855
        %v5857 = vunpack.c.l.b16 %v5759
        %v5858 = vunpack.c.l.b16 %v5807
        %v5859 = vpack.c.b16 %v5858, %v5857
        %5860 = vrot.lane.b32.xlu0 %v5859, 48
        %v5861 = vpop.permute.xlu0 %5860
        %v5862 = vunpack.c.l.b16 %v5762
        %v5863 = vunpack.c.l.b16 %v5810
        %v5864 = vpack.c.b16 %v5863, %v5862
        %5865 = vrot.lane.b32.xlu0 %v5864, 64
        %v5866 = vpop.permute.xlu0 %5865
        %v5867 = vunpack.c.l.b16 %v5765
        %v5868 = vunpack.c.l.b16 %v5813
        %v5869 = vpack.c.b16 %v5868, %v5867
        %5870 = vrot.lane.b32.xlu0 %v5869, 80
        %v5871 = vpop.permute.xlu0 %5870
        %v5872 = vunpack.c.l.b16 %v5768
        %v5873 = vunpack.c.l.b16 %v5816
        %v5874 = vpack.c.b16 %v5873, %v5872
        %5875 = vrot.lane.b32.xlu0 %v5874, 96
        %v5876 = vpop.permute.xlu0 %5875
        %v5877 = vunpack.c.l.b16 %v5771
        %v5878 = vunpack.c.l.b16 %v5819
        %v5879 = vpack.c.b16 %v5878, %v5877
        %5880 = vrot.lane.b32.xlu0 %v5879, 112
        %v5881 = vpop.permute.xlu0 %5880
        %v5882 = vunpack.c.l.b16 %v5774
        %v5883 = vunpack.c.l.b16 %v5822
        %v5884 = vpack.c.b16 %v5883, %v5882
        %v5885 = vunpack.c.l.b16 %v5777
        %v5886 = vunpack.c.l.b16 %v5825
        %v5887 = vpack.c.b16 %v5886, %v5885
        %5888 = vrot.lane.b32.xlu0 %v5887, 16
        %v5889 = vpop.permute.xlu0 %5888
        %v5890 = vunpack.c.l.b16 %v5780
        %v5891 = vunpack.c.l.b16 %v5828
        %v5892 = vpack.c.b16 %v5891, %v5890
        %5893 = vrot.lane.b32.xlu0 %v5892, 32
        %v5894 = vpop.permute.xlu0 %5893
        %v5895 = vunpack.c.l.b16 %v5783
        %v5896 = vunpack.c.l.b16 %v5831
        %v5897 = vpack.c.b16 %v5896, %v5895
        %5898 = vrot.lane.b32.xlu0 %v5897, 48
        %v5899 = vpop.permute.xlu0 %5898
        %v5900 = vunpack.c.l.b16 %v5786
        %v5901 = vunpack.c.l.b16 %v5834
        %v5902 = vpack.c.b16 %v5901, %v5900
        %5903 = vrot.lane.b32.xlu0 %v5902, 64
        %v5904 = vpop.permute.xlu0 %5903
        %v5905 = vunpack.c.l.b16 %v5789
        %v5906 = vunpack.c.l.b16 %v5837
        %v5907 = vpack.c.b16 %v5906, %v5905
        %5908 = vrot.lane.b32.xlu0 %v5907, 80
        %v5909 = vpop.permute.xlu0 %5908
        %v5910 = vunpack.c.l.b16 %v5792
        %v5911 = vunpack.c.l.b16 %v5840
        %v5912 = vpack.c.b16 %v5911, %v5910
        %5913 = vrot.lane.b32.xlu0 %v5912, 96
        %v5914 = vpop.permute.xlu0 %5913
        %v5915 = vunpack.c.l.b16 %v5795
        %v5916 = vunpack.c.l.b16 %v5843
        %v5917 = vpack.c.b16 %v5916, %v5915
        %5918 = vrot.lane.b32.xlu0 %v5917, 112
        %v5919 = vpop.permute.xlu0 %5918
        %v5922 = vsel %vm1104, %v5846, %v5851
        %v5924 = vsel %vm1108, %v5922, %v5856
        %v5926 = vsel %vm1111, %v5924, %v5861
        %v5928 = vsel %vm1114, %v5926, %v5866
        %v5930 = vsel %vm1117, %v5928, %v5871
        %v5932 = vsel %vm1120, %v5930, %v5876
        %v5934 = vsel %vm1123, %v5932, %v5881
        %v5938 = vsel %vm1104, %v5884, %v5889
        %v5940 = vsel %vm1108, %v5938, %v5894
        %v5942 = vsel %vm1111, %v5940, %v5899
        %v5944 = vsel %vm1114, %v5942, %v5904
        %v5946 = vsel %vm1117, %v5944, %v5909
        %v5948 = vsel %vm1120, %v5946, %v5914
        %v5950 = vsel %vm1123, %v5948, %v5919
        %5952 = vrot.lane.b32.xlu0 %v4840, 126
        %v5953 = vpop.permute.xlu0 %5952
        %5954 = vrot.lane.b32.xlu0 %v4841, 126
        %v5955 = vpop.permute.xlu0 %5954
        %5956 = vrot.lane.b32.xlu0 %v4842, 126
        %v5957 = vpop.permute.xlu0 %5956
        %5958 = vrot.lane.b32.xlu0 %v4843, 126
        %v5959 = vpop.permute.xlu0 %5958
        %5960 = vrot.lane.b32.xlu0 %v4844, 126
        %v5961 = vpop.permute.xlu0 %5960
        %5962 = vrot.lane.b32.xlu0 %v4845, 126
        %v5963 = vpop.permute.xlu0 %5962
        %5964 = vrot.lane.b32.xlu0 %v4846, 126
        %v5965 = vpop.permute.xlu0 %5964
        %5966 = vrot.lane.b32.xlu0 %v4847, 126
        %v5967 = vpop.permute.xlu0 %5966
        %5968 = vrot.lane.b32.xlu0 %v4848, 126
        %v5969 = vpop.permute.xlu0 %5968
        %5970 = vrot.lane.b32.xlu0 %v4849, 126
        %v5971 = vpop.permute.xlu0 %5970
        %5972 = vrot.lane.b32.xlu0 %v4850, 126
        %v5973 = vpop.permute.xlu0 %5972
        %5974 = vrot.lane.b32.xlu0 %v4851, 126
        %v5975 = vpop.permute.xlu0 %5974
        %5976 = vrot.lane.b32.xlu0 %v4852, 126
        %v5977 = vpop.permute.xlu0 %5976
        %5978 = vrot.lane.b32.xlu0 %v4853, 126
        %v5979 = vpop.permute.xlu0 %5978
        %5980 = vrot.lane.b32.xlu0 %v4854, 126
        %v5981 = vpop.permute.xlu0 %5980
        %5982 = vrot.lane.b32.xlu0 %v4855, 126
        %v5983 = vpop.permute.xlu0 %5982
        %5984 = vrot.lane.b32.xlu0 %v4856, 126
        %v5985 = vpop.permute.xlu0 %5984
        %5986 = vrot.lane.b32.xlu0 %v4857, 126
        %v5987 = vpop.permute.xlu0 %5986
        %5988 = vrot.lane.b32.xlu0 %v4858, 126
        %v5989 = vpop.permute.xlu0 %5988
        %5990 = vrot.lane.b32.xlu0 %v4859, 126
        %v5991 = vpop.permute.xlu0 %5990
        %5992 = vrot.lane.b32.xlu0 %v4860, 126
        %v5993 = vpop.permute.xlu0 %5992
        %5994 = vrot.lane.b32.xlu0 %v4861, 126
        %v5995 = vpop.permute.xlu0 %5994
        %5996 = vrot.lane.b32.xlu0 %v4862, 126
        %v5997 = vpop.permute.xlu0 %5996
        %5998 = vrot.lane.b32.xlu0 %v4863, 126
        %v5999 = vpop.permute.xlu0 %5998
        %6000 = vrot.lane.b32.xlu0 %v4864, 126
        %v6001 = vpop.permute.xlu0 %6000
        %6002 = vrot.lane.b32.xlu0 %v4865, 126
        %v6003 = vpop.permute.xlu0 %6002
        %6004 = vrot.lane.b32.xlu0 %v4866, 126
        %v6005 = vpop.permute.xlu0 %6004
        %6006 = vrot.lane.b32.xlu0 %v4867, 126
        %v6007 = vpop.permute.xlu0 %6006
        %6008 = vrot.lane.b32.xlu0 %v4868, 126
        %v6009 = vpop.permute.xlu0 %6008
        %6010 = vrot.lane.b32.xlu0 %v4869, 126
        %v6011 = vpop.permute.xlu0 %6010
        %6012 = vrot.lane.b32.xlu0 %v4870, 126
        %v6013 = vpop.permute.xlu0 %6012
        %6014 = vrot.lane.b32.xlu0 %v4871, 126
        %v6015 = vpop.permute.xlu0 %6014
        %v6048 = vcombine.low %v5953, %v5969
        %v6050 = vunpack.c.l.s4 1983009808
        %v6051 = vunpack.c.0.s8 %v6050
        %v6052 = vlaneseq
        %v6053 = vshrl.u32 %v6052, 7
        %v6054 = vsub.s32 %v6051, %v6053
        %v6055 = vrot.slane %v6048, %v6054
        %v6056 = vcombine.low %v5961, %v5977
        %v6058 = vunpack.c.l.s4 1983009808
        %v6059 = vunpack.c.0.s8 %v6058
        %v6060 = vlaneseq
        %v6061 = vshrl.u32 %v6060, 7
        %v6062 = vsub.s32 %v6059, %v6061
        %v6063 = vrot.slane %v6056, %v6062
        %v6064 = vcombine.low %v6055, %v6063
        %v6065 = vcombine.high %v6055, %v6063
        %v6067 = vunpack.c.l.s4 1934713408
        %v6068 = vunpack.c.0.s8 %v6067
        %v6069 = vlaneseq
        %v6070 = vshrl.u32 %v6069, 7
        %v6071 = vsub.s32 %v6068, %v6070
        %v6072 = vrot.slane %v6064, %v6071
        %v6074 = vunpack.c.l.s4 1934713408
        %v6075 = vunpack.c.0.s8 %v6074
        %v6076 = vlaneseq
        %v6077 = vshrl.u32 %v6076, 7
        %v6078 = vsub.s32 %v6075, %v6077
        %v6079 = vrot.slane %v6065, %v6078
        %v6080 = vcombine.high %v6072, 0
        %v6081 = vcombine.high %v6079, 0
        %v6082 = vcombine.low %v5957, %v5973
        %v6084 = vunpack.c.l.s4 1983009808
        %v6085 = vunpack.c.0.s8 %v6084
        %v6086 = vlaneseq
        %v6087 = vshrl.u32 %v6086, 7
        %v6088 = vsub.s32 %v6085, %v6087
        %v6089 = vrot.slane %v6082, %v6088
        %v6090 = vcombine.low %v5965, %v5981
        %v6092 = vunpack.c.l.s4 1983009808
        %v6093 = vunpack.c.0.s8 %v6092
        %v6094 = vlaneseq
        %v6095 = vshrl.u32 %v6094, 7
        %v6096 = vsub.s32 %v6093, %v6095
        %v6097 = vrot.slane %v6090, %v6096
        %v6098 = vcombine.low %v6089, %v6097
        %v6099 = vcombine.high %v6089, %v6097
        %v6101 = vunpack.c.l.s4 1934713408
        %v6102 = vunpack.c.0.s8 %v6101
        %v6103 = vlaneseq
        %v6104 = vshrl.u32 %v6103, 7
        %v6105 = vsub.s32 %v6102, %v6104
        %v6106 = vrot.slane %v6098, %v6105
        %v6108 = vunpack.c.l.s4 1934713408
        %v6109 = vunpack.c.0.s8 %v6108
        %v6110 = vlaneseq
        %v6111 = vshrl.u32 %v6110, 7
        %v6112 = vsub.s32 %v6109, %v6111
        %v6113 = vrot.slane %v6099, %v6112
        %v6114 = vcombine.high %v6106, 0
        %v6115 = vcombine.high %v6113, 0
        %v6116 = vcombine.low %v5985, %v6001
        %v6118 = vunpack.c.l.s4 1983009808
        %v6119 = vunpack.c.0.s8 %v6118
        %v6120 = vlaneseq
        %v6121 = vshrl.u32 %v6120, 7
        %v6122 = vsub.s32 %v6119, %v6121
        %v6123 = vrot.slane %v6116, %v6122
        %v6124 = vcombine.low %v5993, %v6009
        %v6126 = vunpack.c.l.s4 1983009808
        %v6127 = vunpack.c.0.s8 %v6126
        %v6128 = vlaneseq
        %v6129 = vshrl.u32 %v6128, 7
        %v6130 = vsub.s32 %v6127, %v6129
        %v6131 = vrot.slane %v6124, %v6130
        %v6132 = vcombine.low %v6123, %v6131
        %v6133 = vcombine.high %v6123, %v6131
        %v6135 = vunpack.c.l.s4 1934713408
        %v6136 = vunpack.c.0.s8 %v6135
        %v6137 = vlaneseq
        %v6138 = vshrl.u32 %v6137, 7
        %v6139 = vsub.s32 %v6136, %v6138
        %v6140 = vrot.slane %v6132, %v6139
        %v6142 = vunpack.c.l.s4 1934713408
        %v6143 = vunpack.c.0.s8 %v6142
        %v6144 = vlaneseq
        %v6145 = vshrl.u32 %v6144, 7
        %v6146 = vsub.s32 %v6143, %v6145
        %v6147 = vrot.slane %v6133, %v6146
        %v6148 = vcombine.high %v6140, 0
        %v6149 = vcombine.high %v6147, 0
        %v6150 = vcombine.low %v5989, %v6005
        %v6152 = vunpack.c.l.s4 1983009808
        %v6153 = vunpack.c.0.s8 %v6152
        %v6154 = vlaneseq
        %v6155 = vshrl.u32 %v6154, 7
        %v6156 = vsub.s32 %v6153, %v6155
        %v6157 = vrot.slane %v6150, %v6156
        %v6158 = vcombine.low %v5997, %v6013
        %v6160 = vunpack.c.l.s4 1983009808
        %v6161 = vunpack.c.0.s8 %v6160
        %v6162 = vlaneseq
        %v6163 = vshrl.u32 %v6162, 7
        %v6164 = vsub.s32 %v6161, %v6163
        %v6165 = vrot.slane %v6158, %v6164
        %v6166 = vcombine.low %v6157, %v6165
        %v6167 = vcombine.high %v6157, %v6165
        %v6169 = vunpack.c.l.s4 1934713408
        %v6170 = vunpack.c.0.s8 %v6169
        %v6171 = vlaneseq
        %v6172 = vshrl.u32 %v6171, 7
        %v6173 = vsub.s32 %v6170, %v6172
        %v6174 = vrot.slane %v6166, %v6173
        %v6176 = vunpack.c.l.s4 1934713408
        %v6177 = vunpack.c.0.s8 %v6176
        %v6178 = vlaneseq
        %v6179 = vshrl.u32 %v6178, 7
        %v6180 = vsub.s32 %v6177, %v6179
        %v6181 = vrot.slane %v6167, %v6180
        %v6182 = vcombine.high %v6174, 0
        %v6183 = vcombine.high %v6181, 0
        %v6184 = vcombine.low %v5955, %v5971
        %v6186 = vunpack.c.l.s4 1983009808
        %v6187 = vunpack.c.0.s8 %v6186
        %v6188 = vlaneseq
        %v6189 = vshrl.u32 %v6188, 7
        %v6190 = vsub.s32 %v6187, %v6189
        %v6191 = vrot.slane %v6184, %v6190
        %v6192 = vcombine.low %v5963, %v5979
        %v6194 = vunpack.c.l.s4 1983009808
        %v6195 = vunpack.c.0.s8 %v6194
        %v6196 = vlaneseq
        %v6197 = vshrl.u32 %v6196, 7
        %v6198 = vsub.s32 %v6195, %v6197
        %v6199 = vrot.slane %v6192, %v6198
        %v6200 = vcombine.low %v6191, %v6199
        %v6201 = vcombine.high %v6191, %v6199
        %v6203 = vunpack.c.l.s4 1934713408
        %v6204 = vunpack.c.0.s8 %v6203
        %v6205 = vlaneseq
        %v6206 = vshrl.u32 %v6205, 7
        %v6207 = vsub.s32 %v6204, %v6206
        %v6208 = vrot.slane %v6200, %v6207
        %v6210 = vunpack.c.l.s4 1934713408
        %v6211 = vunpack.c.0.s8 %v6210
        %v6212 = vlaneseq
        %v6213 = vshrl.u32 %v6212, 7
        %v6214 = vsub.s32 %v6211, %v6213
        %v6215 = vrot.slane %v6201, %v6214
        %v6216 = vcombine.high %v6208, 0
        %v6217 = vcombine.high %v6215, 0
        %v6218 = vcombine.low %v5959, %v5975
        %v6220 = vunpack.c.l.s4 1983009808
        %v6221 = vunpack.c.0.s8 %v6220
        %v6222 = vlaneseq
        %v6223 = vshrl.u32 %v6222, 7
        %v6224 = vsub.s32 %v6221, %v6223
        %v6225 = vrot.slane %v6218, %v6224
        %v6226 = vcombine.low %v5967, %v5983
        %v6228 = vunpack.c.l.s4 1983009808
        %v6229 = vunpack.c.0.s8 %v6228
        %v6230 = vlaneseq
        %v6231 = vshrl.u32 %v6230, 7
        %v6232 = vsub.s32 %v6229, %v6231
        %v6233 = vrot.slane %v6226, %v6232
        %v6234 = vcombine.low %v6225, %v6233
        %v6235 = vcombine.high %v6225, %v6233
        %v6237 = vunpack.c.l.s4 1934713408
        %v6238 = vunpack.c.0.s8 %v6237
        %v6239 = vlaneseq
        %v6240 = vshrl.u32 %v6239, 7
        %v6241 = vsub.s32 %v6238, %v6240
        %v6242 = vrot.slane %v6234, %v6241
        %v6244 = vunpack.c.l.s4 1934713408
        %v6245 = vunpack.c.0.s8 %v6244
        %v6246 = vlaneseq
        %v6247 = vshrl.u32 %v6246, 7
        %v6248 = vsub.s32 %v6245, %v6247
        %v6249 = vrot.slane %v6235, %v6248
        %v6250 = vcombine.high %v6242, 0
        %v6251 = vcombine.high %v6249, 0
        %v6252 = vcombine.low %v5987, %v6003
        %v6254 = vunpack.c.l.s4 1983009808
        %v6255 = vunpack.c.0.s8 %v6254
        %v6256 = vlaneseq
        %v6257 = vshrl.u32 %v6256, 7
        %v6258 = vsub.s32 %v6255, %v6257
        %v6259 = vrot.slane %v6252, %v6258
        %v6260 = vcombine.low %v5995, %v6011
        %v6262 = vunpack.c.l.s4 1983009808
        %v6263 = vunpack.c.0.s8 %v6262
        %v6264 = vlaneseq
        %v6265 = vshrl.u32 %v6264, 7
        %v6266 = vsub.s32 %v6263, %v6265
        %v6267 = vrot.slane %v6260, %v6266
        %v6268 = vcombine.low %v6259, %v6267
        %v6269 = vcombine.high %v6259, %v6267
        %v6271 = vunpack.c.l.s4 1934713408
        %v6272 = vunpack.c.0.s8 %v6271
        %v6273 = vlaneseq
        %v6274 = vshrl.u32 %v6273, 7
        %v6275 = vsub.s32 %v6272, %v6274
        %v6276 = vrot.slane %v6268, %v6275
        %v6278 = vunpack.c.l.s4 1934713408
        %v6279 = vunpack.c.0.s8 %v6278
        %v6280 = vlaneseq
        %v6281 = vshrl.u32 %v6280, 7
        %v6282 = vsub.s32 %v6279, %v6281
        %v6283 = vrot.slane %v6269, %v6282
        %v6284 = vcombine.high %v6276, 0
        %v6285 = vcombine.high %v6283, 0
        %v6286 = vcombine.low %v5991, %v6007
        %v6288 = vunpack.c.l.s4 1983009808
        %v6289 = vunpack.c.0.s8 %v6288
        %v6290 = vlaneseq
        %v6291 = vshrl.u32 %v6290, 7
        %v6292 = vsub.s32 %v6289, %v6291
        %v6293 = vrot.slane %v6286, %v6292
        %v6294 = vcombine.low %v5999, %v6015
        %v6296 = vunpack.c.l.s4 1983009808
        %v6297 = vunpack.c.0.s8 %v6296
        %v6298 = vlaneseq
        %v6299 = vshrl.u32 %v6298, 7
        %v6300 = vsub.s32 %v6297, %v6299
        %v6301 = vrot.slane %v6294, %v6300
        %v6302 = vcombine.low %v6293, %v6301
        %v6303 = vcombine.high %v6293, %v6301
        %v6305 = vunpack.c.l.s4 1934713408
        %v6306 = vunpack.c.0.s8 %v6305
        %v6307 = vlaneseq
        %v6308 = vshrl.u32 %v6307, 7
        %v6309 = vsub.s32 %v6306, %v6308
        %v6310 = vrot.slane %v6302, %v6309
        %v6312 = vunpack.c.l.s4 1934713408
        %v6313 = vunpack.c.0.s8 %v6312
        %v6314 = vlaneseq
        %v6315 = vshrl.u32 %v6314, 7
        %v6316 = vsub.s32 %v6313, %v6315
        %v6317 = vrot.slane %v6303, %v6316
        %v6318 = vcombine.high %v6310, 0
        %v6319 = vcombine.high %v6317, 0
        %v6322 = vpack.i.b16 %v6106, %v6072
        %v6323 = vshrl.u32 %v6072, 16
        %v6324 = vshrl.u32 %v6106, 16
        %v6325 = vpack.i.b16 %v6324, %v6323
        %v6328 = vpack.i.b16 %v6114, %v6080
        %v6329 = vshrl.u32 %v6080, 16
        %v6330 = vshrl.u32 %v6114, 16
        %v6331 = vpack.i.b16 %v6330, %v6329
        %v6334 = vpack.i.b16 %v6113, %v6079
        %v6335 = vshrl.u32 %v6079, 16
        %v6336 = vshrl.u32 %v6113, 16
        %v6337 = vpack.i.b16 %v6336, %v6335
        %v6340 = vpack.i.b16 %v6115, %v6081
        %v6341 = vshrl.u32 %v6081, 16
        %v6342 = vshrl.u32 %v6115, 16
        %v6343 = vpack.i.b16 %v6342, %v6341
        %v6346 = vpack.i.b16 %v6242, %v6208
        %v6347 = vshrl.u32 %v6208, 16
        %v6348 = vshrl.u32 %v6242, 16
        %v6349 = vpack.i.b16 %v6348, %v6347
        %v6352 = vpack.i.b16 %v6250, %v6216
        %v6353 = vshrl.u32 %v6216, 16
        %v6354 = vshrl.u32 %v6250, 16
        %v6355 = vpack.i.b16 %v6354, %v6353
        %v6358 = vpack.i.b16 %v6249, %v6215
        %v6359 = vshrl.u32 %v6215, 16
        %v6360 = vshrl.u32 %v6249, 16
        %v6361 = vpack.i.b16 %v6360, %v6359
        %v6364 = vpack.i.b16 %v6251, %v6217
        %v6365 = vshrl.u32 %v6217, 16
        %v6366 = vshrl.u32 %v6251, 16
        %v6367 = vpack.i.b16 %v6366, %v6365
        %v6370 = vpack.i.b16 %v6174, %v6140
        %v6371 = vshrl.u32 %v6140, 16
        %v6372 = vshrl.u32 %v6174, 16
        %v6373 = vpack.i.b16 %v6372, %v6371
        %v6376 = vpack.i.b16 %v6182, %v6148
        %v6377 = vshrl.u32 %v6148, 16
        %v6378 = vshrl.u32 %v6182, 16
        %v6379 = vpack.i.b16 %v6378, %v6377
        %v6382 = vpack.i.b16 %v6181, %v6147
        %v6383 = vshrl.u32 %v6147, 16
        %v6384 = vshrl.u32 %v6181, 16
        %v6385 = vpack.i.b16 %v6384, %v6383
        %v6388 = vpack.i.b16 %v6183, %v6149
        %v6389 = vshrl.u32 %v6149, 16
        %v6390 = vshrl.u32 %v6183, 16
        %v6391 = vpack.i.b16 %v6390, %v6389
        %v6394 = vpack.i.b16 %v6310, %v6276
        %v6395 = vshrl.u32 %v6276, 16
        %v6396 = vshrl.u32 %v6310, 16
        %v6397 = vpack.i.b16 %v6396, %v6395
        %v6400 = vpack.i.b16 %v6318, %v6284
        %v6401 = vshrl.u32 %v6284, 16
        %v6402 = vshrl.u32 %v6318, 16
        %v6403 = vpack.i.b16 %v6402, %v6401
        %v6406 = vpack.i.b16 %v6317, %v6283
        %v6407 = vshrl.u32 %v6283, 16
        %v6408 = vshrl.u32 %v6317, 16
        %v6409 = vpack.i.b16 %v6408, %v6407
        %v6412 = vpack.i.b16 %v6319, %v6285
        %v6413 = vshrl.u32 %v6285, 16
        %v6414 = vshrl.u32 %v6319, 16
        %v6415 = vpack.i.b16 %v6414, %v6413
        %v6416 = vunpack.c.l.b16 %v6322
        %v6417 = vunpack.c.l.b16 %v6370
        %v6418 = vpack.c.b16 %v6417, %v6416
        %v6419 = vunpack.c.l.b16 %v6325
        %v6420 = vunpack.c.l.b16 %v6373
        %v6421 = vpack.c.b16 %v6420, %v6419
        %6422 = vrot.lane.b32.xlu0 %v6421, 16
        %v6423 = vpop.permute.xlu0 %6422
        %v6424 = vunpack.c.l.b16 %v6328
        %v6425 = vunpack.c.l.b16 %v6376
        %v6426 = vpack.c.b16 %v6425, %v6424
        %6427 = vrot.lane.b32.xlu0 %v6426, 32
        %v6428 = vpop.permute.xlu0 %6427
        %v6429 = vunpack.c.l.b16 %v6331
        %v6430 = vunpack.c.l.b16 %v6379
        %v6431 = vpack.c.b16 %v6430, %v6429
        %6432 = vrot.lane.b32.xlu0 %v6431, 48
        %v6433 = vpop.permute.xlu0 %6432
        %v6434 = vunpack.c.l.b16 %v6334
        %v6435 = vunpack.c.l.b16 %v6382
        %v6436 = vpack.c.b16 %v6435, %v6434
        %6437 = vrot.lane.b32.xlu0 %v6436, 64
        %v6438 = vpop.permute.xlu0 %6437
        %v6439 = vunpack.c.l.b16 %v6337
        %v6440 = vunpack.c.l.b16 %v6385
        %v6441 = vpack.c.b16 %v6440, %v6439
        %6442 = vrot.lane.b32.xlu0 %v6441, 80
        %v6443 = vpop.permute.xlu0 %6442
        %v6444 = vunpack.c.l.b16 %v6340
        %v6445 = vunpack.c.l.b16 %v6388
        %v6446 = vpack.c.b16 %v6445, %v6444
        %6447 = vrot.lane.b32.xlu0 %v6446, 96
        %v6448 = vpop.permute.xlu0 %6447
        %v6449 = vunpack.c.l.b16 %v6343
        %v6450 = vunpack.c.l.b16 %v6391
        %v6451 = vpack.c.b16 %v6450, %v6449
        %6452 = vrot.lane.b32.xlu0 %v6451, 112
        %v6453 = vpop.permute.xlu0 %6452
        %v6454 = vunpack.c.l.b16 %v6346
        %v6455 = vunpack.c.l.b16 %v6394
        %v6456 = vpack.c.b16 %v6455, %v6454
        %v6457 = vunpack.c.l.b16 %v6349
        %v6458 = vunpack.c.l.b16 %v6397
        %v6459 = vpack.c.b16 %v6458, %v6457
        %6460 = vrot.lane.b32.xlu0 %v6459, 16
        %v6461 = vpop.permute.xlu0 %6460
        %v6462 = vunpack.c.l.b16 %v6352
        %v6463 = vunpack.c.l.b16 %v6400
        %v6464 = vpack.c.b16 %v6463, %v6462
        %6465 = vrot.lane.b32.xlu0 %v6464, 32
        %v6466 = vpop.permute.xlu0 %6465
        %v6467 = vunpack.c.l.b16 %v6355
        %v6468 = vunpack.c.l.b16 %v6403
        %v6469 = vpack.c.b16 %v6468, %v6467
        %6470 = vrot.lane.b32.xlu0 %v6469, 48
        %v6471 = vpop.permute.xlu0 %6470
        %v6472 = vunpack.c.l.b16 %v6358
        %v6473 = vunpack.c.l.b16 %v6406
        %v6474 = vpack.c.b16 %v6473, %v6472
        %6475 = vrot.lane.b32.xlu0 %v6474, 64
        %v6476 = vpop.permute.xlu0 %6475
        %v6477 = vunpack.c.l.b16 %v6361
        %v6478 = vunpack.c.l.b16 %v6409
        %v6479 = vpack.c.b16 %v6478, %v6477
        %6480 = vrot.lane.b32.xlu0 %v6479, 80
        %v6481 = vpop.permute.xlu0 %6480
        %v6482 = vunpack.c.l.b16 %v6364
        %v6483 = vunpack.c.l.b16 %v6412
        %v6484 = vpack.c.b16 %v6483, %v6482
        %6485 = vrot.lane.b32.xlu0 %v6484, 96
        %v6486 = vpop.permute.xlu0 %6485
        %v6487 = vunpack.c.l.b16 %v6367
        %v6488 = vunpack.c.l.b16 %v6415
        %v6489 = vpack.c.b16 %v6488, %v6487
        %6490 = vrot.lane.b32.xlu0 %v6489, 112
        %v6491 = vpop.permute.xlu0 %6490
        %v6494 = vsel %vm1104, %v6418, %v6423
        %v6496 = vsel %vm1108, %v6494, %v6428
        %v6498 = vsel %vm1111, %v6496, %v6433
        %v6500 = vsel %vm1114, %v6498, %v6438
        %v6502 = vsel %vm1117, %v6500, %v6443
        %v6504 = vsel %vm1120, %v6502, %v6448
        %v6506 = vsel %vm1123, %v6504, %v6453
        %v6510 = vsel %vm1104, %v6456, %v6461
        %v6512 = vsel %vm1108, %v6510, %v6466
        %v6514 = vsel %vm1111, %v6512, %v6471
        %v6516 = vsel %vm1114, %v6514, %v6476
        %v6518 = vsel %vm1117, %v6516, %v6481
        %v6520 = vsel %vm1120, %v6518, %v6486
        %v6522 = vsel %vm1123, %v6520, %v6491
        %v6524 = vld [vmem:[#allocation3 + $0x8] sm:$0x1]
        %v6525 = vld [vmem:[#allocation3 + $0x14] sm:$0x1]
        %v6526 = vld [vmem:[#allocation3 + $0x20] sm:$0x1]
        %v6527 = vld [vmem:[#allocation3 + $0x2c] sm:$0x1]
        %v6528 = vld [vmem:[#allocation3 + $0x38] sm:$0x1]
        %v6529 = vld [vmem:[#allocation3 + $0x44] sm:$0x1]
        %v6530 = vld [vmem:[#allocation3 + $0x50] sm:$0x1]
        %v6531 = vld [vmem:[#allocation3 + $0x5c] sm:$0x1]
        %v6532 = vld [vmem:[#allocation3 + $0x68] sm:$0x1]
        %v6533 = vld [vmem:[#allocation3 + $0x74] sm:$0x1]
        %v6534 = vld [vmem:[#allocation3 + $0x80] sm:$0x1]
        %v6535 = vld [vmem:[#allocation3 + $0x8c] sm:$0x1]
        %v6536 = vld [vmem:[#allocation3 + $0x98] sm:$0x1]
        %v6537 = vld [vmem:[#allocation3 + $0xa4] sm:$0x1]
        %v6538 = vld [vmem:[#allocation3 + $0xb0] sm:$0x1]
        %v6539 = vld [vmem:[#allocation3 + $0xbc] sm:$0x1]
        %v6541 = vshrl.u32 %v4840, 16
        %v6543 = vrot.slane %v6541, 4
        %v6544 = vshll.u32 %v4840, 16
        %v6546 = vrot.slane %v6544, 5
        %v6547 = vor.u32 %v6543, %v6546
        %v6548 = vrot.slane %v6547, 4
        %v6550 = vshll.u32 %v4841, 16
        %v6552 = vrot.slane %v6550, 5
        %v6553 = vsel %vm1707, %v6548, %v6552
        %v6554 = vshrl.u32 %v4841, 16
        %v6556 = vrot.slane %v6554, 4
        %v6557 = vor.u32 %v6556, %v6552
        %v6558 = vrot.slane %v6557, 4
        %v6560 = vshll.u32 %v6524, 16
        %v6562 = vrot.slane %v6560, 5
        %v6563 = vsel %vm1707, %v6558, %v6562
        %v6565 = vshrl.u32 %v4842, 16
        %v6567 = vrot.slane %v6565, 4
        %v6568 = vshll.u32 %v4842, 16
        %v6570 = vrot.slane %v6568, 5
        %v6571 = vor.u32 %v6567, %v6570
        %v6572 = vrot.slane %v6571, 4
        %v6574 = vshll.u32 %v4843, 16
        %v6576 = vrot.slane %v6574, 5
        %v6577 = vsel %vm1707, %v6572, %v6576
        %v6578 = vshrl.u32 %v4843, 16
        %v6580 = vrot.slane %v6578, 4
        %v6581 = vor.u32 %v6580, %v6576
        %v6582 = vrot.slane %v6581, 4
        %v6584 = vshll.u32 %v6525, 16
        %v6586 = vrot.slane %v6584, 5
        %v6587 = vsel %vm1707, %v6582, %v6586
        %v6589 = vshrl.u32 %v4844, 16
        %v6591 = vrot.slane %v6589, 4
        %v6592 = vshll.u32 %v4844, 16
        %v6594 = vrot.slane %v6592, 5
        %v6595 = vor.u32 %v6591, %v6594
        %v6596 = vrot.slane %v6595, 4
        %v6598 = vshll.u32 %v4845, 16
        %v6600 = vrot.slane %v6598, 5
        %v6601 = vsel %vm1707, %v6596, %v6600
        %v6602 = vshrl.u32 %v4845, 16
        %v6604 = vrot.slane %v6602, 4
        %v6605 = vor.u32 %v6604, %v6600
        %v6606 = vrot.slane %v6605, 4
        %v6608 = vshll.u32 %v6526, 16
        %v6610 = vrot.slane %v6608, 5
        %v6611 = vsel %vm1707, %v6606, %v6610
        %v6613 = vshrl.u32 %v4846, 16
        %v6615 = vrot.slane %v6613, 4
        %v6616 = vshll.u32 %v4846, 16
        %v6618 = vrot.slane %v6616, 5
        %v6619 = vor.u32 %v6615, %v6618
        %v6620 = vrot.slane %v6619, 4
        %v6622 = vshll.u32 %v4847, 16
        %v6624 = vrot.slane %v6622, 5
        %v6625 = vsel %vm1707, %v6620, %v6624
        %v6626 = vshrl.u32 %v4847, 16
        %v6628 = vrot.slane %v6626, 4
        %v6629 = vor.u32 %v6628, %v6624
        %v6630 = vrot.slane %v6629, 4
        %v6632 = vshll.u32 %v6527, 16
        %v6634 = vrot.slane %v6632, 5
        %v6635 = vsel %vm1707, %v6630, %v6634
        %v6637 = vshrl.u32 %v4848, 16
        %v6639 = vrot.slane %v6637, 4
        %v6640 = vshll.u32 %v4848, 16
        %v6642 = vrot.slane %v6640, 5
        %v6643 = vor.u32 %v6639, %v6642
        %v6644 = vrot.slane %v6643, 4
        %v6646 = vshll.u32 %v4849, 16
        %v6648 = vrot.slane %v6646, 5
        %v6649 = vsel %vm1707, %v6644, %v6648
        %v6650 = vshrl.u32 %v4849, 16
        %v6652 = vrot.slane %v6650, 4
        %v6653 = vor.u32 %v6652, %v6648
        %v6654 = vrot.slane %v6653, 4
        %v6656 = vshll.u32 %v6528, 16
        %v6658 = vrot.slane %v6656, 5
        %v6659 = vsel %vm1707, %v6654, %v6658
        %v6661 = vshrl.u32 %v4850, 16
        %v6663 = vrot.slane %v6661, 4
        %v6664 = vshll.u32 %v4850, 16
        %v6666 = vrot.slane %v6664, 5
        %v6667 = vor.u32 %v6663, %v6666
        %v6668 = vrot.slane %v6667, 4
        %v6670 = vshll.u32 %v4851, 16
        %v6672 = vrot.slane %v6670, 5
        %v6673 = vsel %vm1707, %v6668, %v6672
        %v6674 = vshrl.u32 %v4851, 16
        %v6676 = vrot.slane %v6674, 4
        %v6677 = vor.u32 %v6676, %v6672
        %v6678 = vrot.slane %v6677, 4
        %v6680 = vshll.u32 %v6529, 16
        %v6682 = vrot.slane %v6680, 5
        %v6683 = vsel %vm1707, %v6678, %v6682
        %v6685 = vshrl.u32 %v4852, 16
        %v6687 = vrot.slane %v6685, 4
        %v6688 = vshll.u32 %v4852, 16
        %v6690 = vrot.slane %v6688, 5
        %v6691 = vor.u32 %v6687, %v6690
        %v6692 = vrot.slane %v6691, 4
        %v6694 = vshll.u32 %v4853, 16
        %v6696 = vrot.slane %v6694, 5
        %v6697 = vsel %vm1707, %v6692, %v6696
        %v6698 = vshrl.u32 %v4853, 16
        %v6700 = vrot.slane %v6698, 4
        %v6701 = vor.u32 %v6700, %v6696
        %v6702 = vrot.slane %v6701, 4
        %v6704 = vshll.u32 %v6530, 16
        %v6706 = vrot.slane %v6704, 5
        %v6707 = vsel %vm1707, %v6702, %v6706
        %v6709 = vshrl.u32 %v4854, 16
        %v6711 = vrot.slane %v6709, 4
        %v6712 = vshll.u32 %v4854, 16
        %v6714 = vrot.slane %v6712, 5
        %v6715 = vor.u32 %v6711, %v6714
        %v6716 = vrot.slane %v6715, 4
        %v6718 = vshll.u32 %v4855, 16
        %v6720 = vrot.slane %v6718, 5
        %v6721 = vsel %vm1707, %v6716, %v6720
        %v6722 = vshrl.u32 %v4855, 16
        %v6724 = vrot.slane %v6722, 4
        %v6725 = vor.u32 %v6724, %v6720
        %v6726 = vrot.slane %v6725, 4
        %v6728 = vshll.u32 %v6531, 16
        %v6730 = vrot.slane %v6728, 5
        %v6731 = vsel %vm1707, %v6726, %v6730
        %v6733 = vshrl.u32 %v4856, 16
        %v6735 = vrot.slane %v6733, 4
        %v6736 = vshll.u32 %v4856, 16
        %v6738 = vrot.slane %v6736, 5
        %v6739 = vor.u32 %v6735, %v6738
        %v6740 = vrot.slane %v6739, 4
        %v6742 = vshll.u32 %v4857, 16
        %v6744 = vrot.slane %v6742, 5
        %v6745 = vsel %vm1707, %v6740, %v6744
        %v6746 = vshrl.u32 %v4857, 16
        %v6748 = vrot.slane %v6746, 4
        %v6749 = vor.u32 %v6748, %v6744
        %v6750 = vrot.slane %v6749, 4
        %v6752 = vshll.u32 %v6532, 16
        %v6754 = vrot.slane %v6752, 5
        %v6755 = vsel %vm1707, %v6750, %v6754
        %v6757 = vshrl.u32 %v4858, 16
        %v6759 = vrot.slane %v6757, 4
        %v6760 = vshll.u32 %v4858, 16
        %v6762 = vrot.slane %v6760, 5
        %v6763 = vor.u32 %v6759, %v6762
        %v6764 = vrot.slane %v6763, 4
        %v6766 = vshll.u32 %v4859, 16
        %v6768 = vrot.slane %v6766, 5
        %v6769 = vsel %vm1707, %v6764, %v6768
        %v6770 = vshrl.u32 %v4859, 16
        %v6772 = vrot.slane %v6770, 4
        %v6773 = vor.u32 %v6772, %v6768
        %v6774 = vrot.slane %v6773, 4
        %v6776 = vshll.u32 %v6533, 16
        %v6778 = vrot.slane %v6776, 5
        %v6779 = vsel %vm1707, %v6774, %v6778
        %v6781 = vshrl.u32 %v4860, 16
        %v6783 = vrot.slane %v6781, 4
        %v6784 = vshll.u32 %v4860, 16
        %v6786 = vrot.slane %v6784, 5
        %v6787 = vor.u32 %v6783, %v6786
        %v6788 = vrot.slane %v6787, 4
        %v6790 = vshll.u32 %v4861, 16
        %v6792 = vrot.slane %v6790, 5
        %v6793 = vsel %vm1707, %v6788, %v6792
        %v6794 = vshrl.u32 %v4861, 16
        %v6796 = vrot.slane %v6794, 4
        %v6797 = vor.u32 %v6796, %v6792
        %v6798 = vrot.slane %v6797, 4
        %v6800 = vshll.u32 %v6534, 16
        %v6802 = vrot.slane %v6800, 5
        %v6803 = vsel %vm1707, %v6798, %v6802
        %v6805 = vshrl.u32 %v4862, 16
        %v6807 = vrot.slane %v6805, 4
        %v6808 = vshll.u32 %v4862, 16
        %v6810 = vrot.slane %v6808, 5
        %v6811 = vor.u32 %v6807, %v6810
        %v6812 = vrot.slane %v6811, 4
        %v6814 = vshll.u32 %v4863, 16
        %v6816 = vrot.slane %v6814, 5
        %v6817 = vsel %vm1707, %v6812, %v6816
        %v6818 = vshrl.u32 %v4863, 16
        %v6820 = vrot.slane %v6818, 4
        %v6821 = vor.u32 %v6820, %v6816
        %v6822 = vrot.slane %v6821, 4
        %v6824 = vshll.u32 %v6535, 16
        %v6826 = vrot.slane %v6824, 5
        %v6827 = vsel %vm1707, %v6822, %v6826
        %v6829 = vshrl.u32 %v4864, 16
        %v6831 = vrot.slane %v6829, 4
        %v6832 = vshll.u32 %v4864, 16
        %v6834 = vrot.slane %v6832, 5
        %v6835 = vor.u32 %v6831, %v6834
        %v6836 = vrot.slane %v6835, 4
        %v6838 = vshll.u32 %v4865, 16
        %v6840 = vrot.slane %v6838, 5
        %v6841 = vsel %vm1707, %v6836, %v6840
        %v6842 = vshrl.u32 %v4865, 16
        %v6844 = vrot.slane %v6842, 4
        %v6845 = vor.u32 %v6844, %v6840
        %v6846 = vrot.slane %v6845, 4
        %v6848 = vshll.u32 %v6536, 16
        %v6850 = vrot.slane %v6848, 5
        %v6851 = vsel %vm1707, %v6846, %v6850
        %v6853 = vshrl.u32 %v4866, 16
        %v6855 = vrot.slane %v6853, 4
        %v6856 = vshll.u32 %v4866, 16
        %v6858 = vrot.slane %v6856, 5
        %v6859 = vor.u32 %v6855, %v6858
        %v6860 = vrot.slane %v6859, 4
        %v6862 = vshll.u32 %v4867, 16
        %v6864 = vrot.slane %v6862, 5
        %v6865 = vsel %vm1707, %v6860, %v6864
        %v6866 = vshrl.u32 %v4867, 16
        %v6868 = vrot.slane %v6866, 4
        %v6869 = vor.u32 %v6868, %v6864
        %v6870 = vrot.slane %v6869, 4
        %v6872 = vshll.u32 %v6537, 16
        %v6874 = vrot.slane %v6872, 5
        %v6875 = vsel %vm1707, %v6870, %v6874
        %v6877 = vshrl.u32 %v4868, 16
        %v6879 = vrot.slane %v6877, 4
        %v6880 = vshll.u32 %v4868, 16
        %v6882 = vrot.slane %v6880, 5
        %v6883 = vor.u32 %v6879, %v6882
        %v6884 = vrot.slane %v6883, 4
        %v6886 = vshll.u32 %v4869, 16
        %v6888 = vrot.slane %v6886, 5
        %v6889 = vsel %vm1707, %v6884, %v6888
        %v6890 = vshrl.u32 %v4869, 16
        %v6892 = vrot.slane %v6890, 4
        %v6893 = vor.u32 %v6892, %v6888
        %v6894 = vrot.slane %v6893, 4
        %v6896 = vshll.u32 %v6538, 16
        %v6898 = vrot.slane %v6896, 5
        %v6899 = vsel %vm1707, %v6894, %v6898
        %v6901 = vshrl.u32 %v4870, 16
        %v6903 = vrot.slane %v6901, 4
        %v6904 = vshll.u32 %v4870, 16
        %v6906 = vrot.slane %v6904, 5
        %v6907 = vor.u32 %v6903, %v6906
        %v6908 = vrot.slane %v6907, 4
        %v6910 = vshll.u32 %v4871, 16
        %v6912 = vrot.slane %v6910, 5
        %v6913 = vsel %vm1707, %v6908, %v6912
        %v6914 = vshrl.u32 %v4871, 16
        %v6916 = vrot.slane %v6914, 4
        %v6917 = vor.u32 %v6916, %v6912
        %v6918 = vrot.slane %v6917, 4
        %v6920 = vshll.u32 %v6539, 16
        %v6922 = vrot.slane %v6920, 5
        %v6923 = vsel %vm1707, %v6918, %v6922
        %v6956 = vcombine.low %v6553, %v6649
        %v6958 = vunpack.c.l.s4 1983009808
        %v6959 = vunpack.c.0.s8 %v6958
        %v6960 = vlaneseq
        %v6961 = vshrl.u32 %v6960, 7
        %v6962 = vsub.s32 %v6959, %v6961
        %v6963 = vrot.slane %v6956, %v6962
        %v6964 = vcombine.low %v6601, %v6697
        %v6966 = vunpack.c.l.s4 1983009808
        %v6967 = vunpack.c.0.s8 %v6966
        %v6968 = vlaneseq
        %v6969 = vshrl.u32 %v6968, 7
        %v6970 = vsub.s32 %v6967, %v6969
        %v6971 = vrot.slane %v6964, %v6970
        %v6972 = vcombine.low %v6963, %v6971
        %v6973 = vcombine.high %v6963, %v6971
        %v6975 = vunpack.c.l.s4 1934713408
        %v6976 = vunpack.c.0.s8 %v6975
        %v6977 = vlaneseq
        %v6978 = vshrl.u32 %v6977, 7
        %v6979 = vsub.s32 %v6976, %v6978
        %v6980 = vrot.slane %v6972, %v6979
        %v6982 = vunpack.c.l.s4 1934713408
        %v6983 = vunpack.c.0.s8 %v6982
        %v6984 = vlaneseq
        %v6985 = vshrl.u32 %v6984, 7
        %v6986 = vsub.s32 %v6983, %v6985
        %v6987 = vrot.slane %v6973, %v6986
        %v6988 = vcombine.high %v6980, 0
        %v6989 = vcombine.high %v6987, 0
        %v6990 = vcombine.low %v6577, %v6673
        %v6992 = vunpack.c.l.s4 1983009808
        %v6993 = vunpack.c.0.s8 %v6992
        %v6994 = vlaneseq
        %v6995 = vshrl.u32 %v6994, 7
        %v6996 = vsub.s32 %v6993, %v6995
        %v6997 = vrot.slane %v6990, %v6996
        %v6998 = vcombine.low %v6625, %v6721
        %v7000 = vunpack.c.l.s4 1983009808
        %v7001 = vunpack.c.0.s8 %v7000
        %v7002 = vlaneseq
        %v7003 = vshrl.u32 %v7002, 7
        %v7004 = vsub.s32 %v7001, %v7003
        %v7005 = vrot.slane %v6998, %v7004
        %v7006 = vcombine.low %v6997, %v7005
        %v7007 = vcombine.high %v6997, %v7005
        %v7009 = vunpack.c.l.s4 1934713408
        %v7010 = vunpack.c.0.s8 %v7009
        %v7011 = vlaneseq
        %v7012 = vshrl.u32 %v7011, 7
        %v7013 = vsub.s32 %v7010, %v7012
        %v7014 = vrot.slane %v7006, %v7013
        %v7016 = vunpack.c.l.s4 1934713408
        %v7017 = vunpack.c.0.s8 %v7016
        %v7018 = vlaneseq
        %v7019 = vshrl.u32 %v7018, 7
        %v7020 = vsub.s32 %v7017, %v7019
        %v7021 = vrot.slane %v7007, %v7020
        %v7022 = vcombine.high %v7014, 0
        %v7023 = vcombine.high %v7021, 0
        %v7024 = vcombine.low %v6745, %v6841
        %v7026 = vunpack.c.l.s4 1983009808
        %v7027 = vunpack.c.0.s8 %v7026
        %v7028 = vlaneseq
        %v7029 = vshrl.u32 %v7028, 7
        %v7030 = vsub.s32 %v7027, %v7029
        %v7031 = vrot.slane %v7024, %v7030
        %v7032 = vcombine.low %v6793, %v6889
        %v7034 = vunpack.c.l.s4 1983009808
        %v7035 = vunpack.c.0.s8 %v7034
        %v7036 = vlaneseq
        %v7037 = vshrl.u32 %v7036, 7
        %v7038 = vsub.s32 %v7035, %v7037
        %v7039 = vrot.slane %v7032, %v7038
        %v7040 = vcombine.low %v7031, %v7039
        %v7041 = vcombine.high %v7031, %v7039
        %v7043 = vunpack.c.l.s4 1934713408
        %v7044 = vunpack.c.0.s8 %v7043
        %v7045 = vlaneseq
        %v7046 = vshrl.u32 %v7045, 7
        %v7047 = vsub.s32 %v7044, %v7046
        %v7048 = vrot.slane %v7040, %v7047
        %v7050 = vunpack.c.l.s4 1934713408
        %v7051 = vunpack.c.0.s8 %v7050
        %v7052 = vlaneseq
        %v7053 = vshrl.u32 %v7052, 7
        %v7054 = vsub.s32 %v7051, %v7053
        %v7055 = vrot.slane %v7041, %v7054
        %v7056 = vcombine.high %v7048, 0
        %v7057 = vcombine.high %v7055, 0
        %v7058 = vcombine.low %v6769, %v6865
        %v7060 = vunpack.c.l.s4 1983009808
        %v7061 = vunpack.c.0.s8 %v7060
        %v7062 = vlaneseq
        %v7063 = vshrl.u32 %v7062, 7
        %v7064 = vsub.s32 %v7061, %v7063
        %v7065 = vrot.slane %v7058, %v7064
        %v7066 = vcombine.low %v6817, %v6913
        %v7068 = vunpack.c.l.s4 1983009808
        %v7069 = vunpack.c.0.s8 %v7068
        %v7070 = vlaneseq
        %v7071 = vshrl.u32 %v7070, 7
        %v7072 = vsub.s32 %v7069, %v7071
        %v7073 = vrot.slane %v7066, %v7072
        %v7074 = vcombine.low %v7065, %v7073
        %v7075 = vcombine.high %v7065, %v7073
        %v7077 = vunpack.c.l.s4 1934713408
        %v7078 = vunpack.c.0.s8 %v7077
        %v7079 = vlaneseq
        %v7080 = vshrl.u32 %v7079, 7
        %v7081 = vsub.s32 %v7078, %v7080
        %v7082 = vrot.slane %v7074, %v7081
        %v7084 = vunpack.c.l.s4 1934713408
        %v7085 = vunpack.c.0.s8 %v7084
        %v7086 = vlaneseq
        %v7087 = vshrl.u32 %v7086, 7
        %v7088 = vsub.s32 %v7085, %v7087
        %v7089 = vrot.slane %v7075, %v7088
        %v7090 = vcombine.high %v7082, 0
        %v7091 = vcombine.high %v7089, 0
        %v7092 = vcombine.low %v6563, %v6659
        %v7094 = vunpack.c.l.s4 1983009808
        %v7095 = vunpack.c.0.s8 %v7094
        %v7096 = vlaneseq
        %v7097 = vshrl.u32 %v7096, 7
        %v7098 = vsub.s32 %v7095, %v7097
        %v7099 = vrot.slane %v7092, %v7098
        %v7100 = vcombine.low %v6611, %v6707
        %v7102 = vunpack.c.l.s4 1983009808
        %v7103 = vunpack.c.0.s8 %v7102
        %v7104 = vlaneseq
        %v7105 = vshrl.u32 %v7104, 7
        %v7106 = vsub.s32 %v7103, %v7105
        %v7107 = vrot.slane %v7100, %v7106
        %v7108 = vcombine.low %v7099, %v7107
        %v7109 = vcombine.high %v7099, %v7107
        %v7111 = vunpack.c.l.s4 1934713408
        %v7112 = vunpack.c.0.s8 %v7111
        %v7113 = vlaneseq
        %v7114 = vshrl.u32 %v7113, 7
        %v7115 = vsub.s32 %v7112, %v7114
        %v7116 = vrot.slane %v7108, %v7115
        %v7118 = vunpack.c.l.s4 1934713408
        %v7119 = vunpack.c.0.s8 %v7118
        %v7120 = vlaneseq
        %v7121 = vshrl.u32 %v7120, 7
        %v7122 = vsub.s32 %v7119, %v7121
        %v7123 = vrot.slane %v7109, %v7122
        %v7124 = vcombine.high %v7116, 0
        %v7125 = vcombine.high %v7123, 0
        %v7126 = vcombine.low %v6587, %v6683
        %v7128 = vunpack.c.l.s4 1983009808
        %v7129 = vunpack.c.0.s8 %v7128
        %v7130 = vlaneseq
        %v7131 = vshrl.u32 %v7130, 7
        %v7132 = vsub.s32 %v7129, %v7131
        %v7133 = vrot.slane %v7126, %v7132
        %v7134 = vcombine.low %v6635, %v6731
        %v7136 = vunpack.c.l.s4 1983009808
        %v7137 = vunpack.c.0.s8 %v7136
        %v7138 = vlaneseq
        %v7139 = vshrl.u32 %v7138, 7
        %v7140 = vsub.s32 %v7137, %v7139
        %v7141 = vrot.slane %v7134, %v7140
        %v7142 = vcombine.low %v7133, %v7141
        %v7143 = vcombine.high %v7133, %v7141
        %v7145 = vunpack.c.l.s4 1934713408
        %v7146 = vunpack.c.0.s8 %v7145
        %v7147 = vlaneseq
        %v7148 = vshrl.u32 %v7147, 7
        %v7149 = vsub.s32 %v7146, %v7148
        %v7150 = vrot.slane %v7142, %v7149
        %v7152 = vunpack.c.l.s4 1934713408
        %v7153 = vunpack.c.0.s8 %v7152
        %v7154 = vlaneseq
        %v7155 = vshrl.u32 %v7154, 7
        %v7156 = vsub.s32 %v7153, %v7155
        %v7157 = vrot.slane %v7143, %v7156
        %v7158 = vcombine.high %v7150, 0
        %v7159 = vcombine.high %v7157, 0
        %v7160 = vcombine.low %v6755, %v6851
        %v7162 = vunpack.c.l.s4 1983009808
        %v7163 = vunpack.c.0.s8 %v7162
        %v7164 = vlaneseq
        %v7165 = vshrl.u32 %v7164, 7
        %v7166 = vsub.s32 %v7163, %v7165
        %v7167 = vrot.slane %v7160, %v7166
        %v7168 = vcombine.low %v6803, %v6899
        %v7170 = vunpack.c.l.s4 1983009808
        %v7171 = vunpack.c.0.s8 %v7170
        %v7172 = vlaneseq
        %v7173 = vshrl.u32 %v7172, 7
        %v7174 = vsub.s32 %v7171, %v7173
        %v7175 = vrot.slane %v7168, %v7174
        %v7176 = vcombine.low %v7167, %v7175
        %v7177 = vcombine.high %v7167, %v7175
        %v7179 = vunpack.c.l.s4 1934713408
        %v7180 = vunpack.c.0.s8 %v7179
        %v7181 = vlaneseq
        %v7182 = vshrl.u32 %v7181, 7
        %v7183 = vsub.s32 %v7180, %v7182
        %v7184 = vrot.slane %v7176, %v7183
        %v7186 = vunpack.c.l.s4 1934713408
        %v7187 = vunpack.c.0.s8 %v7186
        %v7188 = vlaneseq
        %v7189 = vshrl.u32 %v7188, 7
        %v7190 = vsub.s32 %v7187, %v7189
        %v7191 = vrot.slane %v7177, %v7190
        %v7192 = vcombine.high %v7184, 0
        %v7193 = vcombine.high %v7191, 0
        %v7194 = vcombine.low %v6779, %v6875
        %v7196 = vunpack.c.l.s4 1983009808
        %v7197 = vunpack.c.0.s8 %v7196
        %v7198 = vlaneseq
        %v7199 = vshrl.u32 %v7198, 7
        %v7200 = vsub.s32 %v7197, %v7199
        %v7201 = vrot.slane %v7194, %v7200
        %v7202 = vcombine.low %v6827, %v6923
        %v7204 = vunpack.c.l.s4 1983009808
        %v7205 = vunpack.c.0.s8 %v7204
        %v7206 = vlaneseq
        %v7207 = vshrl.u32 %v7206, 7
        %v7208 = vsub.s32 %v7205, %v7207
        %v7209 = vrot.slane %v7202, %v7208
        %v7210 = vcombine.low %v7201, %v7209
        %v7211 = vcombine.high %v7201, %v7209
        %v7213 = vunpack.c.l.s4 1934713408
        %v7214 = vunpack.c.0.s8 %v7213
        %v7215 = vlaneseq
        %v7216 = vshrl.u32 %v7215, 7
        %v7217 = vsub.s32 %v7214, %v7216
        %v7218 = vrot.slane %v7210, %v7217
        %v7220 = vunpack.c.l.s4 1934713408
        %v7221 = vunpack.c.0.s8 %v7220
        %v7222 = vlaneseq
        %v7223 = vshrl.u32 %v7222, 7
        %v7224 = vsub.s32 %v7221, %v7223
        %v7225 = vrot.slane %v7211, %v7224
        %v7226 = vcombine.high %v7218, 0
        %v7227 = vcombine.high %v7225, 0
        %v7230 = vpack.i.b16 %v7014, %v6980
        %v7231 = vshrl.u32 %v6980, 16
        %v7232 = vshrl.u32 %v7014, 16
        %v7233 = vpack.i.b16 %v7232, %v7231
        %v7236 = vpack.i.b16 %v7022, %v6988
        %v7237 = vshrl.u32 %v6988, 16
        %v7238 = vshrl.u32 %v7022, 16
        %v7239 = vpack.i.b16 %v7238, %v7237
        %v7242 = vpack.i.b16 %v7021, %v6987
        %v7243 = vshrl.u32 %v6987, 16
        %v7244 = vshrl.u32 %v7021, 16
        %v7245 = vpack.i.b16 %v7244, %v7243
        %v7248 = vpack.i.b16 %v7023, %v6989
        %v7249 = vshrl.u32 %v6989, 16
        %v7250 = vshrl.u32 %v7023, 16
        %v7251 = vpack.i.b16 %v7250, %v7249
        %v7254 = vpack.i.b16 %v7150, %v7116
        %v7255 = vshrl.u32 %v7116, 16
        %v7256 = vshrl.u32 %v7150, 16
        %v7257 = vpack.i.b16 %v7256, %v7255
        %v7260 = vpack.i.b16 %v7158, %v7124
        %v7261 = vshrl.u32 %v7124, 16
        %v7262 = vshrl.u32 %v7158, 16
        %v7263 = vpack.i.b16 %v7262, %v7261
        %v7266 = vpack.i.b16 %v7157, %v7123
        %v7267 = vshrl.u32 %v7123, 16
        %v7268 = vshrl.u32 %v7157, 16
        %v7269 = vpack.i.b16 %v7268, %v7267
        %v7272 = vpack.i.b16 %v7159, %v7125
        %v7273 = vshrl.u32 %v7125, 16
        %v7274 = vshrl.u32 %v7159, 16
        %v7275 = vpack.i.b16 %v7274, %v7273
        %v7278 = vpack.i.b16 %v7082, %v7048
        %v7279 = vshrl.u32 %v7048, 16
        %v7280 = vshrl.u32 %v7082, 16
        %v7281 = vpack.i.b16 %v7280, %v7279
        %v7284 = vpack.i.b16 %v7090, %v7056
        %v7285 = vshrl.u32 %v7056, 16
        %v7286 = vshrl.u32 %v7090, 16
        %v7287 = vpack.i.b16 %v7286, %v7285
        %v7290 = vpack.i.b16 %v7089, %v7055
        %v7291 = vshrl.u32 %v7055, 16
        %v7292 = vshrl.u32 %v7089, 16
        %v7293 = vpack.i.b16 %v7292, %v7291
        %v7296 = vpack.i.b16 %v7091, %v7057
        %v7297 = vshrl.u32 %v7057, 16
        %v7298 = vshrl.u32 %v7091, 16
        %v7299 = vpack.i.b16 %v7298, %v7297
        %v7302 = vpack.i.b16 %v7218, %v7184
        %v7303 = vshrl.u32 %v7184, 16
        %v7304 = vshrl.u32 %v7218, 16
        %v7305 = vpack.i.b16 %v7304, %v7303
        %v7308 = vpack.i.b16 %v7226, %v7192
        %v7309 = vshrl.u32 %v7192, 16
        %v7310 = vshrl.u32 %v7226, 16
        %v7311 = vpack.i.b16 %v7310, %v7309
        %v7314 = vpack.i.b16 %v7225, %v7191
        %v7315 = vshrl.u32 %v7191, 16
        %v7316 = vshrl.u32 %v7225, 16
        %v7317 = vpack.i.b16 %v7316, %v7315
        %v7320 = vpack.i.b16 %v7227, %v7193
        %v7321 = vshrl.u32 %v7193, 16
        %v7322 = vshrl.u32 %v7227, 16
        %v7323 = vpack.i.b16 %v7322, %v7321
        %v7324 = vunpack.c.l.b16 %v7230
        %v7325 = vunpack.c.l.b16 %v7278
        %v7326 = vpack.c.b16 %v7325, %v7324
        %v7327 = vunpack.c.l.b16 %v7233
        %v7328 = vunpack.c.l.b16 %v7281
        %v7329 = vpack.c.b16 %v7328, %v7327
        %7330 = vrot.lane.b32.xlu0 %v7329, 16
        %v7331 = vpop.permute.xlu0 %7330
        %v7332 = vunpack.c.l.b16 %v7236
        %v7333 = vunpack.c.l.b16 %v7284
        %v7334 = vpack.c.b16 %v7333, %v7332
        %7335 = vrot.lane.b32.xlu0 %v7334, 32
        %v7336 = vpop.permute.xlu0 %7335
        %v7337 = vunpack.c.l.b16 %v7239
        %v7338 = vunpack.c.l.b16 %v7287
        %v7339 = vpack.c.b16 %v7338, %v7337
        %7340 = vrot.lane.b32.xlu0 %v7339, 48
        %v7341 = vpop.permute.xlu0 %7340
        %v7342 = vunpack.c.l.b16 %v7242
        %v7343 = vunpack.c.l.b16 %v7290
        %v7344 = vpack.c.b16 %v7343, %v7342
        %7345 = vrot.lane.b32.xlu0 %v7344, 64
        %v7346 = vpop.permute.xlu0 %7345
        %v7347 = vunpack.c.l.b16 %v7245
        %v7348 = vunpack.c.l.b16 %v7293
        %v7349 = vpack.c.b16 %v7348, %v7347
        %7350 = vrot.lane.b32.xlu0 %v7349, 80
        %v7351 = vpop.permute.xlu0 %7350
        %v7352 = vunpack.c.l.b16 %v7248
        %v7353 = vunpack.c.l.b16 %v7296
        %v7354 = vpack.c.b16 %v7353, %v7352
        %7355 = vrot.lane.b32.xlu0 %v7354, 96
        %v7356 = vpop.permute.xlu0 %7355
        %v7357 = vunpack.c.l.b16 %v7251
        %v7358 = vunpack.c.l.b16 %v7299
        %v7359 = vpack.c.b16 %v7358, %v7357
        %7360 = vrot.lane.b32.xlu0 %v7359, 112
        %v7361 = vpop.permute.xlu0 %7360
        %v7362 = vunpack.c.l.b16 %v7254
        %v7363 = vunpack.c.l.b16 %v7302
        %v7364 = vpack.c.b16 %v7363, %v7362
        %v7365 = vunpack.c.l.b16 %v7257
        %v7366 = vunpack.c.l.b16 %v7305
        %v7367 = vpack.c.b16 %v7366, %v7365
        %7368 = vrot.lane.b32.xlu0 %v7367, 16
        %v7369 = vpop.permute.xlu0 %7368
        %v7370 = vunpack.c.l.b16 %v7260
        %v7371 = vunpack.c.l.b16 %v7308
        %v7372 = vpack.c.b16 %v7371, %v7370
        %7373 = vrot.lane.b32.xlu0 %v7372, 32
        %v7374 = vpop.permute.xlu0 %7373
        %v7375 = vunpack.c.l.b16 %v7263
        %v7376 = vunpack.c.l.b16 %v7311
        %v7377 = vpack.c.b16 %v7376, %v7375
        %7378 = vrot.lane.b32.xlu0 %v7377, 48
        %v7379 = vpop.permute.xlu0 %7378
        %v7380 = vunpack.c.l.b16 %v7266
        %v7381 = vunpack.c.l.b16 %v7314
        %v7382 = vpack.c.b16 %v7381, %v7380
        %7383 = vrot.lane.b32.xlu0 %v7382, 64
        %v7384 = vpop.permute.xlu0 %7383
        %v7385 = vunpack.c.l.b16 %v7269
        %v7386 = vunpack.c.l.b16 %v7317
        %v7387 = vpack.c.b16 %v7386, %v7385
        %7388 = vrot.lane.b32.xlu0 %v7387, 80
        %v7389 = vpop.permute.xlu0 %7388
        %v7390 = vunpack.c.l.b16 %v7272
        %v7391 = vunpack.c.l.b16 %v7320
        %v7392 = vpack.c.b16 %v7391, %v7390
        %7393 = vrot.lane.b32.xlu0 %v7392, 96
        %v7394 = vpop.permute.xlu0 %7393
        %v7395 = vunpack.c.l.b16 %v7275
        %v7396 = vunpack.c.l.b16 %v7323
        %v7397 = vpack.c.b16 %v7396, %v7395
        %7398 = vrot.lane.b32.xlu0 %v7397, 112
        %v7399 = vpop.permute.xlu0 %7398
        %v7402 = vsel %vm1104, %v7326, %v7331
        %v7404 = vsel %vm1108, %v7402, %v7336
        %v7406 = vsel %vm1111, %v7404, %v7341
        %v7408 = vsel %vm1114, %v7406, %v7346
        %v7410 = vsel %vm1117, %v7408, %v7351
        %v7412 = vsel %vm1120, %v7410, %v7356
        %v7414 = vsel %vm1123, %v7412, %v7361
        %v7418 = vsel %vm1104, %v7364, %v7369
        %v7420 = vsel %vm1108, %v7418, %v7374
        %v7422 = vsel %vm1111, %v7420, %v7379
        %v7424 = vsel %vm1114, %v7422, %v7384
        %v7426 = vsel %vm1117, %v7424, %v7389
        %v7428 = vsel %vm1120, %v7426, %v7394
        %v7430 = vsel %vm1123, %v7428, %v7399
        %7432 = vrot.lane.b32.xlu0 %v6553, 127
        %v7433 = vpop.permute.xlu0 %7432
        %7434 = vrot.lane.b32.xlu0 %v6563, 127
        %v7435 = vpop.permute.xlu0 %7434
        %7436 = vrot.lane.b32.xlu0 %v6577, 127
        %v7437 = vpop.permute.xlu0 %7436
        %7438 = vrot.lane.b32.xlu0 %v6587, 127
        %v7439 = vpop.permute.xlu0 %7438
        %7440 = vrot.lane.b32.xlu0 %v6601, 127
        %v7441 = vpop.permute.xlu0 %7440
        %7442 = vrot.lane.b32.xlu0 %v6611, 127
        %v7443 = vpop.permute.xlu0 %7442
        %7444 = vrot.lane.b32.xlu0 %v6625, 127
        %v7445 = vpop.permute.xlu0 %7444
        %7446 = vrot.lane.b32.xlu0 %v6635, 127
        %v7447 = vpop.permute.xlu0 %7446
        %7448 = vrot.lane.b32.xlu0 %v6649, 127
        %v7449 = vpop.permute.xlu0 %7448
        %7450 = vrot.lane.b32.xlu0 %v6659, 127
        %v7451 = vpop.permute.xlu0 %7450
        %7452 = vrot.lane.b32.xlu0 %v6673, 127
        %v7453 = vpop.permute.xlu0 %7452
        %7454 = vrot.lane.b32.xlu0 %v6683, 127
        %v7455 = vpop.permute.xlu0 %7454
        %7456 = vrot.lane.b32.xlu0 %v6697, 127
        %v7457 = vpop.permute.xlu0 %7456
        %7458 = vrot.lane.b32.xlu0 %v6707, 127
        %v7459 = vpop.permute.xlu0 %7458
        %7460 = vrot.lane.b32.xlu0 %v6721, 127
        %v7461 = vpop.permute.xlu0 %7460
        %7462 = vrot.lane.b32.xlu0 %v6731, 127
        %v7463 = vpop.permute.xlu0 %7462
        %7464 = vrot.lane.b32.xlu0 %v6745, 127
        %v7465 = vpop.permute.xlu0 %7464
        %7466 = vrot.lane.b32.xlu0 %v6755, 127
        %v7467 = vpop.permute.xlu0 %7466
        %7468 = vrot.lane.b32.xlu0 %v6769, 127
        %v7469 = vpop.permute.xlu0 %7468
        %7470 = vrot.lane.b32.xlu0 %v6779, 127
        %v7471 = vpop.permute.xlu0 %7470
        %7472 = vrot.lane.b32.xlu0 %v6793, 127
        %v7473 = vpop.permute.xlu0 %7472
        %7474 = vrot.lane.b32.xlu0 %v6803, 127
        %v7475 = vpop.permute.xlu0 %7474
        %7476 = vrot.lane.b32.xlu0 %v6817, 127
        %v7477 = vpop.permute.xlu0 %7476
        %7478 = vrot.lane.b32.xlu0 %v6827, 127
        %v7479 = vpop.permute.xlu0 %7478
        %7480 = vrot.lane.b32.xlu0 %v6841, 127
        %v7481 = vpop.permute.xlu0 %7480
        %7482 = vrot.lane.b32.xlu0 %v6851, 127
        %v7483 = vpop.permute.xlu0 %7482
        %7484 = vrot.lane.b32.xlu0 %v6865, 127
        %v7485 = vpop.permute.xlu0 %7484
        %7486 = vrot.lane.b32.xlu0 %v6875, 127
        %v7487 = vpop.permute.xlu0 %7486
        %7488 = vrot.lane.b32.xlu0 %v6889, 127
        %v7489 = vpop.permute.xlu0 %7488
        %7490 = vrot.lane.b32.xlu0 %v6899, 127
        %v7491 = vpop.permute.xlu0 %7490
        %7492 = vrot.lane.b32.xlu0 %v6913, 127
        %v7493 = vpop.permute.xlu0 %7492
        %7494 = vrot.lane.b32.xlu0 %v6923, 127
        %v7495 = vpop.permute.xlu0 %7494
        %v7528 = vcombine.low %v7433, %v7449
        %v7530 = vunpack.c.l.s4 1983009808
        %v7531 = vunpack.c.0.s8 %v7530
        %v7532 = vlaneseq
        %v7533 = vshrl.u32 %v7532, 7
        %v7534 = vsub.s32 %v7531, %v7533
        %v7535 = vrot.slane %v7528, %v7534
        %v7536 = vcombine.low %v7441, %v7457
        %v7538 = vunpack.c.l.s4 1983009808
        %v7539 = vunpack.c.0.s8 %v7538
        %v7540 = vlaneseq
        %v7541 = vshrl.u32 %v7540, 7
        %v7542 = vsub.s32 %v7539, %v7541
        %v7543 = vrot.slane %v7536, %v7542
        %v7544 = vcombine.low %v7535, %v7543
        %v7545 = vcombine.high %v7535, %v7543
        %v7547 = vunpack.c.l.s4 1934713408
        %v7548 = vunpack.c.0.s8 %v7547
        %v7549 = vlaneseq
        %v7550 = vshrl.u32 %v7549, 7
        %v7551 = vsub.s32 %v7548, %v7550
        %v7552 = vrot.slane %v7544, %v7551
        %v7554 = vunpack.c.l.s4 1934713408
        %v7555 = vunpack.c.0.s8 %v7554
        %v7556 = vlaneseq
        %v7557 = vshrl.u32 %v7556, 7
        %v7558 = vsub.s32 %v7555, %v7557
        %v7559 = vrot.slane %v7545, %v7558
        %v7560 = vcombine.high %v7552, 0
        %v7561 = vcombine.high %v7559, 0
        %v7562 = vcombine.low %v7437, %v7453
        %v7564 = vunpack.c.l.s4 1983009808
        %v7565 = vunpack.c.0.s8 %v7564
        %v7566 = vlaneseq
        %v7567 = vshrl.u32 %v7566, 7
        %v7568 = vsub.s32 %v7565, %v7567
        %v7569 = vrot.slane %v7562, %v7568
        %v7570 = vcombine.low %v7445, %v7461
        %v7572 = vunpack.c.l.s4 1983009808
        %v7573 = vunpack.c.0.s8 %v7572
        %v7574 = vlaneseq
        %v7575 = vshrl.u32 %v7574, 7
        %v7576 = vsub.s32 %v7573, %v7575
        %v7577 = vrot.slane %v7570, %v7576
        %v7578 = vcombine.low %v7569, %v7577
        %v7579 = vcombine.high %v7569, %v7577
        %v7581 = vunpack.c.l.s4 1934713408
        %v7582 = vunpack.c.0.s8 %v7581
        %v7583 = vlaneseq
        %v7584 = vshrl.u32 %v7583, 7
        %v7585 = vsub.s32 %v7582, %v7584
        %v7586 = vrot.slane %v7578, %v7585
        %v7588 = vunpack.c.l.s4 1934713408
        %v7589 = vunpack.c.0.s8 %v7588
        %v7590 = vlaneseq
        %v7591 = vshrl.u32 %v7590, 7
        %v7592 = vsub.s32 %v7589, %v7591
        %v7593 = vrot.slane %v7579, %v7592
        %v7594 = vcombine.high %v7586, 0
        %v7595 = vcombine.high %v7593, 0
        %v7596 = vcombine.low %v7465, %v7481
        %v7598 = vunpack.c.l.s4 1983009808
        %v7599 = vunpack.c.0.s8 %v7598
        %v7600 = vlaneseq
        %v7601 = vshrl.u32 %v7600, 7
        %v7602 = vsub.s32 %v7599, %v7601
        %v7603 = vrot.slane %v7596, %v7602
        %v7604 = vcombine.low %v7473, %v7489
        %v7606 = vunpack.c.l.s4 1983009808
        %v7607 = vunpack.c.0.s8 %v7606
        %v7608 = vlaneseq
        %v7609 = vshrl.u32 %v7608, 7
        %v7610 = vsub.s32 %v7607, %v7609
        %v7611 = vrot.slane %v7604, %v7610
        %v7612 = vcombine.low %v7603, %v7611
        %v7613 = vcombine.high %v7603, %v7611
        %v7615 = vunpack.c.l.s4 1934713408
        %v7616 = vunpack.c.0.s8 %v7615
        %v7617 = vlaneseq
        %v7618 = vshrl.u32 %v7617, 7
        %v7619 = vsub.s32 %v7616, %v7618
        %v7620 = vrot.slane %v7612, %v7619
        %v7622 = vunpack.c.l.s4 1934713408
        %v7623 = vunpack.c.0.s8 %v7622
        %v7624 = vlaneseq
        %v7625 = vshrl.u32 %v7624, 7
        %v7626 = vsub.s32 %v7623, %v7625
        %v7627 = vrot.slane %v7613, %v7626
        %v7628 = vcombine.high %v7620, 0
        %v7629 = vcombine.high %v7627, 0
        %v7630 = vcombine.low %v7469, %v7485
        %v7632 = vunpack.c.l.s4 1983009808
        %v7633 = vunpack.c.0.s8 %v7632
        %v7634 = vlaneseq
        %v7635 = vshrl.u32 %v7634, 7
        %v7636 = vsub.s32 %v7633, %v7635
        %v7637 = vrot.slane %v7630, %v7636
        %v7638 = vcombine.low %v7477, %v7493
        %v7640 = vunpack.c.l.s4 1983009808
        %v7641 = vunpack.c.0.s8 %v7640
        %v7642 = vlaneseq
        %v7643 = vshrl.u32 %v7642, 7
        %v7644 = vsub.s32 %v7641, %v7643
        %v7645 = vrot.slane %v7638, %v7644
        %v7646 = vcombine.low %v7637, %v7645
        %v7647 = vcombine.high %v7637, %v7645
        %v7649 = vunpack.c.l.s4 1934713408
        %v7650 = vunpack.c.0.s8 %v7649
        %v7651 = vlaneseq
        %v7652 = vshrl.u32 %v7651, 7
        %v7653 = vsub.s32 %v7650, %v7652
        %v7654 = vrot.slane %v7646, %v7653
        %v7656 = vunpack.c.l.s4 1934713408
        %v7657 = vunpack.c.0.s8 %v7656
        %v7658 = vlaneseq
        %v7659 = vshrl.u32 %v7658, 7
        %v7660 = vsub.s32 %v7657, %v7659
        %v7661 = vrot.slane %v7647, %v7660
        %v7662 = vcombine.high %v7654, 0
        %v7663 = vcombine.high %v7661, 0
        %v7664 = vcombine.low %v7435, %v7451
        %v7666 = vunpack.c.l.s4 1983009808
        %v7667 = vunpack.c.0.s8 %v7666
        %v7668 = vlaneseq
        %v7669 = vshrl.u32 %v7668, 7
        %v7670 = vsub.s32 %v7667, %v7669
        %v7671 = vrot.slane %v7664, %v7670
        %v7672 = vcombine.low %v7443, %v7459
        %v7674 = vunpack.c.l.s4 1983009808
        %v7675 = vunpack.c.0.s8 %v7674
        %v7676 = vlaneseq
        %v7677 = vshrl.u32 %v7676, 7
        %v7678 = vsub.s32 %v7675, %v7677
        %v7679 = vrot.slane %v7672, %v7678
        %v7680 = vcombine.low %v7671, %v7679
        %v7681 = vcombine.high %v7671, %v7679
        %v7683 = vunpack.c.l.s4 1934713408
        %v7684 = vunpack.c.0.s8 %v7683
        %v7685 = vlaneseq
        %v7686 = vshrl.u32 %v7685, 7
        %v7687 = vsub.s32 %v7684, %v7686
        %v7688 = vrot.slane %v7680, %v7687
        %v7690 = vunpack.c.l.s4 1934713408
        %v7691 = vunpack.c.0.s8 %v7690
        %v7692 = vlaneseq
        %v7693 = vshrl.u32 %v7692, 7
        %v7694 = vsub.s32 %v7691, %v7693
        %v7695 = vrot.slane %v7681, %v7694
        %v7696 = vcombine.high %v7688, 0
        %v7697 = vcombine.high %v7695, 0
        %v7698 = vcombine.low %v7439, %v7455
        %v7700 = vunpack.c.l.s4 1983009808
        %v7701 = vunpack.c.0.s8 %v7700
        %v7702 = vlaneseq
        %v7703 = vshrl.u32 %v7702, 7
        %v7704 = vsub.s32 %v7701, %v7703
        %v7705 = vrot.slane %v7698, %v7704
        %v7706 = vcombine.low %v7447, %v7463
        %v7708 = vunpack.c.l.s4 1983009808
        %v7709 = vunpack.c.0.s8 %v7708
        %v7710 = vlaneseq
        %v7711 = vshrl.u32 %v7710, 7
        %v7712 = vsub.s32 %v7709, %v7711
        %v7713 = vrot.slane %v7706, %v7712
        %v7714 = vcombine.low %v7705, %v7713
        %v7715 = vcombine.high %v7705, %v7713
        %v7717 = vunpack.c.l.s4 1934713408
        %v7718 = vunpack.c.0.s8 %v7717
        %v7719 = vlaneseq
        %v7720 = vshrl.u32 %v7719, 7
        %v7721 = vsub.s32 %v7718, %v7720
        %v7722 = vrot.slane %v7714, %v7721
        %v7724 = vunpack.c.l.s4 1934713408
        %v7725 = vunpack.c.0.s8 %v7724
        %v7726 = vlaneseq
        %v7727 = vshrl.u32 %v7726, 7
        %v7728 = vsub.s32 %v7725, %v7727
        %v7729 = vrot.slane %v7715, %v7728
        %v7730 = vcombine.high %v7722, 0
        %v7731 = vcombine.high %v7729, 0
        %v7732 = vcombine.low %v7467, %v7483
        %v7734 = vunpack.c.l.s4 1983009808
        %v7735 = vunpack.c.0.s8 %v7734
        %v7736 = vlaneseq
        %v7737 = vshrl.u32 %v7736, 7
        %v7738 = vsub.s32 %v7735, %v7737
        %v7739 = vrot.slane %v7732, %v7738
        %v7740 = vcombine.low %v7475, %v7491
        %v7742 = vunpack.c.l.s4 1983009808
        %v7743 = vunpack.c.0.s8 %v7742
        %v7744 = vlaneseq
        %v7745 = vshrl.u32 %v7744, 7
        %v7746 = vsub.s32 %v7743, %v7745
        %v7747 = vrot.slane %v7740, %v7746
        %v7748 = vcombine.low %v7739, %v7747
        %v7749 = vcombine.high %v7739, %v7747
        %v7751 = vunpack.c.l.s4 1934713408
        %v7752 = vunpack.c.0.s8 %v7751
        %v7753 = vlaneseq
        %v7754 = vshrl.u32 %v7753, 7
        %v7755 = vsub.s32 %v7752, %v7754
        %v7756 = vrot.slane %v7748, %v7755
        %v7758 = vunpack.c.l.s4 1934713408
        %v7759 = vunpack.c.0.s8 %v7758
        %v7760 = vlaneseq
        %v7761 = vshrl.u32 %v7760, 7
        %v7762 = vsub.s32 %v7759, %v7761
        %v7763 = vrot.slane %v7749, %v7762
        %v7764 = vcombine.high %v7756, 0
        %v7765 = vcombine.high %v7763, 0
        %v7766 = vcombine.low %v7471, %v7487
        %v7768 = vunpack.c.l.s4 1983009808
        %v7769 = vunpack.c.0.s8 %v7768
        %v7770 = vlaneseq
        %v7771 = vshrl.u32 %v7770, 7
        %v7772 = vsub.s32 %v7769, %v7771
        %v7773 = vrot.slane %v7766, %v7772
        %v7774 = vcombine.low %v7479, %v7495
        %v7776 = vunpack.c.l.s4 1983009808
        %v7777 = vunpack.c.0.s8 %v7776
        %v7778 = vlaneseq
        %v7779 = vshrl.u32 %v7778, 7
        %v7780 = vsub.s32 %v7777, %v7779
        %v7781 = vrot.slane %v7774, %v7780
        %v7782 = vcombine.low %v7773, %v7781
        %v7783 = vcombine.high %v7773, %v7781
        %v7785 = vunpack.c.l.s4 1934713408
        %v7786 = vunpack.c.0.s8 %v7785
        %v7787 = vlaneseq
        %v7788 = vshrl.u32 %v7787, 7
        %v7789 = vsub.s32 %v7786, %v7788
        %v7790 = vrot.slane %v7782, %v7789
        %v7792 = vunpack.c.l.s4 1934713408
        %v7793 = vunpack.c.0.s8 %v7792
        %v7794 = vlaneseq
        %v7795 = vshrl.u32 %v7794, 7
        %v7796 = vsub.s32 %v7793, %v7795
        %v7797 = vrot.slane %v7783, %v7796
        %v7798 = vcombine.high %v7790, 0
        %v7799 = vcombine.high %v7797, 0
        %v7802 = vpack.i.b16 %v7586, %v7552
        %v7803 = vshrl.u32 %v7552, 16
        %v7804 = vshrl.u32 %v7586, 16
        %v7805 = vpack.i.b16 %v7804, %v7803
        %v7808 = vpack.i.b16 %v7594, %v7560
        %v7809 = vshrl.u32 %v7560, 16
        %v7810 = vshrl.u32 %v7594, 16
        %v7811 = vpack.i.b16 %v7810, %v7809
        %v7814 = vpack.i.b16 %v7593, %v7559
        %v7815 = vshrl.u32 %v7559, 16
        %v7816 = vshrl.u32 %v7593, 16
        %v7817 = vpack.i.b16 %v7816, %v7815
        %v7820 = vpack.i.b16 %v7595, %v7561
        %v7821 = vshrl.u32 %v7561, 16
        %v7822 = vshrl.u32 %v7595, 16
        %v7823 = vpack.i.b16 %v7822, %v7821
        %v7826 = vpack.i.b16 %v7722, %v7688
        %v7827 = vshrl.u32 %v7688, 16
        %v7828 = vshrl.u32 %v7722, 16
        %v7829 = vpack.i.b16 %v7828, %v7827
        %v7832 = vpack.i.b16 %v7730, %v7696
        %v7833 = vshrl.u32 %v7696, 16
        %v7834 = vshrl.u32 %v7730, 16
        %v7835 = vpack.i.b16 %v7834, %v7833
        %v7838 = vpack.i.b16 %v7729, %v7695
        %v7839 = vshrl.u32 %v7695, 16
        %v7840 = vshrl.u32 %v7729, 16
        %v7841 = vpack.i.b16 %v7840, %v7839
        %v7844 = vpack.i.b16 %v7731, %v7697
        %v7845 = vshrl.u32 %v7697, 16
        %v7846 = vshrl.u32 %v7731, 16
        %v7847 = vpack.i.b16 %v7846, %v7845
        %v7850 = vpack.i.b16 %v7654, %v7620
        %v7851 = vshrl.u32 %v7620, 16
        %v7852 = vshrl.u32 %v7654, 16
        %v7853 = vpack.i.b16 %v7852, %v7851
        %v7856 = vpack.i.b16 %v7662, %v7628
        %v7857 = vshrl.u32 %v7628, 16
        %v7858 = vshrl.u32 %v7662, 16
        %v7859 = vpack.i.b16 %v7858, %v7857
        %v7862 = vpack.i.b16 %v7661, %v7627
        %v7863 = vshrl.u32 %v7627, 16
        %v7864 = vshrl.u32 %v7661, 16
        %v7865 = vpack.i.b16 %v7864, %v7863
        %v7868 = vpack.i.b16 %v7663, %v7629
        %v7869 = vshrl.u32 %v7629, 16
        %v7870 = vshrl.u32 %v7663, 16
        %v7871 = vpack.i.b16 %v7870, %v7869
        %v7874 = vpack.i.b16 %v7790, %v7756
        %v7875 = vshrl.u32 %v7756, 16
        %v7876 = vshrl.u32 %v7790, 16
        %v7877 = vpack.i.b16 %v7876, %v7875
        %v7880 = vpack.i.b16 %v7798, %v7764
        %v7881 = vshrl.u32 %v7764, 16
        %v7882 = vshrl.u32 %v7798, 16
        %v7883 = vpack.i.b16 %v7882, %v7881
        %v7886 = vpack.i.b16 %v7797, %v7763
        %v7887 = vshrl.u32 %v7763, 16
        %v7888 = vshrl.u32 %v7797, 16
        %v7889 = vpack.i.b16 %v7888, %v7887
        %v7892 = vpack.i.b16 %v7799, %v7765
        %v7893 = vshrl.u32 %v7765, 16
        %v7894 = vshrl.u32 %v7799, 16
        %v7895 = vpack.i.b16 %v7894, %v7893
        %v7896 = vunpack.c.l.b16 %v7802
        %v7897 = vunpack.c.l.b16 %v7850
        %v7898 = vpack.c.b16 %v7897, %v7896
        %v7899 = vunpack.c.l.b16 %v7805
        %v7900 = vunpack.c.l.b16 %v7853
        %v7901 = vpack.c.b16 %v7900, %v7899
        %7902 = vrot.lane.b32.xlu0 %v7901, 16
        %v7903 = vpop.permute.xlu0 %7902
        %v7904 = vunpack.c.l.b16 %v7808
        %v7905 = vunpack.c.l.b16 %v7856
        %v7906 = vpack.c.b16 %v7905, %v7904
        %7907 = vrot.lane.b32.xlu0 %v7906, 32
        %v7908 = vpop.permute.xlu0 %7907
        %v7909 = vunpack.c.l.b16 %v7811
        %v7910 = vunpack.c.l.b16 %v7859
        %v7911 = vpack.c.b16 %v7910, %v7909
        %7912 = vrot.lane.b32.xlu0 %v7911, 48
        %v7913 = vpop.permute.xlu0 %7912
        %v7914 = vunpack.c.l.b16 %v7814
        %v7915 = vunpack.c.l.b16 %v7862
        %v7916 = vpack.c.b16 %v7915, %v7914
        %7917 = vrot.lane.b32.xlu0 %v7916, 64
        %v7918 = vpop.permute.xlu0 %7917
        %v7919 = vunpack.c.l.b16 %v7817
        %v7920 = vunpack.c.l.b16 %v7865
        %v7921 = vpack.c.b16 %v7920, %v7919
        %7922 = vrot.lane.b32.xlu0 %v7921, 80
        %v7923 = vpop.permute.xlu0 %7922
        %v7924 = vunpack.c.l.b16 %v7820
        %v7925 = vunpack.c.l.b16 %v7868
        %v7926 = vpack.c.b16 %v7925, %v7924
        %7927 = vrot.lane.b32.xlu0 %v7926, 96
        %v7928 = vpop.permute.xlu0 %7927
        %v7929 = vunpack.c.l.b16 %v7823
        %v7930 = vunpack.c.l.b16 %v7871
        %v7931 = vpack.c.b16 %v7930, %v7929
        %7932 = vrot.lane.b32.xlu0 %v7931, 112
        %v7933 = vpop.permute.xlu0 %7932
        %v7934 = vunpack.c.l.b16 %v7826
        %v7935 = vunpack.c.l.b16 %v7874
        %v7936 = vpack.c.b16 %v7935, %v7934
        %v7937 = vunpack.c.l.b16 %v7829
        %v7938 = vunpack.c.l.b16 %v7877
        %v7939 = vpack.c.b16 %v7938, %v7937
        %7940 = vrot.lane.b32.xlu0 %v7939, 16
        %v7941 = vpop.permute.xlu0 %7940
        %v7942 = vunpack.c.l.b16 %v7832
        %v7943 = vunpack.c.l.b16 %v7880
        %v7944 = vpack.c.b16 %v7943, %v7942
        %7945 = vrot.lane.b32.xlu0 %v7944, 32
        %v7946 = vpop.permute.xlu0 %7945
        %v7947 = vunpack.c.l.b16 %v7835
        %v7948 = vunpack.c.l.b16 %v7883
        %v7949 = vpack.c.b16 %v7948, %v7947
        %7950 = vrot.lane.b32.xlu0 %v7949, 48
        %v7951 = vpop.permute.xlu0 %7950
        %v7952 = vunpack.c.l.b16 %v7838
        %v7953 = vunpack.c.l.b16 %v7886
        %v7954 = vpack.c.b16 %v7953, %v7952
        %7955 = vrot.lane.b32.xlu0 %v7954, 64
        %v7956 = vpop.permute.xlu0 %7955
        %v7957 = vunpack.c.l.b16 %v7841
        %v7958 = vunpack.c.l.b16 %v7889
        %v7959 = vpack.c.b16 %v7958, %v7957
        %7960 = vrot.lane.b32.xlu0 %v7959, 80
        %v7961 = vpop.permute.xlu0 %7960
        %v7962 = vunpack.c.l.b16 %v7844
        %v7963 = vunpack.c.l.b16 %v7892
        %v7964 = vpack.c.b16 %v7963, %v7962
        %7965 = vrot.lane.b32.xlu0 %v7964, 96
        %v7966 = vpop.permute.xlu0 %7965
        %v7967 = vunpack.c.l.b16 %v7847
        %v7968 = vunpack.c.l.b16 %v7895
        %v7969 = vpack.c.b16 %v7968, %v7967
        %7970 = vrot.lane.b32.xlu0 %v7969, 112
        %v7971 = vpop.permute.xlu0 %7970
        %v7974 = vsel %vm1104, %v7898, %v7903
        %v7976 = vsel %vm1108, %v7974, %v7908
        %v7978 = vsel %vm1111, %v7976, %v7913
        %v7980 = vsel %vm1114, %v7978, %v7918
        %v7982 = vsel %vm1117, %v7980, %v7923
        %v7984 = vsel %vm1120, %v7982, %v7928
        %v7986 = vsel %vm1123, %v7984, %v7933
        %v7990 = vsel %vm1104, %v7936, %v7941
        %v7992 = vsel %vm1108, %v7990, %v7946
        %v7994 = vsel %vm1111, %v7992, %v7951
        %v7996 = vsel %vm1114, %v7994, %v7956
        %v7998 = vsel %vm1117, %v7996, %v7961
        %v8000 = vsel %vm1120, %v7998, %v7966
        %v8002 = vsel %vm1123, %v8000, %v7971
        %8004 = vrot.lane.b32.xlu0 %v6553, 126
        %v8005 = vpop.permute.xlu0 %8004
        %8006 = vrot.lane.b32.xlu0 %v6563, 126
        %v8007 = vpop.permute.xlu0 %8006
        %8008 = vrot.lane.b32.xlu0 %v6577, 126
        %v8009 = vpop.permute.xlu0 %8008
        %8010 = vrot.lane.b32.xlu0 %v6587, 126
        %v8011 = vpop.permute.xlu0 %8010
        %8012 = vrot.lane.b32.xlu0 %v6601, 126
        %v8013 = vpop.permute.xlu0 %8012
        %8014 = vrot.lane.b32.xlu0 %v6611, 126
        %v8015 = vpop.permute.xlu0 %8014
        %8016 = vrot.lane.b32.xlu0 %v6625, 126
        %v8017 = vpop.permute.xlu0 %8016
        %8018 = vrot.lane.b32.xlu0 %v6635, 126
        %v8019 = vpop.permute.xlu0 %8018
        %8020 = vrot.lane.b32.xlu0 %v6649, 126
        %v8021 = vpop.permute.xlu0 %8020
        %8022 = vrot.lane.b32.xlu0 %v6659, 126
        %v8023 = vpop.permute.xlu0 %8022
        %8024 = vrot.lane.b32.xlu0 %v6673, 126
        %v8025 = vpop.permute.xlu0 %8024
        %8026 = vrot.lane.b32.xlu0 %v6683, 126
        %v8027 = vpop.permute.xlu0 %8026
        %8028 = vrot.lane.b32.xlu0 %v6697, 126
        %v8029 = vpop.permute.xlu0 %8028
        %8030 = vrot.lane.b32.xlu0 %v6707, 126
        %v8031 = vpop.permute.xlu0 %8030
        %8032 = vrot.lane.b32.xlu0 %v6721, 126
        %v8033 = vpop.permute.xlu0 %8032
        %8034 = vrot.lane.b32.xlu0 %v6731, 126
        %v8035 = vpop.permute.xlu0 %8034
        %8036 = vrot.lane.b32.xlu0 %v6745, 126
        %v8037 = vpop.permute.xlu0 %8036
        %8038 = vrot.lane.b32.xlu0 %v6755, 126
        %v8039 = vpop.permute.xlu0 %8038
        %8040 = vrot.lane.b32.xlu0 %v6769, 126
        %v8041 = vpop.permute.xlu0 %8040
        %8042 = vrot.lane.b32.xlu0 %v6779, 126
        %v8043 = vpop.permute.xlu0 %8042
        %8044 = vrot.lane.b32.xlu0 %v6793, 126
        %v8045 = vpop.permute.xlu0 %8044
        %8046 = vrot.lane.b32.xlu0 %v6803, 126
        %v8047 = vpop.permute.xlu0 %8046
        %8048 = vrot.lane.b32.xlu0 %v6817, 126
        %v8049 = vpop.permute.xlu0 %8048
        %8050 = vrot.lane.b32.xlu0 %v6827, 126
        %v8051 = vpop.permute.xlu0 %8050
        %8052 = vrot.lane.b32.xlu0 %v6841, 126
        %v8053 = vpop.permute.xlu0 %8052
        %8054 = vrot.lane.b32.xlu0 %v6851, 126
        %v8055 = vpop.permute.xlu0 %8054
        %8056 = vrot.lane.b32.xlu0 %v6865, 126
        %v8057 = vpop.permute.xlu0 %8056
        %8058 = vrot.lane.b32.xlu0 %v6875, 126
        %v8059 = vpop.permute.xlu0 %8058
        %8060 = vrot.lane.b32.xlu0 %v6889, 126
        %v8061 = vpop.permute.xlu0 %8060
        %8062 = vrot.lane.b32.xlu0 %v6899, 126
        %v8063 = vpop.permute.xlu0 %8062
        %8064 = vrot.lane.b32.xlu0 %v6913, 126
        %v8065 = vpop.permute.xlu0 %8064
        %8066 = vrot.lane.b32.xlu0 %v6923, 126
        %v8067 = vpop.permute.xlu0 %8066
        %v8100 = vcombine.low %v8005, %v8021
        %v8102 = vunpack.c.l.s4 1983009808
        %v8103 = vunpack.c.0.s8 %v8102
        %v8104 = vlaneseq
        %v8105 = vshrl.u32 %v8104, 7
        %v8106 = vsub.s32 %v8103, %v8105
        %v8107 = vrot.slane %v8100, %v8106
        %v8108 = vcombine.low %v8013, %v8029
        %v8110 = vunpack.c.l.s4 1983009808
        %v8111 = vunpack.c.0.s8 %v8110
        %v8112 = vlaneseq
        %v8113 = vshrl.u32 %v8112, 7
        %v8114 = vsub.s32 %v8111, %v8113
        %v8115 = vrot.slane %v8108, %v8114
        %v8116 = vcombine.low %v8107, %v8115
        %v8117 = vcombine.high %v8107, %v8115
        %v8119 = vunpack.c.l.s4 1934713408
        %v8120 = vunpack.c.0.s8 %v8119
        %v8121 = vlaneseq
        %v8122 = vshrl.u32 %v8121, 7
        %v8123 = vsub.s32 %v8120, %v8122
        %v8124 = vrot.slane %v8116, %v8123
        %v8126 = vunpack.c.l.s4 1934713408
        %v8127 = vunpack.c.0.s8 %v8126
        %v8128 = vlaneseq
        %v8129 = vshrl.u32 %v8128, 7
        %v8130 = vsub.s32 %v8127, %v8129
        %v8131 = vrot.slane %v8117, %v8130
        %v8132 = vcombine.high %v8124, 0
        %v8133 = vcombine.high %v8131, 0
        %v8134 = vcombine.low %v8009, %v8025
        %v8136 = vunpack.c.l.s4 1983009808
        %v8137 = vunpack.c.0.s8 %v8136
        %v8138 = vlaneseq
        %v8139 = vshrl.u32 %v8138, 7
        %v8140 = vsub.s32 %v8137, %v8139
        %v8141 = vrot.slane %v8134, %v8140
        %v8142 = vcombine.low %v8017, %v8033
        %v8144 = vunpack.c.l.s4 1983009808
        %v8145 = vunpack.c.0.s8 %v8144
        %v8146 = vlaneseq
        %v8147 = vshrl.u32 %v8146, 7
        %v8148 = vsub.s32 %v8145, %v8147
        %v8149 = vrot.slane %v8142, %v8148
        %v8150 = vcombine.low %v8141, %v8149
        %v8151 = vcombine.high %v8141, %v8149
        %v8153 = vunpack.c.l.s4 1934713408
        %v8154 = vunpack.c.0.s8 %v8153
        %v8155 = vlaneseq
        %v8156 = vshrl.u32 %v8155, 7
        %v8157 = vsub.s32 %v8154, %v8156
        %v8158 = vrot.slane %v8150, %v8157
        %v8160 = vunpack.c.l.s4 1934713408
        %v8161 = vunpack.c.0.s8 %v8160
        %v8162 = vlaneseq
        %v8163 = vshrl.u32 %v8162, 7
        %v8164 = vsub.s32 %v8161, %v8163
        %v8165 = vrot.slane %v8151, %v8164
        %v8166 = vcombine.high %v8158, 0
        %v8167 = vcombine.high %v8165, 0
        %v8168 = vcombine.low %v8037, %v8053
        %v8170 = vunpack.c.l.s4 1983009808
        %v8171 = vunpack.c.0.s8 %v8170
        %v8172 = vlaneseq
        %v8173 = vshrl.u32 %v8172, 7
        %v8174 = vsub.s32 %v8171, %v8173
        %v8175 = vrot.slane %v8168, %v8174
        %v8176 = vcombine.low %v8045, %v8061
        %v8178 = vunpack.c.l.s4 1983009808
        %v8179 = vunpack.c.0.s8 %v8178
        %v8180 = vlaneseq
        %v8181 = vshrl.u32 %v8180, 7
        %v8182 = vsub.s32 %v8179, %v8181
        %v8183 = vrot.slane %v8176, %v8182
        %v8184 = vcombine.low %v8175, %v8183
        %v8185 = vcombine.high %v8175, %v8183
        %v8187 = vunpack.c.l.s4 1934713408
        %v8188 = vunpack.c.0.s8 %v8187
        %v8189 = vlaneseq
        %v8190 = vshrl.u32 %v8189, 7
        %v8191 = vsub.s32 %v8188, %v8190
        %v8192 = vrot.slane %v8184, %v8191
        %v8194 = vunpack.c.l.s4 1934713408
        %v8195 = vunpack.c.0.s8 %v8194
        %v8196 = vlaneseq
        %v8197 = vshrl.u32 %v8196, 7
        %v8198 = vsub.s32 %v8195, %v8197
        %v8199 = vrot.slane %v8185, %v8198
        %v8200 = vcombine.high %v8192, 0
        %v8201 = vcombine.high %v8199, 0
        %v8202 = vcombine.low %v8041, %v8057
        %v8204 = vunpack.c.l.s4 1983009808
        %v8205 = vunpack.c.0.s8 %v8204
        %v8206 = vlaneseq
        %v8207 = vshrl.u32 %v8206, 7
        %v8208 = vsub.s32 %v8205, %v8207
        %v8209 = vrot.slane %v8202, %v8208
        %v8210 = vcombine.low %v8049, %v8065
        %v8212 = vunpack.c.l.s4 1983009808
        %v8213 = vunpack.c.0.s8 %v8212
        %v8214 = vlaneseq
        %v8215 = vshrl.u32 %v8214, 7
        %v8216 = vsub.s32 %v8213, %v8215
        %v8217 = vrot.slane %v8210, %v8216
        %v8218 = vcombine.low %v8209, %v8217
        %v8219 = vcombine.high %v8209, %v8217
        %v8221 = vunpack.c.l.s4 1934713408
        %v8222 = vunpack.c.0.s8 %v8221
        %v8223 = vlaneseq
        %v8224 = vshrl.u32 %v8223, 7
        %v8225 = vsub.s32 %v8222, %v8224
        %v8226 = vrot.slane %v8218, %v8225
        %v8228 = vunpack.c.l.s4 1934713408
        %v8229 = vunpack.c.0.s8 %v8228
        %v8230 = vlaneseq
        %v8231 = vshrl.u32 %v8230, 7
        %v8232 = vsub.s32 %v8229, %v8231
        %v8233 = vrot.slane %v8219, %v8232
        %v8234 = vcombine.high %v8226, 0
        %v8235 = vcombine.high %v8233, 0
        %v8236 = vcombine.low %v8007, %v8023
        %v8238 = vunpack.c.l.s4 1983009808
        %v8239 = vunpack.c.0.s8 %v8238
        %v8240 = vlaneseq
        %v8241 = vshrl.u32 %v8240, 7
        %v8242 = vsub.s32 %v8239, %v8241
        %v8243 = vrot.slane %v8236, %v8242
        %v8244 = vcombine.low %v8015, %v8031
        %v8246 = vunpack.c.l.s4 1983009808
        %v8247 = vunpack.c.0.s8 %v8246
        %v8248 = vlaneseq
        %v8249 = vshrl.u32 %v8248, 7
        %v8250 = vsub.s32 %v8247, %v8249
        %v8251 = vrot.slane %v8244, %v8250
        %v8252 = vcombine.low %v8243, %v8251
        %v8253 = vcombine.high %v8243, %v8251
        %v8255 = vunpack.c.l.s4 1934713408
        %v8256 = vunpack.c.0.s8 %v8255
        %v8257 = vlaneseq
        %v8258 = vshrl.u32 %v8257, 7
        %v8259 = vsub.s32 %v8256, %v8258
        %v8260 = vrot.slane %v8252, %v8259
        %v8262 = vunpack.c.l.s4 1934713408
        %v8263 = vunpack.c.0.s8 %v8262
        %v8264 = vlaneseq
        %v8265 = vshrl.u32 %v8264, 7
        %v8266 = vsub.s32 %v8263, %v8265
        %v8267 = vrot.slane %v8253, %v8266
        %v8268 = vcombine.high %v8260, 0
        %v8269 = vcombine.high %v8267, 0
        %v8270 = vcombine.low %v8011, %v8027
        %v8272 = vunpack.c.l.s4 1983009808
        %v8273 = vunpack.c.0.s8 %v8272
        %v8274 = vlaneseq
        %v8275 = vshrl.u32 %v8274, 7
        %v8276 = vsub.s32 %v8273, %v8275
        %v8277 = vrot.slane %v8270, %v8276
        %v8278 = vcombine.low %v8019, %v8035
        %v8280 = vunpack.c.l.s4 1983009808
        %v8281 = vunpack.c.0.s8 %v8280
        %v8282 = vlaneseq
        %v8283 = vshrl.u32 %v8282, 7
        %v8284 = vsub.s32 %v8281, %v8283
        %v8285 = vrot.slane %v8278, %v8284
        %v8286 = vcombine.low %v8277, %v8285
        %v8287 = vcombine.high %v8277, %v8285
        %v8289 = vunpack.c.l.s4 1934713408
        %v8290 = vunpack.c.0.s8 %v8289
        %v8291 = vlaneseq
        %v8292 = vshrl.u32 %v8291, 7
        %v8293 = vsub.s32 %v8290, %v8292
        %v8294 = vrot.slane %v8286, %v8293
        %v8296 = vunpack.c.l.s4 1934713408
        %v8297 = vunpack.c.0.s8 %v8296
        %v8298 = vlaneseq
        %v8299 = vshrl.u32 %v8298, 7
        %v8300 = vsub.s32 %v8297, %v8299
        %v8301 = vrot.slane %v8287, %v8300
        %v8302 = vcombine.high %v8294, 0
        %v8303 = vcombine.high %v8301, 0
        %v8304 = vcombine.low %v8039, %v8055
        %v8306 = vunpack.c.l.s4 1983009808
        %v8307 = vunpack.c.0.s8 %v8306
        %v8308 = vlaneseq
        %v8309 = vshrl.u32 %v8308, 7
        %v8310 = vsub.s32 %v8307, %v8309
        %v8311 = vrot.slane %v8304, %v8310
        %v8312 = vcombine.low %v8047, %v8063
        %v8314 = vunpack.c.l.s4 1983009808
        %v8315 = vunpack.c.0.s8 %v8314
        %v8316 = vlaneseq
        %v8317 = vshrl.u32 %v8316, 7
        %v8318 = vsub.s32 %v8315, %v8317
        %v8319 = vrot.slane %v8312, %v8318
        %v8320 = vcombine.low %v8311, %v8319
        %v8321 = vcombine.high %v8311, %v8319
        %v8323 = vunpack.c.l.s4 1934713408
        %v8324 = vunpack.c.0.s8 %v8323
        %v8325 = vlaneseq
        %v8326 = vshrl.u32 %v8325, 7
        %v8327 = vsub.s32 %v8324, %v8326
        %v8328 = vrot.slane %v8320, %v8327
        %v8330 = vunpack.c.l.s4 1934713408
        %v8331 = vunpack.c.0.s8 %v8330
        %v8332 = vlaneseq
        %v8333 = vshrl.u32 %v8332, 7
        %v8334 = vsub.s32 %v8331, %v8333
        %v8335 = vrot.slane %v8321, %v8334
        %v8336 = vcombine.high %v8328, 0
        %v8337 = vcombine.high %v8335, 0
        %v8338 = vcombine.low %v8043, %v8059
        %v8340 = vunpack.c.l.s4 1983009808
        %v8341 = vunpack.c.0.s8 %v8340
        %v8342 = vlaneseq
        %v8343 = vshrl.u32 %v8342, 7
        %v8344 = vsub.s32 %v8341, %v8343
        %v8345 = vrot.slane %v8338, %v8344
        %v8346 = vcombine.low %v8051, %v8067
        %v8348 = vunpack.c.l.s4 1983009808
        %v8349 = vunpack.c.0.s8 %v8348
        %v8350 = vlaneseq
        %v8351 = vshrl.u32 %v8350, 7
        %v8352 = vsub.s32 %v8349, %v8351
        %v8353 = vrot.slane %v8346, %v8352
        %v8354 = vcombine.low %v8345, %v8353
        %v8355 = vcombine.high %v8345, %v8353
        %v8357 = vunpack.c.l.s4 1934713408
        %v8358 = vunpack.c.0.s8 %v8357
        %v8359 = vlaneseq
        %v8360 = vshrl.u32 %v8359, 7
        %v8361 = vsub.s32 %v8358, %v8360
        %v8362 = vrot.slane %v8354, %v8361
        %v8364 = vunpack.c.l.s4 1934713408
        %v8365 = vunpack.c.0.s8 %v8364
        %v8366 = vlaneseq
        %v8367 = vshrl.u32 %v8366, 7
        %v8368 = vsub.s32 %v8365, %v8367
        %v8369 = vrot.slane %v8355, %v8368
        %v8370 = vcombine.high %v8362, 0
        %v8371 = vcombine.high %v8369, 0
        %v8374 = vpack.i.b16 %v8158, %v8124
        %v8375 = vshrl.u32 %v8124, 16
        %v8376 = vshrl.u32 %v8158, 16
        %v8377 = vpack.i.b16 %v8376, %v8375
        %v8380 = vpack.i.b16 %v8166, %v8132
        %v8381 = vshrl.u32 %v8132, 16
        %v8382 = vshrl.u32 %v8166, 16
        %v8383 = vpack.i.b16 %v8382, %v8381
        %v8386 = vpack.i.b16 %v8165, %v8131
        %v8387 = vshrl.u32 %v8131, 16
        %v8388 = vshrl.u32 %v8165, 16
        %v8389 = vpack.i.b16 %v8388, %v8387
        %v8392 = vpack.i.b16 %v8167, %v8133
        %v8393 = vshrl.u32 %v8133, 16
        %v8394 = vshrl.u32 %v8167, 16
        %v8395 = vpack.i.b16 %v8394, %v8393
        %v8398 = vpack.i.b16 %v8294, %v8260
        %v8399 = vshrl.u32 %v8260, 16
        %v8400 = vshrl.u32 %v8294, 16
        %v8401 = vpack.i.b16 %v8400, %v8399
        %v8404 = vpack.i.b16 %v8302, %v8268
        %v8405 = vshrl.u32 %v8268, 16
        %v8406 = vshrl.u32 %v8302, 16
        %v8407 = vpack.i.b16 %v8406, %v8405
        %v8410 = vpack.i.b16 %v8301, %v8267
        %v8411 = vshrl.u32 %v8267, 16
        %v8412 = vshrl.u32 %v8301, 16
        %v8413 = vpack.i.b16 %v8412, %v8411
        %v8416 = vpack.i.b16 %v8303, %v8269
        %v8417 = vshrl.u32 %v8269, 16
        %v8418 = vshrl.u32 %v8303, 16
        %v8419 = vpack.i.b16 %v8418, %v8417
        %v8422 = vpack.i.b16 %v8226, %v8192
        %v8423 = vshrl.u32 %v8192, 16
        %v8424 = vshrl.u32 %v8226, 16
        %v8425 = vpack.i.b16 %v8424, %v8423
        %v8428 = vpack.i.b16 %v8234, %v8200
        %v8429 = vshrl.u32 %v8200, 16
        %v8430 = vshrl.u32 %v8234, 16
        %v8431 = vpack.i.b16 %v8430, %v8429
        %v8434 = vpack.i.b16 %v8233, %v8199
        %v8435 = vshrl.u32 %v8199, 16
        %v8436 = vshrl.u32 %v8233, 16
        %v8437 = vpack.i.b16 %v8436, %v8435
        %v8440 = vpack.i.b16 %v8235, %v8201
        %v8441 = vshrl.u32 %v8201, 16
        %v8442 = vshrl.u32 %v8235, 16
        %v8443 = vpack.i.b16 %v8442, %v8441
        %v8446 = vpack.i.b16 %v8362, %v8328
        %v8447 = vshrl.u32 %v8328, 16
        %v8448 = vshrl.u32 %v8362, 16
        %v8449 = vpack.i.b16 %v8448, %v8447
        %v8452 = vpack.i.b16 %v8370, %v8336
        %v8453 = vshrl.u32 %v8336, 16
        %v8454 = vshrl.u32 %v8370, 16
        %v8455 = vpack.i.b16 %v8454, %v8453
        %v8458 = vpack.i.b16 %v8369, %v8335
        %v8459 = vshrl.u32 %v8335, 16
        %v8460 = vshrl.u32 %v8369, 16
        %v8461 = vpack.i.b16 %v8460, %v8459
        %v8464 = vpack.i.b16 %v8371, %v8337
        %v8465 = vshrl.u32 %v8337, 16
        %v8466 = vshrl.u32 %v8371, 16
        %v8467 = vpack.i.b16 %v8466, %v8465
        %v8468 = vunpack.c.l.b16 %v8374
        %v8469 = vunpack.c.l.b16 %v8422
        %v8470 = vpack.c.b16 %v8469, %v8468
        %v8471 = vunpack.c.l.b16 %v8377
        %v8472 = vunpack.c.l.b16 %v8425
        %v8473 = vpack.c.b16 %v8472, %v8471
        %8474 = vrot.lane.b32.xlu0 %v8473, 16
        %v8475 = vpop.permute.xlu0 %8474
        %v8476 = vunpack.c.l.b16 %v8380
        %v8477 = vunpack.c.l.b16 %v8428
        %v8478 = vpack.c.b16 %v8477, %v8476
        %8479 = vrot.lane.b32.xlu0 %v8478, 32
        %v8480 = vpop.permute.xlu0 %8479
        %v8481 = vunpack.c.l.b16 %v8383
        %v8482 = vunpack.c.l.b16 %v8431
        %v8483 = vpack.c.b16 %v8482, %v8481
        %8484 = vrot.lane.b32.xlu0 %v8483, 48
        %v8485 = vpop.permute.xlu0 %8484
        %v8486 = vunpack.c.l.b16 %v8386
        %v8487 = vunpack.c.l.b16 %v8434
        %v8488 = vpack.c.b16 %v8487, %v8486
        %8489 = vrot.lane.b32.xlu0 %v8488, 64
        %v8490 = vpop.permute.xlu0 %8489
        %v8491 = vunpack.c.l.b16 %v8389
        %v8492 = vunpack.c.l.b16 %v8437
        %v8493 = vpack.c.b16 %v8492, %v8491
        %8494 = vrot.lane.b32.xlu0 %v8493, 80
        %v8495 = vpop.permute.xlu0 %8494
        %v8496 = vunpack.c.l.b16 %v8392
        %v8497 = vunpack.c.l.b16 %v8440
        %v8498 = vpack.c.b16 %v8497, %v8496
        %8499 = vrot.lane.b32.xlu0 %v8498, 96
        %v8500 = vpop.permute.xlu0 %8499
        %v8501 = vunpack.c.l.b16 %v8395
        %v8502 = vunpack.c.l.b16 %v8443
        %v8503 = vpack.c.b16 %v8502, %v8501
        %8504 = vrot.lane.b32.xlu0 %v8503, 112
        %v8505 = vpop.permute.xlu0 %8504
        %v8506 = vunpack.c.l.b16 %v8398
        %v8507 = vunpack.c.l.b16 %v8446
        %v8508 = vpack.c.b16 %v8507, %v8506
        %v8509 = vunpack.c.l.b16 %v8401
        %v8510 = vunpack.c.l.b16 %v8449
        %v8511 = vpack.c.b16 %v8510, %v8509
        %8512 = vrot.lane.b32.xlu0 %v8511, 16
        %v8513 = vpop.permute.xlu0 %8512
        %v8514 = vunpack.c.l.b16 %v8404
        %v8515 = vunpack.c.l.b16 %v8452
        %v8516 = vpack.c.b16 %v8515, %v8514
        %8517 = vrot.lane.b32.xlu0 %v8516, 32
        %v8518 = vpop.permute.xlu0 %8517
        %v8519 = vunpack.c.l.b16 %v8407
        %v8520 = vunpack.c.l.b16 %v8455
        %v8521 = vpack.c.b16 %v8520, %v8519
        %8522 = vrot.lane.b32.xlu0 %v8521, 48
        %v8523 = vpop.permute.xlu0 %8522
        %v8524 = vunpack.c.l.b16 %v8410
        %v8525 = vunpack.c.l.b16 %v8458
        %v8526 = vpack.c.b16 %v8525, %v8524
        %8527 = vrot.lane.b32.xlu0 %v8526, 64
        %v8528 = vpop.permute.xlu0 %8527
        %v8529 = vunpack.c.l.b16 %v8413
        %v8530 = vunpack.c.l.b16 %v8461
        %v8531 = vpack.c.b16 %v8530, %v8529
        %8532 = vrot.lane.b32.xlu0 %v8531, 80
        %v8533 = vpop.permute.xlu0 %8532
        %v8534 = vunpack.c.l.b16 %v8416
        %v8535 = vunpack.c.l.b16 %v8464
        %v8536 = vpack.c.b16 %v8535, %v8534
        %8537 = vrot.lane.b32.xlu0 %v8536, 96
        %v8538 = vpop.permute.xlu0 %8537
        %v8539 = vunpack.c.l.b16 %v8419
        %v8540 = vunpack.c.l.b16 %v8467
        %v8541 = vpack.c.b16 %v8540, %v8539
        %8542 = vrot.lane.b32.xlu0 %v8541, 112
        %v8543 = vpop.permute.xlu0 %8542
        %v8546 = vsel %vm1104, %v8470, %v8475
        %v8548 = vsel %vm1108, %v8546, %v8480
        %v8550 = vsel %vm1111, %v8548, %v8485
        %v8552 = vsel %vm1114, %v8550, %v8490
        %v8554 = vsel %vm1117, %v8552, %v8495
        %v8556 = vsel %vm1120, %v8554, %v8500
        %v8558 = vsel %vm1123, %v8556, %v8505
        %v8562 = vsel %vm1104, %v8508, %v8513
        %v8564 = vsel %vm1108, %v8562, %v8518
        %v8566 = vsel %vm1111, %v8564, %v8523
        %v8568 = vsel %vm1114, %v8566, %v8528
        %v8570 = vsel %vm1117, %v8568, %v8533
        %v8572 = vsel %vm1120, %v8570, %v8538
        %v8574 = vsel %vm1123, %v8572, %v8543
        %v8576 = vld [vmem:[#allocation3] sm:$0xe]
        %v8577 = vld [vmem:[#allocation3 + $0xc] sm:$0xe]
        %v8578 = vld [vmem:[#allocation3 + $0x18] sm:$0xe]
        %v8579 = vld [vmem:[#allocation3 + $0x24] sm:$0xe]
        %v8580 = vld [vmem:[#allocation3 + $0x30] sm:$0xe]
        %v8581 = vld [vmem:[#allocation3 + $0x3c] sm:$0xe]
        %v8582 = vld [vmem:[#allocation3 + $0x48] sm:$0xe]
        %v8583 = vld [vmem:[#allocation3 + $0x54] sm:$0xe]
        %v8584 = vld [vmem:[#allocation3 + $0x60] sm:$0xe]
        %v8585 = vld [vmem:[#allocation3 + $0x6c] sm:$0xe]
        %v8586 = vld [vmem:[#allocation3 + $0x78] sm:$0xe]
        %v8587 = vld [vmem:[#allocation3 + $0x84] sm:$0xe]
        %v8588 = vld [vmem:[#allocation3 + $0x90] sm:$0xe]
        %v8589 = vld [vmem:[#allocation3 + $0x9c] sm:$0xe]
        %v8590 = vld [vmem:[#allocation3 + $0xa8] sm:$0xe]
        %v8591 = vld [vmem:[#allocation3 + $0xb4] sm:$0xe]
        %v8624 = vrot.slane %v8576, 5
        %v8625 = vrot.slane %v8624, 4
        %v8626 = vrot.slane %v4841, 5
        %v8627 = vsel %vm2614, %v8625, %v8626
        %v8628 = vrot.slane %v8626, 4
        %v8629 = vrot.slane %v6524, 5
        %v8630 = vsel %vm2614, %v8628, %v8629
        %v8631 = vrot.slane %v8577, 5
        %v8632 = vrot.slane %v8631, 4
        %v8633 = vrot.slane %v4843, 5
        %v8634 = vsel %vm2614, %v8632, %v8633
        %v8635 = vrot.slane %v8633, 4
        %v8636 = vrot.slane %v6525, 5
        %v8637 = vsel %vm2614, %v8635, %v8636
        %v8638 = vrot.slane %v8578, 5
        %v8639 = vrot.slane %v8638, 4
        %v8640 = vrot.slane %v4845, 5
        %v8641 = vsel %vm2614, %v8639, %v8640
        %v8642 = vrot.slane %v8640, 4
        %v8643 = vrot.slane %v6526, 5
        %v8644 = vsel %vm2614, %v8642, %v8643
        %v8645 = vrot.slane %v8579, 5
        %v8646 = vrot.slane %v8645, 4
        %v8647 = vrot.slane %v4847, 5
        %v8648 = vsel %vm2614, %v8646, %v8647
        %v8649 = vrot.slane %v8647, 4
        %v8650 = vrot.slane %v6527, 5
        %v8651 = vsel %vm2614, %v8649, %v8650
        %v8652 = vrot.slane %v8580, 5
        %v8653 = vrot.slane %v8652, 4
        %v8654 = vrot.slane %v4849, 5
        %v8655 = vsel %vm2614, %v8653, %v8654
        %v8656 = vrot.slane %v8654, 4
        %v8657 = vrot.slane %v6528, 5
        %v8658 = vsel %vm2614, %v8656, %v8657
        %v8659 = vrot.slane %v8581, 5
        %v8660 = vrot.slane %v8659, 4
        %v8661 = vrot.slane %v4851, 5
        %v8662 = vsel %vm2614, %v8660, %v8661
        %v8663 = vrot.slane %v8661, 4
        %v8664 = vrot.slane %v6529, 5
        %v8665 = vsel %vm2614, %v8663, %v8664
        %v8666 = vrot.slane %v8582, 5
        %v8667 = vrot.slane %v8666, 4
        %v8668 = vrot.slane %v4853, 5
        %v8669 = vsel %vm2614, %v8667, %v8668
        %v8670 = vrot.slane %v8668, 4
        %v8671 = vrot.slane %v6530, 5
        %v8672 = vsel %vm2614, %v8670, %v8671
        %v8673 = vrot.slane %v8583, 5
        %v8674 = vrot.slane %v8673, 4
        %v8675 = vrot.slane %v4855, 5
        %v8676 = vsel %vm2614, %v8674, %v8675
        %v8677 = vrot.slane %v8675, 4
        %v8678 = vrot.slane %v6531, 5
        %v8679 = vsel %vm2614, %v8677, %v8678
        %v8680 = vrot.slane %v8584, 5
        %v8681 = vrot.slane %v8680, 4
        %v8682 = vrot.slane %v4857, 5
        %v8683 = vsel %vm2614, %v8681, %v8682
        %v8684 = vrot.slane %v8682, 4
        %v8685 = vrot.slane %v6532, 5
        %v8686 = vsel %vm2614, %v8684, %v8685
        %v8687 = vrot.slane %v8585, 5
        %v8688 = vrot.slane %v8687, 4
        %v8689 = vrot.slane %v4859, 5
        %v8690 = vsel %vm2614, %v8688, %v8689
        %v8691 = vrot.slane %v8689, 4
        %v8692 = vrot.slane %v6533, 5
        %v8693 = vsel %vm2614, %v8691, %v8692
        %v8694 = vrot.slane %v8586, 5
        %v8695 = vrot.slane %v8694, 4
        %v8696 = vrot.slane %v4861, 5
        %v8697 = vsel %vm2614, %v8695, %v8696
        %v8698 = vrot.slane %v8696, 4
        %v8699 = vrot.slane %v6534, 5
        %v8700 = vsel %vm2614, %v8698, %v8699
        %v8701 = vrot.slane %v8587, 5
        %v8702 = vrot.slane %v8701, 4
        %v8703 = vrot.slane %v4863, 5
        %v8704 = vsel %vm2614, %v8702, %v8703
        %v8705 = vrot.slane %v8703, 4
        %v8706 = vrot.slane %v6535, 5
        %v8707 = vsel %vm2614, %v8705, %v8706
        %v8708 = vrot.slane %v8588, 5
        %v8709 = vrot.slane %v8708, 4
        %v8710 = vrot.slane %v4865, 5
        %v8711 = vsel %vm2614, %v8709, %v8710
        %v8712 = vrot.slane %v8710, 4
        %v8713 = vrot.slane %v6536, 5
        %v8714 = vsel %vm2614, %v8712, %v8713
        %v8715 = vrot.slane %v8589, 5
        %v8716 = vrot.slane %v8715, 4
        %v8717 = vrot.slane %v4867, 5
        %v8718 = vsel %vm2614, %v8716, %v8717
        %v8719 = vrot.slane %v8717, 4
        %v8720 = vrot.slane %v6537, 5
        %v8721 = vsel %vm2614, %v8719, %v8720
        %v8722 = vrot.slane %v8590, 5
        %v8723 = vrot.slane %v8722, 4
        %v8724 = vrot.slane %v4869, 5
        %v8725 = vsel %vm2614, %v8723, %v8724
        %v8726 = vrot.slane %v8724, 4
        %v8727 = vrot.slane %v6538, 5
        %v8728 = vsel %vm2614, %v8726, %v8727
        %v8729 = vrot.slane %v8591, 5
        %v8730 = vrot.slane %v8729, 4
        %v8731 = vrot.slane %v4871, 5
        %v8732 = vsel %vm2614, %v8730, %v8731
        %v8733 = vrot.slane %v8731, 4
        %v8734 = vrot.slane %v6539, 5
        %v8735 = vsel %vm2614, %v8733, %v8734
        %v8768 = vcombine.low %v8627, %v8655
        %v8770 = vunpack.c.l.s4 1983009808
        %v8771 = vunpack.c.0.s8 %v8770
        %v8772 = vlaneseq
        %v8773 = vshrl.u32 %v8772, 7
        %v8774 = vsub.s32 %v8771, %v8773
        %v8775 = vrot.slane %v8768, %v8774
        %v8776 = vcombine.low %v8641, %v8669
        %v8778 = vunpack.c.l.s4 1983009808
        %v8779 = vunpack.c.0.s8 %v8778
        %v8780 = vlaneseq
        %v8781 = vshrl.u32 %v8780, 7
        %v8782 = vsub.s32 %v8779, %v8781
        %v8783 = vrot.slane %v8776, %v8782
        %v8784 = vcombine.low %v8775, %v8783
        %v8785 = vcombine.high %v8775, %v8783
        %v8787 = vunpack.c.l.s4 1934713408
        %v8788 = vunpack.c.0.s8 %v8787
        %v8789 = vlaneseq
        %v8790 = vshrl.u32 %v8789, 7
        %v8791 = vsub.s32 %v8788, %v8790
        %v8792 = vrot.slane %v8784, %v8791
        %v8794 = vunpack.c.l.s4 1934713408
        %v8795 = vunpack.c.0.s8 %v8794
        %v8796 = vlaneseq
        %v8797 = vshrl.u32 %v8796, 7
        %v8798 = vsub.s32 %v8795, %v8797
        %v8799 = vrot.slane %v8785, %v8798
        %v8800 = vcombine.high %v8792, 0
        %v8801 = vcombine.high %v8799, 0
        %v8802 = vcombine.low %v8634, %v8662
        %v8804 = vunpack.c.l.s4 1983009808
        %v8805 = vunpack.c.0.s8 %v8804
        %v8806 = vlaneseq
        %v8807 = vshrl.u32 %v8806, 7
        %v8808 = vsub.s32 %v8805, %v8807
        %v8809 = vrot.slane %v8802, %v8808
        %v8810 = vcombine.low %v8648, %v8676
        %v8812 = vunpack.c.l.s4 1983009808
        %v8813 = vunpack.c.0.s8 %v8812
        %v8814 = vlaneseq
        %v8815 = vshrl.u32 %v8814, 7
        %v8816 = vsub.s32 %v8813, %v8815
        %v8817 = vrot.slane %v8810, %v8816
        %v8818 = vcombine.low %v8809, %v8817
        %v8819 = vcombine.high %v8809, %v8817
        %v8821 = vunpack.c.l.s4 1934713408
        %v8822 = vunpack.c.0.s8 %v8821
        %v8823 = vlaneseq
        %v8824 = vshrl.u32 %v8823, 7
        %v8825 = vsub.s32 %v8822, %v8824
        %v8826 = vrot.slane %v8818, %v8825
        %v8828 = vunpack.c.l.s4 1934713408
        %v8829 = vunpack.c.0.s8 %v8828
        %v8830 = vlaneseq
        %v8831 = vshrl.u32 %v8830, 7
        %v8832 = vsub.s32 %v8829, %v8831
        %v8833 = vrot.slane %v8819, %v8832
        %v8834 = vcombine.high %v8826, 0
        %v8835 = vcombine.high %v8833, 0
        %v8836 = vcombine.low %v8683, %v8711
        %v8838 = vunpack.c.l.s4 1983009808
        %v8839 = vunpack.c.0.s8 %v8838
        %v8840 = vlaneseq
        %v8841 = vshrl.u32 %v8840, 7
        %v8842 = vsub.s32 %v8839, %v8841
        %v8843 = vrot.slane %v8836, %v8842
        %v8844 = vcombine.low %v8697, %v8725
        %v8846 = vunpack.c.l.s4 1983009808
        %v8847 = vunpack.c.0.s8 %v8846
        %v8848 = vlaneseq
        %v8849 = vshrl.u32 %v8848, 7
        %v8850 = vsub.s32 %v8847, %v8849
        %v8851 = vrot.slane %v8844, %v8850
        %v8852 = vcombine.low %v8843, %v8851
        %v8853 = vcombine.high %v8843, %v8851
        %v8855 = vunpack.c.l.s4 1934713408
        %v8856 = vunpack.c.0.s8 %v8855
        %v8857 = vlaneseq
        %v8858 = vshrl.u32 %v8857, 7
        %v8859 = vsub.s32 %v8856, %v8858
        %v8860 = vrot.slane %v8852, %v8859
        %v8862 = vunpack.c.l.s4 1934713408
        %v8863 = vunpack.c.0.s8 %v8862
        %v8864 = vlaneseq
        %v8865 = vshrl.u32 %v8864, 7
        %v8866 = vsub.s32 %v8863, %v8865
        %v8867 = vrot.slane %v8853, %v8866
        %v8868 = vcombine.high %v8860, 0
        %v8869 = vcombine.high %v8867, 0
        %v8870 = vcombine.low %v8690, %v8718
        %v8872 = vunpack.c.l.s4 1983009808
        %v8873 = vunpack.c.0.s8 %v8872
        %v8874 = vlaneseq
        %v8875 = vshrl.u32 %v8874, 7
        %v8876 = vsub.s32 %v8873, %v8875
        %v8877 = vrot.slane %v8870, %v8876
        %v8878 = vcombine.low %v8704, %v8732
        %v8880 = vunpack.c.l.s4 1983009808
        %v8881 = vunpack.c.0.s8 %v8880
        %v8882 = vlaneseq
        %v8883 = vshrl.u32 %v8882, 7
        %v8884 = vsub.s32 %v8881, %v8883
        %v8885 = vrot.slane %v8878, %v8884
        %v8886 = vcombine.low %v8877, %v8885
        %v8887 = vcombine.high %v8877, %v8885
        %v8889 = vunpack.c.l.s4 1934713408
        %v8890 = vunpack.c.0.s8 %v8889
        %v8891 = vlaneseq
        %v8892 = vshrl.u32 %v8891, 7
        %v8893 = vsub.s32 %v8890, %v8892
        %v8894 = vrot.slane %v8886, %v8893
        %v8896 = vunpack.c.l.s4 1934713408
        %v8897 = vunpack.c.0.s8 %v8896
        %v8898 = vlaneseq
        %v8899 = vshrl.u32 %v8898, 7
        %v8900 = vsub.s32 %v8897, %v8899
        %v8901 = vrot.slane %v8887, %v8900
        %v8902 = vcombine.high %v8894, 0
        %v8903 = vcombine.high %v8901, 0
        %v8904 = vcombine.low %v8630, %v8658
        %v8906 = vunpack.c.l.s4 1983009808
        %v8907 = vunpack.c.0.s8 %v8906
        %v8908 = vlaneseq
        %v8909 = vshrl.u32 %v8908, 7
        %v8910 = vsub.s32 %v8907, %v8909
        %v8911 = vrot.slane %v8904, %v8910
        %v8912 = vcombine.low %v8644, %v8672
        %v8914 = vunpack.c.l.s4 1983009808
        %v8915 = vunpack.c.0.s8 %v8914
        %v8916 = vlaneseq
        %v8917 = vshrl.u32 %v8916, 7
        %v8918 = vsub.s32 %v8915, %v8917
        %v8919 = vrot.slane %v8912, %v8918
        %v8920 = vcombine.low %v8911, %v8919
        %v8921 = vcombine.high %v8911, %v8919
        %v8923 = vunpack.c.l.s4 1934713408
        %v8924 = vunpack.c.0.s8 %v8923
        %v8925 = vlaneseq
        %v8926 = vshrl.u32 %v8925, 7
        %v8927 = vsub.s32 %v8924, %v8926
        %v8928 = vrot.slane %v8920, %v8927
        %v8930 = vunpack.c.l.s4 1934713408
        %v8931 = vunpack.c.0.s8 %v8930
        %v8932 = vlaneseq
        %v8933 = vshrl.u32 %v8932, 7
        %v8934 = vsub.s32 %v8931, %v8933
        %v8935 = vrot.slane %v8921, %v8934
        %v8936 = vcombine.high %v8928, 0
        %v8937 = vcombine.high %v8935, 0
        %v8938 = vcombine.low %v8637, %v8665
        %v8940 = vunpack.c.l.s4 1983009808
        %v8941 = vunpack.c.0.s8 %v8940
        %v8942 = vlaneseq
        %v8943 = vshrl.u32 %v8942, 7
        %v8944 = vsub.s32 %v8941, %v8943
        %v8945 = vrot.slane %v8938, %v8944
        %v8946 = vcombine.low %v8651, %v8679
        %v8948 = vunpack.c.l.s4 1983009808
        %v8949 = vunpack.c.0.s8 %v8948
        %v8950 = vlaneseq
        %v8951 = vshrl.u32 %v8950, 7
        %v8952 = vsub.s32 %v8949, %v8951
        %v8953 = vrot.slane %v8946, %v8952
        %v8954 = vcombine.low %v8945, %v8953
        %v8955 = vcombine.high %v8945, %v8953
        %v8957 = vunpack.c.l.s4 1934713408
        %v8958 = vunpack.c.0.s8 %v8957
        %v8959 = vlaneseq
        %v8960 = vshrl.u32 %v8959, 7
        %v8961 = vsub.s32 %v8958, %v8960
        %v8962 = vrot.slane %v8954, %v8961
        %v8964 = vunpack.c.l.s4 1934713408
        %v8965 = vunpack.c.0.s8 %v8964
        %v8966 = vlaneseq
        %v8967 = vshrl.u32 %v8966, 7
        %v8968 = vsub.s32 %v8965, %v8967
        %v8969 = vrot.slane %v8955, %v8968
        %v8970 = vcombine.high %v8962, 0
        %v8971 = vcombine.high %v8969, 0
        %v8972 = vcombine.low %v8686, %v8714
        %v8974 = vunpack.c.l.s4 1983009808
        %v8975 = vunpack.c.0.s8 %v8974
        %v8976 = vlaneseq
        %v8977 = vshrl.u32 %v8976, 7
        %v8978 = vsub.s32 %v8975, %v8977
        %v8979 = vrot.slane %v8972, %v8978
        %v8980 = vcombine.low %v8700, %v8728
        %v8982 = vunpack.c.l.s4 1983009808
        %v8983 = vunpack.c.0.s8 %v8982
        %v8984 = vlaneseq
        %v8985 = vshrl.u32 %v8984, 7
        %v8986 = vsub.s32 %v8983, %v8985
        %v8987 = vrot.slane %v8980, %v8986
        %v8988 = vcombine.low %v8979, %v8987
        %v8989 = vcombine.high %v8979, %v8987
        %v8991 = vunpack.c.l.s4 1934713408
        %v8992 = vunpack.c.0.s8 %v8991
        %v8993 = vlaneseq
        %v8994 = vshrl.u32 %v8993, 7
        %v8995 = vsub.s32 %v8992, %v8994
        %v8996 = vrot.slane %v8988, %v8995
        %v8998 = vunpack.c.l.s4 1934713408
        %v8999 = vunpack.c.0.s8 %v8998
        %v9000 = vlaneseq
        %v9001 = vshrl.u32 %v9000, 7
        %v9002 = vsub.s32 %v8999, %v9001
        %v9003 = vrot.slane %v8989, %v9002
        %v9004 = vcombine.high %v8996, 0
        %v9005 = vcombine.high %v9003, 0
        %v9006 = vcombine.low %v8693, %v8721
        %v9008 = vunpack.c.l.s4 1983009808
        %v9009 = vunpack.c.0.s8 %v9008
        %v9010 = vlaneseq
        %v9011 = vshrl.u32 %v9010, 7
        %v9012 = vsub.s32 %v9009, %v9011
        %v9013 = vrot.slane %v9006, %v9012
        %v9014 = vcombine.low %v8707, %v8735
        %v9016 = vunpack.c.l.s4 1983009808
        %v9017 = vunpack.c.0.s8 %v9016
        %v9018 = vlaneseq
        %v9019 = vshrl.u32 %v9018, 7
        %v9020 = vsub.s32 %v9017, %v9019
        %v9021 = vrot.slane %v9014, %v9020
        %v9022 = vcombine.low %v9013, %v9021
        %v9023 = vcombine.high %v9013, %v9021
        %v9025 = vunpack.c.l.s4 1934713408
        %v9026 = vunpack.c.0.s8 %v9025
        %v9027 = vlaneseq
        %v9028 = vshrl.u32 %v9027, 7
        %v9029 = vsub.s32 %v9026, %v9028
        %v9030 = vrot.slane %v9022, %v9029
        %v9032 = vunpack.c.l.s4 1934713408
        %v9033 = vunpack.c.0.s8 %v9032
        %v9034 = vlaneseq
        %v9035 = vshrl.u32 %v9034, 7
        %v9036 = vsub.s32 %v9033, %v9035
        %v9037 = vrot.slane %v9023, %v9036
        %v9038 = vcombine.high %v9030, 0
        %v9039 = vcombine.high %v9037, 0
        %v9042 = vpack.i.b16 %v8826, %v8792
        %v9043 = vshrl.u32 %v8792, 16
        %v9044 = vshrl.u32 %v8826, 16
        %v9045 = vpack.i.b16 %v9044, %v9043
        %v9048 = vpack.i.b16 %v8834, %v8800
        %v9049 = vshrl.u32 %v8800, 16
        %v9050 = vshrl.u32 %v8834, 16
        %v9051 = vpack.i.b16 %v9050, %v9049
        %v9054 = vpack.i.b16 %v8833, %v8799
        %v9055 = vshrl.u32 %v8799, 16
        %v9056 = vshrl.u32 %v8833, 16
        %v9057 = vpack.i.b16 %v9056, %v9055
        %v9060 = vpack.i.b16 %v8835, %v8801
        %v9061 = vshrl.u32 %v8801, 16
        %v9062 = vshrl.u32 %v8835, 16
        %v9063 = vpack.i.b16 %v9062, %v9061
        %v9066 = vpack.i.b16 %v8962, %v8928
        %v9067 = vshrl.u32 %v8928, 16
        %v9068 = vshrl.u32 %v8962, 16
        %v9069 = vpack.i.b16 %v9068, %v9067
        %v9072 = vpack.i.b16 %v8970, %v8936
        %v9073 = vshrl.u32 %v8936, 16
        %v9074 = vshrl.u32 %v8970, 16
        %v9075 = vpack.i.b16 %v9074, %v9073
        %v9078 = vpack.i.b16 %v8969, %v8935
        %v9079 = vshrl.u32 %v8935, 16
        %v9080 = vshrl.u32 %v8969, 16
        %v9081 = vpack.i.b16 %v9080, %v9079
        %v9084 = vpack.i.b16 %v8971, %v8937
        %v9085 = vshrl.u32 %v8937, 16
        %v9086 = vshrl.u32 %v8971, 16
        %v9087 = vpack.i.b16 %v9086, %v9085
        %v9090 = vpack.i.b16 %v8894, %v8860
        %v9091 = vshrl.u32 %v8860, 16
        %v9092 = vshrl.u32 %v8894, 16
        %v9093 = vpack.i.b16 %v9092, %v9091
        %v9096 = vpack.i.b16 %v8902, %v8868
        %v9097 = vshrl.u32 %v8868, 16
        %v9098 = vshrl.u32 %v8902, 16
        %v9099 = vpack.i.b16 %v9098, %v9097
        %v9102 = vpack.i.b16 %v8901, %v8867
        %v9103 = vshrl.u32 %v8867, 16
        %v9104 = vshrl.u32 %v8901, 16
        %v9105 = vpack.i.b16 %v9104, %v9103
        %v9108 = vpack.i.b16 %v8903, %v8869
        %v9109 = vshrl.u32 %v8869, 16
        %v9110 = vshrl.u32 %v8903, 16
        %v9111 = vpack.i.b16 %v9110, %v9109
        %v9114 = vpack.i.b16 %v9030, %v8996
        %v9115 = vshrl.u32 %v8996, 16
        %v9116 = vshrl.u32 %v9030, 16
        %v9117 = vpack.i.b16 %v9116, %v9115
        %v9120 = vpack.i.b16 %v9038, %v9004
        %v9121 = vshrl.u32 %v9004, 16
        %v9122 = vshrl.u32 %v9038, 16
        %v9123 = vpack.i.b16 %v9122, %v9121
        %v9126 = vpack.i.b16 %v9037, %v9003
        %v9127 = vshrl.u32 %v9003, 16
        %v9128 = vshrl.u32 %v9037, 16
        %v9129 = vpack.i.b16 %v9128, %v9127
        %v9132 = vpack.i.b16 %v9039, %v9005
        %v9133 = vshrl.u32 %v9005, 16
        %v9134 = vshrl.u32 %v9039, 16
        %v9135 = vpack.i.b16 %v9134, %v9133
        %v9136 = vunpack.c.l.b16 %v9042
        %v9137 = vunpack.c.l.b16 %v9090
        %v9138 = vpack.c.b16 %v9137, %v9136
        %v9139 = vunpack.c.l.b16 %v9045
        %v9140 = vunpack.c.l.b16 %v9093
        %v9141 = vpack.c.b16 %v9140, %v9139
        %9142 = vrot.lane.b32.xlu0 %v9141, 16
        %v9143 = vpop.permute.xlu0 %9142
        %v9144 = vunpack.c.l.b16 %v9048
        %v9145 = vunpack.c.l.b16 %v9096
        %v9146 = vpack.c.b16 %v9145, %v9144
        %9147 = vrot.lane.b32.xlu0 %v9146, 32
        %v9148 = vpop.permute.xlu0 %9147
        %v9149 = vunpack.c.l.b16 %v9051
        %v9150 = vunpack.c.l.b16 %v9099
        %v9151 = vpack.c.b16 %v9150, %v9149
        %9152 = vrot.lane.b32.xlu0 %v9151, 48
        %v9153 = vpop.permute.xlu0 %9152
        %v9154 = vunpack.c.l.b16 %v9054
        %v9155 = vunpack.c.l.b16 %v9102
        %v9156 = vpack.c.b16 %v9155, %v9154
        %9157 = vrot.lane.b32.xlu0 %v9156, 64
        %v9158 = vpop.permute.xlu0 %9157
        %v9159 = vunpack.c.l.b16 %v9057
        %v9160 = vunpack.c.l.b16 %v9105
        %v9161 = vpack.c.b16 %v9160, %v9159
        %9162 = vrot.lane.b32.xlu0 %v9161, 80
        %v9163 = vpop.permute.xlu0 %9162
        %v9164 = vunpack.c.l.b16 %v9060
        %v9165 = vunpack.c.l.b16 %v9108
        %v9166 = vpack.c.b16 %v9165, %v9164
        %9167 = vrot.lane.b32.xlu0 %v9166, 96
        %v9168 = vpop.permute.xlu0 %9167
        %v9169 = vunpack.c.l.b16 %v9063
        %v9170 = vunpack.c.l.b16 %v9111
        %v9171 = vpack.c.b16 %v9170, %v9169
        %9172 = vrot.lane.b32.xlu0 %v9171, 112
        %v9173 = vpop.permute.xlu0 %9172
        %v9174 = vunpack.c.l.b16 %v9066
        %v9175 = vunpack.c.l.b16 %v9114
        %v9176 = vpack.c.b16 %v9175, %v9174
        %v9177 = vunpack.c.l.b16 %v9069
        %v9178 = vunpack.c.l.b16 %v9117
        %v9179 = vpack.c.b16 %v9178, %v9177
        %9180 = vrot.lane.b32.xlu0 %v9179, 16
        %v9181 = vpop.permute.xlu0 %9180
        %v9182 = vunpack.c.l.b16 %v9072
        %v9183 = vunpack.c.l.b16 %v9120
        %v9184 = vpack.c.b16 %v9183, %v9182
        %9185 = vrot.lane.b32.xlu0 %v9184, 32
        %v9186 = vpop.permute.xlu0 %9185
        %v9187 = vunpack.c.l.b16 %v9075
        %v9188 = vunpack.c.l.b16 %v9123
        %v9189 = vpack.c.b16 %v9188, %v9187
        %9190 = vrot.lane.b32.xlu0 %v9189, 48
        %v9191 = vpop.permute.xlu0 %9190
        %v9192 = vunpack.c.l.b16 %v9078
        %v9193 = vunpack.c.l.b16 %v9126
        %v9194 = vpack.c.b16 %v9193, %v9192
        %9195 = vrot.lane.b32.xlu0 %v9194, 64
        %v9196 = vpop.permute.xlu0 %9195
        %v9197 = vunpack.c.l.b16 %v9081
        %v9198 = vunpack.c.l.b16 %v9129
        %v9199 = vpack.c.b16 %v9198, %v9197
        %9200 = vrot.lane.b32.xlu0 %v9199, 80
        %v9201 = vpop.permute.xlu0 %9200
        %v9202 = vunpack.c.l.b16 %v9084
        %v9203 = vunpack.c.l.b16 %v9132
        %v9204 = vpack.c.b16 %v9203, %v9202
        %9205 = vrot.lane.b32.xlu0 %v9204, 96
        %v9206 = vpop.permute.xlu0 %9205
        %v9207 = vunpack.c.l.b16 %v9087
        %v9208 = vunpack.c.l.b16 %v9135
        %v9209 = vpack.c.b16 %v9208, %v9207
        %9210 = vrot.lane.b32.xlu0 %v9209, 112
        %v9211 = vpop.permute.xlu0 %9210
        %v9214 = vsel %vm1104, %v9138, %v9143
        %v9216 = vsel %vm1108, %v9214, %v9148
        %v9218 = vsel %vm1111, %v9216, %v9153
        %v9220 = vsel %vm1114, %v9218, %v9158
        %v9222 = vsel %vm1117, %v9220, %v9163
        %v9224 = vsel %vm1120, %v9222, %v9168
        %v9226 = vsel %vm1123, %v9224, %v9173
        %v9230 = vsel %vm1104, %v9176, %v9181
        %v9232 = vsel %vm1108, %v9230, %v9186
        %v9234 = vsel %vm1111, %v9232, %v9191
        %v9236 = vsel %vm1114, %v9234, %v9196
        %v9238 = vsel %vm1117, %v9236, %v9201
        %v9240 = vsel %vm1120, %v9238, %v9206
        %v9242 = vsel %vm1123, %v9240, %v9211
        %9244 = vrot.lane.b32.xlu0 %v8627, 127
        %v9245 = vpop.permute.xlu0 %9244
        %9246 = vrot.lane.b32.xlu0 %v8630, 127
        %v9247 = vpop.permute.xlu0 %9246
        %9248 = vrot.lane.b32.xlu0 %v8634, 127
        %v9249 = vpop.permute.xlu0 %9248
        %9250 = vrot.lane.b32.xlu0 %v8637, 127
        %v9251 = vpop.permute.xlu0 %9250
        %9252 = vrot.lane.b32.xlu0 %v8641, 127
        %v9253 = vpop.permute.xlu0 %9252
        %9254 = vrot.lane.b32.xlu0 %v8644, 127
        %v9255 = vpop.permute.xlu0 %9254
        %9256 = vrot.lane.b32.xlu0 %v8648, 127
        %v9257 = vpop.permute.xlu0 %9256
        %9258 = vrot.lane.b32.xlu0 %v8651, 127
        %v9259 = vpop.permute.xlu0 %9258
        %9260 = vrot.lane.b32.xlu0 %v8655, 127
        %v9261 = vpop.permute.xlu0 %9260
        %9262 = vrot.lane.b32.xlu0 %v8658, 127
        %v9263 = vpop.permute.xlu0 %9262
        %9264 = vrot.lane.b32.xlu0 %v8662, 127
        %v9265 = vpop.permute.xlu0 %9264
        %9266 = vrot.lane.b32.xlu0 %v8665, 127
        %v9267 = vpop.permute.xlu0 %9266
        %9268 = vrot.lane.b32.xlu0 %v8669, 127
        %v9269 = vpop.permute.xlu0 %9268
        %9270 = vrot.lane.b32.xlu0 %v8672, 127
        %v9271 = vpop.permute.xlu0 %9270
        %9272 = vrot.lane.b32.xlu0 %v8676, 127
        %v9273 = vpop.permute.xlu0 %9272
        %9274 = vrot.lane.b32.xlu0 %v8679, 127
        %v9275 = vpop.permute.xlu0 %9274
        %9276 = vrot.lane.b32.xlu0 %v8683, 127
        %v9277 = vpop.permute.xlu0 %9276
        %9278 = vrot.lane.b32.xlu0 %v8686, 127
        %v9279 = vpop.permute.xlu0 %9278
        %9280 = vrot.lane.b32.xlu0 %v8690, 127
        %v9281 = vpop.permute.xlu0 %9280
        %9282 = vrot.lane.b32.xlu0 %v8693, 127
        %v9283 = vpop.permute.xlu0 %9282
        %9284 = vrot.lane.b32.xlu0 %v8697, 127
        %v9285 = vpop.permute.xlu0 %9284
        %9286 = vrot.lane.b32.xlu0 %v8700, 127
        %v9287 = vpop.permute.xlu0 %9286
        %9288 = vrot.lane.b32.xlu0 %v8704, 127
        %v9289 = vpop.permute.xlu0 %9288
        %9290 = vrot.lane.b32.xlu0 %v8707, 127
        %v9291 = vpop.permute.xlu0 %9290
        %9292 = vrot.lane.b32.xlu0 %v8711, 127
        %v9293 = vpop.permute.xlu0 %9292
        %9294 = vrot.lane.b32.xlu0 %v8714, 127
        %v9295 = vpop.permute.xlu0 %9294
        %9296 = vrot.lane.b32.xlu0 %v8718, 127
        %v9297 = vpop.permute.xlu0 %9296
        %9298 = vrot.lane.b32.xlu0 %v8721, 127
        %v9299 = vpop.permute.xlu0 %9298
        %9300 = vrot.lane.b32.xlu0 %v8725, 127
        %v9301 = vpop.permute.xlu0 %9300
        %9302 = vrot.lane.b32.xlu0 %v8728, 127
        %v9303 = vpop.permute.xlu0 %9302
        %9304 = vrot.lane.b32.xlu0 %v8732, 127
        %v9305 = vpop.permute.xlu0 %9304
        %9306 = vrot.lane.b32.xlu0 %v8735, 127
        %v9307 = vpop.permute.xlu0 %9306
        %v9340 = vcombine.low %v9245, %v9261
        %v9342 = vunpack.c.l.s4 1983009808
        %v9343 = vunpack.c.0.s8 %v9342
        %v9344 = vlaneseq
        %v9345 = vshrl.u32 %v9344, 7
        %v9346 = vsub.s32 %v9343, %v9345
        %v9347 = vrot.slane %v9340, %v9346
        %v9348 = vcombine.low %v9253, %v9269
        %v9350 = vunpack.c.l.s4 1983009808
        %v9351 = vunpack.c.0.s8 %v9350
        %v9352 = vlaneseq
        %v9353 = vshrl.u32 %v9352, 7
        %v9354 = vsub.s32 %v9351, %v9353
        %v9355 = vrot.slane %v9348, %v9354
        %v9356 = vcombine.low %v9347, %v9355
        %v9357 = vcombine.high %v9347, %v9355
        %v9359 = vunpack.c.l.s4 1934713408
        %v9360 = vunpack.c.0.s8 %v9359
        %v9361 = vlaneseq
        %v9362 = vshrl.u32 %v9361, 7
        %v9363 = vsub.s32 %v9360, %v9362
        %v9364 = vrot.slane %v9356, %v9363
        %v9366 = vunpack.c.l.s4 1934713408
        %v9367 = vunpack.c.0.s8 %v9366
        %v9368 = vlaneseq
        %v9369 = vshrl.u32 %v9368, 7
        %v9370 = vsub.s32 %v9367, %v9369
        %v9371 = vrot.slane %v9357, %v9370
        %v9372 = vcombine.high %v9364, 0
        %v9373 = vcombine.high %v9371, 0
        %v9374 = vcombine.low %v9249, %v9265
        %v9376 = vunpack.c.l.s4 1983009808
        %v9377 = vunpack.c.0.s8 %v9376
        %v9378 = vlaneseq
        %v9379 = vshrl.u32 %v9378, 7
        %v9380 = vsub.s32 %v9377, %v9379
        %v9381 = vrot.slane %v9374, %v9380
        %v9382 = vcombine.low %v9257, %v9273
        %v9384 = vunpack.c.l.s4 1983009808
        %v9385 = vunpack.c.0.s8 %v9384
        %v9386 = vlaneseq
        %v9387 = vshrl.u32 %v9386, 7
        %v9388 = vsub.s32 %v9385, %v9387
        %v9389 = vrot.slane %v9382, %v9388
        %v9390 = vcombine.low %v9381, %v9389
        %v9391 = vcombine.high %v9381, %v9389
        %v9393 = vunpack.c.l.s4 1934713408
        %v9394 = vunpack.c.0.s8 %v9393
        %v9395 = vlaneseq
        %v9396 = vshrl.u32 %v9395, 7
        %v9397 = vsub.s32 %v9394, %v9396
        %v9398 = vrot.slane %v9390, %v9397
        %v9400 = vunpack.c.l.s4 1934713408
        %v9401 = vunpack.c.0.s8 %v9400
        %v9402 = vlaneseq
        %v9403 = vshrl.u32 %v9402, 7
        %v9404 = vsub.s32 %v9401, %v9403
        %v9405 = vrot.slane %v9391, %v9404
        %v9406 = vcombine.high %v9398, 0
        %v9407 = vcombine.high %v9405, 0
        %v9408 = vcombine.low %v9277, %v9293
        %v9410 = vunpack.c.l.s4 1983009808
        %v9411 = vunpack.c.0.s8 %v9410
        %v9412 = vlaneseq
        %v9413 = vshrl.u32 %v9412, 7
        %v9414 = vsub.s32 %v9411, %v9413
        %v9415 = vrot.slane %v9408, %v9414
        %v9416 = vcombine.low %v9285, %v9301
        %v9418 = vunpack.c.l.s4 1983009808
        %v9419 = vunpack.c.0.s8 %v9418
        %v9420 = vlaneseq
        %v9421 = vshrl.u32 %v9420, 7
        %v9422 = vsub.s32 %v9419, %v9421
        %v9423 = vrot.slane %v9416, %v9422
        %v9424 = vcombine.low %v9415, %v9423
        %v9425 = vcombine.high %v9415, %v9423
        %v9427 = vunpack.c.l.s4 1934713408
        %v9428 = vunpack.c.0.s8 %v9427
        %v9429 = vlaneseq
        %v9430 = vshrl.u32 %v9429, 7
        %v9431 = vsub.s32 %v9428, %v9430
        %v9432 = vrot.slane %v9424, %v9431
        %v9434 = vunpack.c.l.s4 1934713408
        %v9435 = vunpack.c.0.s8 %v9434
        %v9436 = vlaneseq
        %v9437 = vshrl.u32 %v9436, 7
        %v9438 = vsub.s32 %v9435, %v9437
        %v9439 = vrot.slane %v9425, %v9438
        %v9440 = vcombine.high %v9432, 0
        %v9441 = vcombine.high %v9439, 0
        %v9442 = vcombine.low %v9281, %v9297
        %v9444 = vunpack.c.l.s4 1983009808
        %v9445 = vunpack.c.0.s8 %v9444
        %v9446 = vlaneseq
        %v9447 = vshrl.u32 %v9446, 7
        %v9448 = vsub.s32 %v9445, %v9447
        %v9449 = vrot.slane %v9442, %v9448
        %v9450 = vcombine.low %v9289, %v9305
        %v9452 = vunpack.c.l.s4 1983009808
        %v9453 = vunpack.c.0.s8 %v9452
        %v9454 = vlaneseq
        %v9455 = vshrl.u32 %v9454, 7
        %v9456 = vsub.s32 %v9453, %v9455
        %v9457 = vrot.slane %v9450, %v9456
        %v9458 = vcombine.low %v9449, %v9457
        %v9459 = vcombine.high %v9449, %v9457
        %v9461 = vunpack.c.l.s4 1934713408
        %v9462 = vunpack.c.0.s8 %v9461
        %v9463 = vlaneseq
        %v9464 = vshrl.u32 %v9463, 7
        %v9465 = vsub.s32 %v9462, %v9464
        %v9466 = vrot.slane %v9458, %v9465
        %v9468 = vunpack.c.l.s4 1934713408
        %v9469 = vunpack.c.0.s8 %v9468
        %v9470 = vlaneseq
        %v9471 = vshrl.u32 %v9470, 7
        %v9472 = vsub.s32 %v9469, %v9471
        %v9473 = vrot.slane %v9459, %v9472
        %v9474 = vcombine.high %v9466, 0
        %v9475 = vcombine.high %v9473, 0
        %v9476 = vcombine.low %v9247, %v9263
        %v9478 = vunpack.c.l.s4 1983009808
        %v9479 = vunpack.c.0.s8 %v9478
        %v9480 = vlaneseq
        %v9481 = vshrl.u32 %v9480, 7
        %v9482 = vsub.s32 %v9479, %v9481
        %v9483 = vrot.slane %v9476, %v9482
        %v9484 = vcombine.low %v9255, %v9271
        %v9486 = vunpack.c.l.s4 1983009808
        %v9487 = vunpack.c.0.s8 %v9486
        %v9488 = vlaneseq
        %v9489 = vshrl.u32 %v9488, 7
        %v9490 = vsub.s32 %v9487, %v9489
        %v9491 = vrot.slane %v9484, %v9490
        %v9492 = vcombine.low %v9483, %v9491
        %v9493 = vcombine.high %v9483, %v9491
        %v9495 = vunpack.c.l.s4 1934713408
        %v9496 = vunpack.c.0.s8 %v9495
        %v9497 = vlaneseq
        %v9498 = vshrl.u32 %v9497, 7
        %v9499 = vsub.s32 %v9496, %v9498
        %v9500 = vrot.slane %v9492, %v9499
        %v9502 = vunpack.c.l.s4 1934713408
        %v9503 = vunpack.c.0.s8 %v9502
        %v9504 = vlaneseq
        %v9505 = vshrl.u32 %v9504, 7
        %v9506 = vsub.s32 %v9503, %v9505
        %v9507 = vrot.slane %v9493, %v9506
        %v9508 = vcombine.high %v9500, 0
        %v9509 = vcombine.high %v9507, 0
        %v9510 = vcombine.low %v9251, %v9267
        %v9512 = vunpack.c.l.s4 1983009808
        %v9513 = vunpack.c.0.s8 %v9512
        %v9514 = vlaneseq
        %v9515 = vshrl.u32 %v9514, 7
        %v9516 = vsub.s32 %v9513, %v9515
        %v9517 = vrot.slane %v9510, %v9516
        %v9518 = vcombine.low %v9259, %v9275
        %v9520 = vunpack.c.l.s4 1983009808
        %v9521 = vunpack.c.0.s8 %v9520
        %v9522 = vlaneseq
        %v9523 = vshrl.u32 %v9522, 7
        %v9524 = vsub.s32 %v9521, %v9523
        %v9525 = vrot.slane %v9518, %v9524
        %v9526 = vcombine.low %v9517, %v9525
        %v9527 = vcombine.high %v9517, %v9525
        %v9529 = vunpack.c.l.s4 1934713408
        %v9530 = vunpack.c.0.s8 %v9529
        %v9531 = vlaneseq
        %v9532 = vshrl.u32 %v9531, 7
        %v9533 = vsub.s32 %v9530, %v9532
        %v9534 = vrot.slane %v9526, %v9533
        %v9536 = vunpack.c.l.s4 1934713408
        %v9537 = vunpack.c.0.s8 %v9536
        %v9538 = vlaneseq
        %v9539 = vshrl.u32 %v9538, 7
        %v9540 = vsub.s32 %v9537, %v9539
        %v9541 = vrot.slane %v9527, %v9540
        %v9542 = vcombine.high %v9534, 0
        %v9543 = vcombine.high %v9541, 0
        %v9544 = vcombine.low %v9279, %v9295
        %v9546 = vunpack.c.l.s4 1983009808
        %v9547 = vunpack.c.0.s8 %v9546
        %v9548 = vlaneseq
        %v9549 = vshrl.u32 %v9548, 7
        %v9550 = vsub.s32 %v9547, %v9549
        %v9551 = vrot.slane %v9544, %v9550
        %v9552 = vcombine.low %v9287, %v9303
        %v9554 = vunpack.c.l.s4 1983009808
        %v9555 = vunpack.c.0.s8 %v9554
        %v9556 = vlaneseq
        %v9557 = vshrl.u32 %v9556, 7
        %v9558 = vsub.s32 %v9555, %v9557
        %v9559 = vrot.slane %v9552, %v9558
        %v9560 = vcombine.low %v9551, %v9559
        %v9561 = vcombine.high %v9551, %v9559
        %v9563 = vunpack.c.l.s4 1934713408
        %v9564 = vunpack.c.0.s8 %v9563
        %v9565 = vlaneseq
        %v9566 = vshrl.u32 %v9565, 7
        %v9567 = vsub.s32 %v9564, %v9566
        %v9568 = vrot.slane %v9560, %v9567
        %v9570 = vunpack.c.l.s4 1934713408
        %v9571 = vunpack.c.0.s8 %v9570
        %v9572 = vlaneseq
        %v9573 = vshrl.u32 %v9572, 7
        %v9574 = vsub.s32 %v9571, %v9573
        %v9575 = vrot.slane %v9561, %v9574
        %v9576 = vcombine.high %v9568, 0
        %v9577 = vcombine.high %v9575, 0
        %v9578 = vcombine.low %v9283, %v9299
        %v9580 = vunpack.c.l.s4 1983009808
        %v9581 = vunpack.c.0.s8 %v9580
        %v9582 = vlaneseq
        %v9583 = vshrl.u32 %v9582, 7
        %v9584 = vsub.s32 %v9581, %v9583
        %v9585 = vrot.slane %v9578, %v9584
        %v9586 = vcombine.low %v9291, %v9307
        %v9588 = vunpack.c.l.s4 1983009808
        %v9589 = vunpack.c.0.s8 %v9588
        %v9590 = vlaneseq
        %v9591 = vshrl.u32 %v9590, 7
        %v9592 = vsub.s32 %v9589, %v9591
        %v9593 = vrot.slane %v9586, %v9592
        %v9594 = vcombine.low %v9585, %v9593
        %v9595 = vcombine.high %v9585, %v9593
        %v9597 = vunpack.c.l.s4 1934713408
        %v9598 = vunpack.c.0.s8 %v9597
        %v9599 = vlaneseq
        %v9600 = vshrl.u32 %v9599, 7
        %v9601 = vsub.s32 %v9598, %v9600
        %v9602 = vrot.slane %v9594, %v9601
        %v9604 = vunpack.c.l.s4 1934713408
        %v9605 = vunpack.c.0.s8 %v9604
        %v9606 = vlaneseq
        %v9607 = vshrl.u32 %v9606, 7
        %v9608 = vsub.s32 %v9605, %v9607
        %v9609 = vrot.slane %v9595, %v9608
        %v9610 = vcombine.high %v9602, 0
        %v9611 = vcombine.high %v9609, 0
        %v9614 = vpack.i.b16 %v9398, %v9364
        %v9615 = vshrl.u32 %v9364, 16
        %v9616 = vshrl.u32 %v9398, 16
        %v9617 = vpack.i.b16 %v9616, %v9615
        %v9620 = vpack.i.b16 %v9406, %v9372
        %v9621 = vshrl.u32 %v9372, 16
        %v9622 = vshrl.u32 %v9406, 16
        %v9623 = vpack.i.b16 %v9622, %v9621
        %v9626 = vpack.i.b16 %v9405, %v9371
        %v9627 = vshrl.u32 %v9371, 16
        %v9628 = vshrl.u32 %v9405, 16
        %v9629 = vpack.i.b16 %v9628, %v9627
        %v9632 = vpack.i.b16 %v9407, %v9373
        %v9633 = vshrl.u32 %v9373, 16
        %v9634 = vshrl.u32 %v9407, 16
        %v9635 = vpack.i.b16 %v9634, %v9633
        %v9638 = vpack.i.b16 %v9534, %v9500
        %v9639 = vshrl.u32 %v9500, 16
        %v9640 = vshrl.u32 %v9534, 16
        %v9641 = vpack.i.b16 %v9640, %v9639
        %v9644 = vpack.i.b16 %v9542, %v9508
        %v9645 = vshrl.u32 %v9508, 16
        %v9646 = vshrl.u32 %v9542, 16
        %v9647 = vpack.i.b16 %v9646, %v9645
        %v9650 = vpack.i.b16 %v9541, %v9507
        %v9651 = vshrl.u32 %v9507, 16
        %v9652 = vshrl.u32 %v9541, 16
        %v9653 = vpack.i.b16 %v9652, %v9651
        %v9656 = vpack.i.b16 %v9543, %v9509
        %v9657 = vshrl.u32 %v9509, 16
        %v9658 = vshrl.u32 %v9543, 16
        %v9659 = vpack.i.b16 %v9658, %v9657
        %v9662 = vpack.i.b16 %v9466, %v9432
        %v9663 = vshrl.u32 %v9432, 16
        %v9664 = vshrl.u32 %v9466, 16
        %v9665 = vpack.i.b16 %v9664, %v9663
        %v9668 = vpack.i.b16 %v9474, %v9440
        %v9669 = vshrl.u32 %v9440, 16
        %v9670 = vshrl.u32 %v9474, 16
        %v9671 = vpack.i.b16 %v9670, %v9669
        %v9674 = vpack.i.b16 %v9473, %v9439
        %v9675 = vshrl.u32 %v9439, 16
        %v9676 = vshrl.u32 %v9473, 16
        %v9677 = vpack.i.b16 %v9676, %v9675
        %v9680 = vpack.i.b16 %v9475, %v9441
        %v9681 = vshrl.u32 %v9441, 16
        %v9682 = vshrl.u32 %v9475, 16
        %v9683 = vpack.i.b16 %v9682, %v9681
        %v9686 = vpack.i.b16 %v9602, %v9568
        %v9687 = vshrl.u32 %v9568, 16
        %v9688 = vshrl.u32 %v9602, 16
        %v9689 = vpack.i.b16 %v9688, %v9687
        %v9692 = vpack.i.b16 %v9610, %v9576
        %v9693 = vshrl.u32 %v9576, 16
        %v9694 = vshrl.u32 %v9610, 16
        %v9695 = vpack.i.b16 %v9694, %v9693
        %v9698 = vpack.i.b16 %v9609, %v9575
        %v9699 = vshrl.u32 %v9575, 16
        %v9700 = vshrl.u32 %v9609, 16
        %v9701 = vpack.i.b16 %v9700, %v9699
        %v9704 = vpack.i.b16 %v9611, %v9577
        %v9705 = vshrl.u32 %v9577, 16
        %v9706 = vshrl.u32 %v9611, 16
        %v9707 = vpack.i.b16 %v9706, %v9705
        %v9708 = vunpack.c.l.b16 %v9614
        %v9709 = vunpack.c.l.b16 %v9662
        %v9710 = vpack.c.b16 %v9709, %v9708
        %v9711 = vunpack.c.l.b16 %v9617
        %v9712 = vunpack.c.l.b16 %v9665
        %v9713 = vpack.c.b16 %v9712, %v9711
        %9714 = vrot.lane.b32.xlu0 %v9713, 16
        %v9715 = vpop.permute.xlu0 %9714
        %v9716 = vunpack.c.l.b16 %v9620
        %v9717 = vunpack.c.l.b16 %v9668
        %v9718 = vpack.c.b16 %v9717, %v9716
        %9719 = vrot.lane.b32.xlu0 %v9718, 32
        %v9720 = vpop.permute.xlu0 %9719
        %v9721 = vunpack.c.l.b16 %v9623
        %v9722 = vunpack.c.l.b16 %v9671
        %v9723 = vpack.c.b16 %v9722, %v9721
        %9724 = vrot.lane.b32.xlu0 %v9723, 48
        %v9725 = vpop.permute.xlu0 %9724
        %v9726 = vunpack.c.l.b16 %v9626
        %v9727 = vunpack.c.l.b16 %v9674
        %v9728 = vpack.c.b16 %v9727, %v9726
        %9729 = vrot.lane.b32.xlu0 %v9728, 64
        %v9730 = vpop.permute.xlu0 %9729
        %v9731 = vunpack.c.l.b16 %v9629
        %v9732 = vunpack.c.l.b16 %v9677
        %v9733 = vpack.c.b16 %v9732, %v9731
        %9734 = vrot.lane.b32.xlu0 %v9733, 80
        %v9735 = vpop.permute.xlu0 %9734
        %v9736 = vunpack.c.l.b16 %v9632
        %v9737 = vunpack.c.l.b16 %v9680
        %v9738 = vpack.c.b16 %v9737, %v9736
        %9739 = vrot.lane.b32.xlu0 %v9738, 96
        %v9740 = vpop.permute.xlu0 %9739
        %v9741 = vunpack.c.l.b16 %v9635
        %v9742 = vunpack.c.l.b16 %v9683
        %v9743 = vpack.c.b16 %v9742, %v9741
        %9744 = vrot.lane.b32.xlu0 %v9743, 112
        %v9745 = vpop.permute.xlu0 %9744
        %v9746 = vunpack.c.l.b16 %v9638
        %v9747 = vunpack.c.l.b16 %v9686
        %v9748 = vpack.c.b16 %v9747, %v9746
        %v9749 = vunpack.c.l.b16 %v9641
        %v9750 = vunpack.c.l.b16 %v9689
        %v9751 = vpack.c.b16 %v9750, %v9749
        %9752 = vrot.lane.b32.xlu0 %v9751, 16
        %v9753 = vpop.permute.xlu0 %9752
        %v9754 = vunpack.c.l.b16 %v9644
        %v9755 = vunpack.c.l.b16 %v9692
        %v9756 = vpack.c.b16 %v9755, %v9754
        %9757 = vrot.lane.b32.xlu0 %v9756, 32
        %v9758 = vpop.permute.xlu0 %9757
        %v9759 = vunpack.c.l.b16 %v9647
        %v9760 = vunpack.c.l.b16 %v9695
        %v9761 = vpack.c.b16 %v9760, %v9759
        %9762 = vrot.lane.b32.xlu0 %v9761, 48
        %v9763 = vpop.permute.xlu0 %9762
        %v9764 = vunpack.c.l.b16 %v9650
        %v9765 = vunpack.c.l.b16 %v9698
        %v9766 = vpack.c.b16 %v9765, %v9764
        %9767 = vrot.lane.b32.xlu0 %v9766, 64
        %v9768 = vpop.permute.xlu0 %9767
        %v9769 = vunpack.c.l.b16 %v9653
        %v9770 = vunpack.c.l.b16 %v9701
        %v9771 = vpack.c.b16 %v9770, %v9769
        %9772 = vrot.lane.b32.xlu0 %v9771, 80
        %v9773 = vpop.permute.xlu0 %9772
        %v9774 = vunpack.c.l.b16 %v9656
        %v9775 = vunpack.c.l.b16 %v9704
        %v9776 = vpack.c.b16 %v9775, %v9774
        %9777 = vrot.lane.b32.xlu0 %v9776, 96
        %v9778 = vpop.permute.xlu0 %9777
        %v9779 = vunpack.c.l.b16 %v9659
        %v9780 = vunpack.c.l.b16 %v9707
        %v9781 = vpack.c.b16 %v9780, %v9779
        %9782 = vrot.lane.b32.xlu0 %v9781, 112
        %v9783 = vpop.permute.xlu0 %9782
        %v9786 = vsel %vm1104, %v9710, %v9715
        %v9788 = vsel %vm1108, %v9786, %v9720
        %v9790 = vsel %vm1111, %v9788, %v9725
        %v9792 = vsel %vm1114, %v9790, %v9730
        %v9794 = vsel %vm1117, %v9792, %v9735
        %v9796 = vsel %vm1120, %v9794, %v9740
        %v9798 = vsel %vm1123, %v9796, %v9745
        %v9802 = vsel %vm1104, %v9748, %v9753
        %v9804 = vsel %vm1108, %v9802, %v9758
        %v9806 = vsel %vm1111, %v9804, %v9763
        %v9808 = vsel %vm1114, %v9806, %v9768
        %v9810 = vsel %vm1117, %v9808, %v9773
        %v9812 = vsel %vm1120, %v9810, %v9778
        %v9814 = vsel %vm1123, %v9812, %v9783
        %9816 = vrot.lane.b32.xlu0 %v8627, 126
        %v9817 = vpop.permute.xlu0 %9816
        %9818 = vrot.lane.b32.xlu0 %v8630, 126
        %v9819 = vpop.permute.xlu0 %9818
        %9820 = vrot.lane.b32.xlu0 %v8634, 126
        %v9821 = vpop.permute.xlu0 %9820
        %9822 = vrot.lane.b32.xlu0 %v8637, 126
        %v9823 = vpop.permute.xlu0 %9822
        %9824 = vrot.lane.b32.xlu0 %v8641, 126
        %v9825 = vpop.permute.xlu0 %9824
        %9826 = vrot.lane.b32.xlu0 %v8644, 126
        %v9827 = vpop.permute.xlu0 %9826
        %9828 = vrot.lane.b32.xlu0 %v8648, 126
        %v9829 = vpop.permute.xlu0 %9828
        %9830 = vrot.lane.b32.xlu0 %v8651, 126
        %v9831 = vpop.permute.xlu0 %9830
        %9832 = vrot.lane.b32.xlu0 %v8655, 126
        %v9833 = vpop.permute.xlu0 %9832
        %9834 = vrot.lane.b32.xlu0 %v8658, 126
        %v9835 = vpop.permute.xlu0 %9834
        %9836 = vrot.lane.b32.xlu0 %v8662, 126
        %v9837 = vpop.permute.xlu0 %9836
        %9838 = vrot.lane.b32.xlu0 %v8665, 126
        %v9839 = vpop.permute.xlu0 %9838
        %9840 = vrot.lane.b32.xlu0 %v8669, 126
        %v9841 = vpop.permute.xlu0 %9840
        %9842 = vrot.lane.b32.xlu0 %v8672, 126
        %v9843 = vpop.permute.xlu0 %9842
        %9844 = vrot.lane.b32.xlu0 %v8676, 126
        %v9845 = vpop.permute.xlu0 %9844
        %9846 = vrot.lane.b32.xlu0 %v8679, 126
        %v9847 = vpop.permute.xlu0 %9846
        %9848 = vrot.lane.b32.xlu0 %v8683, 126
        %v9849 = vpop.permute.xlu0 %9848
        %9850 = vrot.lane.b32.xlu0 %v8686, 126
        %v9851 = vpop.permute.xlu0 %9850
        %9852 = vrot.lane.b32.xlu0 %v8690, 126
        %v9853 = vpop.permute.xlu0 %9852
        %9854 = vrot.lane.b32.xlu0 %v8693, 126
        %v9855 = vpop.permute.xlu0 %9854
        %9856 = vrot.lane.b32.xlu0 %v8697, 126
        %v9857 = vpop.permute.xlu0 %9856
        %9858 = vrot.lane.b32.xlu0 %v8700, 126
        %v9859 = vpop.permute.xlu0 %9858
        %9860 = vrot.lane.b32.xlu0 %v8704, 126
        %v9861 = vpop.permute.xlu0 %9860
        %9862 = vrot.lane.b32.xlu0 %v8707, 126
        %v9863 = vpop.permute.xlu0 %9862
        %9864 = vrot.lane.b32.xlu0 %v8711, 126
        %v9865 = vpop.permute.xlu0 %9864
        %9866 = vrot.lane.b32.xlu0 %v8714, 126
        %v9867 = vpop.permute.xlu0 %9866
        %9868 = vrot.lane.b32.xlu0 %v8718, 126
        %v9869 = vpop.permute.xlu0 %9868
        %9870 = vrot.lane.b32.xlu0 %v8721, 126
        %v9871 = vpop.permute.xlu0 %9870
        %9872 = vrot.lane.b32.xlu0 %v8725, 126
        %v9873 = vpop.permute.xlu0 %9872
        %9874 = vrot.lane.b32.xlu0 %v8728, 126
        %v9875 = vpop.permute.xlu0 %9874
        %9876 = vrot.lane.b32.xlu0 %v8732, 126
        %v9877 = vpop.permute.xlu0 %9876
        %9878 = vrot.lane.b32.xlu0 %v8735, 126
        %v9879 = vpop.permute.xlu0 %9878
        %v9912 = vcombine.low %v9817, %v9833
        %v9914 = vunpack.c.l.s4 1983009808
        %v9915 = vunpack.c.0.s8 %v9914
        %v9916 = vlaneseq
        %v9917 = vshrl.u32 %v9916, 7
        %v9918 = vsub.s32 %v9915, %v9917
        %v9919 = vrot.slane %v9912, %v9918
        %v9920 = vcombine.low %v9825, %v9841
        %v9922 = vunpack.c.l.s4 1983009808
        %v9923 = vunpack.c.0.s8 %v9922
        %v9924 = vlaneseq
        %v9925 = vshrl.u32 %v9924, 7
        %v9926 = vsub.s32 %v9923, %v9925
        %v9927 = vrot.slane %v9920, %v9926
        %v9928 = vcombine.low %v9919, %v9927
        %v9929 = vcombine.high %v9919, %v9927
        %v9931 = vunpack.c.l.s4 1934713408
        %v9932 = vunpack.c.0.s8 %v9931
        %v9933 = vlaneseq
        %v9934 = vshrl.u32 %v9933, 7
        %v9935 = vsub.s32 %v9932, %v9934
        %v9936 = vrot.slane %v9928, %v9935
        %v9938 = vunpack.c.l.s4 1934713408
        %v9939 = vunpack.c.0.s8 %v9938
        %v9940 = vlaneseq
        %v9941 = vshrl.u32 %v9940, 7
        %v9942 = vsub.s32 %v9939, %v9941
        %v9943 = vrot.slane %v9929, %v9942
        %v9944 = vcombine.high %v9936, 0
        %v9945 = vcombine.high %v9943, 0
        %v9946 = vcombine.low %v9821, %v9837
        %v9948 = vunpack.c.l.s4 1983009808
        %v9949 = vunpack.c.0.s8 %v9948
        %v9950 = vlaneseq
        %v9951 = vshrl.u32 %v9950, 7
        %v9952 = vsub.s32 %v9949, %v9951
        %v9953 = vrot.slane %v9946, %v9952
        %v9954 = vcombine.low %v9829, %v9845
        %v9956 = vunpack.c.l.s4 1983009808
        %v9957 = vunpack.c.0.s8 %v9956
        %v9958 = vlaneseq
        %v9959 = vshrl.u32 %v9958, 7
        %v9960 = vsub.s32 %v9957, %v9959
        %v9961 = vrot.slane %v9954, %v9960
        %v9962 = vcombine.low %v9953, %v9961
        %v9963 = vcombine.high %v9953, %v9961
        %v9965 = vunpack.c.l.s4 1934713408
        %v9966 = vunpack.c.0.s8 %v9965
        %v9967 = vlaneseq
        %v9968 = vshrl.u32 %v9967, 7
        %v9969 = vsub.s32 %v9966, %v9968
        %v9970 = vrot.slane %v9962, %v9969
        %v9972 = vunpack.c.l.s4 1934713408
        %v9973 = vunpack.c.0.s8 %v9972
        %v9974 = vlaneseq
        %v9975 = vshrl.u32 %v9974, 7
        %v9976 = vsub.s32 %v9973, %v9975
        %v9977 = vrot.slane %v9963, %v9976
        %v9978 = vcombine.high %v9970, 0
        %v9979 = vcombine.high %v9977, 0
        %v9980 = vcombine.low %v9849, %v9865
        %v9982 = vunpack.c.l.s4 1983009808
        %v9983 = vunpack.c.0.s8 %v9982
        %v9984 = vlaneseq
        %v9985 = vshrl.u32 %v9984, 7
        %v9986 = vsub.s32 %v9983, %v9985
        %v9987 = vrot.slane %v9980, %v9986
        %v9988 = vcombine.low %v9857, %v9873
        %v9990 = vunpack.c.l.s4 1983009808
        %v9991 = vunpack.c.0.s8 %v9990
        %v9992 = vlaneseq
        %v9993 = vshrl.u32 %v9992, 7
        %v9994 = vsub.s32 %v9991, %v9993
        %v9995 = vrot.slane %v9988, %v9994
        %v9996 = vcombine.low %v9987, %v9995
        %v9997 = vcombine.high %v9987, %v9995
        %v9999 = vunpack.c.l.s4 1934713408
        %v10000 = vunpack.c.0.s8 %v9999
        %v10001 = vlaneseq
        %v10002 = vshrl.u32 %v10001, 7
        %v10003 = vsub.s32 %v10000, %v10002
        %v10004 = vrot.slane %v9996, %v10003
        %v10006 = vunpack.c.l.s4 1934713408
        %v10007 = vunpack.c.0.s8 %v10006
        %v10008 = vlaneseq
        %v10009 = vshrl.u32 %v10008, 7
        %v10010 = vsub.s32 %v10007, %v10009
        %v10011 = vrot.slane %v9997, %v10010
        %v10012 = vcombine.high %v10004, 0
        %v10013 = vcombine.high %v10011, 0
        %v10014 = vcombine.low %v9853, %v9869
        %v10016 = vunpack.c.l.s4 1983009808
        %v10017 = vunpack.c.0.s8 %v10016
        %v10018 = vlaneseq
        %v10019 = vshrl.u32 %v10018, 7
        %v10020 = vsub.s32 %v10017, %v10019
        %v10021 = vrot.slane %v10014, %v10020
        %v10022 = vcombine.low %v9861, %v9877
        %v10024 = vunpack.c.l.s4 1983009808
        %v10025 = vunpack.c.0.s8 %v10024
        %v10026 = vlaneseq
        %v10027 = vshrl.u32 %v10026, 7
        %v10028 = vsub.s32 %v10025, %v10027
        %v10029 = vrot.slane %v10022, %v10028
        %v10030 = vcombine.low %v10021, %v10029
        %v10031 = vcombine.high %v10021, %v10029
        %v10033 = vunpack.c.l.s4 1934713408
        %v10034 = vunpack.c.0.s8 %v10033
        %v10035 = vlaneseq
        %v10036 = vshrl.u32 %v10035, 7
        %v10037 = vsub.s32 %v10034, %v10036
        %v10038 = vrot.slane %v10030, %v10037
        %v10040 = vunpack.c.l.s4 1934713408
        %v10041 = vunpack.c.0.s8 %v10040
        %v10042 = vlaneseq
        %v10043 = vshrl.u32 %v10042, 7
        %v10044 = vsub.s32 %v10041, %v10043
        %v10045 = vrot.slane %v10031, %v10044
        %v10046 = vcombine.high %v10038, 0
        %v10047 = vcombine.high %v10045, 0
        %v10048 = vcombine.low %v9819, %v9835
        %v10050 = vunpack.c.l.s4 1983009808
        %v10051 = vunpack.c.0.s8 %v10050
        %v10052 = vlaneseq
        %v10053 = vshrl.u32 %v10052, 7
        %v10054 = vsub.s32 %v10051, %v10053
        %v10055 = vrot.slane %v10048, %v10054
        %v10056 = vcombine.low %v9827, %v9843
        %v10058 = vunpack.c.l.s4 1983009808
        %v10059 = vunpack.c.0.s8 %v10058
        %v10060 = vlaneseq
        %v10061 = vshrl.u32 %v10060, 7
        %v10062 = vsub.s32 %v10059, %v10061
        %v10063 = vrot.slane %v10056, %v10062
        %v10064 = vcombine.low %v10055, %v10063
        %v10065 = vcombine.high %v10055, %v10063
        %v10067 = vunpack.c.l.s4 1934713408
        %v10068 = vunpack.c.0.s8 %v10067
        %v10069 = vlaneseq
        %v10070 = vshrl.u32 %v10069, 7
        %v10071 = vsub.s32 %v10068, %v10070
        %v10072 = vrot.slane %v10064, %v10071
        %v10074 = vunpack.c.l.s4 1934713408
        %v10075 = vunpack.c.0.s8 %v10074
        %v10076 = vlaneseq
        %v10077 = vshrl.u32 %v10076, 7
        %v10078 = vsub.s32 %v10075, %v10077
        %v10079 = vrot.slane %v10065, %v10078
        %v10080 = vcombine.high %v10072, 0
        %v10081 = vcombine.high %v10079, 0
        %v10082 = vcombine.low %v9823, %v9839
        %v10084 = vunpack.c.l.s4 1983009808
        %v10085 = vunpack.c.0.s8 %v10084
        %v10086 = vlaneseq
        %v10087 = vshrl.u32 %v10086, 7
        %v10088 = vsub.s32 %v10085, %v10087
        %v10089 = vrot.slane %v10082, %v10088
        %v10090 = vcombine.low %v9831, %v9847
        %v10092 = vunpack.c.l.s4 1983009808
        %v10093 = vunpack.c.0.s8 %v10092
        %v10094 = vlaneseq
        %v10095 = vshrl.u32 %v10094, 7
        %v10096 = vsub.s32 %v10093, %v10095
        %v10097 = vrot.slane %v10090, %v10096
        %v10098 = vcombine.low %v10089, %v10097
        %v10099 = vcombine.high %v10089, %v10097
        %v10101 = vunpack.c.l.s4 1934713408
        %v10102 = vunpack.c.0.s8 %v10101
        %v10103 = vlaneseq
        %v10104 = vshrl.u32 %v10103, 7
        %v10105 = vsub.s32 %v10102, %v10104
        %v10106 = vrot.slane %v10098, %v10105
        %v10108 = vunpack.c.l.s4 1934713408
        %v10109 = vunpack.c.0.s8 %v10108
        %v10110 = vlaneseq
        %v10111 = vshrl.u32 %v10110, 7
        %v10112 = vsub.s32 %v10109, %v10111
        %v10113 = vrot.slane %v10099, %v10112
        %v10114 = vcombine.high %v10106, 0
        %v10115 = vcombine.high %v10113, 0
        %v10116 = vcombine.low %v9851, %v9867
        %v10118 = vunpack.c.l.s4 1983009808
        %v10119 = vunpack.c.0.s8 %v10118
        %v10120 = vlaneseq
        %v10121 = vshrl.u32 %v10120, 7
        %v10122 = vsub.s32 %v10119, %v10121
        %v10123 = vrot.slane %v10116, %v10122
        %v10124 = vcombine.low %v9859, %v9875
        %v10126 = vunpack.c.l.s4 1983009808
        %v10127 = vunpack.c.0.s8 %v10126
        %v10128 = vlaneseq
        %v10129 = vshrl.u32 %v10128, 7
        %v10130 = vsub.s32 %v10127, %v10129
        %v10131 = vrot.slane %v10124, %v10130
        %v10132 = vcombine.low %v10123, %v10131
        %v10133 = vcombine.high %v10123, %v10131
        %v10135 = vunpack.c.l.s4 1934713408
        %v10136 = vunpack.c.0.s8 %v10135
        %v10137 = vlaneseq
        %v10138 = vshrl.u32 %v10137, 7
        %v10139 = vsub.s32 %v10136, %v10138
        %v10140 = vrot.slane %v10132, %v10139
        %v10142 = vunpack.c.l.s4 1934713408
        %v10143 = vunpack.c.0.s8 %v10142
        %v10144 = vlaneseq
        %v10145 = vshrl.u32 %v10144, 7
        %v10146 = vsub.s32 %v10143, %v10145
        %v10147 = vrot.slane %v10133, %v10146
        %v10148 = vcombine.high %v10140, 0
        %v10149 = vcombine.high %v10147, 0
        %v10150 = vcombine.low %v9855, %v9871
        %v10152 = vunpack.c.l.s4 1983009808
        %v10153 = vunpack.c.0.s8 %v10152
        %v10154 = vlaneseq
        %v10155 = vshrl.u32 %v10154, 7
        %v10156 = vsub.s32 %v10153, %v10155
        %v10157 = vrot.slane %v10150, %v10156
        %v10158 = vcombine.low %v9863, %v9879
        %v10160 = vunpack.c.l.s4 1983009808
        %v10161 = vunpack.c.0.s8 %v10160
        %v10162 = vlaneseq
        %v10163 = vshrl.u32 %v10162, 7
        %v10164 = vsub.s32 %v10161, %v10163
        %v10165 = vrot.slane %v10158, %v10164
        %v10166 = vcombine.low %v10157, %v10165
        %v10167 = vcombine.high %v10157, %v10165
        %v10169 = vunpack.c.l.s4 1934713408
        %v10170 = vunpack.c.0.s8 %v10169
        %v10171 = vlaneseq
        %v10172 = vshrl.u32 %v10171, 7
        %v10173 = vsub.s32 %v10170, %v10172
        %v10174 = vrot.slane %v10166, %v10173
        %v10176 = vunpack.c.l.s4 1934713408
        %v10177 = vunpack.c.0.s8 %v10176
        %v10178 = vlaneseq
        %v10179 = vshrl.u32 %v10178, 7
        %v10180 = vsub.s32 %v10177, %v10179
        %v10181 = vrot.slane %v10167, %v10180
        %v10182 = vcombine.high %v10174, 0
        %v10183 = vcombine.high %v10181, 0
        %v10186 = vpack.i.b16 %v9970, %v9936
        %v10187 = vshrl.u32 %v9936, 16
        %v10188 = vshrl.u32 %v9970, 16
        %v10189 = vpack.i.b16 %v10188, %v10187
        %v10192 = vpack.i.b16 %v9978, %v9944
        %v10193 = vshrl.u32 %v9944, 16
        %v10194 = vshrl.u32 %v9978, 16
        %v10195 = vpack.i.b16 %v10194, %v10193
        %v10198 = vpack.i.b16 %v9977, %v9943
        %v10199 = vshrl.u32 %v9943, 16
        %v10200 = vshrl.u32 %v9977, 16
        %v10201 = vpack.i.b16 %v10200, %v10199
        %v10204 = vpack.i.b16 %v9979, %v9945
        %v10205 = vshrl.u32 %v9945, 16
        %v10206 = vshrl.u32 %v9979, 16
        %v10207 = vpack.i.b16 %v10206, %v10205
        %v10210 = vpack.i.b16 %v10106, %v10072
        %v10211 = vshrl.u32 %v10072, 16
        %v10212 = vshrl.u32 %v10106, 16
        %v10213 = vpack.i.b16 %v10212, %v10211
        %v10216 = vpack.i.b16 %v10114, %v10080
        %v10217 = vshrl.u32 %v10080, 16
        %v10218 = vshrl.u32 %v10114, 16
        %v10219 = vpack.i.b16 %v10218, %v10217
        %v10222 = vpack.i.b16 %v10113, %v10079
        %v10223 = vshrl.u32 %v10079, 16
        %v10224 = vshrl.u32 %v10113, 16
        %v10225 = vpack.i.b16 %v10224, %v10223
        %v10228 = vpack.i.b16 %v10115, %v10081
        %v10229 = vshrl.u32 %v10081, 16
        %v10230 = vshrl.u32 %v10115, 16
        %v10231 = vpack.i.b16 %v10230, %v10229
        %v10234 = vpack.i.b16 %v10038, %v10004
        %v10235 = vshrl.u32 %v10004, 16
        %v10236 = vshrl.u32 %v10038, 16
        %v10237 = vpack.i.b16 %v10236, %v10235
        %v10240 = vpack.i.b16 %v10046, %v10012
        %v10241 = vshrl.u32 %v10012, 16
        %v10242 = vshrl.u32 %v10046, 16
        %v10243 = vpack.i.b16 %v10242, %v10241
        %v10246 = vpack.i.b16 %v10045, %v10011
        %v10247 = vshrl.u32 %v10011, 16
        %v10248 = vshrl.u32 %v10045, 16
        %v10249 = vpack.i.b16 %v10248, %v10247
        %v10252 = vpack.i.b16 %v10047, %v10013
        %v10253 = vshrl.u32 %v10013, 16
        %v10254 = vshrl.u32 %v10047, 16
        %v10255 = vpack.i.b16 %v10254, %v10253
        %v10258 = vpack.i.b16 %v10174, %v10140
        %v10259 = vshrl.u32 %v10140, 16
        %v10260 = vshrl.u32 %v10174, 16
        %v10261 = vpack.i.b16 %v10260, %v10259
        %v10264 = vpack.i.b16 %v10182, %v10148
        %v10265 = vshrl.u32 %v10148, 16
        %v10266 = vshrl.u32 %v10182, 16
        %v10267 = vpack.i.b16 %v10266, %v10265
        %v10270 = vpack.i.b16 %v10181, %v10147
        %v10271 = vshrl.u32 %v10147, 16
        %v10272 = vshrl.u32 %v10181, 16
        %v10273 = vpack.i.b16 %v10272, %v10271
        %v10276 = vpack.i.b16 %v10183, %v10149
        %v10277 = vshrl.u32 %v10149, 16
        %v10278 = vshrl.u32 %v10183, 16
        %v10279 = vpack.i.b16 %v10278, %v10277
        %v10280 = vunpack.c.l.b16 %v10186
        %v10281 = vunpack.c.l.b16 %v10234
        %v10282 = vpack.c.b16 %v10281, %v10280
        %v10283 = vunpack.c.l.b16 %v10189
        %v10284 = vunpack.c.l.b16 %v10237
        %v10285 = vpack.c.b16 %v10284, %v10283
        %10286 = vrot.lane.b32.xlu0 %v10285, 16
        %v10287 = vpop.permute.xlu0 %10286
        %v10288 = vunpack.c.l.b16 %v10192
        %v10289 = vunpack.c.l.b16 %v10240
        %v10290 = vpack.c.b16 %v10289, %v10288
        %10291 = vrot.lane.b32.xlu0 %v10290, 32
        %v10292 = vpop.permute.xlu0 %10291
        %v10293 = vunpack.c.l.b16 %v10195
        %v10294 = vunpack.c.l.b16 %v10243
        %v10295 = vpack.c.b16 %v10294, %v10293
        %10296 = vrot.lane.b32.xlu0 %v10295, 48
        %v10297 = vpop.permute.xlu0 %10296
        %v10298 = vunpack.c.l.b16 %v10198
        %v10299 = vunpack.c.l.b16 %v10246
        %v10300 = vpack.c.b16 %v10299, %v10298
        %10301 = vrot.lane.b32.xlu0 %v10300, 64
        %v10302 = vpop.permute.xlu0 %10301
        %v10303 = vunpack.c.l.b16 %v10201
        %v10304 = vunpack.c.l.b16 %v10249
        %v10305 = vpack.c.b16 %v10304, %v10303
        %10306 = vrot.lane.b32.xlu0 %v10305, 80
        %v10307 = vpop.permute.xlu0 %10306
        %v10308 = vunpack.c.l.b16 %v10204
        %v10309 = vunpack.c.l.b16 %v10252
        %v10310 = vpack.c.b16 %v10309, %v10308
        %10311 = vrot.lane.b32.xlu0 %v10310, 96
        %v10312 = vpop.permute.xlu0 %10311
        %v10313 = vunpack.c.l.b16 %v10207
        %v10314 = vunpack.c.l.b16 %v10255
        %v10315 = vpack.c.b16 %v10314, %v10313
        %10316 = vrot.lane.b32.xlu0 %v10315, 112
        %v10317 = vpop.permute.xlu0 %10316
        %v10318 = vunpack.c.l.b16 %v10210
        %v10319 = vunpack.c.l.b16 %v10258
        %v10320 = vpack.c.b16 %v10319, %v10318
        %v10321 = vunpack.c.l.b16 %v10213
        %v10322 = vunpack.c.l.b16 %v10261
        %v10323 = vpack.c.b16 %v10322, %v10321
        %10324 = vrot.lane.b32.xlu0 %v10323, 16
        %v10325 = vpop.permute.xlu0 %10324
        %v10326 = vunpack.c.l.b16 %v10216
        %v10327 = vunpack.c.l.b16 %v10264
        %v10328 = vpack.c.b16 %v10327, %v10326
        %10329 = vrot.lane.b32.xlu0 %v10328, 32
        %v10330 = vpop.permute.xlu0 %10329
        %v10331 = vunpack.c.l.b16 %v10219
        %v10332 = vunpack.c.l.b16 %v10267
        %v10333 = vpack.c.b16 %v10332, %v10331
        %10334 = vrot.lane.b32.xlu0 %v10333, 48
        %v10335 = vpop.permute.xlu0 %10334
        %v10336 = vunpack.c.l.b16 %v10222
        %v10337 = vunpack.c.l.b16 %v10270
        %v10338 = vpack.c.b16 %v10337, %v10336
        %10339 = vrot.lane.b32.xlu0 %v10338, 64
        %v10340 = vpop.permute.xlu0 %10339
        %v10341 = vunpack.c.l.b16 %v10225
        %v10342 = vunpack.c.l.b16 %v10273
        %v10343 = vpack.c.b16 %v10342, %v10341
        %10344 = vrot.lane.b32.xlu0 %v10343, 80
        %v10345 = vpop.permute.xlu0 %10344
        %v10346 = vunpack.c.l.b16 %v10228
        %v10347 = vunpack.c.l.b16 %v10276
        %v10348 = vpack.c.b16 %v10347, %v10346
        %10349 = vrot.lane.b32.xlu0 %v10348, 96
        %v10350 = vpop.permute.xlu0 %10349
        %v10351 = vunpack.c.l.b16 %v10231
        %v10352 = vunpack.c.l.b16 %v10279
        %v10353 = vpack.c.b16 %v10352, %v10351
        %10354 = vrot.lane.b32.xlu0 %v10353, 112
        %v10355 = vpop.permute.xlu0 %10354
        %v10358 = vsel %vm1104, %v10282, %v10287
        %v10360 = vsel %vm1108, %v10358, %v10292
        %v10362 = vsel %vm1111, %v10360, %v10297
        %v10364 = vsel %vm1114, %v10362, %v10302
        %v10366 = vsel %vm1117, %v10364, %v10307
        %v10368 = vsel %vm1120, %v10366, %v10312
        %v10370 = vsel %vm1123, %v10368, %v10317
        %v10374 = vsel %vm1104, %v10320, %v10325
        %v10376 = vsel %vm1108, %v10374, %v10330
        %v10378 = vsel %vm1111, %v10376, %v10335
        %v10380 = vsel %vm1114, %v10378, %v10340
        %v10382 = vsel %vm1117, %v10380, %v10345
        %v10384 = vsel %vm1120, %v10382, %v10350
        %v10386 = vsel %vm1123, %v10384, %v10355
        %v10388 = vld [vmem:[%s5] sm:$0xff]
        %v10389 = vld [vmem:[%s5 + $0x8] sm:$0xff]
        %v10390 = vld [vmem:[%s6] sm:$0xff]
        %v10391 = vld [vmem:[%s6 + $0x8] sm:$0xff]
        %10393 = vset.pattern.permute.xlu0 0
        %10394 = vperm.xlu0 %10393, %v10390
        %v10395 = vpop.permute.xlu0 %10394
        %10398 = vset.pattern.permute.xlu0 0
        %10399 = vperm.xlu0 %10398, %v10391
        %v10400 = vpop.permute.xlu0 %10399
        %v10404 = vunpack.c.l.b16 %v10388
        %v10405 = vunpack.c.h.b16 %v10388
        %v10406 = vunpack.c.l.b16 %v10389
        %v10407 = vunpack.c.h.b16 %v10389
        %v10408 = vpack.c.b16 %v10406, %v10404
        %v10409 = vpack.c.b16 %v10407, %v10405
        %v10412 = vsel %vm1104, %v10409, 0
        %10414 = vmatprep.subr.bf16.mxu0 %v5346
        %10415 = vmatpush1.bf16.msra.mxu0 %v5330
        %10416 = vmatprep.subr.bf16.mxu0 %v5950
        %10417 = vmatpush1.bf16.msra.mxu0 %v5934
        %10418 = vmatprep.subr.bf16.mxu0 %v6522
        %10419 = vmatpush1.bf16.msra.mxu0 %v6506
        %10420 = vmatprep.subr.bf16.mxu0 %v7430
        %10421 = vmatpush1.bf16.msra.mxu0 %v7414
        %10422 = vmatprep.subr.bf16.mxu0 %v8002
        %10423 = vmatpush1.bf16.msra.mxu0 %v7986
        %10424 = vmatprep.subr.bf16.mxu0 %v8574
        %10425 = vmatpush1.bf16.msra.mxu0 %v8558
        %10426 = vmatprep.subr.bf16.mxu0 %v9242
        %10427 = vmatpush1.bf16.msra.mxu0 %v9226
        %10428 = vmatprep.subr.bf16.mxu0 %v9814
        %10429 = vmatpush1.bf16.msra.mxu0 %v9798
        %10430 = vmatprep.subr.bf16.mxu0 %v10386
        %10431 = vmatpush1.bf16.msra.mxu0 %v10370
        %10432 = vmatprep.subr.bf16.mxu0 0
        %10433 = vmatpush1.bf16.msra.mxu0 0
        %10434 = vmatprep.subr.bf16.mxu0 0
        %10435 = vmatpush1.bf16.msra.mxu0 0
        %10436 = vmatprep.subr.bf16.mxu0 0
        %10437 = vmatpush1.bf16.msra.mxu0 0
        %10438 = vmatprep.subr.bf16.mxu0 0
        %10439 = vmatpush1.bf16.msra.mxu0 0
        %10440 = vmatprep.subr.bf16.mxu0 0
        %10441 = vmatpush1.bf16.msra.mxu0 0
        %10442 = vmatprep.subr.bf16.mxu0 0
        %10443 = vmatpush1.bf16.msra.mxu0 0
        %10444 = vmatprep.subr.bf16.mxu0 0
        %10445 = vmatpush1.bf16.msra.mxu0 0
        %10446 = vmatprep.mubr.bf16.mxu0 %v10412
        %10447 = vmatmul.mubr.bf16.gmra.mrb[0].mxu0 %v10408
        %v10448 = vpop.f32.mrb[0].mxu0
        %v10449 = vadd.f32 %v10395, %v10448
        %v10450 = vpop.f32.mrb[0].mxu0
        %v10451 = vadd.f32 %v10395, %v10450
        %v10452 = vpop.f32.mrb[0].mxu0
        %v10453 = vadd.f32 %v10400, %v10452
        %v10454 = vpop.f32.mrb[0].mxu0
        %v10455 = vadd.f32 %v10400, %v10454
        %10456 = vdwg.mxu0
        %10457 = vst [vmem:[%s296] sm:$0xff] %v10449
        %10458 = vst [vmem:[%s296 + $0x8] sm:$0xff] %v10451
        %10459 = vst [vmem:[%s296 + $0x10] sm:$0xff] %v10453
        %10460 = vst [vmem:[%s296 + $0x18] sm:$0xff] %v10455
        %s10461 = sand.u32 %s184, 1
        %s10462 = scalar_lea.sflag [#allocation6], %s10461
        %s10463 = sand.u32 %s184, 1
        %s10464 = smul.addr %s10463, 32
        %s10465 = scalar_lea.vmem [#allocation7], %s10464
        // Predicated region
        $region53: #{tpu_custom_call.1} parent=47 // pred_check
          %p10466 = pneg %p194
        $region54: #{tpu_custom_call.1} parent=47 // pred_check_branch
          %10468 = sbr.rel (%p10466) target = $region56
        $region55: #{tpu_custom_call.1} parent=47 // pred_region
          %s10470 = ssub.s32 512, 512
          %10471 = vsyncadd %s10462, %s10470
          %s10472 = smul.addr %s24, 4
          %s10473 = smul.addr %s10472, 128
          %s10474 = scalar_lea.hbm %s7, %s10473
          %s10475 = sshll.u32 %s10465, 4
          %s10476 = int_to_ptr.vmem [resolvable:$true] %s10475
          %10481 = dma.vmem_to_hbm [thread:$0]  %s10476, 512, %s10474, %s10462, 256, 256, 16
        $region56: #{tpu_custom_call.1} parent=47 // pred_fallthru
          _
      $region48: #{tpu_custom_call.1} parent=5 // pred_fallthru
        _
      %p10482 = scmp.le.s32.totalorder 2, %s19
      // Predicated region
      $region57: #{tpu_custom_call.1} parent=5 // pred_check
        %p10483 = pneg %p10482
      $region58: #{tpu_custom_call.1} parent=5 // pred_check_branch
        %10485 = sbr.rel (%p10483) target = $region60
      $region59: #{tpu_custom_call.1} parent=5 // pred_region
        %s10486 = ssub.s32 %s19, 2
        // Predicated region
        $region61: #{tpu_custom_call.1} parent=59 // pred_check
          %p10487 = pneg %p200
        $region62: #{tpu_custom_call.1} parent=59 // pred_check_branch
          %10489 = sbr.rel (%p10487) target = $region64
        $region63: #{tpu_custom_call.1} parent=59 // pred_region
          %s10490 = sand.u32 %s185, 1
          %s10491 = scalar_lea.sflag [#allocation6], %s10490
          %s10492 = sand.u32 %s185, 1
          %s10493 = smul.addr %s10492, 32
          %s10494 = scalar_lea.vmem [#allocation7], %s10493
          %10495 = dma.done %s10491, 512
        $region64: #{tpu_custom_call.1} parent=59 // pred_fallthru
          _
      $region60: #{tpu_custom_call.1} parent=5 // pred_fallthru
        _
    $region6: #{tpu_custom_call.1} parent=1 // loop_footer
      %s23 = sadd.s32 1, %s19
    $region7: #{tpu_custom_call.1} parent=1 // loop_footer_branch
      %18 = sbr.rel target = $region3
    $region8: #{tpu_custom_call.1} parent=1 // loop_exit
      _
    %10496 = vsyncpa [#allocation5], 1
    %s10497 = scalar_lea.sflag [#allocation5], 1
    %10498 = vsyncpa %s10497, 1
    %10499 = vsyncpa [#allocation6], 1
    %s10500 = scalar_lea.sflag [#allocation6], 1
    %10501 = vsyncpa %s10500, 1

</llo_original>
